<compile_context>
chip_gen: v6e
topology: v6e:2x2x1
jax: 0.10.0
libtpu: 0.0.40
codegen_flags: <defaults>
</compile_context>

<pallas_src>
import functools

import jax
import jax.numpy as jnp
from jax.experimental import pallas as pl
from jax.experimental.pallas import tpu as pltpu

# ---- model hyper-parameters (options.model.*) --------------------------------
HIDDEN = 64          # options.model.hidden_size
IMG_EMB = 32         # options.model.image_embedding
DEC_LAYERS = 2       # options.model.decoder_layers
PE_FREQS = 10        # positional encoding: d -> d*(1+2*10)
POINT_DIM = 3
PARAM_DIM = 7
POINT_PE_DIM = POINT_DIM * (1 + 2 * PE_FREQS)   # 63
CAM_PE_DIM = PARAM_DIM * (1 + 2 * PE_FREQS)     # 147
POS_DIM = POINT_PE_DIM + CAM_PE_DIM             # 210 == Decoder.fc_p.in_features


# ---- glue: positional encoding (train_utils.positional_encoding) -------------
def positional_encoding(x):
    feats = [x]
    for k in range(PE_FREQS):
        feats.append(jnp.sin((2.0 ** k) * jnp.pi * x))
        feats.append(jnp.cos((2.0 ** k) * jnp.pi * x))
    return jnp.concatenate(feats, axis=-1)


def _chain_dtype():
    # bf16 merger/elementwise temporaries only on chips with bf16 VALUs
    # (v6e, v7x); v5e and earlier keep f32 vector math (no bf16 VPU).
    try:
        kind = jax.devices()[0].device_kind.lower()
    except Exception:
        return jnp.float32
    return jnp.bfloat16 if any(t in kind for t in ("v6", "v7", "7x")) else jnp.float32


# ---- fused Pallas kernel: Decoder (fc_p|fc_z, 2x ResnetBlockFC, fc_out[:, :H])
#                           + Merger (block0, view-max, block1-split, view-max)
def _fused_kernel(pe_ref, vb_ref, wpt_ref, w_ref, b_ref, out_ref,
                  *, n_views, tile_p, hidden, chain_dtype):
    f32, bf16 = jnp.float32, jnp.bfloat16
    cdt = chain_dtype
    N, TP, H = n_views, tile_p, hidden
    R = N * TP

    def mxu(a, w, b=None, out_dtype=None):
        y = jnp.dot(a.astype(bf16), w, preferred_element_type=f32)
        if b is not None:
            y = y + b
        return y.astype(out_dtype or cdt)

    # ---- Decoder first layer (fused fc_p | fc_z) -----------------------------
    # Point part (K=63) computed ONCE per point and reused by every view; the
    # per-view part (fc_p cam-PE columns + fc_z + both biases) arrives as a tiny
    # precomputed (N, H) row matrix and is broadcast-added.
    pts_term = jnp.dot(pe_ref[...], wpt_ref[...],
                       preferred_element_type=f32)                       # (TP, H) f32
    net = (pts_term[None, :, :] + vb_ref[...][:, None, :]).reshape(R, H)  # (R, H) f32

    # ---- 2x ResnetBlockFC (size_in == size_out -> identity shortcut) ---------
    # Residual trunk kept f32 for accuracy; matmul feeds are bf16 (MXU) anyway.
    for i in range(DEC_LAYERS):
        h = jax.nn.relu(mxu(jax.nn.relu(net), w_ref[2 * i], b_ref[2 * i]))
        net = net + mxu(h, w_ref[2 * i + 1], b_ref[2 * i + 1], out_dtype=f32)

    # ---- Decoder fc_out (weight pre-sliced to its first H columns) -----------
    occ = mxu(jax.nn.relu(net), w_ref[4], b_ref[4])                      # (R, H)

    # ---- Merger block 0 + view max --------------------------------------------
    m0 = mxu(jax.nn.relu(occ), w_ref[5], b_ref[5])                       # (R, H)
    pooled0 = jnp.max(m0.reshape(N, TP, H), axis=0)                      # (TP, H)

    # ---- Merger block 1: relu(cat([m0, pooled0_bcast])) @ wm1
    #      = relu(m0) @ wm1_top + relu(pooled0) @ wm1_bot + bm1,
    #      and the view-independent second term commutes with the view max.
    top = mxu(jax.nn.relu(m0), w_ref[6]).reshape(N, TP, H)
    pooled1 = (jnp.max(top, axis=0).astype(f32)
               + mxu(jax.nn.relu(pooled0), w_ref[7], b_ref[6], out_dtype=f32))

    out_ref[...] = pooled1.astype(out_ref.dtype)                         # (TP, H) bf16


def _pick_tile_p(p_pad, batch):
    # Largest tile first (fewer grid steps amortize the ~0.35us/step overhead and
    # the 64x64 MXU weight pushes), but keep >= 2 total grid steps so both v7x
    # TensorCores (and megacore sharding) get work.
    for tp in (2048, 1024, 512, 256, 128):
        if p_pad % tp == 0 and batch * (p_pad // tp) >= 2:
            return tp
    return min(p_pad, 128)   # p_pad is always a multiple of 128


def fused_pallas(pts_pe, view_rows, kp):
    """pts_pe: (B, P, 63) bf16; view_rows: (B, N, H) f32 -> pooled (B, P, H) bf16."""
    B, P, Fp = pts_pe.shape
    N = view_rows.shape[1]
    H = HIDDEN

    # Pad P to a multiple of 128 so block shapes stay aligned and bounded even for
    # awkward point counts (padded rows are dropped below).
    P_pad = ((P + 127) // 128) * 128
    if P_pad != P:
        pts_pe = jnp.pad(pts_pe, ((0, 0), (0, P_pad - P), (0, 0)))
    TP = _pick_tile_p(P_pad, B)
    grid = (B, P_pad // TP)

    kernel = functools.partial(_fused_kernel, n_views=N, tile_p=TP, hidden=H,
                               chain_dtype=_chain_dtype())

    const2 = lambda b, pt: (0, 0)
    const3 = lambda b, pt: (0, 0, 0)
    in_specs = [
        pl.BlockSpec((None, TP, Fp), lambda b, pt: (b, pt, 0)),   # point-PE tile
        pl.BlockSpec((None, N, H), lambda b, pt: (b, 0, 0)),      # per-view rows
        pl.BlockSpec(kp["w_pt"].shape, const2),                   # (63, H)   bf16
        pl.BlockSpec(kp["w_slab"].shape, const3),                 # (8, H, H) bf16
        pl.BlockSpec(kp["b_slab"].shape, const3),                 # (7, 1, H) f32
    ]
    out_spec = pl.BlockSpec((None, TP, H), lambda b, pt: (b, pt, 0))

    flops = (2 * B * P_pad * Fp * H                # shared point matmul
             + 2 * B * N * P_pad * 7 * H * H       # 7 HxH matmuls per point-view
             + 2 * B * P_pad * H * H)              # view-independent wm1_bot term
    bytes_accessed = (pts_pe.size * 2 + view_rows.size * 4
                      + kp["w_pt"].size * 2 + kp["w_slab"].size * 2
                      + kp["b_slab"].size * 4 + B * P_pad * H * 2)

    out = pl.pallas_call(
        kernel,
        out_shape=jax.ShapeDtypeStruct((B, P_pad, H), jnp.bfloat16),
        grid_spec=pltpu.PrefetchScalarGridSpec(
            num_scalar_prefetch=0,
            grid=grid,
            in_specs=in_specs,
            out_specs=out_spec,
        ),
        compiler_params=pltpu.CompilerParams(
            dimension_semantics=("parallel", "parallel"),
            vmem_limit_bytes=32 * 1024 * 1024),
        cost_estimate=pl.CostEstimate(
            flops=int(flops), transcendentals=0,
            bytes_accessed=int(bytes_accessed)),
    )(pts_pe, view_rows, kp["w_pt"], kp["w_slab"], kp["b_slab"])
    return out[:, :P] if P_pad != P else out


# ---- weight preparation (hoist: build once, reuse every forward step) ---------
def prepare_kernel_params(params):
    assert DEC_LAYERS == 2
    f32, bf16 = jnp.float32, jnp.bfloat16
    H, H2 = HIDDEN, HIDDEN // 2

    # fc_p point-PE rows embedded in a (63, H) weight whose last H/2 columns are
    # zero (the fc_z half of `net` comes from the per-view rows).
    w_pt = jnp.zeros((POINT_PE_DIM, H), f32).at[:, :H2].set(
        params["wp"][:POINT_PE_DIM])

    wo = params["wo"][:, :H]           # Decoder.fc_out: only first H cols survive
    bo = params["bo"][:, :H]
    wm1_top = params["wm1"][:H]        # Merger block-1 split (per-view | pooled)
    wm1_bot = params["wm1"][H:]

    w_slab = jnp.stack([params["w0"][0], params["w1"][0],
                        params["w0"][1], params["w1"][1],
                        wo, params["wm0"], wm1_top, wm1_bot]).astype(bf16)  # (8,H,H)
    b_slab = jnp.stack([params["b0"][0], params["b1"][0],
                        params["b0"][1], params["b1"][1],
                        bo, params["bm0"], params["bm1"]]).astype(f32)      # (7,1,H)

    return {
        "w_pt": w_pt.astype(bf16),
        "w_slab": w_slab,
        "b_slab": b_slab,
        # wrapper-side pieces for the tiny per-view rows:
        "wp_cam": params["wp"][POINT_PE_DIM:].astype(bf16),   # (147, H/2)
        "bp": params["bp"].astype(f32),
        "wz": params["wz"].astype(bf16),
        "bz": params["bz"].astype(f32),
    }


def _view_rows(cam_pe, z, kp):
    """Per-view (point-independent) decoder-input rows, (B, N, H) f32."""
    f32, bf16 = jnp.float32, jnp.bfloat16
    row_p = jnp.dot(cam_pe.astype(bf16), kp["wp_cam"],
                    preferred_element_type=f32) + kp["bp"]
    row_z = jnp.dot(z.astype(bf16), kp["wz"],
                    preferred_element_type=f32) + kp["bz"]
    return jnp.concatenate([row_p, row_z], axis=-1)


# ---- pure-JAX reference (torch formulation: full broadcast, full fc_out, cat) --
def _fused_ref(pts_pe, cam_pe, z, params):
    B, P, _ = pts_pe.shape
    N = cam_pe.shape[1]
    H = HIDDEN
    f32, bf16 = jnp.float32, jnp.bfloat16

    def mm(a, w, b=None):
        y = jnp.dot(a.astype(bf16), w.astype(bf16), preferred_element_type=f32)
        return y if b is None else y + b

    pos = jnp.concatenate(
        [jnp.broadcast_to(pts_pe[:, None], (B, N, P, POINT_PE_DIM)),
         jnp.broadcast_to(cam_pe[:, :, None], (B, N, P, CAM_PE_DIM))],
        axis=-1).reshape(B * N * P, POS_DIM)
    zb = jnp.broadcast_to(z[:, :, None], (B, N, P, IMG_EMB)).reshape(B * N * P, IMG_EMB)

    net = jnp.concatenate([mm(pos, params["wp"], params["bp"]),
                           mm(zb, params["wz"], params["bz"])], axis=-1)
    for i in range(DEC_LAYERS):
        h = jax.nn.relu(net)
        h = jax.nn.relu(mm(h, params["w0"][i], params["b0"][i]))
        net = net + mm(h, params["w1"][i], params["b1"][i])
    occ = mm(jax.nn.relu(net), params["wo"], params["bo"])[:, :H]     # full fc_out, slice

    m0 = mm(jax.nn.relu(occ), params["wm0"], params["bm0"]).reshape(B, N, P, H)
    pooled0 = m0.max(axis=1)
    cat = jnp.concatenate([m0, jnp.broadcast_to(pooled0[:, None], m0.shape)], axis=-1)
    m1 = mm(jax.nn.relu(cat).reshape(B * N * P, 2 * H),
            params["wm1"], params["bm1"]).reshape(B, N, P, H)
    return m1.max(axis=1)                                             # (B, P, H) f32


# ---- full model forward (glue + fused kernel) ----------------------------------
def model_forward(imgs, points, matricies, cam_params, num_imgs, params,
                  kp=None, use_pallas=True):
    B = imgs.shape[0]
    N = num_imgs
    del matricies    # consumed only by the (stubbed) external image encoder
    if kp is None:
        kp = prepare_kernel_params(params)   # hoist out of the step when possible

    # TODO(synk): CNN.Image_Encoder is external and not provided; stand-in encoder
    # = global average pool + linear projection -> one embedding per view.  The
    # per-view (point-independent) z is what allows the fc_z de-duplication; a real
    # per-point feature sampler would need a (B, N, P, IMG_EMB) kernel operand.
    feat = imgs[:, :N].mean(axis=(3, 4))                           # (B, N, C)
    z = feat @ params["w_enc"] + params["b_enc"]                   # (B, N, IMG_EMB)

    pts_pe = positional_encoding(points)                           # (B, P, 63)
    cam_pe = positional_encoding(cam_params[:, :N])                # (B, N, 147)

    if use_pallas:
        vrows = _view_rows(cam_pe, z, kp)                          # (B, N, H) f32
        pooled = fused_pallas(pts_pe.astype(jnp.bfloat16), vrows, kp)  # (B,P,H) bf16
    else:
        pooled = _fused_ref(pts_pe, cam_pe, z, params)             # (B, P, H) f32

    # Merger.fc_out (H -> 1) kept in XLA so the kernel's store stays H-lanes wide.
    pred = jax.nn.relu(pooled.astype(jnp.float32)) @ params["w_mout"] + params["b_mout"]
    return pred[..., 0]


# ---- deterministic parameter init ----------------------------------------------
def init_params(key, img_channels=3):
    keys = list(jax.random.split(key, 64))
    it = iter(keys)

    def lin(d_in, d_out):
        w = jax.random.normal(next(it), (d_in, d_out), jnp.float32) / jnp.sqrt(d_in)
        b = jax.random.normal(next(it), (1, d_out), jnp.float32) * 0.01
        return w, b

    p = {}
    p["w_enc"], p["b_enc"] = lin(img_channels, IMG_EMB)              # encoder stub
    p["wp"], p["bp"] = lin(POS_DIM, HIDDEN // 2)                     # Decoder.fc_p
    p["wz"], p["bz"] = lin(IMG_EMB, HIDDEN // 2)                     # Decoder.fc_z
    p["w0"], p["b0"], p["w1"], p["b1"] = [], [], [], []
    for _ in range(DEC_LAYERS):                                      # ResnetBlockFC
        w0, b0 = lin(HIDDEN, HIDDEN)
        # NOTE: torch zero-inits fc_1.weight; random weights are used here so the
        # fc_1 matmul path of the kernel is actually exercised.
        w1, b1 = lin(HIDDEN, HIDDEN)
        p["w0"].append(w0); p["b0"].append(b0)
        p["w1"].append(w1); p["b1"].append(b1)
    p["wo"], p["bo"] = lin(HIDDEN, 2 * HIDDEN)                       # Decoder.fc_out
    p["wm0"], p["bm0"] = lin(HIDDEN, HIDDEN)                         # Merger.blocks[0]
    p["wm1"], p["bm1"] = lin(2 * HIDDEN, HIDDEN)                     # Merger.blocks[1]
    p["w_mout"], p["b_mout"] = lin(HIDDEN, 1)                        # Merger.fc_out
    return p


if __name__ == "__main__":
    key = jax.random.PRNGKey(0)
    pkey, ikey, ptkey, mkey, ckey = jax.random.split(key, 5)

    B, N, C, Hi, Wi = 2, 2, 3, 16, 16
    P = 512                                       # grid = (B, P // TP) = (2, 1)
    params = init_params(pkey, img_channels=C)
    kp = prepare_kernel_params(params)            # hoisted: built once, reused

    imgs = jax.random.normal(ikey, (B, N, C, Hi, Wi), jnp.float32)
    points = jax.random.normal(ptkey, (B, P, POINT_DIM), jnp.float32)
    matricies = jax.random.normal(mkey, (B, N, 3, 4), jnp.float32)
    cam_params = jax.random.normal(ckey, (B, N, PARAM_DIM), jnp.float32)

    pred = model_forward(imgs, points, matricies, cam_params, N, params,
                         kp=kp, use_pallas=True)
    pred = jax.block_until_ready(pred)

    ref = model_forward(imgs, points, matricies, cam_params, N, params,
                        kp=kp, use_pallas=False)
    ref = jax.block_until_ready(ref)

    assert pred.shape == (B, P), pred.shape
    err = float(jnp.abs(pred - ref).max())
    assert jnp.allclose(pred, ref, atol=5e-2, rtol=5e-2), f"max abs err={err}"
    print("KERNEL_OK")
</pallas_src>

<mosaic_0001>
module attributes {stable_mosaic.version = 11 : i64} {
  func.func @_fused_kernel(%arg0: i32, %arg1: i32, %arg2: memref<1x512x63xbf16, #tpu.memory_space<vmem>>, %arg3: memref<1x2x64xf32, #tpu.memory_space<vmem>>, %arg4: memref<63x64xbf16, #tpu.memory_space<vmem>>, %arg5: memref<8x64x64xbf16, #tpu.memory_space<vmem>>, %arg6: memref<7x1x64xf32, #tpu.memory_space<vmem>>, %arg7: memref<1x512x64xbf16, #tpu.memory_space<vmem>>) attributes {dimension_semantics = [#tpu.dimension_semantics<parallel>, #tpu.dimension_semantics<parallel>], iteration_bounds = array<i64: 2, 1>, scalar_prefetch = 0 : i64, scratch_operands = 0 : i64, tpu.core_type = #tpu.core_type<tc>, window_params = [{transform_indices = @transform_0, window_bounds = array<i64: 1, 512, 63>}, {transform_indices = @transform_1, window_bounds = array<i64: 1, 2, 64>}, {pipeline_mode = #tpu.pipeline_mode<synchronous>, transform_indices = @transform_2, window_bounds = array<i64: 63, 64>}, {pipeline_mode = #tpu.pipeline_mode<synchronous>, transform_indices = @transform_3, window_bounds = array<i64: 8, 64, 64>}, {pipeline_mode = #tpu.pipeline_mode<synchronous>, transform_indices = @transform_4, window_bounds = array<i64: 7, 1, 64>}, {transform_indices = @transform_5, window_bounds = array<i64: 1, 512, 64>}]} {
    %c0 = arith.constant 0 : index
    %c0_0 = arith.constant 0 : index
    %c0_1 = arith.constant 0 : index
    %0 = vector.load %arg2[%c0, %c0_0, %c0_1] : memref<1x512x63xbf16, #tpu.memory_space<vmem>>, vector<1x512x63xbf16>
    %1 = vector.shape_cast %0 : vector<1x512x63xbf16> to vector<512x63xbf16>
    %c0_2 = arith.constant 0 : index
    %c0_3 = arith.constant 0 : index
    %2 = vector.load %arg4[%c0_2, %c0_3] : memref<63x64xbf16, #tpu.memory_space<vmem>>, vector<63x64xbf16>
    %cst = arith.constant dense<0.000000e+00> : vector<512x64xf32>
    %3 = tpu.matmul %1, %2, %cst {dimension_numbers = #tpu.dot_dimension_numbers<[1], [0], [0], [1], [0, 0, 1, 1], [], []>} : vector<512x63xbf16>, vector<63x64xbf16>, vector<512x64xf32> -> vector<512x64xf32>
    %4 = vector.shape_cast %3 : vector<512x64xf32> to vector<1x512x64xf32>
    %c0_4 = arith.constant 0 : index
    %c0_5 = arith.constant 0 : index
    %c0_6 = arith.constant 0 : index
    %5 = vector.load %arg3[%c0_4, %c0_5, %c0_6] : memref<1x2x64xf32, #tpu.memory_space<vmem>>, vector<1x2x64xf32>
    %6 = vector.shape_cast %5 : vector<1x2x64xf32> to vector<2x64xf32>
    %7 = vector.shape_cast %6 : vector<2x64xf32> to vector<2x1x64xf32>
    %8 = vector.broadcast %4 : vector<1x512x64xf32> to vector<2x512x64xf32>
    %9 = vector.broadcast %7 : vector<2x1x64xf32> to vector<2x512x64xf32>
    %10 = arith.addf %8, %9 : vector<2x512x64xf32>
    %11 = vector.shape_cast %10 : vector<2x512x64xf32> to vector<1024x64xf32>
    %cst_7 = arith.constant 0.000000e+00 : f32
    %12 = vector.broadcast %cst_7 : f32 to vector<1024x64xf32>
    %13 = arith.maximumf %11, %12 : vector<1024x64xf32>
    %c0_8 = arith.constant 0 : index
    %c0_9 = arith.constant 0 : index
    %c0_10 = arith.constant 0 : index
    %14 = vector.load %arg5[%c0_8, %c0_9, %c0_10] : memref<8x64x64xbf16, #tpu.memory_space<vmem>>, vector<1x64x64xbf16>
    %15 = vector.shape_cast %14 : vector<1x64x64xbf16> to vector<64x64xbf16>
    %c0_11 = arith.constant 0 : index
    %c0_12 = arith.constant 0 : index
    %c0_13 = arith.constant 0 : index
    %16 = vector.load %arg6[%c0_11, %c0_12, %c0_13] : memref<7x1x64xf32, #tpu.memory_space<vmem>>, vector<1x1x64xf32>
    %17 = vector.shape_cast %16 : vector<1x1x64xf32> to vector<1x64xf32>
    %18 = arith.truncf %13 : vector<1024x64xf32> to vector<1024x64xbf16>
    %cst_14 = arith.constant dense<0.000000e+00> : vector<1024x64xf32>
    %19 = tpu.matmul %18, %15, %cst_14 {dimension_numbers = #tpu.dot_dimension_numbers<[1], [0], [0], [1], [0, 0, 1, 1], [], []>} : vector<1024x64xbf16>, vector<64x64xbf16>, vector<1024x64xf32> -> vector<1024x64xf32>
    %20 = vector.broadcast %17 : vector<1x64xf32> to vector<1024x64xf32>
    %21 = arith.addf %19, %20 : vector<1024x64xf32>
    %cst_15 = arith.constant 0.000000e+00 : f32
    %22 = vector.broadcast %cst_15 : f32 to vector<1024x64xf32>
    %23 = arith.maximumf %21, %22 : vector<1024x64xf32>
    %c1 = arith.constant 1 : index
    %c0_16 = arith.constant 0 : index
    %c0_17 = arith.constant 0 : index
    %24 = vector.load %arg5[%c1, %c0_16, %c0_17] : memref<8x64x64xbf16, #tpu.memory_space<vmem>>, vector<1x64x64xbf16>
    %25 = vector.shape_cast %24 : vector<1x64x64xbf16> to vector<64x64xbf16>
    %c1_18 = arith.constant 1 : index
    %c0_19 = arith.constant 0 : index
    %c0_20 = arith.constant 0 : index
    %26 = vector.load %arg6[%c1_18, %c0_19, %c0_20] : memref<7x1x64xf32, #tpu.memory_space<vmem>>, vector<1x1x64xf32>
    %27 = vector.shape_cast %26 : vector<1x1x64xf32> to vector<1x64xf32>
    %28 = arith.truncf %23 : vector<1024x64xf32> to vector<1024x64xbf16>
    %cst_21 = arith.constant dense<0.000000e+00> : vector<1024x64xf32>
    %29 = tpu.matmul %28, %25, %cst_21 {dimension_numbers = #tpu.dot_dimension_numbers<[1], [0], [0], [1], [0, 0, 1, 1], [], []>} : vector<1024x64xbf16>, vector<64x64xbf16>, vector<1024x64xf32> -> vector<1024x64xf32>
    %30 = vector.broadcast %27 : vector<1x64xf32> to vector<1024x64xf32>
    %31 = arith.addf %29, %30 : vector<1024x64xf32>
    %32 = arith.addf %11, %31 : vector<1024x64xf32>
    %cst_22 = arith.constant 0.000000e+00 : f32
    %33 = vector.broadcast %cst_22 : f32 to vector<1024x64xf32>
    %34 = arith.maximumf %32, %33 : vector<1024x64xf32>
    %c2 = arith.constant 2 : index
    %c0_23 = arith.constant 0 : index
    %c0_24 = arith.constant 0 : index
    %35 = vector.load %arg5[%c2, %c0_23, %c0_24] : memref<8x64x64xbf16, #tpu.memory_space<vmem>>, vector<1x64x64xbf16>
    %36 = vector.shape_cast %35 : vector<1x64x64xbf16> to vector<64x64xbf16>
    %c2_25 = arith.constant 2 : index
    %c0_26 = arith.constant 0 : index
    %c0_27 = arith.constant 0 : index
    %37 = vector.load %arg6[%c2_25, %c0_26, %c0_27] : memref<7x1x64xf32, #tpu.memory_space<vmem>>, vector<1x1x64xf32>
    %38 = vector.shape_cast %37 : vector<1x1x64xf32> to vector<1x64xf32>
    %39 = arith.truncf %34 : vector<1024x64xf32> to vector<1024x64xbf16>
    %cst_28 = arith.constant dense<0.000000e+00> : vector<1024x64xf32>
    %40 = tpu.matmul %39, %36, %cst_28 {dimension_numbers = #tpu.dot_dimension_numbers<[1], [0], [0], [1], [0, 0, 1, 1], [], []>} : vector<1024x64xbf16>, vector<64x64xbf16>, vector<1024x64xf32> -> vector<1024x64xf32>
    %41 = vector.broadcast %38 : vector<1x64xf32> to vector<1024x64xf32>
    %42 = arith.addf %40, %41 : vector<1024x64xf32>
    %cst_29 = arith.constant 0.000000e+00 : f32
    %43 = vector.broadcast %cst_29 : f32 to vector<1024x64xf32>
    %44 = arith.maximumf %42, %43 : vector<1024x64xf32>
    %c3 = arith.constant 3 : index
    %c0_30 = arith.constant 0 : index
    %c0_31 = arith.constant 0 : index
    %45 = vector.load %arg5[%c3, %c0_30, %c0_31] : memref<8x64x64xbf16, #tpu.memory_space<vmem>>, vector<1x64x64xbf16>
    %46 = vector.shape_cast %45 : vector<1x64x64xbf16> to vector<64x64xbf16>
    %c3_32 = arith.constant 3 : index
    %c0_33 = arith.constant 0 : index
    %c0_34 = arith.constant 0 : index
    %47 = vector.load %arg6[%c3_32, %c0_33, %c0_34] : memref<7x1x64xf32, #tpu.memory_space<vmem>>, vector<1x1x64xf32>
    %48 = vector.shape_cast %47 : vector<1x1x64xf32> to vector<1x64xf32>
    %49 = arith.truncf %44 : vector<1024x64xf32> to vector<1024x64xbf16>
    %cst_35 = arith.constant dense<0.000000e+00> : vector<1024x64xf32>
    %50 = tpu.matmul %49, %46, %cst_35 {dimension_numbers = #tpu.dot_dimension_numbers<[1], [0], [0], [1], [0, 0, 1, 1], [], []>} : vector<1024x64xbf16>, vector<64x64xbf16>, vector<1024x64xf32> -> vector<1024x64xf32>
    %51 = vector.broadcast %48 : vector<1x64xf32> to vector<1024x64xf32>
    %52 = arith.addf %50, %51 : vector<1024x64xf32>
    %53 = arith.addf %32, %52 : vector<1024x64xf32>
    %cst_36 = arith.constant 0.000000e+00 : f32
    %54 = vector.broadcast %cst_36 : f32 to vector<1024x64xf32>
    %55 = arith.maximumf %53, %54 : vector<1024x64xf32>
    %c4 = arith.constant 4 : index
    %c0_37 = arith.constant 0 : index
    %c0_38 = arith.constant 0 : index
    %56 = vector.load %arg5[%c4, %c0_37, %c0_38] : memref<8x64x64xbf16, #tpu.memory_space<vmem>>, vector<1x64x64xbf16>
    %57 = vector.shape_cast %56 : vector<1x64x64xbf16> to vector<64x64xbf16>
    %c4_39 = arith.constant 4 : index
    %c0_40 = arith.constant 0 : index
    %c0_41 = arith.constant 0 : index
    %58 = vector.load %arg6[%c4_39, %c0_40, %c0_41] : memref<7x1x64xf32, #tpu.memory_space<vmem>>, vector<1x1x64xf32>
    %59 = vector.shape_cast %58 : vector<1x1x64xf32> to vector<1x64xf32>
    %60 = arith.truncf %55 : vector<1024x64xf32> to vector<1024x64xbf16>
    %cst_42 = arith.constant dense<0.000000e+00> : vector<1024x64xf32>
    %61 = tpu.matmul %60, %57, %cst_42 {dimension_numbers = #tpu.dot_dimension_numbers<[1], [0], [0], [1], [0, 0, 1, 1], [], []>} : vector<1024x64xbf16>, vector<64x64xbf16>, vector<1024x64xf32> -> vector<1024x64xf32>
    %62 = vector.broadcast %59 : vector<1x64xf32> to vector<1024x64xf32>
    %63 = arith.addf %61, %62 : vector<1024x64xf32>
    %cst_43 = arith.constant 0.000000e+00 : f32
    %64 = vector.broadcast %cst_43 : f32 to vector<1024x64xf32>
    %65 = arith.maximumf %63, %64 : vector<1024x64xf32>
    %c5 = arith.constant 5 : index
    %c0_44 = arith.constant 0 : index
    %c0_45 = arith.constant 0 : index
    %66 = vector.load %arg5[%c5, %c0_44, %c0_45] : memref<8x64x64xbf16, #tpu.memory_space<vmem>>, vector<1x64x64xbf16>
    %67 = vector.shape_cast %66 : vector<1x64x64xbf16> to vector<64x64xbf16>
    %c5_46 = arith.constant 5 : index
    %c0_47 = arith.constant 0 : index
    %c0_48 = arith.constant 0 : index
    %68 = vector.load %arg6[%c5_46, %c0_47, %c0_48] : memref<7x1x64xf32, #tpu.memory_space<vmem>>, vector<1x1x64xf32>
    %69 = vector.shape_cast %68 : vector<1x1x64xf32> to vector<1x64xf32>
    %70 = arith.truncf %65 : vector<1024x64xf32> to vector<1024x64xbf16>
    %cst_49 = arith.constant dense<0.000000e+00> : vector<1024x64xf32>
    %71 = tpu.matmul %70, %67, %cst_49 {dimension_numbers = #tpu.dot_dimension_numbers<[1], [0], [0], [1], [0, 0, 1, 1], [], []>} : vector<1024x64xbf16>, vector<64x64xbf16>, vector<1024x64xf32> -> vector<1024x64xf32>
    %72 = vector.broadcast %69 : vector<1x64xf32> to vector<1024x64xf32>
    %73 = arith.addf %71, %72 : vector<1024x64xf32>
    %74 = vector.shape_cast %73 : vector<1024x64xf32> to vector<2x512x64xf32>
    %cst_50 = arith.constant dense<0xFF800000> : vector<512x64xf32>
    %75 = vector.multi_reduction <maximumf>, %74, %cst_50 [0] : vector<2x512x64xf32> to vector<512x64xf32>
    %cst_51 = arith.constant 0.000000e+00 : f32
    %76 = vector.broadcast %cst_51 : f32 to vector<1024x64xf32>
    %77 = arith.maximumf %73, %76 : vector<1024x64xf32>
    %c6 = arith.constant 6 : index
    %c0_52 = arith.constant 0 : index
    %c0_53 = arith.constant 0 : index
    %78 = vector.load %arg5[%c6, %c0_52, %c0_53] : memref<8x64x64xbf16, #tpu.memory_space<vmem>>, vector<1x64x64xbf16>
    %79 = vector.shape_cast %78 : vector<1x64x64xbf16> to vector<64x64xbf16>
    %80 = arith.truncf %77 : vector<1024x64xf32> to vector<1024x64xbf16>
    %cst_54 = arith.constant dense<0.000000e+00> : vector<1024x64xf32>
    %81 = tpu.matmul %80, %79, %cst_54 {dimension_numbers = #tpu.dot_dimension_numbers<[1], [0], [0], [1], [0, 0, 1, 1], [], []>} : vector<1024x64xbf16>, vector<64x64xbf16>, vector<1024x64xf32> -> vector<1024x64xf32>
    %82 = vector.shape_cast %81 : vector<1024x64xf32> to vector<2x512x64xf32>
    %cst_55 = arith.constant dense<0xFF800000> : vector<512x64xf32>
    %83 = vector.multi_reduction <maximumf>, %82, %cst_55 [0] : vector<2x512x64xf32> to vector<512x64xf32>
    %cst_56 = arith.constant 0.000000e+00 : f32
    %84 = vector.broadcast %cst_56 : f32 to vector<512x64xf32>
    %85 = arith.maximumf %75, %84 : vector<512x64xf32>
    %c7 = arith.constant 7 : index
    %c0_57 = arith.constant 0 : index
    %c0_58 = arith.constant 0 : index
    %86 = vector.load %arg5[%c7, %c0_57, %c0_58] : memref<8x64x64xbf16, #tpu.memory_space<vmem>>, vector<1x64x64xbf16>
    %87 = vector.shape_cast %86 : vector<1x64x64xbf16> to vector<64x64xbf16>
    %c6_59 = arith.constant 6 : index
    %c0_60 = arith.constant 0 : index
    %c0_61 = arith.constant 0 : index
    %88 = vector.load %arg6[%c6_59, %c0_60, %c0_61] : memref<7x1x64xf32, #tpu.memory_space<vmem>>, vector<1x1x64xf32>
    %89 = vector.shape_cast %88 : vector<1x1x64xf32> to vector<1x64xf32>
    %90 = arith.truncf %85 : vector<512x64xf32> to vector<512x64xbf16>
    %cst_62 = arith.constant dense<0.000000e+00> : vector<512x64xf32>
    %91 = tpu.matmul %90, %87, %cst_62 {dimension_numbers = #tpu.dot_dimension_numbers<[1], [0], [0], [1], [0, 0, 1, 1], [], []>} : vector<512x64xbf16>, vector<64x64xbf16>, vector<512x64xf32> -> vector<512x64xf32>
    %92 = vector.broadcast %89 : vector<1x64xf32> to vector<512x64xf32>
    %93 = arith.addf %91, %92 : vector<512x64xf32>
    %94 = arith.addf %83, %93 : vector<512x64xf32>
    %95 = arith.truncf %94 : vector<512x64xf32> to vector<512x64xbf16>
    %c0_63 = arith.constant 0 : index
    %c0_64 = arith.constant 0 : index
    %c0_65 = arith.constant 0 : index
    %96 = vector.load %arg7[%c0_63, %c0_64, %c0_65] : memref<1x512x64xbf16, #tpu.memory_space<vmem>>, vector<1x512x64xbf16>
    %97 = vector.shape_cast %96 : vector<1x512x64xbf16> to vector<512x64xbf16>
    %98 = vector.shape_cast %95 : vector<512x64xbf16> to vector<1x512x64xbf16>
    tpu.vector_store %arg7[%c0_63, %c0_64, %c0_65], %98 {strides = array<i32>} : memref<1x512x64xbf16, #tpu.memory_space<vmem>>, vector<1x512x64xbf16>,
    return
  }
  func.func @transform_0(%arg0: i32, %arg1: i32) -> (i32, i32, i32) {
    %c0_i32 = arith.constant 0 : i32
    %c0_i32_0 = arith.constant 0 : i32
    return %arg0, %arg1, %c0_i32 : i32, i32, i32
  }
  func.func @transform_1(%arg0: i32, %arg1: i32) -> (i32, i32, i32) {
    %c0_i32 = arith.constant 0 : i32
    %c0_i32_0 = arith.constant 0 : i32
    %c0_i32_1 = arith.constant 0 : i32
    return %arg0, %c0_i32, %c0_i32_0 : i32, i32, i32
  }
  func.func @transform_2(%arg0: i32, %arg1: i32) -> (i32, i32) {
    %c0_i32 = arith.constant 0 : i32
    %c0_i32_0 = arith.constant 0 : i32
    %c0_i32_1 = arith.constant 0 : i32
    return %c0_i32, %c0_i32_0 : i32, i32
  }
  func.func @transform_3(%arg0: i32, %arg1: i32) -> (i32, i32, i32) {
    %c0_i32 = arith.constant 0 : i32
    %c0_i32_0 = arith.constant 0 : i32
    %c0_i32_1 = arith.constant 0 : i32
    %c0_i32_2 = arith.constant 0 : i32
    return %c0_i32, %c0_i32_0, %c0_i32_1 : i32, i32, i32
  }
  func.func @transform_4(%arg0: i32, %arg1: i32) -> (i32, i32, i32) {
    %c0_i32 = arith.constant 0 : i32
    %c0_i32_0 = arith.constant 0 : i32
    %c0_i32_1 = arith.constant 0 : i32
    %c0_i32_2 = arith.constant 0 : i32
    return %c0_i32, %c0_i32_0, %c0_i32_1 : i32, i32, i32
  }
  func.func @transform_5(%arg0: i32, %arg1: i32) -> (i32, i32, i32) {
    %c0_i32 = arith.constant 0 : i32
    %c0_i32_0 = arith.constant 0 : i32
    return %arg0, %arg1, %c0_i32 : i32, i32, i32
  }
}

</mosaic_0001>

<llo_original>
// kernel: tpu_custom_call.1
$region0: #{tpu_custom_call.1}
  #allocation0 [shape = 'u32[]', space=smem, size = 0x4, offset = 0x4, fixed_abs, tag = 'smem constant byte address 0x4 - core index']
  #allocation1 [shape = 'u32[144,128]{1,0:T(1,128)}', space=vmem, size = 0x12000, scoped, tag = 'internal scratch']
  %s0 = inlined_call_operand.vmem [shape: bf16[2,512,63], index: 0, kind: input, shape index: {}]
  %s1 = inlined_call_operand.vmem [shape: f32[2,2,64], index: 1, kind: input, shape index: {}]
  %s2 = inlined_call_operand.vmem [shape: bf16[63,64], index: 2, kind: input, shape index: {}]
  %s3 = inlined_call_operand.vmem [shape: bf16[8,64,64], index: 3, kind: input, shape index: {}]
  %s4 = inlined_call_operand.vmem [shape: f32[7,1,64], index: 4, kind: input, shape index: {}]
  %s5 = inlined_call_operand.vmem [shape: bf16[2,512,64], index: 5, kind: output, shape index: {}]
  %s6 = sld [smem:[#allocation0]]
  $region53: #{tpu_custom_call.1} parent=0
    _
  %s8 = ssub.s32 1, %s6
  %s9 = scalar_select 0, %s8, %s6
  loop: start=0, step=1, limit=4
  $region2: #{tpu_custom_call.1} parent=0 // loop_pre_header
    _
  $region3: #{tpu_custom_call.1} parent=0 // loop_header
    %s11 = sphi 0, %s15
    %p12 = scmp.ge.s32.totalorder %s11, 4
    %s18 = sphi 0, %s30
    %s19 = sphi 0, %s26
    %s20 = sphi 0, %s18
    %s21 = sphi 0, %s19
    %s22 = sphi 0, %s20
    %s23 = sphi 0, %s21
    %s35 = sphi 0, %s37
    %s38 = sphi 0, %s35
    %s39 = sphi 0, %s38
    %s55 = sphi 0, %s39
    %s61 = sphi 0, %s63
    %s64 = sphi 0, %s61
    %s65 = sphi 0, %s64
    %s81 = sphi 0, %s65
    %s85 = sphi 0, %s85
    %s87 = sphi 0, %s85
    %s88 = sphi 0, %s87
    %s102 = sphi 0, %s88
    %s106 = sphi 0, %s106
    %s108 = sphi 0, %s106
    %s109 = sphi 0, %s108
    %s123 = sphi 0, %s109
    %s127 = sphi 0, %s127
    %s129 = sphi 0, %s127
    %s130 = sphi 0, %s129
    %s144 = sphi 0, %s130
    %s152 = sphi 0, %s154
    %s155 = sphi 0, %s152
    %s156 = sphi 0, %s155
    %s172 = sphi 0, %s156
  $region4: #{tpu_custom_call.1} parent=0 // loop_header_branch
    %14 = sbr.rel (%p12) target = $region8
  $region5: #{tpu_custom_call.1} parent=0 // loop_body
    %s16 = ssub.s32 %s11, 1
    %s17 = ssub.s32 %s11, 2
    %s24 = sadd.s32 1, %s19
    %p25 = scmp.ge.s32.totalorder %s24, 1
    %s26 = scalar_select %p25, 0, %s24
    %s27 = sadd.s32 1, %s18
    %s28 = scalar_select %p25, %s27, %s18
    %p29 = scmp.ge.s32.totalorder %s28, 2
    %s30 = scalar_select %p29, 0, %s28
    %s31 = ssub.s32 %s18, %s30
    %s32 = ssub.s32 %s19, %s26
    %s33 = sor.u32 %s31, %s32
    %p34 = scmp.eq.s32.totalorder %s33, 0
    %s36 = sadd.s32 %s35, 1
    %s37 = scalar_select %p34, %s35, %s36
    %p40 = pneg %p34
    %p41 = scmp.eq.s32.totalorder %s11, 1
    %p42 = por %p40, %p41
    %p43 = scmp.ne.s32.totalorder %s35, %s38
    %p44 = scmp.eq.s32.totalorder %s11, 0
    %p45 = por %p43, %p44
    %p46 = scmp.ne.s32.totalorder %s35, %s38
    %p47 = scmp.eq.s32.totalorder %s16, 1
    %p48 = por %p46, %p47
    %p49 = scmp.ne.s32.totalorder %s38, %s39
    %p50 = scmp.eq.s32.totalorder %s16, 0
    %p51 = por %p49, %p50
    %p52 = scmp.ne.s32.totalorder %s38, %s39
    %p53 = scmp.eq.s32.totalorder %s17, 1
    %p54 = por %p52, %p53
    %p56 = scmp.ne.s32.totalorder %s39, %s55
    %p57 = scmp.eq.s32.totalorder %s17, 0
    %p58 = por %p56, %p57
    %s59 = ssub.s32 %s18, %s30
    %p60 = scmp.eq.s32.totalorder %s59, 0
    %s62 = sadd.s32 %s61, 1
    %s63 = scalar_select %p60, %s61, %s62
    %p66 = pneg %p60
    %p67 = scmp.eq.s32.totalorder %s11, 1
    %p68 = por %p66, %p67
    %p69 = scmp.ne.s32.totalorder %s61, %s64
    %p70 = scmp.eq.s32.totalorder %s11, 0
    %p71 = por %p69, %p70
    %p72 = scmp.ne.s32.totalorder %s61, %s64
    %p73 = scmp.eq.s32.totalorder %s16, 1
    %p74 = por %p72, %p73
    %p75 = scmp.ne.s32.totalorder %s64, %s65
    %p76 = scmp.eq.s32.totalorder %s16, 0
    %p77 = por %p75, %p76
    %p78 = scmp.ne.s32.totalorder %s64, %s65
    %p79 = scmp.eq.s32.totalorder %s17, 1
    %p80 = por %p78, %p79
    %p82 = scmp.ne.s32.totalorder %s65, %s81
    %p83 = scmp.eq.s32.totalorder %s17, 0
    %p84 = por %p82, %p83
    %s86 = sadd.s32 %s85, 1
    %p89 = scmp.eq.s32.totalorder %s11, 1
    %p90 = scmp.ne.s32.totalorder %s85, %s87
    %p91 = scmp.eq.s32.totalorder %s11, 0
    %p92 = por %p90, %p91
    %p93 = scmp.ne.s32.totalorder %s85, %s87
    %p94 = scmp.eq.s32.totalorder %s16, 1
    %p95 = por %p93, %p94
    %p96 = scmp.ne.s32.totalorder %s87, %s88
    %p97 = scmp.eq.s32.totalorder %s16, 0
    %p98 = por %p96, %p97
    %p99 = scmp.ne.s32.totalorder %s87, %s88
    %p100 = scmp.eq.s32.totalorder %s17, 1
    %p101 = por %p99, %p100
    %p103 = scmp.ne.s32.totalorder %s88, %s102
    %p104 = scmp.eq.s32.totalorder %s17, 0
    %p105 = por %p103, %p104
    %s107 = sadd.s32 %s106, 1
    %p110 = scmp.eq.s32.totalorder %s11, 1
    %p111 = scmp.ne.s32.totalorder %s106, %s108
    %p112 = scmp.eq.s32.totalorder %s11, 0
    %p113 = por %p111, %p112
    %p114 = scmp.ne.s32.totalorder %s106, %s108
    %p115 = scmp.eq.s32.totalorder %s16, 1
    %p116 = por %p114, %p115
    %p117 = scmp.ne.s32.totalorder %s108, %s109
    %p118 = scmp.eq.s32.totalorder %s16, 0
    %p119 = por %p117, %p118
    %p120 = scmp.ne.s32.totalorder %s108, %s109
    %p121 = scmp.eq.s32.totalorder %s17, 1
    %p122 = por %p120, %p121
    %p124 = scmp.ne.s32.totalorder %s109, %s123
    %p125 = scmp.eq.s32.totalorder %s17, 0
    %p126 = por %p124, %p125
    %s128 = sadd.s32 %s127, 1
    %p131 = scmp.eq.s32.totalorder %s11, 1
    %p132 = scmp.ne.s32.totalorder %s127, %s129
    %p133 = scmp.eq.s32.totalorder %s11, 0
    %p134 = por %p132, %p133
    %p135 = scmp.ne.s32.totalorder %s127, %s129
    %p136 = scmp.eq.s32.totalorder %s16, 1
    %p137 = por %p135, %p136
    %p138 = scmp.ne.s32.totalorder %s129, %s130
    %p139 = scmp.eq.s32.totalorder %s16, 0
    %p140 = por %p138, %p139
    %p141 = scmp.ne.s32.totalorder %s129, %s130
    %p142 = scmp.eq.s32.totalorder %s17, 1
    %p143 = por %p141, %p142
    %p145 = scmp.ne.s32.totalorder %s130, %s144
    %p146 = scmp.eq.s32.totalorder %s17, 0
    %p147 = por %p145, %p146
    %s148 = ssub.s32 %s18, %s30
    %s149 = ssub.s32 %s19, %s26
    %s150 = sor.u32 %s148, %s149
    %p151 = scmp.eq.s32.totalorder %s150, 0
    %s153 = sadd.s32 %s152, 1
    %s154 = scalar_select %p151, %s152, %s153
    %p157 = pneg %p151
    %p158 = scmp.eq.s32.totalorder %s11, 1
    %p159 = por %p157, %p158
    %p160 = scmp.ne.s32.totalorder %s152, %s155
    %p161 = scmp.eq.s32.totalorder %s11, 0
    %p162 = por %p160, %p161
    %p163 = scmp.ne.s32.totalorder %s152, %s155
    %p164 = scmp.eq.s32.totalorder %s16, 1
    %p165 = por %p163, %p164
    %p166 = scmp.ne.s32.totalorder %s155, %s156
    %p167 = scmp.eq.s32.totalorder %s16, 0
    %p168 = por %p166, %p167
    %p169 = scmp.ne.s32.totalorder %s155, %s156
    %p170 = scmp.eq.s32.totalorder %s17, 1
    %p171 = por %p169, %p170
    %p173 = scmp.ne.s32.totalorder %s156, %s172
    %p174 = scmp.eq.s32.totalorder %s17, 0
    %p175 = por %p173, %p174
    %p176 = scmp.le.s32.totalorder 1, %s11
    %p177 = scmp.lt.s32.totalorder %s11, 3
    %p178 = pnand %p176, %p177
    %p179 = pneg %p178
    // Predicated region
    $region9: #{tpu_custom_call.1} parent=5 // pred_check
      _
    $region10: #{tpu_custom_call.1} parent=5 // pred_check_branch
      %181 = sbr.rel (%p178) target = $region12
    $region11: #{tpu_custom_call.1} parent=5 // pred_region
      %s182 = ssub.s32 %s11, 1
      // Predicated region
      $region13: #{tpu_custom_call.1} parent=11 // pred_check
        %p183 = pneg %p98
      $region14: #{tpu_custom_call.1} parent=11 // pred_check_branch
        %185 = sbr.rel (%p183) target = $region16
      $region15: #{tpu_custom_call.1} parent=11 // pred_region
        _
      $region16: #{tpu_custom_call.1} parent=11 // pred_fallthru
        _
      // Predicated region
      $region17: #{tpu_custom_call.1} parent=11 // pred_check
        %p186 = pneg %p119
      $region18: #{tpu_custom_call.1} parent=11 // pred_check_branch
        %188 = sbr.rel (%p186) target = $region20
      $region19: #{tpu_custom_call.1} parent=11 // pred_region
        _
      $region20: #{tpu_custom_call.1} parent=11 // pred_fallthru
        _
      // Predicated region
      $region21: #{tpu_custom_call.1} parent=11 // pred_check
        %p189 = pneg %p140
      $region22: #{tpu_custom_call.1} parent=11 // pred_check_branch
        %191 = sbr.rel (%p189) target = $region24
      $region23: #{tpu_custom_call.1} parent=11 // pred_region
        _
      $region24: #{tpu_custom_call.1} parent=11 // pred_fallthru
        _
    $region12: #{tpu_custom_call.1} parent=5 // pred_fallthru
      _
    %p192 = scmp.lt.s32.totalorder %s11, 2
    // Predicated region
    $region25: #{tpu_custom_call.1} parent=5 // pred_check
      %p193 = pneg %p192
    $region26: #{tpu_custom_call.1} parent=5 // pred_check_branch
      %195 = sbr.rel (%p193) target = $region28
    $region27: #{tpu_custom_call.1} parent=5 // pred_region
      // Predicated region
      $region29: #{tpu_custom_call.1} parent=27 // pred_check
        %p196 = pneg %p45
      $region30: #{tpu_custom_call.1} parent=27 // pred_check_branch
        %198 = sbr.rel (%p196) target = $region32
      $region31: #{tpu_custom_call.1} parent=27 // pred_region
        %s199 = smul.u32 64, %s19
        %p200 = scmp.lt.s32.totalorder %s18, 1
        %s201 = scalar_select %p200, %s18, 1
        %p202 = scmp.lt.s32.totalorder %s199, 63
        %s203 = scalar_select %p202, %s199, 63
        %s204 = smul.addr %s201, 64
        %s205 = sadd.s32 %s203, %s204
        %s206 = smul.addr %s205, 4
        %s207 = scalar_lea.vmem %s0, %s206
        %s208 = smul.u32 64, %s19
      $region32: #{tpu_custom_call.1} parent=27 // pred_fallthru
        _
      // Predicated region
      $region33: #{tpu_custom_call.1} parent=27 // pred_check
        %p209 = pneg %p71
      $region34: #{tpu_custom_call.1} parent=27 // pred_check_branch
        %211 = sbr.rel (%p209) target = $region36
      $region35: #{tpu_custom_call.1} parent=27 // pred_region
        %p212 = scmp.lt.s32.totalorder %s18, 1
        %s213 = scalar_select %p212, %s18, 1
        %s214 = smul.addr %s213, 2
        %s215 = scalar_lea.vmem %s1, %s214
      $region36: #{tpu_custom_call.1} parent=27 // pred_fallthru
        _
    $region28: #{tpu_custom_call.1} parent=5 // pred_fallthru
      _
    %p216 = scmp.le.s32.totalorder 1, %s11
    %p217 = scmp.lt.s32.totalorder %s11, 3
    %p218 = pnand %p216, %p217
    %p219 = pneg %p218
    // Predicated region
    $region37: #{tpu_custom_call.1} parent=5 // pred_check
      _
    $region38: #{tpu_custom_call.1} parent=5 // pred_check_branch
      %221 = sbr.rel (%p218) target = $region40
    $region39: #{tpu_custom_call.1} parent=5 // pred_region
      %s222 = ssub.s32 %s11, 1
      %s223 = smul.u32 64, %s21
      %p224 = scmp.lt.s32.totalorder %s20, 1
      %s225 = scalar_select %p224, %s20, 1
      %p226 = scmp.lt.s32.totalorder %s223, 63
      %s227 = scalar_select %p226, %s223, 63
      %s228 = smul.addr %s225, 64
      %s229 = sadd.s32 %s227, %s228
      %s230 = smul.addr %s229, 4
      %s231 = scalar_lea.vmem %s0, %s230
      %p232 = pneg %p51
      %p233 = pneg %p48
      %p234 = scmp.lt.s32.totalorder %s20, 1
      %s235 = scalar_select %p234, %s20, 1
      %s236 = smul.addr %s235, 2
      %s237 = scalar_lea.vmem %s1, %s236
      %p238 = pneg %p77
      %p239 = pneg %p74
      %p240 = pneg %p98
      %p241 = pneg %p95
      %p242 = pneg %p119
      %p243 = pneg %p116
      %p244 = pneg %p140
      %p245 = pneg %p137
      %p246 = pneg %p168
      %p247 = pneg %p165
      %s248 = smul.u32 64, %s21
      %p249 = scmp.lt.s32.totalorder %s20, 1
      %s250 = scalar_select %p249, %s20, 1
      %p251 = scmp.lt.s32.totalorder %s248, 63
      %s252 = scalar_select %p251, %s248, 63
      %s253 = smul.addr %s250, 64
      %s254 = sadd.s32 %s252, %s253
      %s255 = smul.addr %s254, 4
      %s256 = scalar_lea.vmem %s5, %s255
      %s257 = smul.u32 64, %s21
      %p258 = scmp.lt.s32.totalorder %s20, 1
      %s259 = scalar_select %p258, %s20, 1
      %p260 = scmp.lt.s32.totalorder %s257, 63
      %s261 = scalar_select %p260, %s257, 63
      %s262 = smul.addr %s259, 64
      %s263 = sadd.s32 %s261, %s262
      %s264 = smul.addr %s263, 4
      %s265 = scalar_lea.vmem %s0, %s264
      %s266 = smul.u32 64, %s21
      %p267 = scmp.lt.s32.totalorder %s20, 1
      %s268 = scalar_select %p267, %s20, 1
      %s269 = smul.addr %s268, 2
      %s270 = scalar_lea.vmem %s1, %s269
      %s271 = smul.u32 64, %s21
      %p272 = scmp.lt.s32.totalorder %s20, 1
      %s273 = scalar_select %p272, %s20, 1
      %p274 = scmp.lt.s32.totalorder %s271, 63
      %s275 = scalar_select %p274, %s271, 63
      %s276 = smul.addr %s273, 64
      %s277 = sadd.s32 %s275, %s276
      %s278 = smul.addr %s277, 4
      %s279 = scalar_lea.vmem %s5, %s278
      %s280 = smul.u32 64, %s21
      %v282 = vld [vmem:[%s265] sm:$0xf]
      %v283 = vld [vmem:[%s265 + $0x4] sm:$0xf]
      %v284 = vld [vmem:[%s265 + $0x8] sm:$0xf]
      %v285 = vld [vmem:[%s265 + $0xc] sm:$0xf]
      %v286 = vld [vmem:[%s265 + $0x10] sm:$0xf]
      %v287 = vld [vmem:[%s265 + $0x14] sm:$0xf]
      %v288 = vld [vmem:[%s265 + $0x18] sm:$0xf]
      %v289 = vld [vmem:[%s265 + $0x1c] sm:$0xf]
      %v290 = vld [vmem:[%s265 + $0x20] sm:$0xf]
      %v291 = vld [vmem:[%s265 + $0x24] sm:$0xf]
      %v292 = vld [vmem:[%s265 + $0x28] sm:$0xf]
      %v293 = vld [vmem:[%s265 + $0x2c] sm:$0xf]
      %v294 = vld [vmem:[%s265 + $0x30] sm:$0xf]
      %v295 = vld [vmem:[%s265 + $0x34] sm:$0xf]
      %v296 = vld [vmem:[%s265 + $0x38] sm:$0xf]
      %v297 = vld [vmem:[%s265 + $0x3c] sm:$0xf]
      %v298 = vld [vmem:[%s265 + $0x40] sm:$0xf]
      %v299 = vld [vmem:[%s265 + $0x44] sm:$0xf]
      %v300 = vld [vmem:[%s265 + $0x48] sm:$0xf]
      %v301 = vld [vmem:[%s265 + $0x4c] sm:$0xf]
      %v302 = vld [vmem:[%s265 + $0x50] sm:$0xf]
      %v303 = vld [vmem:[%s265 + $0x54] sm:$0xf]
      %v304 = vld [vmem:[%s265 + $0x58] sm:$0xf]
      %v305 = vld [vmem:[%s265 + $0x5c] sm:$0xf]
      %v306 = vld [vmem:[%s265 + $0x60] sm:$0xf]
      %v307 = vld [vmem:[%s265 + $0x64] sm:$0xf]
      %v308 = vld [vmem:[%s265 + $0x68] sm:$0xf]
      %v309 = vld [vmem:[%s265 + $0x6c] sm:$0xf]
      %v310 = vld [vmem:[%s265 + $0x70] sm:$0xf]
      %v311 = vld [vmem:[%s265 + $0x74] sm:$0xf]
      %v312 = vld [vmem:[%s265 + $0x78] sm:$0xf]
      %v313 = vld [vmem:[%s265 + $0x7c] sm:$0xf]
      %v314 = vld [vmem:[%s265 + $0x80] sm:$0xf]
      %v315 = vld [vmem:[%s265 + $0x84] sm:$0xf]
      %v316 = vld [vmem:[%s265 + $0x88] sm:$0xf]
      %v317 = vld [vmem:[%s265 + $0x8c] sm:$0xf]
      %v318 = vld [vmem:[%s265 + $0x90] sm:$0xf]
      %v319 = vld [vmem:[%s265 + $0x94] sm:$0xf]
      %v320 = vld [vmem:[%s265 + $0x98] sm:$0xf]
      %v321 = vld [vmem:[%s265 + $0x9c] sm:$0xf]
      %v322 = vld [vmem:[%s265 + $0xa0] sm:$0xf]
      %v323 = vld [vmem:[%s265 + $0xa4] sm:$0xf]
      %v324 = vld [vmem:[%s265 + $0xa8] sm:$0xf]
      %v325 = vld [vmem:[%s265 + $0xac] sm:$0xf]
      %v326 = vld [vmem:[%s265 + $0xb0] sm:$0xf]
      %v327 = vld [vmem:[%s265 + $0xb4] sm:$0xf]
      %v328 = vld [vmem:[%s265 + $0xb8] sm:$0xf]
      %v329 = vld [vmem:[%s265 + $0xbc] sm:$0xf]
      %v330 = vld [vmem:[%s265 + $0xc0] sm:$0xf]
      %v331 = vld [vmem:[%s265 + $0xc4] sm:$0xf]
      %v332 = vld [vmem:[%s265 + $0xc8] sm:$0xf]
      %v333 = vld [vmem:[%s265 + $0xcc] sm:$0xf]
      %v334 = vld [vmem:[%s265 + $0xd0] sm:$0xf]
      %v335 = vld [vmem:[%s265 + $0xd4] sm:$0xf]
      %v336 = vld [vmem:[%s265 + $0xd8] sm:$0xf]
      %v337 = vld [vmem:[%s265 + $0xdc] sm:$0xf]
      %v338 = vld [vmem:[%s265 + $0xe0] sm:$0xf]
      %v339 = vld [vmem:[%s265 + $0xe4] sm:$0xf]
      %v340 = vld [vmem:[%s265 + $0xe8] sm:$0xf]
      %v341 = vld [vmem:[%s265 + $0xec] sm:$0xf]
      %v342 = vld [vmem:[%s265 + $0xf0] sm:$0xf]
      %v343 = vld [vmem:[%s265 + $0xf4] sm:$0xf]
      %v344 = vld [vmem:[%s265 + $0xf8] sm:$0xf]
      %v345 = vld [vmem:[%s265 + $0xfc] sm:$0xf]
      %v346 = vld [vmem:[%s2] sm:$0xf]
      %v347 = vld [vmem:[%s2 + $0x4] sm:$0xf]
      %v348 = vld [vmem:[%s2 + $0x8] sm:$0xf]
      %v349 = vld [vmem:[%s2 + $0xc] sm:$0xf]
      %v350 = vld [vmem:[%s2 + $0x10] sm:$0xf]
      %v351 = vld [vmem:[%s2 + $0x14] sm:$0xf]
      %v352 = vld [vmem:[%s2 + $0x18] sm:$0xf]
      %v353 = vld [vmem:[%s2 + $0x1c] sm:$0xf]
      %v418 = vunpack.c.l.b16 %v282
      %v419 = vunpack.c.l.b16 %v283
      %v420 = vunpack.c.l.b16 %v284
      %v421 = vunpack.c.l.b16 %v285
      %v422 = vunpack.c.l.b16 %v286
      %v423 = vunpack.c.l.b16 %v287
      %v424 = vunpack.c.l.b16 %v288
      %v425 = vunpack.c.l.b16 %v289
      %v426 = vunpack.c.l.b16 %v290
      %v427 = vunpack.c.l.b16 %v291
      %v428 = vunpack.c.l.b16 %v292
      %v429 = vunpack.c.l.b16 %v293
      %v430 = vunpack.c.l.b16 %v294
      %v431 = vunpack.c.l.b16 %v295
      %v432 = vunpack.c.l.b16 %v296
      %v433 = vunpack.c.l.b16 %v297
      %v434 = vunpack.c.l.b16 %v298
      %v435 = vunpack.c.l.b16 %v299
      %v436 = vunpack.c.l.b16 %v300
      %v437 = vunpack.c.l.b16 %v301
      %v438 = vunpack.c.l.b16 %v302
      %v439 = vunpack.c.l.b16 %v303
      %v440 = vunpack.c.l.b16 %v304
      %v441 = vunpack.c.l.b16 %v305
      %v442 = vunpack.c.l.b16 %v306
      %v443 = vunpack.c.l.b16 %v307
      %v444 = vunpack.c.l.b16 %v308
      %v445 = vunpack.c.l.b16 %v309
      %v446 = vunpack.c.l.b16 %v310
      %v447 = vunpack.c.l.b16 %v311
      %v448 = vunpack.c.l.b16 %v312
      %v449 = vunpack.c.l.b16 %v313
      %v450 = vunpack.c.l.b16 %v314
      %v451 = vunpack.c.l.b16 %v315
      %v452 = vunpack.c.l.b16 %v316
      %v453 = vunpack.c.l.b16 %v317
      %v454 = vunpack.c.l.b16 %v318
      %v455 = vunpack.c.l.b16 %v319
      %v456 = vunpack.c.l.b16 %v320
      %v457 = vunpack.c.l.b16 %v321
      %v458 = vunpack.c.l.b16 %v322
      %v459 = vunpack.c.l.b16 %v323
      %v460 = vunpack.c.l.b16 %v324
      %v461 = vunpack.c.l.b16 %v325
      %v462 = vunpack.c.l.b16 %v326
      %v463 = vunpack.c.l.b16 %v327
      %v464 = vunpack.c.l.b16 %v328
      %v465 = vunpack.c.l.b16 %v329
      %v466 = vunpack.c.l.b16 %v330
      %v467 = vunpack.c.l.b16 %v331
      %v468 = vunpack.c.l.b16 %v332
      %v469 = vunpack.c.l.b16 %v333
      %v470 = vunpack.c.l.b16 %v334
      %v471 = vunpack.c.l.b16 %v335
      %v472 = vunpack.c.l.b16 %v336
      %v473 = vunpack.c.l.b16 %v337
      %v474 = vunpack.c.l.b16 %v338
      %v475 = vunpack.c.l.b16 %v339
      %v476 = vunpack.c.l.b16 %v340
      %v477 = vunpack.c.l.b16 %v341
      %v478 = vunpack.c.l.b16 %v342
      %v479 = vunpack.c.l.b16 %v343
      %v480 = vunpack.c.l.b16 %v344
      %v481 = vunpack.c.l.b16 %v345
      %v482 = vpack.c.b16 %v419, %v418
      %v483 = vpack.c.b16 %v421, %v420
      %v484 = vpack.c.b16 %v423, %v422
      %v485 = vpack.c.b16 %v425, %v424
      %v486 = vpack.c.b16 %v427, %v426
      %v487 = vpack.c.b16 %v429, %v428
      %v488 = vpack.c.b16 %v431, %v430
      %v489 = vpack.c.b16 %v433, %v432
      %v490 = vpack.c.b16 %v435, %v434
      %v491 = vpack.c.b16 %v437, %v436
      %v492 = vpack.c.b16 %v439, %v438
      %v493 = vpack.c.b16 %v441, %v440
      %v494 = vpack.c.b16 %v443, %v442
      %v495 = vpack.c.b16 %v445, %v444
      %v496 = vpack.c.b16 %v447, %v446
      %v497 = vpack.c.b16 %v449, %v448
      %v498 = vpack.c.b16 %v451, %v450
      %v499 = vpack.c.b16 %v453, %v452
      %v500 = vpack.c.b16 %v455, %v454
      %v501 = vpack.c.b16 %v457, %v456
      %v502 = vpack.c.b16 %v459, %v458
      %v503 = vpack.c.b16 %v461, %v460
      %v504 = vpack.c.b16 %v463, %v462
      %v505 = vpack.c.b16 %v465, %v464
      %v506 = vpack.c.b16 %v467, %v466
      %v507 = vpack.c.b16 %v469, %v468
      %v508 = vpack.c.b16 %v471, %v470
      %v509 = vpack.c.b16 %v473, %v472
      %v510 = vpack.c.b16 %v475, %v474
      %v511 = vpack.c.b16 %v477, %v476
      %v512 = vpack.c.b16 %v479, %v478
      %v513 = vpack.c.b16 %v481, %v480
      %v522 = vunpack.c.l.b16 %v346
      %v523 = vunpack.c.l.b16 %v347
      %v524 = vunpack.c.l.b16 %v348
      %v525 = vunpack.c.l.b16 %v349
      %v526 = vunpack.c.l.b16 %v350
      %v527 = vunpack.c.l.b16 %v351
      %v528 = vunpack.c.l.b16 %v352
      %v529 = vunpack.c.l.b16 %v353
      %v530 = vpack.c.b16 %v523, %v522
      %v531 = vpack.c.b16 %v525, %v524
      %v532 = vpack.c.b16 %v527, %v526
      %v533 = vpack.c.b16 %v529, %v528
      %vm537 = vcmask 515072
      %v539 = vsel %vm537, %v482, 0
      %v542 = vsel %vm537, %v483, 0
      %v545 = vsel %vm537, %v484, 0
      %v548 = vsel %vm537, %v485, 0
      %v551 = vsel %vm537, %v486, 0
      %v554 = vsel %vm537, %v487, 0
      %v557 = vsel %vm537, %v488, 0
      %v560 = vsel %vm537, %v489, 0
      %v563 = vsel %vm537, %v490, 0
      %v566 = vsel %vm537, %v491, 0
      %v569 = vsel %vm537, %v492, 0
      %v572 = vsel %vm537, %v493, 0
      %v575 = vsel %vm537, %v494, 0
      %v578 = vsel %vm537, %v495, 0
      %v581 = vsel %vm537, %v496, 0
      %v584 = vsel %vm537, %v497, 0
      %v587 = vsel %vm537, %v498, 0
      %v590 = vsel %vm537, %v499, 0
      %v593 = vsel %vm537, %v500, 0
      %v596 = vsel %vm537, %v501, 0
      %v599 = vsel %vm537, %v502, 0
      %v602 = vsel %vm537, %v503, 0
      %v605 = vsel %vm537, %v504, 0
      %v608 = vsel %vm537, %v505, 0
      %v611 = vsel %vm537, %v506, 0
      %v614 = vsel %vm537, %v507, 0
      %v617 = vsel %vm537, %v508, 0
      %v620 = vsel %vm537, %v509, 0
      %v623 = vsel %vm537, %v510, 0
      %v626 = vsel %vm537, %v511, 0
      %v629 = vsel %vm537, %v512, 0
      %v632 = vsel %vm537, %v513, 0
      %vm634 = vcmask 1046528
      %vm635 = vcmask 1047552
      %v636 = vsel %vm634, 4294967295, 65535
      %v637 = vsel %vm635, %v636, 0
      %v639 = vand.u32 %v533, %v637
      %641 = vmatprep.subr.bf16.mxu0 0
      %642 = vmatpush1.bf16.msra.mxu0 0
      %643 = vmatprep.subr.bf16.mxu0 0
      %644 = vmatpush1.bf16.msra.mxu0 0
      %645 = vmatprep.subr.bf16.mxu0 0
      %646 = vmatpush1.bf16.msra.mxu0 0
      %647 = vmatprep.subr.bf16.mxu0 0
      %648 = vmatpush1.bf16.msra.mxu0 0
      %649 = vmatprep.subr.bf16.mxu0 0
      %650 = vmatpush1.bf16.msra.mxu0 %v639
      %651 = vmatprep.subr.bf16.mxu0 0
      %652 = vmatpush1.bf16.msra.mxu0 %v532
      %653 = vmatprep.subr.bf16.mxu0 0
      %654 = vmatpush1.bf16.msra.mxu0 %v531
      %655 = vmatprep.subr.bf16.mxu0 0
      %656 = vmatpush1.bf16.msra.mxu0 %v530
      %657 = vmatprep.subr.bf16.mxu0 0
      %658 = vmatpush2.bf16.msra.mxu0 0
      %659 = vmatprep.subr.bf16.mxu0 0
      %660 = vmatpush2.bf16.msra.mxu0 0
      %661 = vmatprep.subr.bf16.mxu0 0
      %662 = vmatpush2.bf16.msra.mxu0 0
      %663 = vmatprep.subr.bf16.mxu0 0
      %664 = vmatpush2.bf16.msra.mxu0 0
      %665 = vmatprep.subr.bf16.mxu0 0
      %666 = vmatpush2.bf16.msra.mxu0 0
      %667 = vmatprep.subr.bf16.mxu0 0
      %668 = vmatpush2.bf16.msra.mxu0 0
      %669 = vmatprep.subr.bf16.mxu0 0
      %670 = vmatpush2.bf16.msra.mxu0 0
      %671 = vmatprep.subr.bf16.mxu0 0
      %672 = vmatpush2.bf16.msra.mxu0 0
      %673 = vmatprep.mubr.bf16.mxu0 0
      %674 = vmatmul.mubr.bf16.gmra.mxu0 %v539
      %v675 = vpop.f32.mrf.mxu0
      %v676 = vadd.f32 0.0, %v675
      %v677 = vpop.f32.mrf.mxu0
      %v678 = vpop.f32.mrf.mxu0
      %v679 = vadd.f32 0.0, %v678
      %v680 = vpop.f32.mrf.mxu0
      %681 = vmatprep.mubr.bf16.mxu0 0
      %682 = vmatmul.mubr.bf16.gmra.mxu0 %v542
      %v683 = vpop.f32.mrf.mxu0
      %v684 = vadd.f32 0.0, %v683
      %v685 = vpop.f32.mrf.mxu0
      %v686 = vpop.f32.mrf.mxu0
      %v687 = vadd.f32 0.0, %v686
      %v688 = vpop.f32.mrf.mxu0
      %689 = vmatprep.mubr.bf16.mxu0 0
      %690 = vmatmul.mubr.bf16.gmra.mxu0 %v545
      %v691 = vpop.f32.mrf.mxu0
      %v692 = vadd.f32 0.0, %v691
      %v693 = vpop.f32.mrf.mxu0
      %v694 = vpop.f32.mrf.mxu0
      %v695 = vadd.f32 0.0, %v694
      %v696 = vpop.f32.mrf.mxu0
      %697 = vmatprep.mubr.bf16.mxu0 0
      %698 = vmatmul.mubr.bf16.gmra.mxu0 %v548
      %v699 = vpop.f32.mrf.mxu0
      %v700 = vadd.f32 0.0, %v699
      %v701 = vpop.f32.mrf.mxu0
      %v702 = vpop.f32.mrf.mxu0
      %v703 = vadd.f32 0.0, %v702
      %v704 = vpop.f32.mrf.mxu0
      %705 = vmatprep.mubr.bf16.mxu0 0
      %706 = vmatmul.mubr.bf16.gmra.mxu0 %v551
      %v707 = vpop.f32.mrf.mxu0
      %v708 = vadd.f32 0.0, %v707
      %v709 = vpop.f32.mrf.mxu0
      %v710 = vpop.f32.mrf.mxu0
      %v711 = vadd.f32 0.0, %v710
      %v712 = vpop.f32.mrf.mxu0
      %713 = vmatprep.mubr.bf16.mxu0 0
      %714 = vmatmul.mubr.bf16.gmra.mxu0 %v554
      %v715 = vpop.f32.mrf.mxu0
      %v716 = vadd.f32 0.0, %v715
      %v717 = vpop.f32.mrf.mxu0
      %v718 = vpop.f32.mrf.mxu0
      %v719 = vadd.f32 0.0, %v718
      %v720 = vpop.f32.mrf.mxu0
      %721 = vmatprep.mubr.bf16.mxu0 0
      %722 = vmatmul.mubr.bf16.gmra.mxu0 %v557
      %v723 = vpop.f32.mrf.mxu0
      %v724 = vadd.f32 0.0, %v723
      %v725 = vpop.f32.mrf.mxu0
      %v726 = vpop.f32.mrf.mxu0
      %v727 = vadd.f32 0.0, %v726
      %v728 = vpop.f32.mrf.mxu0
      %729 = vmatprep.mubr.bf16.mxu0 0
      %730 = vmatmul.mubr.bf16.gmra.mxu0 %v560
      %v731 = vpop.f32.mrf.mxu0
      %v732 = vadd.f32 0.0, %v731
      %v733 = vpop.f32.mrf.mxu0
      %v734 = vpop.f32.mrf.mxu0
      %v735 = vadd.f32 0.0, %v734
      %v736 = vpop.f32.mrf.mxu0
      %737 = vmatprep.mubr.bf16.mxu0 0
      %738 = vmatmul.mubr.bf16.gmra.mxu0 %v563
      %v739 = vpop.f32.mrf.mxu0
      %v740 = vadd.f32 0.0, %v739
      %v741 = vpop.f32.mrf.mxu0
      %v742 = vpop.f32.mrf.mxu0
      %v743 = vadd.f32 0.0, %v742
      %v744 = vpop.f32.mrf.mxu0
      %745 = vmatprep.mubr.bf16.mxu0 0
      %746 = vmatmul.mubr.bf16.gmra.mxu0 %v566
      %v747 = vpop.f32.mrf.mxu0
      %v748 = vadd.f32 0.0, %v747
      %v749 = vpop.f32.mrf.mxu0
      %v750 = vpop.f32.mrf.mxu0
      %v751 = vadd.f32 0.0, %v750
      %v752 = vpop.f32.mrf.mxu0
      %753 = vmatprep.mubr.bf16.mxu0 0
      %754 = vmatmul.mubr.bf16.gmra.mxu0 %v569
      %v755 = vpop.f32.mrf.mxu0
      %v756 = vadd.f32 0.0, %v755
      %v757 = vpop.f32.mrf.mxu0
      %v758 = vpop.f32.mrf.mxu0
      %v759 = vadd.f32 0.0, %v758
      %v760 = vpop.f32.mrf.mxu0
      %761 = vmatprep.mubr.bf16.mxu0 0
      %762 = vmatmul.mubr.bf16.gmra.mxu0 %v572
      %v763 = vpop.f32.mrf.mxu0
      %v764 = vadd.f32 0.0, %v763
      %v765 = vpop.f32.mrf.mxu0
      %v766 = vpop.f32.mrf.mxu0
      %v767 = vadd.f32 0.0, %v766
      %v768 = vpop.f32.mrf.mxu0
      %769 = vmatprep.mubr.bf16.mxu0 0
      %770 = vmatmul.mubr.bf16.gmra.mxu0 %v575
      %v771 = vpop.f32.mrf.mxu0
      %v772 = vadd.f32 0.0, %v771
      %v773 = vpop.f32.mrf.mxu0
      %v774 = vpop.f32.mrf.mxu0
      %v775 = vadd.f32 0.0, %v774
      %v776 = vpop.f32.mrf.mxu0
      %777 = vmatprep.mubr.bf16.mxu0 0
      %778 = vmatmul.mubr.bf16.gmra.mxu0 %v578
      %v779 = vpop.f32.mrf.mxu0
      %v780 = vadd.f32 0.0, %v779
      %v781 = vpop.f32.mrf.mxu0
      %v782 = vpop.f32.mrf.mxu0
      %v783 = vadd.f32 0.0, %v782
      %v784 = vpop.f32.mrf.mxu0
      %785 = vmatprep.mubr.bf16.mxu0 0
      %786 = vmatmul.mubr.bf16.gmra.mxu0 %v581
      %v787 = vpop.f32.mrf.mxu0
      %v788 = vadd.f32 0.0, %v787
      %v789 = vpop.f32.mrf.mxu0
      %v790 = vpop.f32.mrf.mxu0
      %v791 = vadd.f32 0.0, %v790
      %v792 = vpop.f32.mrf.mxu0
      %793 = vmatprep.mubr.bf16.mxu0 0
      %794 = vmatmul.mubr.bf16.gmra.mxu0 %v584
      %v795 = vpop.f32.mrf.mxu0
      %v796 = vadd.f32 0.0, %v795
      %v797 = vpop.f32.mrf.mxu0
      %v798 = vpop.f32.mrf.mxu0
      %v799 = vadd.f32 0.0, %v798
      %v800 = vpop.f32.mrf.mxu0
      %801 = vmatprep.mubr.bf16.mxu0 0
      %802 = vmatmul.mubr.bf16.gmra.mxu0 %v587
      %v803 = vpop.f32.mrf.mxu0
      %v804 = vadd.f32 0.0, %v803
      %v805 = vpop.f32.mrf.mxu0
      %v806 = vpop.f32.mrf.mxu0
      %v807 = vadd.f32 0.0, %v806
      %v808 = vpop.f32.mrf.mxu0
      %809 = vmatprep.mubr.bf16.mxu0 0
      %810 = vmatmul.mubr.bf16.gmra.mxu0 %v590
      %v811 = vpop.f32.mrf.mxu0
      %v812 = vadd.f32 0.0, %v811
      %v813 = vpop.f32.mrf.mxu0
      %v814 = vpop.f32.mrf.mxu0
      %v815 = vadd.f32 0.0, %v814
      %v816 = vpop.f32.mrf.mxu0
      %817 = vmatprep.mubr.bf16.mxu0 0
      %818 = vmatmul.mubr.bf16.gmra.mxu0 %v593
      %v819 = vpop.f32.mrf.mxu0
      %v820 = vadd.f32 0.0, %v819
      %v821 = vpop.f32.mrf.mxu0
      %v822 = vpop.f32.mrf.mxu0
      %v823 = vadd.f32 0.0, %v822
      %v824 = vpop.f32.mrf.mxu0
      %825 = vmatprep.mubr.bf16.mxu0 0
      %826 = vmatmul.mubr.bf16.gmra.mxu0 %v596
      %v827 = vpop.f32.mrf.mxu0
      %v828 = vadd.f32 0.0, %v827
      %v829 = vpop.f32.mrf.mxu0
      %v830 = vpop.f32.mrf.mxu0
      %v831 = vadd.f32 0.0, %v830
      %v832 = vpop.f32.mrf.mxu0
      %833 = vmatprep.mubr.bf16.mxu0 0
      %834 = vmatmul.mubr.bf16.gmra.mxu0 %v599
      %v835 = vpop.f32.mrf.mxu0
      %v836 = vadd.f32 0.0, %v835
      %v837 = vpop.f32.mrf.mxu0
      %v838 = vpop.f32.mrf.mxu0
      %v839 = vadd.f32 0.0, %v838
      %v840 = vpop.f32.mrf.mxu0
      %841 = vmatprep.mubr.bf16.mxu0 0
      %842 = vmatmul.mubr.bf16.gmra.mxu0 %v602
      %v843 = vpop.f32.mrf.mxu0
      %v844 = vadd.f32 0.0, %v843
      %v845 = vpop.f32.mrf.mxu0
      %v846 = vpop.f32.mrf.mxu0
      %v847 = vadd.f32 0.0, %v846
      %v848 = vpop.f32.mrf.mxu0
      %849 = vmatprep.mubr.bf16.mxu0 0
      %850 = vmatmul.mubr.bf16.gmra.mxu0 %v605
      %v851 = vpop.f32.mrf.mxu0
      %v852 = vadd.f32 0.0, %v851
      %v853 = vpop.f32.mrf.mxu0
      %v854 = vpop.f32.mrf.mxu0
      %v855 = vadd.f32 0.0, %v854
      %v856 = vpop.f32.mrf.mxu0
      %857 = vmatprep.mubr.bf16.mxu0 0
      %858 = vmatmul.mubr.bf16.gmra.mxu0 %v608
      %v859 = vpop.f32.mrf.mxu0
      %v860 = vadd.f32 0.0, %v859
      %v861 = vpop.f32.mrf.mxu0
      %v862 = vpop.f32.mrf.mxu0
      %v863 = vadd.f32 0.0, %v862
      %v864 = vpop.f32.mrf.mxu0
      %865 = vmatprep.mubr.bf16.mxu0 0
      %866 = vmatmul.mubr.bf16.gmra.mxu0 %v611
      %v867 = vpop.f32.mrf.mxu0
      %v868 = vadd.f32 0.0, %v867
      %v869 = vpop.f32.mrf.mxu0
      %v870 = vpop.f32.mrf.mxu0
      %v871 = vadd.f32 0.0, %v870
      %v872 = vpop.f32.mrf.mxu0
      %873 = vmatprep.mubr.bf16.mxu0 0
      %874 = vmatmul.mubr.bf16.gmra.mxu0 %v614
      %v875 = vpop.f32.mrf.mxu0
      %v876 = vadd.f32 0.0, %v875
      %v877 = vpop.f32.mrf.mxu0
      %v878 = vpop.f32.mrf.mxu0
      %v879 = vadd.f32 0.0, %v878
      %v880 = vpop.f32.mrf.mxu0
      %881 = vmatprep.mubr.bf16.mxu0 0
      %882 = vmatmul.mubr.bf16.gmra.mxu0 %v617
      %v883 = vpop.f32.mrf.mxu0
      %v884 = vadd.f32 0.0, %v883
      %v885 = vpop.f32.mrf.mxu0
      %v886 = vpop.f32.mrf.mxu0
      %v887 = vadd.f32 0.0, %v886
      %v888 = vpop.f32.mrf.mxu0
      %889 = vmatprep.mubr.bf16.mxu0 0
      %890 = vmatmul.mubr.bf16.gmra.mxu0 %v620
      %v891 = vpop.f32.mrf.mxu0
      %v892 = vadd.f32 0.0, %v891
      %v893 = vpop.f32.mrf.mxu0
      %v894 = vpop.f32.mrf.mxu0
      %v895 = vadd.f32 0.0, %v894
      %v896 = vpop.f32.mrf.mxu0
      %897 = vmatprep.mubr.bf16.mxu0 0
      %898 = vmatmul.mubr.bf16.gmra.mxu0 %v623
      %v899 = vpop.f32.mrf.mxu0
      %v900 = vadd.f32 0.0, %v899
      %v901 = vpop.f32.mrf.mxu0
      %v902 = vpop.f32.mrf.mxu0
      %v903 = vadd.f32 0.0, %v902
      %v904 = vpop.f32.mrf.mxu0
      %905 = vmatprep.mubr.bf16.mxu0 0
      %906 = vmatmul.mubr.bf16.gmra.mxu0 %v626
      %v907 = vpop.f32.mrf.mxu0
      %v908 = vadd.f32 0.0, %v907
      %v909 = vpop.f32.mrf.mxu0
      %v910 = vpop.f32.mrf.mxu0
      %v911 = vadd.f32 0.0, %v910
      %v912 = vpop.f32.mrf.mxu0
      %913 = vmatprep.mubr.bf16.mxu0 0
      %914 = vmatmul.mubr.bf16.gmra.mxu0 %v629
      %v915 = vpop.f32.mrf.mxu0
      %v916 = vadd.f32 0.0, %v915
      %v917 = vpop.f32.mrf.mxu0
      %v918 = vpop.f32.mrf.mxu0
      %v919 = vadd.f32 0.0, %v918
      %v920 = vpop.f32.mrf.mxu0
      %921 = vmatprep.mubr.bf16.mxu0 0
      %922 = vmatmul.mubr.bf16.gmra.mxu0 %v632
      %v923 = vpop.f32.mrf.mxu0
      %v924 = vadd.f32 0.0, %v923
      %v925 = vpop.f32.mrf.mxu0
      %v926 = vpop.f32.mrf.mxu0
      %v927 = vadd.f32 0.0, %v926
      %v928 = vpop.f32.mrf.mxu0
      %929 = vdwg.mxu0
      %v930 = vld [vmem:[%s270] sm:$0x3]
      %v933 = vunpack.c.l.s4 1966171168
      %v934 = vunpack.c.0.s8 %v933
      %v935 = vlaneseq
      %v936 = vshrl.u32 %v935, 7
      %v937 = vsub.s32 %v934, %v936
      %v938 = vrot.slane %v930, %v937
      %v939 = vcombine.high %v938, %v938
      %v941 = vunpack.c.l.s4 1966171168
      %v942 = vunpack.c.0.s8 %v941
      %v943 = vlaneseq
      %v944 = vshrl.u32 %v943, 7
      %v945 = vsub.s32 %v942, %v944
      %v946 = vrot.slane %v938, %v945
      %v948 = vunpack.c.l.s4 1966171168
      %v949 = vunpack.c.0.s8 %v948
      %v950 = vlaneseq
      %v951 = vshrl.u32 %v950, 7
      %v952 = vsub.s32 %v949, %v951
      %v953 = vrot.slane %v939, %v952
      %v954 = vlaneseq
      %v955 = vshrl.u32 %v954, 7
      %v956 = vsub.s32 0, %v955
      %v957 = vrot.slane %v946, %v956
      %v958 = vlaneseq
      %v959 = vshrl.u32 %v958, 7
      %v960 = vsub.s32 0, %v959
      %v961 = vrot.slane %v953, %v960
      %v964 = vadd.f32 %v676, %v957
      %v965 = vadd.f32 %v679, %v957
      %v966 = vadd.f32 %v684, %v957
      %v967 = vadd.f32 %v687, %v957
      %v968 = vadd.f32 %v692, %v957
      %v969 = vadd.f32 %v695, %v957
      %v970 = vadd.f32 %v700, %v957
      %v971 = vadd.f32 %v703, %v957
      %v972 = vadd.f32 %v708, %v957
      %v973 = vadd.f32 %v711, %v957
      %v974 = vadd.f32 %v716, %v957
      %v975 = vadd.f32 %v719, %v957
      %v976 = vadd.f32 %v724, %v957
      %v977 = vadd.f32 %v727, %v957
      %v978 = vadd.f32 %v732, %v957
      %v979 = vadd.f32 %v735, %v957
      %v980 = vadd.f32 %v740, %v957
      %v981 = vadd.f32 %v743, %v957
      %v982 = vadd.f32 %v748, %v957
      %v983 = vadd.f32 %v751, %v957
      %v984 = vadd.f32 %v756, %v957
      %v985 = vadd.f32 %v759, %v957
      %v986 = vadd.f32 %v764, %v957
      %v987 = vadd.f32 %v767, %v957
      %v988 = vadd.f32 %v772, %v957
      %v989 = vadd.f32 %v775, %v957
      %v990 = vadd.f32 %v780, %v957
      %v991 = vadd.f32 %v783, %v957
      %v992 = vadd.f32 %v788, %v957
      %v993 = vadd.f32 %v791, %v957
      %v994 = vadd.f32 %v796, %v957
      %v995 = vadd.f32 %v799, %v957
      %v996 = vadd.f32 %v804, %v957
      %v997 = vadd.f32 %v807, %v957
      %v998 = vadd.f32 %v812, %v957
      %v999 = vadd.f32 %v815, %v957
      %v1000 = vadd.f32 %v820, %v957
      %v1001 = vadd.f32 %v823, %v957
      %v1002 = vadd.f32 %v828, %v957
      %v1003 = vadd.f32 %v831, %v957
      %v1004 = vadd.f32 %v836, %v957
      %v1005 = vadd.f32 %v839, %v957
      %v1006 = vadd.f32 %v844, %v957
      %v1007 = vadd.f32 %v847, %v957
      %v1008 = vadd.f32 %v852, %v957
      %v1009 = vadd.f32 %v855, %v957
      %v1010 = vadd.f32 %v860, %v957
      %v1011 = vadd.f32 %v863, %v957
      %v1012 = vadd.f32 %v868, %v957
      %v1013 = vadd.f32 %v871, %v957
      %v1014 = vadd.f32 %v876, %v957
      %v1015 = vadd.f32 %v879, %v957
      %v1016 = vadd.f32 %v884, %v957
      %v1017 = vadd.f32 %v887, %v957
      %v1018 = vadd.f32 %v892, %v957
      %v1019 = vadd.f32 %v895, %v957
      %v1020 = vadd.f32 %v900, %v957
      %v1021 = vadd.f32 %v903, %v957
      %v1022 = vadd.f32 %v908, %v957
      %v1023 = vadd.f32 %v911, %v957
      %v1024 = vadd.f32 %v916, %v957
      %v1025 = vadd.f32 %v919, %v957
      %v1026 = vadd.f32 %v924, %v957
      %v1027 = vadd.f32 %v927, %v957
      %v1028 = vadd.f32 %v676, %v961
      %v1029 = vadd.f32 %v679, %v961
      %v1030 = vadd.f32 %v684, %v961
      %v1031 = vadd.f32 %v687, %v961
      %v1032 = vadd.f32 %v692, %v961
      %v1033 = vadd.f32 %v695, %v961
      %v1034 = vadd.f32 %v700, %v961
      %v1035 = vadd.f32 %v703, %v961
      %v1036 = vadd.f32 %v708, %v961
      %v1037 = vadd.f32 %v711, %v961
      %v1038 = vadd.f32 %v716, %v961
      %v1039 = vadd.f32 %v719, %v961
      %v1040 = vadd.f32 %v724, %v961
      %v1041 = vadd.f32 %v727, %v961
      %v1042 = vadd.f32 %v732, %v961
      %v1043 = vadd.f32 %v735, %v961
      %v1044 = vadd.f32 %v740, %v961
      %v1045 = vadd.f32 %v743, %v961
      %v1046 = vadd.f32 %v748, %v961
      %v1047 = vadd.f32 %v751, %v961
      %v1048 = vadd.f32 %v756, %v961
      %v1049 = vadd.f32 %v759, %v961
      %v1050 = vadd.f32 %v764, %v961
      %v1051 = vadd.f32 %v767, %v961
      %v1052 = vadd.f32 %v772, %v961
      %v1053 = vadd.f32 %v775, %v961
      %v1054 = vadd.f32 %v780, %v961
      %v1055 = vadd.f32 %v783, %v961
      %v1056 = vadd.f32 %v788, %v961
      %v1057 = vadd.f32 %v791, %v961
      %v1058 = vadd.f32 %v796, %v961
      %v1059 = vadd.f32 %v799, %v961
      %v1060 = vadd.f32 %v804, %v961
      %v1061 = vadd.f32 %v807, %v961
      %v1062 = vadd.f32 %v812, %v961
      %v1063 = vadd.f32 %v815, %v961
      %v1064 = vadd.f32 %v820, %v961
      %v1065 = vadd.f32 %v823, %v961
      %v1066 = vadd.f32 %v828, %v961
      %v1067 = vadd.f32 %v831, %v961
      %v1068 = vadd.f32 %v836, %v961
      %v1069 = vadd.f32 %v839, %v961
      %v1070 = vadd.f32 %v844, %v961
      %v1071 = vadd.f32 %v847, %v961
      %v1072 = vadd.f32 %v852, %v961
      %v1073 = vadd.f32 %v855, %v961
      %v1074 = vadd.f32 %v860, %v961
      %v1075 = vadd.f32 %v863, %v961
      %v1076 = vadd.f32 %v868, %v961
      %v1077 = vadd.f32 %v871, %v961
      %v1078 = vadd.f32 %v876, %v961
      %v1079 = vadd.f32 %v879, %v961
      %v1080 = vadd.f32 %v884, %v961
      %v1081 = vadd.f32 %v887, %v961
      %v1082 = vadd.f32 %v892, %v961
      %v1083 = vadd.f32 %v895, %v961
      %v1084 = vadd.f32 %v900, %v961
      %v1085 = vadd.f32 %v903, %v961
      %v1086 = vadd.f32 %v908, %v961
      %v1087 = vadd.f32 %v911, %v961
      %v1088 = vadd.f32 %v916, %v961
      %v1089 = vadd.f32 %v919, %v961
      %v1090 = vadd.f32 %v924, %v961
      %v1091 = vadd.f32 %v927, %v961
      %v1092 = vmax.f32 %v964, 0.0
      %v1093 = vmax.f32 %v965, 0.0
      %v1094 = vmax.f32 %v966, 0.0
      %v1095 = vmax.f32 %v967, 0.0
      %v1096 = vmax.f32 %v968, 0.0
      %v1097 = vmax.f32 %v969, 0.0
      %v1098 = vmax.f32 %v970, 0.0
      %v1099 = vmax.f32 %v971, 0.0
      %v1100 = vmax.f32 %v972, 0.0
      %v1101 = vmax.f32 %v973, 0.0
      %v1102 = vmax.f32 %v974, 0.0
      %v1103 = vmax.f32 %v975, 0.0
      %v1104 = vmax.f32 %v976, 0.0
      %v1105 = vmax.f32 %v977, 0.0
      %v1106 = vmax.f32 %v978, 0.0
      %v1107 = vmax.f32 %v979, 0.0
      %v1108 = vmax.f32 %v980, 0.0
      %v1109 = vmax.f32 %v981, 0.0
      %v1110 = vmax.f32 %v982, 0.0
      %v1111 = vmax.f32 %v983, 0.0
      %v1112 = vmax.f32 %v984, 0.0
      %v1113 = vmax.f32 %v985, 0.0
      %v1114 = vmax.f32 %v986, 0.0
      %v1115 = vmax.f32 %v987, 0.0
      %v1116 = vmax.f32 %v988, 0.0
      %v1117 = vmax.f32 %v989, 0.0
      %v1118 = vmax.f32 %v990, 0.0
      %v1119 = vmax.f32 %v991, 0.0
      %v1120 = vmax.f32 %v992, 0.0
      %v1121 = vmax.f32 %v993, 0.0
      %v1122 = vmax.f32 %v994, 0.0
      %v1123 = vmax.f32 %v995, 0.0
      %v1124 = vmax.f32 %v996, 0.0
      %v1125 = vmax.f32 %v997, 0.0
      %v1126 = vmax.f32 %v998, 0.0
      %v1127 = vmax.f32 %v999, 0.0
      %v1128 = vmax.f32 %v1000, 0.0
      %v1129 = vmax.f32 %v1001, 0.0
      %v1130 = vmax.f32 %v1002, 0.0
      %v1131 = vmax.f32 %v1003, 0.0
      %v1132 = vmax.f32 %v1004, 0.0
      %v1133 = vmax.f32 %v1005, 0.0
      %v1134 = vmax.f32 %v1006, 0.0
      %v1135 = vmax.f32 %v1007, 0.0
      %v1136 = vmax.f32 %v1008, 0.0
      %v1137 = vmax.f32 %v1009, 0.0
      %v1138 = vmax.f32 %v1010, 0.0
      %v1139 = vmax.f32 %v1011, 0.0
      %v1140 = vmax.f32 %v1012, 0.0
      %v1141 = vmax.f32 %v1013, 0.0
      %v1142 = vmax.f32 %v1014, 0.0
      %v1143 = vmax.f32 %v1015, 0.0
      %v1144 = vmax.f32 %v1016, 0.0
      %v1145 = vmax.f32 %v1017, 0.0
      %v1146 = vmax.f32 %v1018, 0.0
      %v1147 = vmax.f32 %v1019, 0.0
      %v1148 = vmax.f32 %v1020, 0.0
      %v1149 = vmax.f32 %v1021, 0.0
      %v1150 = vmax.f32 %v1022, 0.0
      %v1151 = vmax.f32 %v1023, 0.0
      %v1152 = vmax.f32 %v1024, 0.0
      %v1153 = vmax.f32 %v1025, 0.0
      %v1154 = vmax.f32 %v1026, 0.0
      %v1155 = vmax.f32 %v1027, 0.0
      %v1156 = vmax.f32 %v1028, 0.0
      %v1157 = vmax.f32 %v1029, 0.0
      %v1158 = vmax.f32 %v1030, 0.0
      %v1159 = vmax.f32 %v1031, 0.0
      %v1160 = vmax.f32 %v1032, 0.0
      %v1161 = vmax.f32 %v1033, 0.0
      %v1162 = vmax.f32 %v1034, 0.0
      %v1163 = vmax.f32 %v1035, 0.0
      %v1164 = vmax.f32 %v1036, 0.0
      %v1165 = vmax.f32 %v1037, 0.0
      %v1166 = vmax.f32 %v1038, 0.0
      %v1167 = vmax.f32 %v1039, 0.0
      %v1168 = vmax.f32 %v1040, 0.0
      %v1169 = vmax.f32 %v1041, 0.0
      %v1170 = vmax.f32 %v1042, 0.0
      %v1171 = vmax.f32 %v1043, 0.0
      %v1172 = vmax.f32 %v1044, 0.0
      %v1173 = vmax.f32 %v1045, 0.0
      %v1174 = vmax.f32 %v1046, 0.0
      %v1175 = vmax.f32 %v1047, 0.0
      %v1176 = vmax.f32 %v1048, 0.0
      %v1177 = vmax.f32 %v1049, 0.0
      %v1178 = vmax.f32 %v1050, 0.0
      %v1179 = vmax.f32 %v1051, 0.0
      %v1180 = vmax.f32 %v1052, 0.0
      %v1181 = vmax.f32 %v1053, 0.0
      %v1182 = vmax.f32 %v1054, 0.0
      %v1183 = vmax.f32 %v1055, 0.0
      %v1184 = vmax.f32 %v1056, 0.0
      %v1185 = vmax.f32 %v1057, 0.0
      %v1186 = vmax.f32 %v1058, 0.0
      %v1187 = vmax.f32 %v1059, 0.0
      %v1188 = vmax.f32 %v1060, 0.0
      %v1189 = vmax.f32 %v1061, 0.0
      %v1190 = vmax.f32 %v1062, 0.0
      %v1191 = vmax.f32 %v1063, 0.0
      %v1192 = vmax.f32 %v1064, 0.0
      %v1193 = vmax.f32 %v1065, 0.0
      %v1194 = vmax.f32 %v1066, 0.0
      %v1195 = vmax.f32 %v1067, 0.0
      %v1196 = vmax.f32 %v1068, 0.0
      %v1197 = vmax.f32 %v1069, 0.0
      %v1198 = vmax.f32 %v1070, 0.0
      %v1199 = vmax.f32 %v1071, 0.0
      %v1200 = vmax.f32 %v1072, 0.0
      %v1201 = vmax.f32 %v1073, 0.0
      %v1202 = vmax.f32 %v1074, 0.0
      %v1203 = vmax.f32 %v1075, 0.0
      %v1204 = vmax.f32 %v1076, 0.0
      %v1205 = vmax.f32 %v1077, 0.0
      %v1206 = vmax.f32 %v1078, 0.0
      %v1207 = vmax.f32 %v1079, 0.0
      %v1208 = vmax.f32 %v1080, 0.0
      %v1209 = vmax.f32 %v1081, 0.0
      %v1210 = vmax.f32 %v1082, 0.0
      %v1211 = vmax.f32 %v1083, 0.0
      %v1212 = vmax.f32 %v1084, 0.0
      %v1213 = vmax.f32 %v1085, 0.0
      %v1214 = vmax.f32 %v1086, 0.0
      %v1215 = vmax.f32 %v1087, 0.0
      %v1216 = vmax.f32 %v1088, 0.0
      %v1217 = vmax.f32 %v1089, 0.0
      %v1218 = vmax.f32 %v1090, 0.0
      %v1219 = vmax.f32 %v1091, 0.0
      %v1220 = vld [vmem:[%s3] sm:$0xf]
      %v1221 = vld [vmem:[%s3 + $0x4] sm:$0xf]
      %v1222 = vld [vmem:[%s3 + $0x8] sm:$0xf]
      %v1223 = vld [vmem:[%s3 + $0xc] sm:$0xf]
      %v1224 = vld [vmem:[%s3 + $0x10] sm:$0xf]
      %v1225 = vld [vmem:[%s3 + $0x14] sm:$0xf]
      %v1226 = vld [vmem:[%s3 + $0x18] sm:$0xf]
      %v1227 = vld [vmem:[%s3 + $0x1c] sm:$0xf]
      %v1228 = vld [vmem:[%s4] sm:$0x1]
      %v1229 = vpack.c.bf16 %v1093, %v1092
      %v1230 = vpack.c.bf16 %v1095, %v1094
      %v1231 = vpack.c.bf16 %v1097, %v1096
      %v1232 = vpack.c.bf16 %v1099, %v1098
      %v1233 = vpack.c.bf16 %v1101, %v1100
      %v1234 = vpack.c.bf16 %v1103, %v1102
      %v1235 = vpack.c.bf16 %v1105, %v1104
      %v1236 = vpack.c.bf16 %v1107, %v1106
      %v1237 = vpack.c.bf16 %v1109, %v1108
      %v1238 = vpack.c.bf16 %v1111, %v1110
      %v1239 = vpack.c.bf16 %v1113, %v1112
      %v1240 = vpack.c.bf16 %v1115, %v1114
      %v1241 = vpack.c.bf16 %v1117, %v1116
      %v1242 = vpack.c.bf16 %v1119, %v1118
      %v1243 = vpack.c.bf16 %v1121, %v1120
      %v1244 = vpack.c.bf16 %v1123, %v1122
      %v1245 = vpack.c.bf16 %v1125, %v1124
      %v1246 = vpack.c.bf16 %v1127, %v1126
      %v1247 = vpack.c.bf16 %v1129, %v1128
      %v1248 = vpack.c.bf16 %v1131, %v1130
      %v1249 = vpack.c.bf16 %v1133, %v1132
      %v1250 = vpack.c.bf16 %v1135, %v1134
      %v1251 = vpack.c.bf16 %v1137, %v1136
      %v1252 = vpack.c.bf16 %v1139, %v1138
      %v1253 = vpack.c.bf16 %v1141, %v1140
      %v1254 = vpack.c.bf16 %v1143, %v1142
      %v1255 = vpack.c.bf16 %v1145, %v1144
      %v1256 = vpack.c.bf16 %v1147, %v1146
      %v1257 = vpack.c.bf16 %v1149, %v1148
      %v1258 = vpack.c.bf16 %v1151, %v1150
      %v1259 = vpack.c.bf16 %v1153, %v1152
      %v1260 = vpack.c.bf16 %v1155, %v1154
      %v1261 = vpack.c.bf16 %v1157, %v1156
      %v1262 = vpack.c.bf16 %v1159, %v1158
      %v1263 = vpack.c.bf16 %v1161, %v1160
      %v1264 = vpack.c.bf16 %v1163, %v1162
      %v1265 = vpack.c.bf16 %v1165, %v1164
      %v1266 = vpack.c.bf16 %v1167, %v1166
      %v1267 = vpack.c.bf16 %v1169, %v1168
      %v1268 = vpack.c.bf16 %v1171, %v1170
      %v1269 = vpack.c.bf16 %v1173, %v1172
      %v1270 = vpack.c.bf16 %v1175, %v1174
      %v1271 = vpack.c.bf16 %v1177, %v1176
      %v1272 = vpack.c.bf16 %v1179, %v1178
      %v1273 = vpack.c.bf16 %v1181, %v1180
      %v1274 = vpack.c.bf16 %v1183, %v1182
      %v1275 = vpack.c.bf16 %v1185, %v1184
      %v1276 = vpack.c.bf16 %v1187, %v1186
      %v1277 = vpack.c.bf16 %v1189, %v1188
      %v1278 = vpack.c.bf16 %v1191, %v1190
      %v1279 = vpack.c.bf16 %v1193, %v1192
      %v1280 = vpack.c.bf16 %v1195, %v1194
      %v1281 = vpack.c.bf16 %v1197, %v1196
      %v1282 = vpack.c.bf16 %v1199, %v1198
      %v1283 = vpack.c.bf16 %v1201, %v1200
      %v1284 = vpack.c.bf16 %v1203, %v1202
      %v1285 = vpack.c.bf16 %v1205, %v1204
      %v1286 = vpack.c.bf16 %v1207, %v1206
      %v1287 = vpack.c.bf16 %v1209, %v1208
      %v1288 = vpack.c.bf16 %v1211, %v1210
      %v1289 = vpack.c.bf16 %v1213, %v1212
      %v1290 = vpack.c.bf16 %v1215, %v1214
      %v1291 = vpack.c.bf16 %v1217, %v1216
      %v1292 = vpack.c.bf16 %v1219, %v1218
      %v1294 = vlaneseq
      %v1295 = vshrl.u32 %v1294, 7
      %v1296 = vsub.s32 0, %v1295
      %v1297 = vrot.slane %v1228, %v1296
      %v1307 = vunpack.c.l.b16 %v1220
      %v1308 = vunpack.c.l.b16 %v1221
      %v1309 = vunpack.c.l.b16 %v1222
      %v1310 = vunpack.c.l.b16 %v1223
      %v1311 = vunpack.c.l.b16 %v1224
      %v1312 = vunpack.c.l.b16 %v1225
      %v1313 = vunpack.c.l.b16 %v1226
      %v1314 = vunpack.c.l.b16 %v1227
      %v1315 = vpack.c.b16 %v1308, %v1307
      %v1316 = vpack.c.b16 %v1310, %v1309
      %v1317 = vpack.c.b16 %v1312, %v1311
      %v1318 = vpack.c.b16 %v1314, %v1313
      %vm1323 = vcmask 523264
      %v1325 = vsel %vm1323, %v1229, 0
      %v1328 = vsel %vm1323, %v1230, 0
      %v1331 = vsel %vm1323, %v1231, 0
      %v1334 = vsel %vm1323, %v1232, 0
      %v1337 = vsel %vm1323, %v1233, 0
      %v1340 = vsel %vm1323, %v1234, 0
      %v1343 = vsel %vm1323, %v1235, 0
      %v1346 = vsel %vm1323, %v1236, 0
      %v1349 = vsel %vm1323, %v1237, 0
      %v1352 = vsel %vm1323, %v1238, 0
      %v1355 = vsel %vm1323, %v1239, 0
      %v1358 = vsel %vm1323, %v1240, 0
      %v1361 = vsel %vm1323, %v1241, 0
      %v1364 = vsel %vm1323, %v1242, 0
      %v1367 = vsel %vm1323, %v1243, 0
      %v1370 = vsel %vm1323, %v1244, 0
      %v1373 = vsel %vm1323, %v1245, 0
      %v1376 = vsel %vm1323, %v1246, 0
      %v1379 = vsel %vm1323, %v1247, 0
      %v1382 = vsel %vm1323, %v1248, 0
      %v1385 = vsel %vm1323, %v1249, 0
      %v1388 = vsel %vm1323, %v1250, 0
      %v1391 = vsel %vm1323, %v1251, 0
      %v1394 = vsel %vm1323, %v1252, 0
      %v1397 = vsel %vm1323, %v1253, 0
      %v1400 = vsel %vm1323, %v1254, 0
      %v1403 = vsel %vm1323, %v1255, 0
      %v1406 = vsel %vm1323, %v1256, 0
      %v1409 = vsel %vm1323, %v1257, 0
      %v1412 = vsel %vm1323, %v1258, 0
      %v1415 = vsel %vm1323, %v1259, 0
      %v1418 = vsel %vm1323, %v1260, 0
      %v1421 = vsel %vm1323, %v1261, 0
      %v1424 = vsel %vm1323, %v1262, 0
      %v1427 = vsel %vm1323, %v1263, 0
      %v1430 = vsel %vm1323, %v1264, 0
      %v1433 = vsel %vm1323, %v1265, 0
      %v1436 = vsel %vm1323, %v1266, 0
      %v1439 = vsel %vm1323, %v1267, 0
      %v1442 = vsel %vm1323, %v1268, 0
      %v1445 = vsel %vm1323, %v1269, 0
      %v1448 = vsel %vm1323, %v1270, 0
      %v1451 = vsel %vm1323, %v1271, 0
      %v1454 = vsel %vm1323, %v1272, 0
      %v1457 = vsel %vm1323, %v1273, 0
      %v1460 = vsel %vm1323, %v1274, 0
      %v1463 = vsel %vm1323, %v1275, 0
      %v1466 = vsel %vm1323, %v1276, 0
      %v1469 = vsel %vm1323, %v1277, 0
      %v1472 = vsel %vm1323, %v1278, 0
      %v1475 = vsel %vm1323, %v1279, 0
      %v1478 = vsel %vm1323, %v1280, 0
      %v1481 = vsel %vm1323, %v1281, 0
      %v1484 = vsel %vm1323, %v1282, 0
      %v1487 = vsel %vm1323, %v1283, 0
      %v1490 = vsel %vm1323, %v1284, 0
      %v1493 = vsel %vm1323, %v1285, 0
      %v1496 = vsel %vm1323, %v1286, 0
      %v1499 = vsel %vm1323, %v1287, 0
      %v1502 = vsel %vm1323, %v1288, 0
      %v1505 = vsel %vm1323, %v1289, 0
      %v1508 = vsel %vm1323, %v1290, 0
      %v1511 = vsel %vm1323, %v1291, 0
      %v1514 = vsel %vm1323, %v1292, 0
      %1516 = vmatprep.subr.bf16.mxu0 0
      %1517 = vmatpush1.bf16.msra.mxu0 0
      %1518 = vmatprep.subr.bf16.mxu0 0
      %1519 = vmatpush1.bf16.msra.mxu0 0
      %1520 = vmatprep.subr.bf16.mxu0 0
      %1521 = vmatpush1.bf16.msra.mxu0 0
      %1522 = vmatprep.subr.bf16.mxu0 0
      %1523 = vmatpush1.bf16.msra.mxu0 0
      %1524 = vmatprep.subr.bf16.mxu0 0
      %1525 = vmatpush1.bf16.msra.mxu0 %v1318
      %1526 = vmatprep.subr.bf16.mxu0 0
      %1527 = vmatpush1.bf16.msra.mxu0 %v1317
      %1528 = vmatprep.subr.bf16.mxu0 0
      %1529 = vmatpush1.bf16.msra.mxu0 %v1316
      %1530 = vmatprep.subr.bf16.mxu0 0
      %1531 = vmatpush1.bf16.msra.mxu0 %v1315
      %1532 = vmatprep.subr.bf16.mxu0 0
      %1533 = vmatpush2.bf16.msra.mxu0 0
      %1534 = vmatprep.subr.bf16.mxu0 0
      %1535 = vmatpush2.bf16.msra.mxu0 0
      %1536 = vmatprep.subr.bf16.mxu0 0
      %1537 = vmatpush2.bf16.msra.mxu0 0
      %1538 = vmatprep.subr.bf16.mxu0 0
      %1539 = vmatpush2.bf16.msra.mxu0 0
      %1540 = vmatprep.subr.bf16.mxu0 0
      %1541 = vmatpush2.bf16.msra.mxu0 0
      %1542 = vmatprep.subr.bf16.mxu0 0
      %1543 = vmatpush2.bf16.msra.mxu0 0
      %1544 = vmatprep.subr.bf16.mxu0 0
      %1545 = vmatpush2.bf16.msra.mxu0 0
      %1546 = vmatprep.subr.bf16.mxu0 0
      %1547 = vmatpush2.bf16.msra.mxu0 0
      %1548 = vmatprep.mubr.bf16.mxu0 0
      %1549 = vmatmul.mubr.bf16.gmra.mxu0 %v1325
      %v1550 = vpop.f32.mrf.mxu0
      %v1551 = vadd.f32 %v1297, %v1550
      %v1552 = vpop.f32.mrf.mxu0
      %v1553 = vpop.f32.mrf.mxu0
      %v1554 = vadd.f32 %v1297, %v1553
      %v1555 = vpop.f32.mrf.mxu0
      %1556 = vmatprep.mubr.bf16.mxu0 0
      %1557 = vmatmul.mubr.bf16.gmra.mxu0 %v1328
      %v1558 = vpop.f32.mrf.mxu0
      %v1559 = vadd.f32 %v1297, %v1558
      %v1560 = vpop.f32.mrf.mxu0
      %v1561 = vpop.f32.mrf.mxu0
      %v1562 = vadd.f32 %v1297, %v1561
      %v1563 = vpop.f32.mrf.mxu0
      %1564 = vmatprep.mubr.bf16.mxu0 0
      %1565 = vmatmul.mubr.bf16.gmra.mxu0 %v1331
      %v1566 = vpop.f32.mrf.mxu0
      %v1567 = vadd.f32 %v1297, %v1566
      %v1568 = vpop.f32.mrf.mxu0
      %v1569 = vpop.f32.mrf.mxu0
      %v1570 = vadd.f32 %v1297, %v1569
      %v1571 = vpop.f32.mrf.mxu0
      %1572 = vmatprep.mubr.bf16.mxu0 0
      %1573 = vmatmul.mubr.bf16.gmra.mxu0 %v1334
      %v1574 = vpop.f32.mrf.mxu0
      %v1575 = vadd.f32 %v1297, %v1574
      %v1576 = vpop.f32.mrf.mxu0
      %v1577 = vpop.f32.mrf.mxu0
      %v1578 = vadd.f32 %v1297, %v1577
      %v1579 = vpop.f32.mrf.mxu0
      %1580 = vmatprep.mubr.bf16.mxu0 0
      %1581 = vmatmul.mubr.bf16.gmra.mxu0 %v1337
      %v1582 = vpop.f32.mrf.mxu0
      %v1583 = vadd.f32 %v1297, %v1582
      %v1584 = vpop.f32.mrf.mxu0
      %v1585 = vpop.f32.mrf.mxu0
      %v1586 = vadd.f32 %v1297, %v1585
      %v1587 = vpop.f32.mrf.mxu0
      %1588 = vmatprep.mubr.bf16.mxu0 0
      %1589 = vmatmul.mubr.bf16.gmra.mxu0 %v1340
      %v1590 = vpop.f32.mrf.mxu0
      %v1591 = vadd.f32 %v1297, %v1590
      %v1592 = vpop.f32.mrf.mxu0
      %v1593 = vpop.f32.mrf.mxu0
      %v1594 = vadd.f32 %v1297, %v1593
      %v1595 = vpop.f32.mrf.mxu0
      %1596 = vmatprep.mubr.bf16.mxu0 0
      %1597 = vmatmul.mubr.bf16.gmra.mxu0 %v1343
      %v1598 = vpop.f32.mrf.mxu0
      %v1599 = vadd.f32 %v1297, %v1598
      %v1600 = vpop.f32.mrf.mxu0
      %v1601 = vpop.f32.mrf.mxu0
      %v1602 = vadd.f32 %v1297, %v1601
      %v1603 = vpop.f32.mrf.mxu0
      %1604 = vmatprep.mubr.bf16.mxu0 0
      %1605 = vmatmul.mubr.bf16.gmra.mxu0 %v1346
      %v1606 = vpop.f32.mrf.mxu0
      %v1607 = vadd.f32 %v1297, %v1606
      %v1608 = vpop.f32.mrf.mxu0
      %v1609 = vpop.f32.mrf.mxu0
      %v1610 = vadd.f32 %v1297, %v1609
      %v1611 = vpop.f32.mrf.mxu0
      %1612 = vmatprep.mubr.bf16.mxu0 0
      %1613 = vmatmul.mubr.bf16.gmra.mxu0 %v1349
      %v1614 = vpop.f32.mrf.mxu0
      %v1615 = vadd.f32 %v1297, %v1614
      %v1616 = vpop.f32.mrf.mxu0
      %v1617 = vpop.f32.mrf.mxu0
      %v1618 = vadd.f32 %v1297, %v1617
      %v1619 = vpop.f32.mrf.mxu0
      %1620 = vmatprep.mubr.bf16.mxu0 0
      %1621 = vmatmul.mubr.bf16.gmra.mxu0 %v1352
      %v1622 = vpop.f32.mrf.mxu0
      %v1623 = vadd.f32 %v1297, %v1622
      %v1624 = vpop.f32.mrf.mxu0
      %v1625 = vpop.f32.mrf.mxu0
      %v1626 = vadd.f32 %v1297, %v1625
      %v1627 = vpop.f32.mrf.mxu0
      %1628 = vmatprep.mubr.bf16.mxu0 0
      %1629 = vmatmul.mubr.bf16.gmra.mxu0 %v1355
      %v1630 = vpop.f32.mrf.mxu0
      %v1631 = vadd.f32 %v1297, %v1630
      %v1632 = vpop.f32.mrf.mxu0
      %v1633 = vpop.f32.mrf.mxu0
      %v1634 = vadd.f32 %v1297, %v1633
      %v1635 = vpop.f32.mrf.mxu0
      %1636 = vmatprep.mubr.bf16.mxu0 0
      %1637 = vmatmul.mubr.bf16.gmra.mxu0 %v1358
      %v1638 = vpop.f32.mrf.mxu0
      %v1639 = vadd.f32 %v1297, %v1638
      %v1640 = vpop.f32.mrf.mxu0
      %v1641 = vpop.f32.mrf.mxu0
      %v1642 = vadd.f32 %v1297, %v1641
      %v1643 = vpop.f32.mrf.mxu0
      %1644 = vmatprep.mubr.bf16.mxu0 0
      %1645 = vmatmul.mubr.bf16.gmra.mxu0 %v1361
      %v1646 = vpop.f32.mrf.mxu0
      %v1647 = vadd.f32 %v1297, %v1646
      %v1648 = vpop.f32.mrf.mxu0
      %v1649 = vpop.f32.mrf.mxu0
      %v1650 = vadd.f32 %v1297, %v1649
      %v1651 = vpop.f32.mrf.mxu0
      %1652 = vmatprep.mubr.bf16.mxu0 0
      %1653 = vmatmul.mubr.bf16.gmra.mxu0 %v1364
      %v1654 = vpop.f32.mrf.mxu0
      %v1655 = vadd.f32 %v1297, %v1654
      %v1656 = vpop.f32.mrf.mxu0
      %v1657 = vpop.f32.mrf.mxu0
      %v1658 = vadd.f32 %v1297, %v1657
      %v1659 = vpop.f32.mrf.mxu0
      %1660 = vmatprep.mubr.bf16.mxu0 0
      %1661 = vmatmul.mubr.bf16.gmra.mxu0 %v1367
      %v1662 = vpop.f32.mrf.mxu0
      %v1663 = vadd.f32 %v1297, %v1662
      %v1664 = vpop.f32.mrf.mxu0
      %v1665 = vpop.f32.mrf.mxu0
      %v1666 = vadd.f32 %v1297, %v1665
      %v1667 = vpop.f32.mrf.mxu0
      %1668 = vmatprep.mubr.bf16.mxu0 0
      %1669 = vmatmul.mubr.bf16.gmra.mxu0 %v1370
      %v1670 = vpop.f32.mrf.mxu0
      %v1671 = vadd.f32 %v1297, %v1670
      %v1672 = vpop.f32.mrf.mxu0
      %v1673 = vpop.f32.mrf.mxu0
      %v1674 = vadd.f32 %v1297, %v1673
      %v1675 = vpop.f32.mrf.mxu0
      %1676 = vmatprep.mubr.bf16.mxu0 0
      %1677 = vmatmul.mubr.bf16.gmra.mxu0 %v1373
      %v1678 = vpop.f32.mrf.mxu0
      %v1679 = vadd.f32 %v1297, %v1678
      %v1680 = vpop.f32.mrf.mxu0
      %v1681 = vpop.f32.mrf.mxu0
      %v1682 = vadd.f32 %v1297, %v1681
      %v1683 = vpop.f32.mrf.mxu0
      %1684 = vmatprep.mubr.bf16.mxu0 0
      %1685 = vmatmul.mubr.bf16.gmra.mxu0 %v1376
      %v1686 = vpop.f32.mrf.mxu0
      %v1687 = vadd.f32 %v1297, %v1686
      %v1688 = vpop.f32.mrf.mxu0
      %v1689 = vpop.f32.mrf.mxu0
      %v1690 = vadd.f32 %v1297, %v1689
      %v1691 = vpop.f32.mrf.mxu0
      %1692 = vmatprep.mubr.bf16.mxu0 0
      %1693 = vmatmul.mubr.bf16.gmra.mxu0 %v1379
      %v1694 = vpop.f32.mrf.mxu0
      %v1695 = vadd.f32 %v1297, %v1694
      %v1696 = vpop.f32.mrf.mxu0
      %v1697 = vpop.f32.mrf.mxu0
      %v1698 = vadd.f32 %v1297, %v1697
      %v1699 = vpop.f32.mrf.mxu0
      %1700 = vmatprep.mubr.bf16.mxu0 0
      %1701 = vmatmul.mubr.bf16.gmra.mxu0 %v1382
      %v1702 = vpop.f32.mrf.mxu0
      %v1703 = vadd.f32 %v1297, %v1702
      %v1704 = vpop.f32.mrf.mxu0
      %v1705 = vpop.f32.mrf.mxu0
      %v1706 = vadd.f32 %v1297, %v1705
      %v1707 = vpop.f32.mrf.mxu0
      %1708 = vmatprep.mubr.bf16.mxu0 0
      %1709 = vmatmul.mubr.bf16.gmra.mxu0 %v1385
      %v1710 = vpop.f32.mrf.mxu0
      %v1711 = vadd.f32 %v1297, %v1710
      %v1712 = vpop.f32.mrf.mxu0
      %v1713 = vpop.f32.mrf.mxu0
      %v1714 = vadd.f32 %v1297, %v1713
      %v1715 = vpop.f32.mrf.mxu0
      %1716 = vmatprep.mubr.bf16.mxu0 0
      %1717 = vmatmul.mubr.bf16.gmra.mxu0 %v1388
      %v1718 = vpop.f32.mrf.mxu0
      %v1719 = vadd.f32 %v1297, %v1718
      %v1720 = vpop.f32.mrf.mxu0
      %v1721 = vpop.f32.mrf.mxu0
      %v1722 = vadd.f32 %v1297, %v1721
      %v1723 = vpop.f32.mrf.mxu0
      %1724 = vmatprep.mubr.bf16.mxu0 0
      %1725 = vmatmul.mubr.bf16.gmra.mxu0 %v1391
      %v1726 = vpop.f32.mrf.mxu0
      %v1727 = vadd.f32 %v1297, %v1726
      %v1728 = vpop.f32.mrf.mxu0
      %v1729 = vpop.f32.mrf.mxu0
      %v1730 = vadd.f32 %v1297, %v1729
      %v1731 = vpop.f32.mrf.mxu0
      %1732 = vmatprep.mubr.bf16.mxu0 0
      %1733 = vmatmul.mubr.bf16.gmra.mxu0 %v1394
      %v1734 = vpop.f32.mrf.mxu0
      %v1735 = vadd.f32 %v1297, %v1734
      %v1736 = vpop.f32.mrf.mxu0
      %v1737 = vpop.f32.mrf.mxu0
      %v1738 = vadd.f32 %v1297, %v1737
      %v1739 = vpop.f32.mrf.mxu0
      %1740 = vmatprep.mubr.bf16.mxu0 0
      %1741 = vmatmul.mubr.bf16.gmra.mxu0 %v1397
      %v1742 = vpop.f32.mrf.mxu0
      %v1743 = vadd.f32 %v1297, %v1742
      %v1744 = vpop.f32.mrf.mxu0
      %v1745 = vpop.f32.mrf.mxu0
      %v1746 = vadd.f32 %v1297, %v1745
      %v1747 = vpop.f32.mrf.mxu0
      %1748 = vmatprep.mubr.bf16.mxu0 0
      %1749 = vmatmul.mubr.bf16.gmra.mxu0 %v1400
      %v1750 = vpop.f32.mrf.mxu0
      %v1751 = vadd.f32 %v1297, %v1750
      %v1752 = vpop.f32.mrf.mxu0
      %v1753 = vpop.f32.mrf.mxu0
      %v1754 = vadd.f32 %v1297, %v1753
      %v1755 = vpop.f32.mrf.mxu0
      %1756 = vmatprep.mubr.bf16.mxu0 0
      %1757 = vmatmul.mubr.bf16.gmra.mxu0 %v1403
      %v1758 = vpop.f32.mrf.mxu0
      %v1759 = vadd.f32 %v1297, %v1758
      %v1760 = vpop.f32.mrf.mxu0
      %v1761 = vpop.f32.mrf.mxu0
      %v1762 = vadd.f32 %v1297, %v1761
      %v1763 = vpop.f32.mrf.mxu0
      %1764 = vmatprep.mubr.bf16.mxu0 0
      %1765 = vmatmul.mubr.bf16.gmra.mxu0 %v1406
      %v1766 = vpop.f32.mrf.mxu0
      %v1767 = vadd.f32 %v1297, %v1766
      %v1768 = vpop.f32.mrf.mxu0
      %v1769 = vpop.f32.mrf.mxu0
      %v1770 = vadd.f32 %v1297, %v1769
      %v1771 = vpop.f32.mrf.mxu0
      %1772 = vmatprep.mubr.bf16.mxu0 0
      %1773 = vmatmul.mubr.bf16.gmra.mxu0 %v1409
      %v1774 = vpop.f32.mrf.mxu0
      %v1775 = vadd.f32 %v1297, %v1774
      %v1776 = vpop.f32.mrf.mxu0
      %v1777 = vpop.f32.mrf.mxu0
      %v1778 = vadd.f32 %v1297, %v1777
      %v1779 = vpop.f32.mrf.mxu0
      %1780 = vmatprep.mubr.bf16.mxu0 0
      %1781 = vmatmul.mubr.bf16.gmra.mxu0 %v1412
      %v1782 = vpop.f32.mrf.mxu0
      %v1783 = vadd.f32 %v1297, %v1782
      %v1784 = vpop.f32.mrf.mxu0
      %v1785 = vpop.f32.mrf.mxu0
      %v1786 = vadd.f32 %v1297, %v1785
      %v1787 = vpop.f32.mrf.mxu0
      %1788 = vmatprep.mubr.bf16.mxu0 0
      %1789 = vmatmul.mubr.bf16.gmra.mxu0 %v1415
      %v1790 = vpop.f32.mrf.mxu0
      %v1791 = vadd.f32 %v1297, %v1790
      %v1792 = vpop.f32.mrf.mxu0
      %v1793 = vpop.f32.mrf.mxu0
      %v1794 = vadd.f32 %v1297, %v1793
      %v1795 = vpop.f32.mrf.mxu0
      %1796 = vmatprep.mubr.bf16.mxu0 0
      %1797 = vmatmul.mubr.bf16.gmra.mxu0 %v1418
      %v1798 = vpop.f32.mrf.mxu0
      %v1799 = vadd.f32 %v1297, %v1798
      %v1800 = vpop.f32.mrf.mxu0
      %v1801 = vpop.f32.mrf.mxu0
      %v1802 = vadd.f32 %v1297, %v1801
      %v1803 = vpop.f32.mrf.mxu0
      %1804 = vmatprep.mubr.bf16.mxu0 0
      %1805 = vmatmul.mubr.bf16.gmra.mxu0 %v1421
      %v1806 = vpop.f32.mrf.mxu0
      %v1807 = vadd.f32 %v1297, %v1806
      %v1808 = vpop.f32.mrf.mxu0
      %v1809 = vpop.f32.mrf.mxu0
      %v1810 = vadd.f32 %v1297, %v1809
      %v1811 = vpop.f32.mrf.mxu0
      %1812 = vmatprep.mubr.bf16.mxu0 0
      %1813 = vmatmul.mubr.bf16.gmra.mxu0 %v1424
      %v1814 = vpop.f32.mrf.mxu0
      %v1815 = vadd.f32 %v1297, %v1814
      %v1816 = vpop.f32.mrf.mxu0
      %v1817 = vpop.f32.mrf.mxu0
      %v1818 = vadd.f32 %v1297, %v1817
      %v1819 = vpop.f32.mrf.mxu0
      %1820 = vmatprep.mubr.bf16.mxu0 0
      %1821 = vmatmul.mubr.bf16.gmra.mxu0 %v1427
      %v1822 = vpop.f32.mrf.mxu0
      %v1823 = vadd.f32 %v1297, %v1822
      %v1824 = vpop.f32.mrf.mxu0
      %v1825 = vpop.f32.mrf.mxu0
      %v1826 = vadd.f32 %v1297, %v1825
      %v1827 = vpop.f32.mrf.mxu0
      %1828 = vmatprep.mubr.bf16.mxu0 0
      %1829 = vmatmul.mubr.bf16.gmra.mxu0 %v1430
      %v1830 = vpop.f32.mrf.mxu0
      %v1831 = vadd.f32 %v1297, %v1830
      %v1832 = vpop.f32.mrf.mxu0
      %v1833 = vpop.f32.mrf.mxu0
      %v1834 = vadd.f32 %v1297, %v1833
      %v1835 = vpop.f32.mrf.mxu0
      %1836 = vmatprep.mubr.bf16.mxu0 0
      %1837 = vmatmul.mubr.bf16.gmra.mxu0 %v1433
      %v1838 = vpop.f32.mrf.mxu0
      %v1839 = vadd.f32 %v1297, %v1838
      %v1840 = vpop.f32.mrf.mxu0
      %v1841 = vpop.f32.mrf.mxu0
      %v1842 = vadd.f32 %v1297, %v1841
      %v1843 = vpop.f32.mrf.mxu0
      %1844 = vmatprep.mubr.bf16.mxu0 0
      %1845 = vmatmul.mubr.bf16.gmra.mxu0 %v1436
      %v1846 = vpop.f32.mrf.mxu0
      %v1847 = vadd.f32 %v1297, %v1846
      %v1848 = vpop.f32.mrf.mxu0
      %v1849 = vpop.f32.mrf.mxu0
      %v1850 = vadd.f32 %v1297, %v1849
      %v1851 = vpop.f32.mrf.mxu0
      %1852 = vmatprep.mubr.bf16.mxu0 0
      %1853 = vmatmul.mubr.bf16.gmra.mxu0 %v1439
      %v1854 = vpop.f32.mrf.mxu0
      %v1855 = vadd.f32 %v1297, %v1854
      %v1856 = vpop.f32.mrf.mxu0
      %v1857 = vpop.f32.mrf.mxu0
      %v1858 = vadd.f32 %v1297, %v1857
      %v1859 = vpop.f32.mrf.mxu0
      %1860 = vmatprep.mubr.bf16.mxu0 0
      %1861 = vmatmul.mubr.bf16.gmra.mxu0 %v1442
      %v1862 = vpop.f32.mrf.mxu0
      %v1863 = vadd.f32 %v1297, %v1862
      %v1864 = vpop.f32.mrf.mxu0
      %v1865 = vpop.f32.mrf.mxu0
      %v1866 = vadd.f32 %v1297, %v1865
      %v1867 = vpop.f32.mrf.mxu0
      %1868 = vmatprep.mubr.bf16.mxu0 0
      %1869 = vmatmul.mubr.bf16.gmra.mxu0 %v1445
      %v1870 = vpop.f32.mrf.mxu0
      %v1871 = vadd.f32 %v1297, %v1870
      %v1872 = vpop.f32.mrf.mxu0
      %v1873 = vpop.f32.mrf.mxu0
      %v1874 = vadd.f32 %v1297, %v1873
      %v1875 = vpop.f32.mrf.mxu0
      %1876 = vmatprep.mubr.bf16.mxu0 0
      %1877 = vmatmul.mubr.bf16.gmra.mxu0 %v1448
      %v1878 = vpop.f32.mrf.mxu0
      %v1879 = vadd.f32 %v1297, %v1878
      %v1880 = vpop.f32.mrf.mxu0
      %v1881 = vpop.f32.mrf.mxu0
      %v1882 = vadd.f32 %v1297, %v1881
      %v1883 = vpop.f32.mrf.mxu0
      %1884 = vmatprep.mubr.bf16.mxu0 0
      %1885 = vmatmul.mubr.bf16.gmra.mxu0 %v1451
      %v1886 = vpop.f32.mrf.mxu0
      %v1887 = vadd.f32 %v1297, %v1886
      %v1888 = vpop.f32.mrf.mxu0
      %v1889 = vpop.f32.mrf.mxu0
      %v1890 = vadd.f32 %v1297, %v1889
      %v1891 = vpop.f32.mrf.mxu0
      %1892 = vmatprep.mubr.bf16.mxu0 0
      %1893 = vmatmul.mubr.bf16.gmra.mxu0 %v1454
      %v1894 = vpop.f32.mrf.mxu0
      %v1895 = vadd.f32 %v1297, %v1894
      %v1896 = vpop.f32.mrf.mxu0
      %v1897 = vpop.f32.mrf.mxu0
      %v1898 = vadd.f32 %v1297, %v1897
      %v1899 = vpop.f32.mrf.mxu0
      %1900 = vmatprep.mubr.bf16.mxu0 0
      %1901 = vmatmul.mubr.bf16.gmra.mxu0 %v1457
      %v1902 = vpop.f32.mrf.mxu0
      %v1903 = vadd.f32 %v1297, %v1902
      %v1904 = vpop.f32.mrf.mxu0
      %v1905 = vpop.f32.mrf.mxu0
      %v1906 = vadd.f32 %v1297, %v1905
      %v1907 = vpop.f32.mrf.mxu0
      %1908 = vmatprep.mubr.bf16.mxu0 0
      %1909 = vmatmul.mubr.bf16.gmra.mxu0 %v1460
      %v1910 = vpop.f32.mrf.mxu0
      %v1911 = vadd.f32 %v1297, %v1910
      %v1912 = vpop.f32.mrf.mxu0
      %v1913 = vpop.f32.mrf.mxu0
      %v1914 = vadd.f32 %v1297, %v1913
      %v1915 = vpop.f32.mrf.mxu0
      %1916 = vmatprep.mubr.bf16.mxu0 0
      %1917 = vmatmul.mubr.bf16.gmra.mxu0 %v1463
      %v1918 = vpop.f32.mrf.mxu0
      %v1919 = vadd.f32 %v1297, %v1918
      %v1920 = vpop.f32.mrf.mxu0
      %v1921 = vpop.f32.mrf.mxu0
      %v1922 = vadd.f32 %v1297, %v1921
      %v1923 = vpop.f32.mrf.mxu0
      %1924 = vmatprep.mubr.bf16.mxu0 0
      %1925 = vmatmul.mubr.bf16.gmra.mxu0 %v1466
      %v1926 = vpop.f32.mrf.mxu0
      %v1927 = vadd.f32 %v1297, %v1926
      %v1928 = vpop.f32.mrf.mxu0
      %v1929 = vpop.f32.mrf.mxu0
      %v1930 = vadd.f32 %v1297, %v1929
      %v1931 = vpop.f32.mrf.mxu0
      %1932 = vmatprep.mubr.bf16.mxu0 0
      %1933 = vmatmul.mubr.bf16.gmra.mxu0 %v1469
      %v1934 = vpop.f32.mrf.mxu0
      %v1935 = vadd.f32 %v1297, %v1934
      %v1936 = vpop.f32.mrf.mxu0
      %v1937 = vpop.f32.mrf.mxu0
      %v1938 = vadd.f32 %v1297, %v1937
      %v1939 = vpop.f32.mrf.mxu0
      %1940 = vmatprep.mubr.bf16.mxu0 0
      %1941 = vmatmul.mubr.bf16.gmra.mxu0 %v1472
      %v1942 = vpop.f32.mrf.mxu0
      %v1943 = vadd.f32 %v1297, %v1942
      %v1944 = vpop.f32.mrf.mxu0
      %v1945 = vpop.f32.mrf.mxu0
      %v1946 = vadd.f32 %v1297, %v1945
      %v1947 = vpop.f32.mrf.mxu0
      %1948 = vmatprep.mubr.bf16.mxu0 0
      %1949 = vmatmul.mubr.bf16.gmra.mxu0 %v1475
      %v1950 = vpop.f32.mrf.mxu0
      %v1951 = vadd.f32 %v1297, %v1950
      %v1952 = vpop.f32.mrf.mxu0
      %v1953 = vpop.f32.mrf.mxu0
      %v1954 = vadd.f32 %v1297, %v1953
      %v1955 = vpop.f32.mrf.mxu0
      %1956 = vmatprep.mubr.bf16.mxu0 0
      %1957 = vmatmul.mubr.bf16.gmra.mxu0 %v1478
      %v1958 = vpop.f32.mrf.mxu0
      %v1959 = vadd.f32 %v1297, %v1958
      %v1960 = vpop.f32.mrf.mxu0
      %v1961 = vpop.f32.mrf.mxu0
      %v1962 = vadd.f32 %v1297, %v1961
      %v1963 = vpop.f32.mrf.mxu0
      %1964 = vmatprep.mubr.bf16.mxu0 0
      %1965 = vmatmul.mubr.bf16.gmra.mxu0 %v1481
      %v1966 = vpop.f32.mrf.mxu0
      %v1967 = vadd.f32 %v1297, %v1966
      %v1968 = vpop.f32.mrf.mxu0
      %v1969 = vpop.f32.mrf.mxu0
      %v1970 = vadd.f32 %v1297, %v1969
      %v1971 = vpop.f32.mrf.mxu0
      %1972 = vmatprep.mubr.bf16.mxu0 0
      %1973 = vmatmul.mubr.bf16.gmra.mxu0 %v1484
      %v1974 = vpop.f32.mrf.mxu0
      %v1975 = vadd.f32 %v1297, %v1974
      %v1976 = vpop.f32.mrf.mxu0
      %v1977 = vpop.f32.mrf.mxu0
      %v1978 = vadd.f32 %v1297, %v1977
      %v1979 = vpop.f32.mrf.mxu0
      %1980 = vmatprep.mubr.bf16.mxu0 0
      %1981 = vmatmul.mubr.bf16.gmra.mxu0 %v1487
      %v1982 = vpop.f32.mrf.mxu0
      %v1983 = vadd.f32 %v1297, %v1982
      %v1984 = vpop.f32.mrf.mxu0
      %v1985 = vpop.f32.mrf.mxu0
      %v1986 = vadd.f32 %v1297, %v1985
      %v1987 = vpop.f32.mrf.mxu0
      %1988 = vmatprep.mubr.bf16.mxu0 0
      %1989 = vmatmul.mubr.bf16.gmra.mxu0 %v1490
      %v1990 = vpop.f32.mrf.mxu0
      %v1991 = vadd.f32 %v1297, %v1990
      %v1992 = vpop.f32.mrf.mxu0
      %v1993 = vpop.f32.mrf.mxu0
      %v1994 = vadd.f32 %v1297, %v1993
      %v1995 = vpop.f32.mrf.mxu0
      %1996 = vmatprep.mubr.bf16.mxu0 0
      %1997 = vmatmul.mubr.bf16.gmra.mxu0 %v1493
      %v1998 = vpop.f32.mrf.mxu0
      %v1999 = vadd.f32 %v1297, %v1998
      %v2000 = vpop.f32.mrf.mxu0
      %v2001 = vpop.f32.mrf.mxu0
      %v2002 = vadd.f32 %v1297, %v2001
      %v2003 = vpop.f32.mrf.mxu0
      %2004 = vmatprep.mubr.bf16.mxu0 0
      %2005 = vmatmul.mubr.bf16.gmra.mxu0 %v1496
      %v2006 = vpop.f32.mrf.mxu0
      %v2007 = vadd.f32 %v1297, %v2006
      %v2008 = vpop.f32.mrf.mxu0
      %v2009 = vpop.f32.mrf.mxu0
      %v2010 = vadd.f32 %v1297, %v2009
      %v2011 = vpop.f32.mrf.mxu0
      %2012 = vmatprep.mubr.bf16.mxu0 0
      %2013 = vmatmul.mubr.bf16.gmra.mxu0 %v1499
      %v2014 = vpop.f32.mrf.mxu0
      %v2015 = vadd.f32 %v1297, %v2014
      %v2016 = vpop.f32.mrf.mxu0
      %v2017 = vpop.f32.mrf.mxu0
      %v2018 = vadd.f32 %v1297, %v2017
      %v2019 = vpop.f32.mrf.mxu0
      %2020 = vmatprep.mubr.bf16.mxu0 0
      %2021 = vmatmul.mubr.bf16.gmra.mxu0 %v1502
      %v2022 = vpop.f32.mrf.mxu0
      %v2023 = vadd.f32 %v1297, %v2022
      %v2024 = vpop.f32.mrf.mxu0
      %v2025 = vpop.f32.mrf.mxu0
      %v2026 = vadd.f32 %v1297, %v2025
      %v2027 = vpop.f32.mrf.mxu0
      %2028 = vmatprep.mubr.bf16.mxu0 0
      %2029 = vmatmul.mubr.bf16.gmra.mxu0 %v1505
      %v2030 = vpop.f32.mrf.mxu0
      %v2031 = vadd.f32 %v1297, %v2030
      %v2032 = vpop.f32.mrf.mxu0
      %v2033 = vpop.f32.mrf.mxu0
      %v2034 = vadd.f32 %v1297, %v2033
      %v2035 = vpop.f32.mrf.mxu0
      %2036 = vmatprep.mubr.bf16.mxu0 0
      %2037 = vmatmul.mubr.bf16.gmra.mxu0 %v1508
      %v2038 = vpop.f32.mrf.mxu0
      %v2039 = vadd.f32 %v1297, %v2038
      %v2040 = vpop.f32.mrf.mxu0
      %v2041 = vpop.f32.mrf.mxu0
      %v2042 = vadd.f32 %v1297, %v2041
      %v2043 = vpop.f32.mrf.mxu0
      %2044 = vmatprep.mubr.bf16.mxu0 0
      %2045 = vmatmul.mubr.bf16.gmra.mxu0 %v1511
      %v2046 = vpop.f32.mrf.mxu0
      %v2047 = vadd.f32 %v1297, %v2046
      %v2048 = vpop.f32.mrf.mxu0
      %v2049 = vpop.f32.mrf.mxu0
      %v2050 = vadd.f32 %v1297, %v2049
      %v2051 = vpop.f32.mrf.mxu0
      %2052 = vmatprep.mubr.bf16.mxu0 0
      %2053 = vmatmul.mubr.bf16.gmra.mxu0 %v1514
      %v2054 = vpop.f32.mrf.mxu0
      %v2055 = vadd.f32 %v1297, %v2054
      %v2056 = vpop.f32.mrf.mxu0
      %v2057 = vpop.f32.mrf.mxu0
      %v2058 = vadd.f32 %v1297, %v2057
      %v2059 = vpop.f32.mrf.mxu0
      %2060 = vdwg.mxu0
      %v2061 = vmax.f32 %v1551, 0.0
      %v2062 = vmax.f32 %v1554, 0.0
      %v2063 = vmax.f32 %v1559, 0.0
      %v2064 = vmax.f32 %v1562, 0.0
      %v2065 = vmax.f32 %v1567, 0.0
      %v2066 = vmax.f32 %v1570, 0.0
      %v2067 = vmax.f32 %v1575, 0.0
      %v2068 = vmax.f32 %v1578, 0.0
      %v2069 = vmax.f32 %v1583, 0.0
      %v2070 = vmax.f32 %v1586, 0.0
      %v2071 = vmax.f32 %v1591, 0.0
      %v2072 = vmax.f32 %v1594, 0.0
      %v2073 = vmax.f32 %v1599, 0.0
      %v2074 = vmax.f32 %v1602, 0.0
      %v2075 = vmax.f32 %v1607, 0.0
      %v2076 = vmax.f32 %v1610, 0.0
      %v2077 = vmax.f32 %v1615, 0.0
      %v2078 = vmax.f32 %v1618, 0.0
      %v2079 = vmax.f32 %v1623, 0.0
      %v2080 = vmax.f32 %v1626, 0.0
      %v2081 = vmax.f32 %v1631, 0.0
      %v2082 = vmax.f32 %v1634, 0.0
      %v2083 = vmax.f32 %v1639, 0.0
      %v2084 = vmax.f32 %v1642, 0.0
      %v2085 = vmax.f32 %v1647, 0.0
      %v2086 = vmax.f32 %v1650, 0.0
      %v2087 = vmax.f32 %v1655, 0.0
      %v2088 = vmax.f32 %v1658, 0.0
      %v2089 = vmax.f32 %v1663, 0.0
      %v2090 = vmax.f32 %v1666, 0.0
      %v2091 = vmax.f32 %v1671, 0.0
      %v2092 = vmax.f32 %v1674, 0.0
      %v2093 = vmax.f32 %v1679, 0.0
      %v2094 = vmax.f32 %v1682, 0.0
      %v2095 = vmax.f32 %v1687, 0.0
      %v2096 = vmax.f32 %v1690, 0.0
      %v2097 = vmax.f32 %v1695, 0.0
      %v2098 = vmax.f32 %v1698, 0.0
      %v2099 = vmax.f32 %v1703, 0.0
      %v2100 = vmax.f32 %v1706, 0.0
      %v2101 = vmax.f32 %v1711, 0.0
      %v2102 = vmax.f32 %v1714, 0.0
      %v2103 = vmax.f32 %v1719, 0.0
      %v2104 = vmax.f32 %v1722, 0.0
      %v2105 = vmax.f32 %v1727, 0.0
      %v2106 = vmax.f32 %v1730, 0.0
      %v2107 = vmax.f32 %v1735, 0.0
      %v2108 = vmax.f32 %v1738, 0.0
      %v2109 = vmax.f32 %v1743, 0.0
      %v2110 = vmax.f32 %v1746, 0.0
      %v2111 = vmax.f32 %v1751, 0.0
      %v2112 = vmax.f32 %v1754, 0.0
      %v2113 = vmax.f32 %v1759, 0.0
      %v2114 = vmax.f32 %v1762, 0.0
      %v2115 = vmax.f32 %v1767, 0.0
      %v2116 = vmax.f32 %v1770, 0.0
      %v2117 = vmax.f32 %v1775, 0.0
      %v2118 = vmax.f32 %v1778, 0.0
      %v2119 = vmax.f32 %v1783, 0.0
      %v2120 = vmax.f32 %v1786, 0.0
      %v2121 = vmax.f32 %v1791, 0.0
      %v2122 = vmax.f32 %v1794, 0.0
      %v2123 = vmax.f32 %v1799, 0.0
      %v2124 = vmax.f32 %v1802, 0.0
      %v2125 = vmax.f32 %v1807, 0.0
      %v2126 = vmax.f32 %v1810, 0.0
      %v2127 = vmax.f32 %v1815, 0.0
      %v2128 = vmax.f32 %v1818, 0.0
      %v2129 = vmax.f32 %v1823, 0.0
      %v2130 = vmax.f32 %v1826, 0.0
      %v2131 = vmax.f32 %v1831, 0.0
      %v2132 = vmax.f32 %v1834, 0.0
      %v2133 = vmax.f32 %v1839, 0.0
      %v2134 = vmax.f32 %v1842, 0.0
      %v2135 = vmax.f32 %v1847, 0.0
      %v2136 = vmax.f32 %v1850, 0.0
      %v2137 = vmax.f32 %v1855, 0.0
      %v2138 = vmax.f32 %v1858, 0.0
      %v2139 = vmax.f32 %v1863, 0.0
      %v2140 = vmax.f32 %v1866, 0.0
      %v2141 = vmax.f32 %v1871, 0.0
      %v2142 = vmax.f32 %v1874, 0.0
      %v2143 = vmax.f32 %v1879, 0.0
      %v2144 = vmax.f32 %v1882, 0.0
      %v2145 = vmax.f32 %v1887, 0.0
      %v2146 = vmax.f32 %v1890, 0.0
      %v2147 = vmax.f32 %v1895, 0.0
      %v2148 = vmax.f32 %v1898, 0.0
      %v2149 = vmax.f32 %v1903, 0.0
      %v2150 = vmax.f32 %v1906, 0.0
      %v2151 = vmax.f32 %v1911, 0.0
      %v2152 = vmax.f32 %v1914, 0.0
      %v2153 = vmax.f32 %v1919, 0.0
      %v2154 = vmax.f32 %v1922, 0.0
      %v2155 = vmax.f32 %v1927, 0.0
      %v2156 = vmax.f32 %v1930, 0.0
      %v2157 = vmax.f32 %v1935, 0.0
      %v2158 = vmax.f32 %v1938, 0.0
      %v2159 = vmax.f32 %v1943, 0.0
      %v2160 = vmax.f32 %v1946, 0.0
      %v2161 = vmax.f32 %v1951, 0.0
      %v2162 = vmax.f32 %v1954, 0.0
      %v2163 = vmax.f32 %v1959, 0.0
      %v2164 = vmax.f32 %v1962, 0.0
      %v2165 = vmax.f32 %v1967, 0.0
      %v2166 = vmax.f32 %v1970, 0.0
      %v2167 = vmax.f32 %v1975, 0.0
      %v2168 = vmax.f32 %v1978, 0.0
      %v2169 = vmax.f32 %v1983, 0.0
      %v2170 = vmax.f32 %v1986, 0.0
      %v2171 = vmax.f32 %v1991, 0.0
      %v2172 = vmax.f32 %v1994, 0.0
      %v2173 = vmax.f32 %v1999, 0.0
      %v2174 = vmax.f32 %v2002, 0.0
      %v2175 = vmax.f32 %v2007, 0.0
      %v2176 = vmax.f32 %v2010, 0.0
      %v2177 = vmax.f32 %v2015, 0.0
      %v2178 = vmax.f32 %v2018, 0.0
      %v2179 = vmax.f32 %v2023, 0.0
      %v2180 = vmax.f32 %v2026, 0.0
      %v2181 = vmax.f32 %v2031, 0.0
      %v2182 = vmax.f32 %v2034, 0.0
      %v2183 = vmax.f32 %v2039, 0.0
      %v2184 = vmax.f32 %v2042, 0.0
      %v2185 = vmax.f32 %v2047, 0.0
      %v2186 = vmax.f32 %v2050, 0.0
      %v2187 = vmax.f32 %v2055, 0.0
      %v2188 = vmax.f32 %v2058, 0.0
      %s2189 = scalar_lea.vmem %s3, 32
      %v2190 = vld [vmem:[%s2189] sm:$0xf]
      %v2191 = vld [vmem:[%s2189 + $0x4] sm:$0xf]
      %v2192 = vld [vmem:[%s2189 + $0x8] sm:$0xf]
      %v2193 = vld [vmem:[%s2189 + $0xc] sm:$0xf]
      %v2194 = vld [vmem:[%s2189 + $0x10] sm:$0xf]
      %v2195 = vld [vmem:[%s2189 + $0x14] sm:$0xf]
      %v2196 = vld [vmem:[%s2189 + $0x18] sm:$0xf]
      %v2197 = vld [vmem:[%s2189 + $0x1c] sm:$0xf]
      %s2198 = scalar_lea.vmem %s4, 1
      %v2199 = vld [vmem:[%s2198] sm:$0x1]
      %v2200 = vpack.c.bf16 %v2062, %v2061
      %v2201 = vpack.c.bf16 %v2064, %v2063
      %v2202 = vpack.c.bf16 %v2066, %v2065
      %v2203 = vpack.c.bf16 %v2068, %v2067
      %v2204 = vpack.c.bf16 %v2070, %v2069
      %v2205 = vpack.c.bf16 %v2072, %v2071
      %v2206 = vpack.c.bf16 %v2074, %v2073
      %v2207 = vpack.c.bf16 %v2076, %v2075
      %v2208 = vpack.c.bf16 %v2078, %v2077
      %v2209 = vpack.c.bf16 %v2080, %v2079
      %v2210 = vpack.c.bf16 %v2082, %v2081
      %v2211 = vpack.c.bf16 %v2084, %v2083
      %v2212 = vpack.c.bf16 %v2086, %v2085
      %v2213 = vpack.c.bf16 %v2088, %v2087
      %v2214 = vpack.c.bf16 %v2090, %v2089
      %v2215 = vpack.c.bf16 %v2092, %v2091
      %v2216 = vpack.c.bf16 %v2094, %v2093
      %v2217 = vpack.c.bf16 %v2096, %v2095
      %v2218 = vpack.c.bf16 %v2098, %v2097
      %v2219 = vpack.c.bf16 %v2100, %v2099
      %v2220 = vpack.c.bf16 %v2102, %v2101
      %v2221 = vpack.c.bf16 %v2104, %v2103
      %v2222 = vpack.c.bf16 %v2106, %v2105
      %v2223 = vpack.c.bf16 %v2108, %v2107
      %v2224 = vpack.c.bf16 %v2110, %v2109
      %v2225 = vpack.c.bf16 %v2112, %v2111
      %v2226 = vpack.c.bf16 %v2114, %v2113
      %v2227 = vpack.c.bf16 %v2116, %v2115
      %v2228 = vpack.c.bf16 %v2118, %v2117
      %v2229 = vpack.c.bf16 %v2120, %v2119
      %v2230 = vpack.c.bf16 %v2122, %v2121
      %v2231 = vpack.c.bf16 %v2124, %v2123
      %v2232 = vpack.c.bf16 %v2126, %v2125
      %v2233 = vpack.c.bf16 %v2128, %v2127
      %v2234 = vpack.c.bf16 %v2130, %v2129
      %v2235 = vpack.c.bf16 %v2132, %v2131
      %v2236 = vpack.c.bf16 %v2134, %v2133
      %v2237 = vpack.c.bf16 %v2136, %v2135
      %v2238 = vpack.c.bf16 %v2138, %v2137
      %v2239 = vpack.c.bf16 %v2140, %v2139
      %v2240 = vpack.c.bf16 %v2142, %v2141
      %v2241 = vpack.c.bf16 %v2144, %v2143
      %v2242 = vpack.c.bf16 %v2146, %v2145
      %v2243 = vpack.c.bf16 %v2148, %v2147
      %v2244 = vpack.c.bf16 %v2150, %v2149
      %v2245 = vpack.c.bf16 %v2152, %v2151
      %v2246 = vpack.c.bf16 %v2154, %v2153
      %v2247 = vpack.c.bf16 %v2156, %v2155
      %v2248 = vpack.c.bf16 %v2158, %v2157
      %v2249 = vpack.c.bf16 %v2160, %v2159
      %v2250 = vpack.c.bf16 %v2162, %v2161
      %v2251 = vpack.c.bf16 %v2164, %v2163
      %v2252 = vpack.c.bf16 %v2166, %v2165
      %v2253 = vpack.c.bf16 %v2168, %v2167
      %v2254 = vpack.c.bf16 %v2170, %v2169
      %v2255 = vpack.c.bf16 %v2172, %v2171
      %v2256 = vpack.c.bf16 %v2174, %v2173
      %v2257 = vpack.c.bf16 %v2176, %v2175
      %v2258 = vpack.c.bf16 %v2178, %v2177
      %v2259 = vpack.c.bf16 %v2180, %v2179
      %v2260 = vpack.c.bf16 %v2182, %v2181
      %v2261 = vpack.c.bf16 %v2184, %v2183
      %v2262 = vpack.c.bf16 %v2186, %v2185
      %v2263 = vpack.c.bf16 %v2188, %v2187
      %v2265 = vlaneseq
      %v2266 = vshrl.u32 %v2265, 7
      %v2267 = vsub.s32 0, %v2266
      %v2268 = vrot.slane %v2199, %v2267
      %v2278 = vunpack.c.l.b16 %v2190
      %v2279 = vunpack.c.l.b16 %v2191
      %v2280 = vunpack.c.l.b16 %v2192
      %v2281 = vunpack.c.l.b16 %v2193
      %v2282 = vunpack.c.l.b16 %v2194
      %v2283 = vunpack.c.l.b16 %v2195
      %v2284 = vunpack.c.l.b16 %v2196
      %v2285 = vunpack.c.l.b16 %v2197
      %v2286 = vpack.c.b16 %v2279, %v2278
      %v2287 = vpack.c.b16 %v2281, %v2280
      %v2288 = vpack.c.b16 %v2283, %v2282
      %v2289 = vpack.c.b16 %v2285, %v2284
      %v2295 = vsel %vm1323, %v2200, 0
      %v2298 = vsel %vm1323, %v2201, 0
      %v2301 = vsel %vm1323, %v2202, 0
      %v2304 = vsel %vm1323, %v2203, 0
      %v2307 = vsel %vm1323, %v2204, 0
      %v2310 = vsel %vm1323, %v2205, 0
      %v2313 = vsel %vm1323, %v2206, 0
      %v2316 = vsel %vm1323, %v2207, 0
      %v2319 = vsel %vm1323, %v2208, 0
      %v2322 = vsel %vm1323, %v2209, 0
      %v2325 = vsel %vm1323, %v2210, 0
      %v2328 = vsel %vm1323, %v2211, 0
      %v2331 = vsel %vm1323, %v2212, 0
      %v2334 = vsel %vm1323, %v2213, 0
      %v2337 = vsel %vm1323, %v2214, 0
      %v2340 = vsel %vm1323, %v2215, 0
      %v2343 = vsel %vm1323, %v2216, 0
      %v2346 = vsel %vm1323, %v2217, 0
      %v2349 = vsel %vm1323, %v2218, 0
      %v2352 = vsel %vm1323, %v2219, 0
      %v2355 = vsel %vm1323, %v2220, 0
      %v2358 = vsel %vm1323, %v2221, 0
      %v2361 = vsel %vm1323, %v2222, 0
      %v2364 = vsel %vm1323, %v2223, 0
      %v2367 = vsel %vm1323, %v2224, 0
      %v2370 = vsel %vm1323, %v2225, 0
      %v2373 = vsel %vm1323, %v2226, 0
      %v2376 = vsel %vm1323, %v2227, 0
      %v2379 = vsel %vm1323, %v2228, 0
      %v2382 = vsel %vm1323, %v2229, 0
      %v2385 = vsel %vm1323, %v2230, 0
      %v2388 = vsel %vm1323, %v2231, 0
      %v2391 = vsel %vm1323, %v2232, 0
      %v2394 = vsel %vm1323, %v2233, 0
      %v2397 = vsel %vm1323, %v2234, 0
      %v2400 = vsel %vm1323, %v2235, 0
      %v2403 = vsel %vm1323, %v2236, 0
      %v2406 = vsel %vm1323, %v2237, 0
      %v2409 = vsel %vm1323, %v2238, 0
      %v2412 = vsel %vm1323, %v2239, 0
      %v2415 = vsel %vm1323, %v2240, 0
      %v2418 = vsel %vm1323, %v2241, 0
      %v2421 = vsel %vm1323, %v2242, 0
      %v2424 = vsel %vm1323, %v2243, 0
      %v2427 = vsel %vm1323, %v2244, 0
      %v2430 = vsel %vm1323, %v2245, 0
      %v2433 = vsel %vm1323, %v2246, 0
      %v2436 = vsel %vm1323, %v2247, 0
      %v2439 = vsel %vm1323, %v2248, 0
      %v2442 = vsel %vm1323, %v2249, 0
      %v2445 = vsel %vm1323, %v2250, 0
      %v2448 = vsel %vm1323, %v2251, 0
      %v2451 = vsel %vm1323, %v2252, 0
      %v2454 = vsel %vm1323, %v2253, 0
      %v2457 = vsel %vm1323, %v2254, 0
      %v2460 = vsel %vm1323, %v2255, 0
      %v2463 = vsel %vm1323, %v2256, 0
      %v2466 = vsel %vm1323, %v2257, 0
      %v2469 = vsel %vm1323, %v2258, 0
      %v2472 = vsel %vm1323, %v2259, 0
      %v2475 = vsel %vm1323, %v2260, 0
      %v2478 = vsel %vm1323, %v2261, 0
      %v2481 = vsel %vm1323, %v2262, 0
      %v2484 = vsel %vm1323, %v2263, 0
      %2486 = vmatprep.subr.bf16.mxu0 0
      %2487 = vmatpush1.bf16.msra.mxu0 0
      %2488 = vmatprep.subr.bf16.mxu0 0
      %2489 = vmatpush1.bf16.msra.mxu0 0
      %2490 = vmatprep.subr.bf16.mxu0 0
      %2491 = vmatpush1.bf16.msra.mxu0 0
      %2492 = vmatprep.subr.bf16.mxu0 0
      %2493 = vmatpush1.bf16.msra.mxu0 0
      %2494 = vmatprep.subr.bf16.mxu0 0
      %2495 = vmatpush1.bf16.msra.mxu0 %v2289
      %2496 = vmatprep.subr.bf16.mxu0 0
      %2497 = vmatpush1.bf16.msra.mxu0 %v2288
      %2498 = vmatprep.subr.bf16.mxu0 0
      %2499 = vmatpush1.bf16.msra.mxu0 %v2287
      %2500 = vmatprep.subr.bf16.mxu0 0
      %2501 = vmatpush1.bf16.msra.mxu0 %v2286
      %2502 = vmatprep.subr.bf16.mxu0 0
      %2503 = vmatpush2.bf16.msra.mxu0 0
      %2504 = vmatprep.subr.bf16.mxu0 0
      %2505 = vmatpush2.bf16.msra.mxu0 0
      %2506 = vmatprep.subr.bf16.mxu0 0
      %2507 = vmatpush2.bf16.msra.mxu0 0
      %2508 = vmatprep.subr.bf16.mxu0 0
      %2509 = vmatpush2.bf16.msra.mxu0 0
      %2510 = vmatprep.subr.bf16.mxu0 0
      %2511 = vmatpush2.bf16.msra.mxu0 0
      %2512 = vmatprep.subr.bf16.mxu0 0
      %2513 = vmatpush2.bf16.msra.mxu0 0
      %2514 = vmatprep.subr.bf16.mxu0 0
      %2515 = vmatpush2.bf16.msra.mxu0 0
      %2516 = vmatprep.subr.bf16.mxu0 0
      %2517 = vmatpush2.bf16.msra.mxu0 0
      %2518 = vmatprep.mubr.bf16.mxu0 0
      %2519 = vmatmul.mubr.bf16.gmra.mxu0 %v2295
      %v2520 = vpop.f32.mrf.mxu0
      %v2521 = vadd.f32 %v2268, %v2520
      %v2522 = vpop.f32.mrf.mxu0
      %v2523 = vpop.f32.mrf.mxu0
      %v2524 = vadd.f32 %v2268, %v2523
      %v2525 = vpop.f32.mrf.mxu0
      %2526 = vmatprep.mubr.bf16.mxu0 0
      %2527 = vmatmul.mubr.bf16.gmra.mxu0 %v2298
      %v2528 = vpop.f32.mrf.mxu0
      %v2529 = vadd.f32 %v2268, %v2528
      %v2530 = vpop.f32.mrf.mxu0
      %v2531 = vpop.f32.mrf.mxu0
      %v2532 = vadd.f32 %v2268, %v2531
      %v2533 = vpop.f32.mrf.mxu0
      %2534 = vmatprep.mubr.bf16.mxu0 0
      %2535 = vmatmul.mubr.bf16.gmra.mxu0 %v2301
      %v2536 = vpop.f32.mrf.mxu0
      %v2537 = vadd.f32 %v2268, %v2536
      %v2538 = vpop.f32.mrf.mxu0
      %v2539 = vpop.f32.mrf.mxu0
      %v2540 = vadd.f32 %v2268, %v2539
      %v2541 = vpop.f32.mrf.mxu0
      %2542 = vmatprep.mubr.bf16.mxu0 0
      %2543 = vmatmul.mubr.bf16.gmra.mxu0 %v2304
      %v2544 = vpop.f32.mrf.mxu0
      %v2545 = vadd.f32 %v2268, %v2544
      %v2546 = vpop.f32.mrf.mxu0
      %v2547 = vpop.f32.mrf.mxu0
      %v2548 = vadd.f32 %v2268, %v2547
      %v2549 = vpop.f32.mrf.mxu0
      %2550 = vmatprep.mubr.bf16.mxu0 0
      %2551 = vmatmul.mubr.bf16.gmra.mxu0 %v2307
      %v2552 = vpop.f32.mrf.mxu0
      %v2553 = vadd.f32 %v2268, %v2552
      %v2554 = vpop.f32.mrf.mxu0
      %v2555 = vpop.f32.mrf.mxu0
      %v2556 = vadd.f32 %v2268, %v2555
      %v2557 = vpop.f32.mrf.mxu0
      %2558 = vmatprep.mubr.bf16.mxu0 0
      %2559 = vmatmul.mubr.bf16.gmra.mxu0 %v2310
      %v2560 = vpop.f32.mrf.mxu0
      %v2561 = vadd.f32 %v2268, %v2560
      %v2562 = vpop.f32.mrf.mxu0
      %v2563 = vpop.f32.mrf.mxu0
      %v2564 = vadd.f32 %v2268, %v2563
      %v2565 = vpop.f32.mrf.mxu0
      %2566 = vmatprep.mubr.bf16.mxu0 0
      %2567 = vmatmul.mubr.bf16.gmra.mxu0 %v2313
      %v2568 = vpop.f32.mrf.mxu0
      %v2569 = vadd.f32 %v2268, %v2568
      %v2570 = vpop.f32.mrf.mxu0
      %v2571 = vpop.f32.mrf.mxu0
      %v2572 = vadd.f32 %v2268, %v2571
      %v2573 = vpop.f32.mrf.mxu0
      %2574 = vmatprep.mubr.bf16.mxu0 0
      %2575 = vmatmul.mubr.bf16.gmra.mxu0 %v2316
      %v2576 = vpop.f32.mrf.mxu0
      %v2577 = vadd.f32 %v2268, %v2576
      %v2578 = vpop.f32.mrf.mxu0
      %v2579 = vpop.f32.mrf.mxu0
      %v2580 = vadd.f32 %v2268, %v2579
      %v2581 = vpop.f32.mrf.mxu0
      %2582 = vmatprep.mubr.bf16.mxu0 0
      %2583 = vmatmul.mubr.bf16.gmra.mxu0 %v2319
      %v2584 = vpop.f32.mrf.mxu0
      %v2585 = vadd.f32 %v2268, %v2584
      %v2586 = vpop.f32.mrf.mxu0
      %v2587 = vpop.f32.mrf.mxu0
      %v2588 = vadd.f32 %v2268, %v2587
      %v2589 = vpop.f32.mrf.mxu0
      %2590 = vmatprep.mubr.bf16.mxu0 0
      %2591 = vmatmul.mubr.bf16.gmra.mxu0 %v2322
      %v2592 = vpop.f32.mrf.mxu0
      %v2593 = vadd.f32 %v2268, %v2592
      %v2594 = vpop.f32.mrf.mxu0
      %v2595 = vpop.f32.mrf.mxu0
      %v2596 = vadd.f32 %v2268, %v2595
      %v2597 = vpop.f32.mrf.mxu0
      %2598 = vmatprep.mubr.bf16.mxu0 0
      %2599 = vmatmul.mubr.bf16.gmra.mxu0 %v2325
      %v2600 = vpop.f32.mrf.mxu0
      %v2601 = vadd.f32 %v2268, %v2600
      %v2602 = vpop.f32.mrf.mxu0
      %v2603 = vpop.f32.mrf.mxu0
      %v2604 = vadd.f32 %v2268, %v2603
      %v2605 = vpop.f32.mrf.mxu0
      %2606 = vmatprep.mubr.bf16.mxu0 0
      %2607 = vmatmul.mubr.bf16.gmra.mxu0 %v2328
      %v2608 = vpop.f32.mrf.mxu0
      %v2609 = vadd.f32 %v2268, %v2608
      %v2610 = vpop.f32.mrf.mxu0
      %v2611 = vpop.f32.mrf.mxu0
      %v2612 = vadd.f32 %v2268, %v2611
      %v2613 = vpop.f32.mrf.mxu0
      %2614 = vmatprep.mubr.bf16.mxu0 0
      %2615 = vmatmul.mubr.bf16.gmra.mxu0 %v2331
      %v2616 = vpop.f32.mrf.mxu0
      %v2617 = vadd.f32 %v2268, %v2616
      %v2618 = vpop.f32.mrf.mxu0
      %v2619 = vpop.f32.mrf.mxu0
      %v2620 = vadd.f32 %v2268, %v2619
      %v2621 = vpop.f32.mrf.mxu0
      %2622 = vmatprep.mubr.bf16.mxu0 0
      %2623 = vmatmul.mubr.bf16.gmra.mxu0 %v2334
      %v2624 = vpop.f32.mrf.mxu0
      %v2625 = vadd.f32 %v2268, %v2624
      %v2626 = vpop.f32.mrf.mxu0
      %v2627 = vpop.f32.mrf.mxu0
      %v2628 = vadd.f32 %v2268, %v2627
      %v2629 = vpop.f32.mrf.mxu0
      %2630 = vmatprep.mubr.bf16.mxu0 0
      %2631 = vmatmul.mubr.bf16.gmra.mxu0 %v2337
      %v2632 = vpop.f32.mrf.mxu0
      %v2633 = vadd.f32 %v2268, %v2632
      %v2634 = vpop.f32.mrf.mxu0
      %v2635 = vpop.f32.mrf.mxu0
      %v2636 = vadd.f32 %v2268, %v2635
      %v2637 = vpop.f32.mrf.mxu0
      %2638 = vmatprep.mubr.bf16.mxu0 0
      %2639 = vmatmul.mubr.bf16.gmra.mxu0 %v2340
      %v2640 = vpop.f32.mrf.mxu0
      %v2641 = vadd.f32 %v2268, %v2640
      %v2642 = vpop.f32.mrf.mxu0
      %v2643 = vpop.f32.mrf.mxu0
      %v2644 = vadd.f32 %v2268, %v2643
      %v2645 = vpop.f32.mrf.mxu0
      %2646 = vmatprep.mubr.bf16.mxu0 0
      %2647 = vmatmul.mubr.bf16.gmra.mxu0 %v2343
      %v2648 = vpop.f32.mrf.mxu0
      %v2649 = vadd.f32 %v2268, %v2648
      %v2650 = vpop.f32.mrf.mxu0
      %v2651 = vpop.f32.mrf.mxu0
      %v2652 = vadd.f32 %v2268, %v2651
      %v2653 = vpop.f32.mrf.mxu0
      %2654 = vmatprep.mubr.bf16.mxu0 0
      %2655 = vmatmul.mubr.bf16.gmra.mxu0 %v2346
      %v2656 = vpop.f32.mrf.mxu0
      %v2657 = vadd.f32 %v2268, %v2656
      %v2658 = vpop.f32.mrf.mxu0
      %v2659 = vpop.f32.mrf.mxu0
      %v2660 = vadd.f32 %v2268, %v2659
      %v2661 = vpop.f32.mrf.mxu0
      %2662 = vmatprep.mubr.bf16.mxu0 0
      %2663 = vmatmul.mubr.bf16.gmra.mxu0 %v2349
      %v2664 = vpop.f32.mrf.mxu0
      %v2665 = vadd.f32 %v2268, %v2664
      %v2666 = vpop.f32.mrf.mxu0
      %v2667 = vpop.f32.mrf.mxu0
      %v2668 = vadd.f32 %v2268, %v2667
      %v2669 = vpop.f32.mrf.mxu0
      %2670 = vmatprep.mubr.bf16.mxu0 0
      %2671 = vmatmul.mubr.bf16.gmra.mxu0 %v2352
      %v2672 = vpop.f32.mrf.mxu0
      %v2673 = vadd.f32 %v2268, %v2672
      %v2674 = vpop.f32.mrf.mxu0
      %v2675 = vpop.f32.mrf.mxu0
      %v2676 = vadd.f32 %v2268, %v2675
      %v2677 = vpop.f32.mrf.mxu0
      %2678 = vmatprep.mubr.bf16.mxu0 0
      %2679 = vmatmul.mubr.bf16.gmra.mxu0 %v2355
      %v2680 = vpop.f32.mrf.mxu0
      %v2681 = vadd.f32 %v2268, %v2680
      %v2682 = vpop.f32.mrf.mxu0
      %v2683 = vpop.f32.mrf.mxu0
      %v2684 = vadd.f32 %v2268, %v2683
      %v2685 = vpop.f32.mrf.mxu0
      %2686 = vmatprep.mubr.bf16.mxu0 0
      %2687 = vmatmul.mubr.bf16.gmra.mxu0 %v2358
      %v2688 = vpop.f32.mrf.mxu0
      %v2689 = vadd.f32 %v2268, %v2688
      %v2690 = vpop.f32.mrf.mxu0
      %v2691 = vpop.f32.mrf.mxu0
      %v2692 = vadd.f32 %v2268, %v2691
      %v2693 = vpop.f32.mrf.mxu0
      %2694 = vmatprep.mubr.bf16.mxu0 0
      %2695 = vmatmul.mubr.bf16.gmra.mxu0 %v2361
      %v2696 = vpop.f32.mrf.mxu0
      %v2697 = vadd.f32 %v2268, %v2696
      %v2698 = vpop.f32.mrf.mxu0
      %v2699 = vpop.f32.mrf.mxu0
      %v2700 = vadd.f32 %v2268, %v2699
      %v2701 = vpop.f32.mrf.mxu0
      %2702 = vmatprep.mubr.bf16.mxu0 0
      %2703 = vmatmul.mubr.bf16.gmra.mxu0 %v2364
      %v2704 = vpop.f32.mrf.mxu0
      %v2705 = vadd.f32 %v2268, %v2704
      %v2706 = vpop.f32.mrf.mxu0
      %v2707 = vpop.f32.mrf.mxu0
      %v2708 = vadd.f32 %v2268, %v2707
      %v2709 = vpop.f32.mrf.mxu0
      %2710 = vmatprep.mubr.bf16.mxu0 0
      %2711 = vmatmul.mubr.bf16.gmra.mxu0 %v2367
      %v2712 = vpop.f32.mrf.mxu0
      %v2713 = vadd.f32 %v2268, %v2712
      %v2714 = vpop.f32.mrf.mxu0
      %v2715 = vpop.f32.mrf.mxu0
      %v2716 = vadd.f32 %v2268, %v2715
      %v2717 = vpop.f32.mrf.mxu0
      %2718 = vmatprep.mubr.bf16.mxu0 0
      %2719 = vmatmul.mubr.bf16.gmra.mxu0 %v2370
      %v2720 = vpop.f32.mrf.mxu0
      %v2721 = vadd.f32 %v2268, %v2720
      %v2722 = vpop.f32.mrf.mxu0
      %v2723 = vpop.f32.mrf.mxu0
      %v2724 = vadd.f32 %v2268, %v2723
      %v2725 = vpop.f32.mrf.mxu0
      %2726 = vmatprep.mubr.bf16.mxu0 0
      %2727 = vmatmul.mubr.bf16.gmra.mxu0 %v2373
      %v2728 = vpop.f32.mrf.mxu0
      %v2729 = vadd.f32 %v2268, %v2728
      %v2730 = vpop.f32.mrf.mxu0
      %v2731 = vpop.f32.mrf.mxu0
      %v2732 = vadd.f32 %v2268, %v2731
      %v2733 = vpop.f32.mrf.mxu0
      %2734 = vmatprep.mubr.bf16.mxu0 0
      %2735 = vmatmul.mubr.bf16.gmra.mxu0 %v2376
      %v2736 = vpop.f32.mrf.mxu0
      %v2737 = vadd.f32 %v2268, %v2736
      %v2738 = vpop.f32.mrf.mxu0
      %v2739 = vpop.f32.mrf.mxu0
      %v2740 = vadd.f32 %v2268, %v2739
      %v2741 = vpop.f32.mrf.mxu0
      %2742 = vmatprep.mubr.bf16.mxu0 0
      %2743 = vmatmul.mubr.bf16.gmra.mxu0 %v2379
      %v2744 = vpop.f32.mrf.mxu0
      %v2745 = vadd.f32 %v2268, %v2744
      %v2746 = vpop.f32.mrf.mxu0
      %v2747 = vpop.f32.mrf.mxu0
      %v2748 = vadd.f32 %v2268, %v2747
      %v2749 = vpop.f32.mrf.mxu0
      %2750 = vmatprep.mubr.bf16.mxu0 0
      %2751 = vmatmul.mubr.bf16.gmra.mxu0 %v2382
      %v2752 = vpop.f32.mrf.mxu0
      %v2753 = vadd.f32 %v2268, %v2752
      %v2754 = vpop.f32.mrf.mxu0
      %v2755 = vpop.f32.mrf.mxu0
      %v2756 = vadd.f32 %v2268, %v2755
      %v2757 = vpop.f32.mrf.mxu0
      %2758 = vmatprep.mubr.bf16.mxu0 0
      %2759 = vmatmul.mubr.bf16.gmra.mxu0 %v2385
      %v2760 = vpop.f32.mrf.mxu0
      %v2761 = vadd.f32 %v2268, %v2760
      %v2762 = vpop.f32.mrf.mxu0
      %v2763 = vpop.f32.mrf.mxu0
      %v2764 = vadd.f32 %v2268, %v2763
      %v2765 = vpop.f32.mrf.mxu0
      %2766 = vmatprep.mubr.bf16.mxu0 0
      %2767 = vmatmul.mubr.bf16.gmra.mxu0 %v2388
      %v2768 = vpop.f32.mrf.mxu0
      %v2769 = vadd.f32 %v2268, %v2768
      %v2770 = vpop.f32.mrf.mxu0
      %v2771 = vpop.f32.mrf.mxu0
      %v2772 = vadd.f32 %v2268, %v2771
      %v2773 = vpop.f32.mrf.mxu0
      %2774 = vmatprep.mubr.bf16.mxu0 0
      %2775 = vmatmul.mubr.bf16.gmra.mxu0 %v2391
      %v2776 = vpop.f32.mrf.mxu0
      %v2777 = vadd.f32 %v2268, %v2776
      %v2778 = vpop.f32.mrf.mxu0
      %v2779 = vpop.f32.mrf.mxu0
      %v2780 = vadd.f32 %v2268, %v2779
      %v2781 = vpop.f32.mrf.mxu0
      %2782 = vmatprep.mubr.bf16.mxu0 0
      %2783 = vmatmul.mubr.bf16.gmra.mxu0 %v2394
      %v2784 = vpop.f32.mrf.mxu0
      %v2785 = vadd.f32 %v2268, %v2784
      %v2786 = vpop.f32.mrf.mxu0
      %v2787 = vpop.f32.mrf.mxu0
      %v2788 = vadd.f32 %v2268, %v2787
      %v2789 = vpop.f32.mrf.mxu0
      %2790 = vmatprep.mubr.bf16.mxu0 0
      %2791 = vmatmul.mubr.bf16.gmra.mxu0 %v2397
      %v2792 = vpop.f32.mrf.mxu0
      %v2793 = vadd.f32 %v2268, %v2792
      %v2794 = vpop.f32.mrf.mxu0
      %v2795 = vpop.f32.mrf.mxu0
      %v2796 = vadd.f32 %v2268, %v2795
      %v2797 = vpop.f32.mrf.mxu0
      %2798 = vmatprep.mubr.bf16.mxu0 0
      %2799 = vmatmul.mubr.bf16.gmra.mxu0 %v2400
      %v2800 = vpop.f32.mrf.mxu0
      %v2801 = vadd.f32 %v2268, %v2800
      %v2802 = vpop.f32.mrf.mxu0
      %v2803 = vpop.f32.mrf.mxu0
      %v2804 = vadd.f32 %v2268, %v2803
      %v2805 = vpop.f32.mrf.mxu0
      %2806 = vmatprep.mubr.bf16.mxu0 0
      %2807 = vmatmul.mubr.bf16.gmra.mxu0 %v2403
      %v2808 = vpop.f32.mrf.mxu0
      %v2809 = vadd.f32 %v2268, %v2808
      %v2810 = vpop.f32.mrf.mxu0
      %v2811 = vpop.f32.mrf.mxu0
      %v2812 = vadd.f32 %v2268, %v2811
      %v2813 = vpop.f32.mrf.mxu0
      %2814 = vmatprep.mubr.bf16.mxu0 0
      %2815 = vmatmul.mubr.bf16.gmra.mxu0 %v2406
      %v2816 = vpop.f32.mrf.mxu0
      %v2817 = vadd.f32 %v2268, %v2816
      %v2818 = vpop.f32.mrf.mxu0
      %v2819 = vpop.f32.mrf.mxu0
      %v2820 = vadd.f32 %v2268, %v2819
      %v2821 = vpop.f32.mrf.mxu0
      %2822 = vmatprep.mubr.bf16.mxu0 0
      %2823 = vmatmul.mubr.bf16.gmra.mxu0 %v2409
      %v2824 = vpop.f32.mrf.mxu0
      %v2825 = vadd.f32 %v2268, %v2824
      %v2826 = vpop.f32.mrf.mxu0
      %v2827 = vpop.f32.mrf.mxu0
      %v2828 = vadd.f32 %v2268, %v2827
      %v2829 = vpop.f32.mrf.mxu0
      %2830 = vmatprep.mubr.bf16.mxu0 0
      %2831 = vmatmul.mubr.bf16.gmra.mxu0 %v2412
      %v2832 = vpop.f32.mrf.mxu0
      %v2833 = vadd.f32 %v2268, %v2832
      %v2834 = vpop.f32.mrf.mxu0
      %v2835 = vpop.f32.mrf.mxu0
      %v2836 = vadd.f32 %v2268, %v2835
      %v2837 = vpop.f32.mrf.mxu0
      %2838 = vmatprep.mubr.bf16.mxu0 0
      %2839 = vmatmul.mubr.bf16.gmra.mxu0 %v2415
      %v2840 = vpop.f32.mrf.mxu0
      %v2841 = vadd.f32 %v2268, %v2840
      %v2842 = vpop.f32.mrf.mxu0
      %v2843 = vpop.f32.mrf.mxu0
      %v2844 = vadd.f32 %v2268, %v2843
      %v2845 = vpop.f32.mrf.mxu0
      %2846 = vmatprep.mubr.bf16.mxu0 0
      %2847 = vmatmul.mubr.bf16.gmra.mxu0 %v2418
      %v2848 = vpop.f32.mrf.mxu0
      %v2849 = vadd.f32 %v2268, %v2848
      %v2850 = vpop.f32.mrf.mxu0
      %v2851 = vpop.f32.mrf.mxu0
      %v2852 = vadd.f32 %v2268, %v2851
      %v2853 = vpop.f32.mrf.mxu0
      %2854 = vmatprep.mubr.bf16.mxu0 0
      %2855 = vmatmul.mubr.bf16.gmra.mxu0 %v2421
      %v2856 = vpop.f32.mrf.mxu0
      %v2857 = vadd.f32 %v2268, %v2856
      %v2858 = vpop.f32.mrf.mxu0
      %v2859 = vpop.f32.mrf.mxu0
      %v2860 = vadd.f32 %v2268, %v2859
      %v2861 = vpop.f32.mrf.mxu0
      %2862 = vmatprep.mubr.bf16.mxu0 0
      %2863 = vmatmul.mubr.bf16.gmra.mxu0 %v2424
      %v2864 = vpop.f32.mrf.mxu0
      %v2865 = vadd.f32 %v2268, %v2864
      %v2866 = vpop.f32.mrf.mxu0
      %v2867 = vpop.f32.mrf.mxu0
      %v2868 = vadd.f32 %v2268, %v2867
      %v2869 = vpop.f32.mrf.mxu0
      %2870 = vmatprep.mubr.bf16.mxu0 0
      %2871 = vmatmul.mubr.bf16.gmra.mxu0 %v2427
      %v2872 = vpop.f32.mrf.mxu0
      %v2873 = vadd.f32 %v2268, %v2872
      %v2874 = vpop.f32.mrf.mxu0
      %v2875 = vpop.f32.mrf.mxu0
      %v2876 = vadd.f32 %v2268, %v2875
      %v2877 = vpop.f32.mrf.mxu0
      %2878 = vmatprep.mubr.bf16.mxu0 0
      %2879 = vmatmul.mubr.bf16.gmra.mxu0 %v2430
      %v2880 = vpop.f32.mrf.mxu0
      %v2881 = vadd.f32 %v2268, %v2880
      %v2882 = vpop.f32.mrf.mxu0
      %v2883 = vpop.f32.mrf.mxu0
      %v2884 = vadd.f32 %v2268, %v2883
      %v2885 = vpop.f32.mrf.mxu0
      %2886 = vmatprep.mubr.bf16.mxu0 0
      %2887 = vmatmul.mubr.bf16.gmra.mxu0 %v2433
      %v2888 = vpop.f32.mrf.mxu0
      %v2889 = vadd.f32 %v2268, %v2888
      %v2890 = vpop.f32.mrf.mxu0
      %v2891 = vpop.f32.mrf.mxu0
      %v2892 = vadd.f32 %v2268, %v2891
      %v2893 = vpop.f32.mrf.mxu0
      %2894 = vmatprep.mubr.bf16.mxu0 0
      %2895 = vmatmul.mubr.bf16.gmra.mxu0 %v2436
      %v2896 = vpop.f32.mrf.mxu0
      %v2897 = vadd.f32 %v2268, %v2896
      %v2898 = vpop.f32.mrf.mxu0
      %v2899 = vpop.f32.mrf.mxu0
      %v2900 = vadd.f32 %v2268, %v2899
      %v2901 = vpop.f32.mrf.mxu0
      %2902 = vmatprep.mubr.bf16.mxu0 0
      %2903 = vmatmul.mubr.bf16.gmra.mxu0 %v2439
      %v2904 = vpop.f32.mrf.mxu0
      %v2905 = vadd.f32 %v2268, %v2904
      %v2906 = vpop.f32.mrf.mxu0
      %v2907 = vpop.f32.mrf.mxu0
      %v2908 = vadd.f32 %v2268, %v2907
      %v2909 = vpop.f32.mrf.mxu0
      %2910 = vmatprep.mubr.bf16.mxu0 0
      %2911 = vmatmul.mubr.bf16.gmra.mxu0 %v2442
      %v2912 = vpop.f32.mrf.mxu0
      %v2913 = vadd.f32 %v2268, %v2912
      %v2914 = vpop.f32.mrf.mxu0
      %v2915 = vpop.f32.mrf.mxu0
      %v2916 = vadd.f32 %v2268, %v2915
      %v2917 = vpop.f32.mrf.mxu0
      %2918 = vmatprep.mubr.bf16.mxu0 0
      %2919 = vmatmul.mubr.bf16.gmra.mxu0 %v2445
      %v2920 = vpop.f32.mrf.mxu0
      %v2921 = vadd.f32 %v2268, %v2920
      %v2922 = vpop.f32.mrf.mxu0
      %v2923 = vpop.f32.mrf.mxu0
      %v2924 = vadd.f32 %v2268, %v2923
      %v2925 = vpop.f32.mrf.mxu0
      %2926 = vmatprep.mubr.bf16.mxu0 0
      %2927 = vmatmul.mubr.bf16.gmra.mxu0 %v2448
      %v2928 = vpop.f32.mrf.mxu0
      %v2929 = vadd.f32 %v2268, %v2928
      %v2930 = vpop.f32.mrf.mxu0
      %v2931 = vpop.f32.mrf.mxu0
      %v2932 = vadd.f32 %v2268, %v2931
      %v2933 = vpop.f32.mrf.mxu0
      %2934 = vmatprep.mubr.bf16.mxu0 0
      %2935 = vmatmul.mubr.bf16.gmra.mxu0 %v2451
      %v2936 = vpop.f32.mrf.mxu0
      %v2937 = vadd.f32 %v2268, %v2936
      %v2938 = vpop.f32.mrf.mxu0
      %v2939 = vpop.f32.mrf.mxu0
      %v2940 = vadd.f32 %v2268, %v2939
      %v2941 = vpop.f32.mrf.mxu0
      %2942 = vmatprep.mubr.bf16.mxu0 0
      %2943 = vmatmul.mubr.bf16.gmra.mxu0 %v2454
      %v2944 = vpop.f32.mrf.mxu0
      %v2945 = vadd.f32 %v2268, %v2944
      %v2946 = vpop.f32.mrf.mxu0
      %v2947 = vpop.f32.mrf.mxu0
      %v2948 = vadd.f32 %v2268, %v2947
      %v2949 = vpop.f32.mrf.mxu0
      %2950 = vmatprep.mubr.bf16.mxu0 0
      %2951 = vmatmul.mubr.bf16.gmra.mxu0 %v2457
      %v2952 = vpop.f32.mrf.mxu0
      %v2953 = vadd.f32 %v2268, %v2952
      %v2954 = vpop.f32.mrf.mxu0
      %v2955 = vpop.f32.mrf.mxu0
      %v2956 = vadd.f32 %v2268, %v2955
      %v2957 = vpop.f32.mrf.mxu0
      %2958 = vmatprep.mubr.bf16.mxu0 0
      %2959 = vmatmul.mubr.bf16.gmra.mxu0 %v2460
      %v2960 = vpop.f32.mrf.mxu0
      %v2961 = vadd.f32 %v2268, %v2960
      %v2962 = vpop.f32.mrf.mxu0
      %v2963 = vpop.f32.mrf.mxu0
      %v2964 = vadd.f32 %v2268, %v2963
      %v2965 = vpop.f32.mrf.mxu0
      %2966 = vmatprep.mubr.bf16.mxu0 0
      %2967 = vmatmul.mubr.bf16.gmra.mxu0 %v2463
      %v2968 = vpop.f32.mrf.mxu0
      %v2969 = vadd.f32 %v2268, %v2968
      %v2970 = vpop.f32.mrf.mxu0
      %v2971 = vpop.f32.mrf.mxu0
      %v2972 = vadd.f32 %v2268, %v2971
      %v2973 = vpop.f32.mrf.mxu0
      %2974 = vmatprep.mubr.bf16.mxu0 0
      %2975 = vmatmul.mubr.bf16.gmra.mxu0 %v2466
      %v2976 = vpop.f32.mrf.mxu0
      %v2977 = vadd.f32 %v2268, %v2976
      %v2978 = vpop.f32.mrf.mxu0
      %v2979 = vpop.f32.mrf.mxu0
      %v2980 = vadd.f32 %v2268, %v2979
      %v2981 = vpop.f32.mrf.mxu0
      %2982 = vmatprep.mubr.bf16.mxu0 0
      %2983 = vmatmul.mubr.bf16.gmra.mxu0 %v2469
      %v2984 = vpop.f32.mrf.mxu0
      %v2985 = vadd.f32 %v2268, %v2984
      %v2986 = vpop.f32.mrf.mxu0
      %v2987 = vpop.f32.mrf.mxu0
      %v2988 = vadd.f32 %v2268, %v2987
      %v2989 = vpop.f32.mrf.mxu0
      %2990 = vmatprep.mubr.bf16.mxu0 0
      %2991 = vmatmul.mubr.bf16.gmra.mxu0 %v2472
      %v2992 = vpop.f32.mrf.mxu0
      %v2993 = vadd.f32 %v2268, %v2992
      %v2994 = vpop.f32.mrf.mxu0
      %v2995 = vpop.f32.mrf.mxu0
      %v2996 = vadd.f32 %v2268, %v2995
      %v2997 = vpop.f32.mrf.mxu0
      %2998 = vmatprep.mubr.bf16.mxu0 0
      %2999 = vmatmul.mubr.bf16.gmra.mxu0 %v2475
      %v3000 = vpop.f32.mrf.mxu0
      %v3001 = vadd.f32 %v2268, %v3000
      %v3002 = vpop.f32.mrf.mxu0
      %v3003 = vpop.f32.mrf.mxu0
      %v3004 = vadd.f32 %v2268, %v3003
      %v3005 = vpop.f32.mrf.mxu0
      %3006 = vmatprep.mubr.bf16.mxu0 0
      %3007 = vmatmul.mubr.bf16.gmra.mxu0 %v2478
      %v3008 = vpop.f32.mrf.mxu0
      %v3009 = vadd.f32 %v2268, %v3008
      %v3010 = vpop.f32.mrf.mxu0
      %v3011 = vpop.f32.mrf.mxu0
      %v3012 = vadd.f32 %v2268, %v3011
      %v3013 = vpop.f32.mrf.mxu0
      %3014 = vmatprep.mubr.bf16.mxu0 0
      %3015 = vmatmul.mubr.bf16.gmra.mxu0 %v2481
      %v3016 = vpop.f32.mrf.mxu0
      %v3017 = vadd.f32 %v2268, %v3016
      %v3018 = vpop.f32.mrf.mxu0
      %v3019 = vpop.f32.mrf.mxu0
      %v3020 = vadd.f32 %v2268, %v3019
      %v3021 = vpop.f32.mrf.mxu0
      %3022 = vmatprep.mubr.bf16.mxu0 0
      %3023 = vmatmul.mubr.bf16.gmra.mxu0 %v2484
      %v3024 = vpop.f32.mrf.mxu0
      %v3025 = vadd.f32 %v2268, %v3024
      %v3026 = vpop.f32.mrf.mxu0
      %v3027 = vpop.f32.mrf.mxu0
      %v3028 = vadd.f32 %v2268, %v3027
      %v3029 = vpop.f32.mrf.mxu0
      %3030 = vdwg.mxu0
      %v3031 = vadd.f32 %v964, %v2521
      %v3032 = vadd.f32 %v965, %v2524
      %v3033 = vadd.f32 %v966, %v2529
      %v3034 = vadd.f32 %v967, %v2532
      %v3035 = vadd.f32 %v968, %v2537
      %v3036 = vadd.f32 %v969, %v2540
      %v3037 = vadd.f32 %v970, %v2545
      %v3038 = vadd.f32 %v971, %v2548
      %v3039 = vadd.f32 %v972, %v2553
      %v3040 = vadd.f32 %v973, %v2556
      %v3041 = vadd.f32 %v974, %v2561
      %v3042 = vadd.f32 %v975, %v2564
      %v3043 = vadd.f32 %v976, %v2569
      %v3044 = vadd.f32 %v977, %v2572
      %v3045 = vadd.f32 %v978, %v2577
      %v3046 = vadd.f32 %v979, %v2580
      %v3047 = vadd.f32 %v980, %v2585
      %v3048 = vadd.f32 %v981, %v2588
      %v3049 = vadd.f32 %v982, %v2593
      %v3050 = vadd.f32 %v983, %v2596
      %v3051 = vadd.f32 %v984, %v2601
      %v3052 = vadd.f32 %v985, %v2604
      %v3053 = vadd.f32 %v986, %v2609
      %v3054 = vadd.f32 %v987, %v2612
      %v3055 = vadd.f32 %v988, %v2617
      %v3056 = vadd.f32 %v989, %v2620
      %v3057 = vadd.f32 %v990, %v2625
      %v3058 = vadd.f32 %v991, %v2628
      %v3059 = vadd.f32 %v992, %v2633
      %v3060 = vadd.f32 %v993, %v2636
      %v3061 = vadd.f32 %v994, %v2641
      %v3062 = vadd.f32 %v995, %v2644
      %v3063 = vadd.f32 %v996, %v2649
      %v3064 = vadd.f32 %v997, %v2652
      %v3065 = vadd.f32 %v998, %v2657
      %v3066 = vadd.f32 %v999, %v2660
      %v3067 = vadd.f32 %v1000, %v2665
      %v3068 = vadd.f32 %v1001, %v2668
      %v3069 = vadd.f32 %v1002, %v2673
      %v3070 = vadd.f32 %v1003, %v2676
      %v3071 = vadd.f32 %v1004, %v2681
      %v3072 = vadd.f32 %v1005, %v2684
      %v3073 = vadd.f32 %v1006, %v2689
      %v3074 = vadd.f32 %v1007, %v2692
      %v3075 = vadd.f32 %v1008, %v2697
      %v3076 = vadd.f32 %v1009, %v2700
      %v3077 = vadd.f32 %v1010, %v2705
      %v3078 = vadd.f32 %v1011, %v2708
      %v3079 = vadd.f32 %v1012, %v2713
      %v3080 = vadd.f32 %v1013, %v2716
      %v3081 = vadd.f32 %v1014, %v2721
      %v3082 = vadd.f32 %v1015, %v2724
      %v3083 = vadd.f32 %v1016, %v2729
      %v3084 = vadd.f32 %v1017, %v2732
      %v3085 = vadd.f32 %v1018, %v2737
      %v3086 = vadd.f32 %v1019, %v2740
      %v3087 = vadd.f32 %v1020, %v2745
      %v3088 = vadd.f32 %v1021, %v2748
      %v3089 = vadd.f32 %v1022, %v2753
      %v3090 = vadd.f32 %v1023, %v2756
      %v3091 = vadd.f32 %v1024, %v2761
      %v3092 = vadd.f32 %v1025, %v2764
      %v3093 = vadd.f32 %v1026, %v2769
      %v3094 = vadd.f32 %v1027, %v2772
      %v3095 = vadd.f32 %v1028, %v2777
      %v3096 = vadd.f32 %v1029, %v2780
      %v3097 = vadd.f32 %v1030, %v2785
      %v3098 = vadd.f32 %v1031, %v2788
      %v3099 = vadd.f32 %v1032, %v2793
      %v3100 = vadd.f32 %v1033, %v2796
      %v3101 = vadd.f32 %v1034, %v2801
      %v3102 = vadd.f32 %v1035, %v2804
      %v3103 = vadd.f32 %v1036, %v2809
      %v3104 = vadd.f32 %v1037, %v2812
      %v3105 = vadd.f32 %v1038, %v2817
      %v3106 = vadd.f32 %v1039, %v2820
      %v3107 = vadd.f32 %v1040, %v2825
      %v3108 = vadd.f32 %v1041, %v2828
      %v3109 = vadd.f32 %v1042, %v2833
      %v3110 = vadd.f32 %v1043, %v2836
      %v3111 = vadd.f32 %v1044, %v2841
      %v3112 = vadd.f32 %v1045, %v2844
      %v3113 = vadd.f32 %v1046, %v2849
      %v3114 = vadd.f32 %v1047, %v2852
      %v3115 = vadd.f32 %v1048, %v2857
      %v3116 = vadd.f32 %v1049, %v2860
      %v3117 = vadd.f32 %v1050, %v2865
      %v3118 = vadd.f32 %v1051, %v2868
      %v3119 = vadd.f32 %v1052, %v2873
      %v3120 = vadd.f32 %v1053, %v2876
      %v3121 = vadd.f32 %v1054, %v2881
      %v3122 = vadd.f32 %v1055, %v2884
      %v3123 = vadd.f32 %v1056, %v2889
      %v3124 = vadd.f32 %v1057, %v2892
      %v3125 = vadd.f32 %v1058, %v2897
      %v3126 = vadd.f32 %v1059, %v2900
      %v3127 = vadd.f32 %v1060, %v2905
      %v3128 = vadd.f32 %v1061, %v2908
      %v3129 = vadd.f32 %v1062, %v2913
      %v3130 = vadd.f32 %v1063, %v2916
      %v3131 = vadd.f32 %v1064, %v2921
      %v3132 = vadd.f32 %v1065, %v2924
      %v3133 = vadd.f32 %v1066, %v2929
      %v3134 = vadd.f32 %v1067, %v2932
      %v3135 = vadd.f32 %v1068, %v2937
      %v3136 = vadd.f32 %v1069, %v2940
      %v3137 = vadd.f32 %v1070, %v2945
      %v3138 = vadd.f32 %v1071, %v2948
      %v3139 = vadd.f32 %v1072, %v2953
      %v3140 = vadd.f32 %v1073, %v2956
      %v3141 = vadd.f32 %v1074, %v2961
      %v3142 = vadd.f32 %v1075, %v2964
      %v3143 = vadd.f32 %v1076, %v2969
      %v3144 = vadd.f32 %v1077, %v2972
      %v3145 = vadd.f32 %v1078, %v2977
      %v3146 = vadd.f32 %v1079, %v2980
      %v3147 = vadd.f32 %v1080, %v2985
      %v3148 = vadd.f32 %v1081, %v2988
      %v3149 = vadd.f32 %v1082, %v2993
      %v3150 = vadd.f32 %v1083, %v2996
      %v3151 = vadd.f32 %v1084, %v3001
      %v3152 = vadd.f32 %v1085, %v3004
      %v3153 = vadd.f32 %v1086, %v3009
      %v3154 = vadd.f32 %v1087, %v3012
      %v3155 = vadd.f32 %v1088, %v3017
      %v3156 = vadd.f32 %v1089, %v3020
      %v3157 = vadd.f32 %v1090, %v3025
      %v3158 = vadd.f32 %v1091, %v3028
      %v3159 = vmax.f32 %v3031, 0.0
      %v3160 = vmax.f32 %v3032, 0.0
      %v3161 = vmax.f32 %v3033, 0.0
      %v3162 = vmax.f32 %v3034, 0.0
      %v3163 = vmax.f32 %v3035, 0.0
      %v3164 = vmax.f32 %v3036, 0.0
      %v3165 = vmax.f32 %v3037, 0.0
      %v3166 = vmax.f32 %v3038, 0.0
      %v3167 = vmax.f32 %v3039, 0.0
      %v3168 = vmax.f32 %v3040, 0.0
      %v3169 = vmax.f32 %v3041, 0.0
      %v3170 = vmax.f32 %v3042, 0.0
      %v3171 = vmax.f32 %v3043, 0.0
      %v3172 = vmax.f32 %v3044, 0.0
      %v3173 = vmax.f32 %v3045, 0.0
      %v3174 = vmax.f32 %v3046, 0.0
      %v3175 = vmax.f32 %v3047, 0.0
      %v3176 = vmax.f32 %v3048, 0.0
      %v3177 = vmax.f32 %v3049, 0.0
      %v3178 = vmax.f32 %v3050, 0.0
      %v3179 = vmax.f32 %v3051, 0.0
      %v3180 = vmax.f32 %v3052, 0.0
      %v3181 = vmax.f32 %v3053, 0.0
      %v3182 = vmax.f32 %v3054, 0.0
      %v3183 = vmax.f32 %v3055, 0.0
      %v3184 = vmax.f32 %v3056, 0.0
      %v3185 = vmax.f32 %v3057, 0.0
      %v3186 = vmax.f32 %v3058, 0.0
      %v3187 = vmax.f32 %v3059, 0.0
      %v3188 = vmax.f32 %v3060, 0.0
      %v3189 = vmax.f32 %v3061, 0.0
      %v3190 = vmax.f32 %v3062, 0.0
      %v3191 = vmax.f32 %v3063, 0.0
      %v3192 = vmax.f32 %v3064, 0.0
      %v3193 = vmax.f32 %v3065, 0.0
      %v3194 = vmax.f32 %v3066, 0.0
      %v3195 = vmax.f32 %v3067, 0.0
      %v3196 = vmax.f32 %v3068, 0.0
      %v3197 = vmax.f32 %v3069, 0.0
      %v3198 = vmax.f32 %v3070, 0.0
      %v3199 = vmax.f32 %v3071, 0.0
      %v3200 = vmax.f32 %v3072, 0.0
      %v3201 = vmax.f32 %v3073, 0.0
      %v3202 = vmax.f32 %v3074, 0.0
      %v3203 = vmax.f32 %v3075, 0.0
      %v3204 = vmax.f32 %v3076, 0.0
      %v3205 = vmax.f32 %v3077, 0.0
      %v3206 = vmax.f32 %v3078, 0.0
      %v3207 = vmax.f32 %v3079, 0.0
      %v3208 = vmax.f32 %v3080, 0.0
      %v3209 = vmax.f32 %v3081, 0.0
      %v3210 = vmax.f32 %v3082, 0.0
      %v3211 = vmax.f32 %v3083, 0.0
      %v3212 = vmax.f32 %v3084, 0.0
      %v3213 = vmax.f32 %v3085, 0.0
      %v3214 = vmax.f32 %v3086, 0.0
      %v3215 = vmax.f32 %v3087, 0.0
      %v3216 = vmax.f32 %v3088, 0.0
      %v3217 = vmax.f32 %v3089, 0.0
      %v3218 = vmax.f32 %v3090, 0.0
      %v3219 = vmax.f32 %v3091, 0.0
      %v3220 = vmax.f32 %v3092, 0.0
      %v3221 = vmax.f32 %v3093, 0.0
      %v3222 = vmax.f32 %v3094, 0.0
      %v3223 = vmax.f32 %v3095, 0.0
      %v3224 = vmax.f32 %v3096, 0.0
      %v3225 = vmax.f32 %v3097, 0.0
      %v3226 = vmax.f32 %v3098, 0.0
      %v3227 = vmax.f32 %v3099, 0.0
      %v3228 = vmax.f32 %v3100, 0.0
      %v3229 = vmax.f32 %v3101, 0.0
      %v3230 = vmax.f32 %v3102, 0.0
      %v3231 = vmax.f32 %v3103, 0.0
      %v3232 = vmax.f32 %v3104, 0.0
      %v3233 = vmax.f32 %v3105, 0.0
      %v3234 = vmax.f32 %v3106, 0.0
      %v3235 = vmax.f32 %v3107, 0.0
      %v3236 = vmax.f32 %v3108, 0.0
      %v3237 = vmax.f32 %v3109, 0.0
      %v3238 = vmax.f32 %v3110, 0.0
      %v3239 = vmax.f32 %v3111, 0.0
      %v3240 = vmax.f32 %v3112, 0.0
      %v3241 = vmax.f32 %v3113, 0.0
      %v3242 = vmax.f32 %v3114, 0.0
      %v3243 = vmax.f32 %v3115, 0.0
      %v3244 = vmax.f32 %v3116, 0.0
      %v3245 = vmax.f32 %v3117, 0.0
      %v3246 = vmax.f32 %v3118, 0.0
      %v3247 = vmax.f32 %v3119, 0.0
      %v3248 = vmax.f32 %v3120, 0.0
      %v3249 = vmax.f32 %v3121, 0.0
      %v3250 = vmax.f32 %v3122, 0.0
      %v3251 = vmax.f32 %v3123, 0.0
      %v3252 = vmax.f32 %v3124, 0.0
      %v3253 = vmax.f32 %v3125, 0.0
      %v3254 = vmax.f32 %v3126, 0.0
      %v3255 = vmax.f32 %v3127, 0.0
      %v3256 = vmax.f32 %v3128, 0.0
      %v3257 = vmax.f32 %v3129, 0.0
      %v3258 = vmax.f32 %v3130, 0.0
      %v3259 = vmax.f32 %v3131, 0.0
      %v3260 = vmax.f32 %v3132, 0.0
      %v3261 = vmax.f32 %v3133, 0.0
      %v3262 = vmax.f32 %v3134, 0.0
      %v3263 = vmax.f32 %v3135, 0.0
      %v3264 = vmax.f32 %v3136, 0.0
      %v3265 = vmax.f32 %v3137, 0.0
      %v3266 = vmax.f32 %v3138, 0.0
      %v3267 = vmax.f32 %v3139, 0.0
      %v3268 = vmax.f32 %v3140, 0.0
      %v3269 = vmax.f32 %v3141, 0.0
      %v3270 = vmax.f32 %v3142, 0.0
      %v3271 = vmax.f32 %v3143, 0.0
      %v3272 = vmax.f32 %v3144, 0.0
      %v3273 = vmax.f32 %v3145, 0.0
      %v3274 = vmax.f32 %v3146, 0.0
      %v3275 = vmax.f32 %v3147, 0.0
      %v3276 = vmax.f32 %v3148, 0.0
      %v3277 = vmax.f32 %v3149, 0.0
      %v3278 = vmax.f32 %v3150, 0.0
      %v3279 = vmax.f32 %v3151, 0.0
      %v3280 = vmax.f32 %v3152, 0.0
      %v3281 = vmax.f32 %v3153, 0.0
      %v3282 = vmax.f32 %v3154, 0.0
      %v3283 = vmax.f32 %v3155, 0.0
      %v3284 = vmax.f32 %v3156, 0.0
      %v3285 = vmax.f32 %v3157, 0.0
      %v3286 = vmax.f32 %v3158, 0.0
      %s3287 = scalar_lea.vmem %s3, 64
      %v3288 = vld [vmem:[%s3287] sm:$0xf]
      %v3289 = vld [vmem:[%s3287 + $0x4] sm:$0xf]
      %v3290 = vld [vmem:[%s3287 + $0x8] sm:$0xf]
      %v3291 = vld [vmem:[%s3287 + $0xc] sm:$0xf]
      %v3292 = vld [vmem:[%s3287 + $0x10] sm:$0xf]
      %v3293 = vld [vmem:[%s3287 + $0x14] sm:$0xf]
      %v3294 = vld [vmem:[%s3287 + $0x18] sm:$0xf]
      %v3295 = vld [vmem:[%s3287 + $0x1c] sm:$0xf]
      %s3296 = scalar_lea.vmem %s4, 2
      %v3297 = vld [vmem:[%s3296] sm:$0x1]
      %v3298 = vpack.c.bf16 %v3160, %v3159
      %v3299 = vpack.c.bf16 %v3162, %v3161
      %v3300 = vpack.c.bf16 %v3164, %v3163
      %v3301 = vpack.c.bf16 %v3166, %v3165
      %v3302 = vpack.c.bf16 %v3168, %v3167
      %v3303 = vpack.c.bf16 %v3170, %v3169
      %v3304 = vpack.c.bf16 %v3172, %v3171
      %v3305 = vpack.c.bf16 %v3174, %v3173
      %v3306 = vpack.c.bf16 %v3176, %v3175
      %v3307 = vpack.c.bf16 %v3178, %v3177
      %v3308 = vpack.c.bf16 %v3180, %v3179
      %v3309 = vpack.c.bf16 %v3182, %v3181
      %v3310 = vpack.c.bf16 %v3184, %v3183
      %v3311 = vpack.c.bf16 %v3186, %v3185
      %v3312 = vpack.c.bf16 %v3188, %v3187
      %v3313 = vpack.c.bf16 %v3190, %v3189
      %v3314 = vpack.c.bf16 %v3192, %v3191
      %v3315 = vpack.c.bf16 %v3194, %v3193
      %v3316 = vpack.c.bf16 %v3196, %v3195
      %v3317 = vpack.c.bf16 %v3198, %v3197
      %v3318 = vpack.c.bf16 %v3200, %v3199
      %v3319 = vpack.c.bf16 %v3202, %v3201
      %v3320 = vpack.c.bf16 %v3204, %v3203
      %v3321 = vpack.c.bf16 %v3206, %v3205
      %v3322 = vpack.c.bf16 %v3208, %v3207
      %v3323 = vpack.c.bf16 %v3210, %v3209
      %v3324 = vpack.c.bf16 %v3212, %v3211
      %v3325 = vpack.c.bf16 %v3214, %v3213
      %v3326 = vpack.c.bf16 %v3216, %v3215
      %v3327 = vpack.c.bf16 %v3218, %v3217
      %v3328 = vpack.c.bf16 %v3220, %v3219
      %v3329 = vpack.c.bf16 %v3222, %v3221
      %v3330 = vpack.c.bf16 %v3224, %v3223
      %v3331 = vpack.c.bf16 %v3226, %v3225
      %v3332 = vpack.c.bf16 %v3228, %v3227
      %v3333 = vpack.c.bf16 %v3230, %v3229
      %v3334 = vpack.c.bf16 %v3232, %v3231
      %v3335 = vpack.c.bf16 %v3234, %v3233
      %v3336 = vpack.c.bf16 %v3236, %v3235
      %v3337 = vpack.c.bf16 %v3238, %v3237
      %v3338 = vpack.c.bf16 %v3240, %v3239
      %v3339 = vpack.c.bf16 %v3242, %v3241
      %v3340 = vpack.c.bf16 %v3244, %v3243
      %v3341 = vpack.c.bf16 %v3246, %v3245
      %v3342 = vpack.c.bf16 %v3248, %v3247
      %v3343 = vpack.c.bf16 %v3250, %v3249
      %v3344 = vpack.c.bf16 %v3252, %v3251
      %v3345 = vpack.c.bf16 %v3254, %v3253
      %v3346 = vpack.c.bf16 %v3256, %v3255
      %v3347 = vpack.c.bf16 %v3258, %v3257
      %v3348 = vpack.c.bf16 %v3260, %v3259
      %v3349 = vpack.c.bf16 %v3262, %v3261
      %v3350 = vpack.c.bf16 %v3264, %v3263
      %v3351 = vpack.c.bf16 %v3266, %v3265
      %v3352 = vpack.c.bf16 %v3268, %v3267
      %v3353 = vpack.c.bf16 %v3270, %v3269
      %v3354 = vpack.c.bf16 %v3272, %v3271
      %v3355 = vpack.c.bf16 %v3274, %v3273
      %v3356 = vpack.c.bf16 %v3276, %v3275
      %v3357 = vpack.c.bf16 %v3278, %v3277
      %v3358 = vpack.c.bf16 %v3280, %v3279
      %v3359 = vpack.c.bf16 %v3282, %v3281
      %v3360 = vpack.c.bf16 %v3284, %v3283
      %v3361 = vpack.c.bf16 %v3286, %v3285
      %v3363 = vlaneseq
      %v3364 = vshrl.u32 %v3363, 7
      %v3365 = vsub.s32 0, %v3364
      %v3366 = vrot.slane %v3297, %v3365
      %v3376 = vunpack.c.l.b16 %v3288
      %v3377 = vunpack.c.l.b16 %v3289
      %v3378 = vunpack.c.l.b16 %v3290
      %v3379 = vunpack.c.l.b16 %v3291
      %v3380 = vunpack.c.l.b16 %v3292
      %v3381 = vunpack.c.l.b16 %v3293
      %v3382 = vunpack.c.l.b16 %v3294
      %v3383 = vunpack.c.l.b16 %v3295
      %v3384 = vpack.c.b16 %v3377, %v3376
      %v3385 = vpack.c.b16 %v3379, %v3378
      %v3386 = vpack.c.b16 %v3381, %v3380
      %v3387 = vpack.c.b16 %v3383, %v3382
      %v3393 = vsel %vm1323, %v3298, 0
      %v3396 = vsel %vm1323, %v3299, 0
      %v3399 = vsel %vm1323, %v3300, 0
      %v3402 = vsel %vm1323, %v3301, 0
      %v3405 = vsel %vm1323, %v3302, 0
      %v3408 = vsel %vm1323, %v3303, 0
      %v3411 = vsel %vm1323, %v3304, 0
      %v3414 = vsel %vm1323, %v3305, 0
      %v3417 = vsel %vm1323, %v3306, 0
      %v3420 = vsel %vm1323, %v3307, 0
      %v3423 = vsel %vm1323, %v3308, 0
      %v3426 = vsel %vm1323, %v3309, 0
      %v3429 = vsel %vm1323, %v3310, 0
      %v3432 = vsel %vm1323, %v3311, 0
      %v3435 = vsel %vm1323, %v3312, 0
      %v3438 = vsel %vm1323, %v3313, 0
      %v3441 = vsel %vm1323, %v3314, 0
      %v3444 = vsel %vm1323, %v3315, 0
      %v3447 = vsel %vm1323, %v3316, 0
      %v3450 = vsel %vm1323, %v3317, 0
      %v3453 = vsel %vm1323, %v3318, 0
      %v3456 = vsel %vm1323, %v3319, 0
      %v3459 = vsel %vm1323, %v3320, 0
      %v3462 = vsel %vm1323, %v3321, 0
      %v3465 = vsel %vm1323, %v3322, 0
      %v3468 = vsel %vm1323, %v3323, 0
      %v3471 = vsel %vm1323, %v3324, 0
      %v3474 = vsel %vm1323, %v3325, 0
      %v3477 = vsel %vm1323, %v3326, 0
      %v3480 = vsel %vm1323, %v3327, 0
      %v3483 = vsel %vm1323, %v3328, 0
      %v3486 = vsel %vm1323, %v3329, 0
      %v3489 = vsel %vm1323, %v3330, 0
      %v3492 = vsel %vm1323, %v3331, 0
      %v3495 = vsel %vm1323, %v3332, 0
      %v3498 = vsel %vm1323, %v3333, 0
      %v3501 = vsel %vm1323, %v3334, 0
      %v3504 = vsel %vm1323, %v3335, 0
      %v3507 = vsel %vm1323, %v3336, 0
      %v3510 = vsel %vm1323, %v3337, 0
      %v3513 = vsel %vm1323, %v3338, 0
      %v3516 = vsel %vm1323, %v3339, 0
      %v3519 = vsel %vm1323, %v3340, 0
      %v3522 = vsel %vm1323, %v3341, 0
      %v3525 = vsel %vm1323, %v3342, 0
      %v3528 = vsel %vm1323, %v3343, 0
      %v3531 = vsel %vm1323, %v3344, 0
      %v3534 = vsel %vm1323, %v3345, 0
      %v3537 = vsel %vm1323, %v3346, 0
      %v3540 = vsel %vm1323, %v3347, 0
      %v3543 = vsel %vm1323, %v3348, 0
      %v3546 = vsel %vm1323, %v3349, 0
      %v3549 = vsel %vm1323, %v3350, 0
      %v3552 = vsel %vm1323, %v3351, 0
      %v3555 = vsel %vm1323, %v3352, 0
      %v3558 = vsel %vm1323, %v3353, 0
      %v3561 = vsel %vm1323, %v3354, 0
      %v3564 = vsel %vm1323, %v3355, 0
      %v3567 = vsel %vm1323, %v3356, 0
      %v3570 = vsel %vm1323, %v3357, 0
      %v3573 = vsel %vm1323, %v3358, 0
      %v3576 = vsel %vm1323, %v3359, 0
      %v3579 = vsel %vm1323, %v3360, 0
      %v3582 = vsel %vm1323, %v3361, 0
      %3584 = vmatprep.subr.bf16.mxu0 0
      %3585 = vmatpush1.bf16.msra.mxu0 0
      %3586 = vmatprep.subr.bf16.mxu0 0
      %3587 = vmatpush1.bf16.msra.mxu0 0
      %3588 = vmatprep.subr.bf16.mxu0 0
      %3589 = vmatpush1.bf16.msra.mxu0 0
      %3590 = vmatprep.subr.bf16.mxu0 0
      %3591 = vmatpush1.bf16.msra.mxu0 0
      %3592 = vmatprep.subr.bf16.mxu0 0
      %3593 = vmatpush1.bf16.msra.mxu0 %v3387
      %3594 = vmatprep.subr.bf16.mxu0 0
      %3595 = vmatpush1.bf16.msra.mxu0 %v3386
      %3596 = vmatprep.subr.bf16.mxu0 0
      %3597 = vmatpush1.bf16.msra.mxu0 %v3385
      %3598 = vmatprep.subr.bf16.mxu0 0
      %3599 = vmatpush1.bf16.msra.mxu0 %v3384
      %3600 = vmatprep.subr.bf16.mxu0 0
      %3601 = vmatpush2.bf16.msra.mxu0 0
      %3602 = vmatprep.subr.bf16.mxu0 0
      %3603 = vmatpush2.bf16.msra.mxu0 0
      %3604 = vmatprep.subr.bf16.mxu0 0
      %3605 = vmatpush2.bf16.msra.mxu0 0
      %3606 = vmatprep.subr.bf16.mxu0 0
      %3607 = vmatpush2.bf16.msra.mxu0 0
      %3608 = vmatprep.subr.bf16.mxu0 0
      %3609 = vmatpush2.bf16.msra.mxu0 0
      %3610 = vmatprep.subr.bf16.mxu0 0
      %3611 = vmatpush2.bf16.msra.mxu0 0
      %3612 = vmatprep.subr.bf16.mxu0 0
      %3613 = vmatpush2.bf16.msra.mxu0 0
      %3614 = vmatprep.subr.bf16.mxu0 0
      %3615 = vmatpush2.bf16.msra.mxu0 0
      %3616 = vmatprep.mubr.bf16.mxu0 0
      %3617 = vmatmul.mubr.bf16.gmra.mxu0 %v3393
      %v3618 = vpop.f32.mrf.mxu0
      %v3619 = vadd.f32 %v3366, %v3618
      %v3620 = vpop.f32.mrf.mxu0
      %v3621 = vpop.f32.mrf.mxu0
      %v3622 = vadd.f32 %v3366, %v3621
      %v3623 = vpop.f32.mrf.mxu0
      %3624 = vmatprep.mubr.bf16.mxu0 0
      %3625 = vmatmul.mubr.bf16.gmra.mxu0 %v3396
      %v3626 = vpop.f32.mrf.mxu0
      %v3627 = vadd.f32 %v3366, %v3626
      %v3628 = vpop.f32.mrf.mxu0
      %v3629 = vpop.f32.mrf.mxu0
      %v3630 = vadd.f32 %v3366, %v3629
      %v3631 = vpop.f32.mrf.mxu0
      %3632 = vmatprep.mubr.bf16.mxu0 0
      %3633 = vmatmul.mubr.bf16.gmra.mxu0 %v3399
      %v3634 = vpop.f32.mrf.mxu0
      %v3635 = vadd.f32 %v3366, %v3634
      %v3636 = vpop.f32.mrf.mxu0
      %v3637 = vpop.f32.mrf.mxu0
      %v3638 = vadd.f32 %v3366, %v3637
      %v3639 = vpop.f32.mrf.mxu0
      %3640 = vmatprep.mubr.bf16.mxu0 0
      %3641 = vmatmul.mubr.bf16.gmra.mxu0 %v3402
      %v3642 = vpop.f32.mrf.mxu0
      %v3643 = vadd.f32 %v3366, %v3642
      %v3644 = vpop.f32.mrf.mxu0
      %v3645 = vpop.f32.mrf.mxu0
      %v3646 = vadd.f32 %v3366, %v3645
      %v3647 = vpop.f32.mrf.mxu0
      %3648 = vmatprep.mubr.bf16.mxu0 0
      %3649 = vmatmul.mubr.bf16.gmra.mxu0 %v3405
      %v3650 = vpop.f32.mrf.mxu0
      %v3651 = vadd.f32 %v3366, %v3650
      %v3652 = vpop.f32.mrf.mxu0
      %v3653 = vpop.f32.mrf.mxu0
      %v3654 = vadd.f32 %v3366, %v3653
      %v3655 = vpop.f32.mrf.mxu0
      %3656 = vmatprep.mubr.bf16.mxu0 0
      %3657 = vmatmul.mubr.bf16.gmra.mxu0 %v3408
      %v3658 = vpop.f32.mrf.mxu0
      %v3659 = vadd.f32 %v3366, %v3658
      %v3660 = vpop.f32.mrf.mxu0
      %v3661 = vpop.f32.mrf.mxu0
      %v3662 = vadd.f32 %v3366, %v3661
      %v3663 = vpop.f32.mrf.mxu0
      %3664 = vmatprep.mubr.bf16.mxu0 0
      %3665 = vmatmul.mubr.bf16.gmra.mxu0 %v3411
      %v3666 = vpop.f32.mrf.mxu0
      %v3667 = vadd.f32 %v3366, %v3666
      %v3668 = vpop.f32.mrf.mxu0
      %v3669 = vpop.f32.mrf.mxu0
      %v3670 = vadd.f32 %v3366, %v3669
      %v3671 = vpop.f32.mrf.mxu0
      %3672 = vmatprep.mubr.bf16.mxu0 0
      %3673 = vmatmul.mubr.bf16.gmra.mxu0 %v3414
      %v3674 = vpop.f32.mrf.mxu0
      %v3675 = vadd.f32 %v3366, %v3674
      %v3676 = vpop.f32.mrf.mxu0
      %v3677 = vpop.f32.mrf.mxu0
      %v3678 = vadd.f32 %v3366, %v3677
      %v3679 = vpop.f32.mrf.mxu0
      %3680 = vmatprep.mubr.bf16.mxu0 0
      %3681 = vmatmul.mubr.bf16.gmra.mxu0 %v3417
      %v3682 = vpop.f32.mrf.mxu0
      %v3683 = vadd.f32 %v3366, %v3682
      %v3684 = vpop.f32.mrf.mxu0
      %v3685 = vpop.f32.mrf.mxu0
      %v3686 = vadd.f32 %v3366, %v3685
      %v3687 = vpop.f32.mrf.mxu0
      %3688 = vmatprep.mubr.bf16.mxu0 0
      %3689 = vmatmul.mubr.bf16.gmra.mxu0 %v3420
      %v3690 = vpop.f32.mrf.mxu0
      %v3691 = vadd.f32 %v3366, %v3690
      %v3692 = vpop.f32.mrf.mxu0
      %v3693 = vpop.f32.mrf.mxu0
      %v3694 = vadd.f32 %v3366, %v3693
      %v3695 = vpop.f32.mrf.mxu0
      %3696 = vmatprep.mubr.bf16.mxu0 0
      %3697 = vmatmul.mubr.bf16.gmra.mxu0 %v3423
      %v3698 = vpop.f32.mrf.mxu0
      %v3699 = vadd.f32 %v3366, %v3698
      %v3700 = vpop.f32.mrf.mxu0
      %v3701 = vpop.f32.mrf.mxu0
      %v3702 = vadd.f32 %v3366, %v3701
      %v3703 = vpop.f32.mrf.mxu0
      %3704 = vmatprep.mubr.bf16.mxu0 0
      %3705 = vmatmul.mubr.bf16.gmra.mxu0 %v3426
      %v3706 = vpop.f32.mrf.mxu0
      %v3707 = vadd.f32 %v3366, %v3706
      %v3708 = vpop.f32.mrf.mxu0
      %v3709 = vpop.f32.mrf.mxu0
      %v3710 = vadd.f32 %v3366, %v3709
      %v3711 = vpop.f32.mrf.mxu0
      %3712 = vmatprep.mubr.bf16.mxu0 0
      %3713 = vmatmul.mubr.bf16.gmra.mxu0 %v3429
      %v3714 = vpop.f32.mrf.mxu0
      %v3715 = vadd.f32 %v3366, %v3714
      %v3716 = vpop.f32.mrf.mxu0
      %v3717 = vpop.f32.mrf.mxu0
      %v3718 = vadd.f32 %v3366, %v3717
      %v3719 = vpop.f32.mrf.mxu0
      %3720 = vmatprep.mubr.bf16.mxu0 0
      %3721 = vmatmul.mubr.bf16.gmra.mxu0 %v3432
      %v3722 = vpop.f32.mrf.mxu0
      %v3723 = vadd.f32 %v3366, %v3722
      %v3724 = vpop.f32.mrf.mxu0
      %v3725 = vpop.f32.mrf.mxu0
      %v3726 = vadd.f32 %v3366, %v3725
      %v3727 = vpop.f32.mrf.mxu0
      %3728 = vmatprep.mubr.bf16.mxu0 0
      %3729 = vmatmul.mubr.bf16.gmra.mxu0 %v3435
      %v3730 = vpop.f32.mrf.mxu0
      %v3731 = vadd.f32 %v3366, %v3730
      %v3732 = vpop.f32.mrf.mxu0
      %v3733 = vpop.f32.mrf.mxu0
      %v3734 = vadd.f32 %v3366, %v3733
      %v3735 = vpop.f32.mrf.mxu0
      %3736 = vmatprep.mubr.bf16.mxu0 0
      %3737 = vmatmul.mubr.bf16.gmra.mxu0 %v3438
      %v3738 = vpop.f32.mrf.mxu0
      %v3739 = vadd.f32 %v3366, %v3738
      %v3740 = vpop.f32.mrf.mxu0
      %v3741 = vpop.f32.mrf.mxu0
      %v3742 = vadd.f32 %v3366, %v3741
      %v3743 = vpop.f32.mrf.mxu0
      %3744 = vmatprep.mubr.bf16.mxu0 0
      %3745 = vmatmul.mubr.bf16.gmra.mxu0 %v3441
      %v3746 = vpop.f32.mrf.mxu0
      %v3747 = vadd.f32 %v3366, %v3746
      %v3748 = vpop.f32.mrf.mxu0
      %v3749 = vpop.f32.mrf.mxu0
      %v3750 = vadd.f32 %v3366, %v3749
      %v3751 = vpop.f32.mrf.mxu0
      %3752 = vmatprep.mubr.bf16.mxu0 0
      %3753 = vmatmul.mubr.bf16.gmra.mxu0 %v3444
      %v3754 = vpop.f32.mrf.mxu0
      %v3755 = vadd.f32 %v3366, %v3754
      %v3756 = vpop.f32.mrf.mxu0
      %v3757 = vpop.f32.mrf.mxu0
      %v3758 = vadd.f32 %v3366, %v3757
      %v3759 = vpop.f32.mrf.mxu0
      %3760 = vmatprep.mubr.bf16.mxu0 0
      %3761 = vmatmul.mubr.bf16.gmra.mxu0 %v3447
      %v3762 = vpop.f32.mrf.mxu0
      %v3763 = vadd.f32 %v3366, %v3762
      %v3764 = vpop.f32.mrf.mxu0
      %v3765 = vpop.f32.mrf.mxu0
      %v3766 = vadd.f32 %v3366, %v3765
      %v3767 = vpop.f32.mrf.mxu0
      %3768 = vmatprep.mubr.bf16.mxu0 0
      %3769 = vmatmul.mubr.bf16.gmra.mxu0 %v3450
      %v3770 = vpop.f32.mrf.mxu0
      %v3771 = vadd.f32 %v3366, %v3770
      %v3772 = vpop.f32.mrf.mxu0
      %v3773 = vpop.f32.mrf.mxu0
      %v3774 = vadd.f32 %v3366, %v3773
      %v3775 = vpop.f32.mrf.mxu0
      %3776 = vmatprep.mubr.bf16.mxu0 0
      %3777 = vmatmul.mubr.bf16.gmra.mxu0 %v3453
      %v3778 = vpop.f32.mrf.mxu0
      %v3779 = vadd.f32 %v3366, %v3778
      %v3780 = vpop.f32.mrf.mxu0
      %v3781 = vpop.f32.mrf.mxu0
      %v3782 = vadd.f32 %v3366, %v3781
      %v3783 = vpop.f32.mrf.mxu0
      %3784 = vmatprep.mubr.bf16.mxu0 0
      %3785 = vmatmul.mubr.bf16.gmra.mxu0 %v3456
      %v3786 = vpop.f32.mrf.mxu0
      %v3787 = vadd.f32 %v3366, %v3786
      %v3788 = vpop.f32.mrf.mxu0
      %v3789 = vpop.f32.mrf.mxu0
      %v3790 = vadd.f32 %v3366, %v3789
      %v3791 = vpop.f32.mrf.mxu0
      %3792 = vmatprep.mubr.bf16.mxu0 0
      %3793 = vmatmul.mubr.bf16.gmra.mxu0 %v3459
      %v3794 = vpop.f32.mrf.mxu0
      %v3795 = vadd.f32 %v3366, %v3794
      %v3796 = vpop.f32.mrf.mxu0
      %v3797 = vpop.f32.mrf.mxu0
      %v3798 = vadd.f32 %v3366, %v3797
      %v3799 = vpop.f32.mrf.mxu0
      %3800 = vmatprep.mubr.bf16.mxu0 0
      %3801 = vmatmul.mubr.bf16.gmra.mxu0 %v3462
      %v3802 = vpop.f32.mrf.mxu0
      %v3803 = vadd.f32 %v3366, %v3802
      %v3804 = vpop.f32.mrf.mxu0
      %v3805 = vpop.f32.mrf.mxu0
      %v3806 = vadd.f32 %v3366, %v3805
      %v3807 = vpop.f32.mrf.mxu0
      %3808 = vmatprep.mubr.bf16.mxu0 0
      %3809 = vmatmul.mubr.bf16.gmra.mxu0 %v3465
      %v3810 = vpop.f32.mrf.mxu0
      %v3811 = vadd.f32 %v3366, %v3810
      %v3812 = vpop.f32.mrf.mxu0
      %v3813 = vpop.f32.mrf.mxu0
      %v3814 = vadd.f32 %v3366, %v3813
      %v3815 = vpop.f32.mrf.mxu0
      %3816 = vmatprep.mubr.bf16.mxu0 0
      %3817 = vmatmul.mubr.bf16.gmra.mxu0 %v3468
      %v3818 = vpop.f32.mrf.mxu0
      %v3819 = vadd.f32 %v3366, %v3818
      %v3820 = vpop.f32.mrf.mxu0
      %v3821 = vpop.f32.mrf.mxu0
      %v3822 = vadd.f32 %v3366, %v3821
      %v3823 = vpop.f32.mrf.mxu0
      %3824 = vmatprep.mubr.bf16.mxu0 0
      %3825 = vmatmul.mubr.bf16.gmra.mxu0 %v3471
      %v3826 = vpop.f32.mrf.mxu0
      %v3827 = vadd.f32 %v3366, %v3826
      %v3828 = vpop.f32.mrf.mxu0
      %v3829 = vpop.f32.mrf.mxu0
      %v3830 = vadd.f32 %v3366, %v3829
      %v3831 = vpop.f32.mrf.mxu0
      %3832 = vmatprep.mubr.bf16.mxu0 0
      %3833 = vmatmul.mubr.bf16.gmra.mxu0 %v3474
      %v3834 = vpop.f32.mrf.mxu0
      %v3835 = vadd.f32 %v3366, %v3834
      %v3836 = vpop.f32.mrf.mxu0
      %v3837 = vpop.f32.mrf.mxu0
      %v3838 = vadd.f32 %v3366, %v3837
      %v3839 = vpop.f32.mrf.mxu0
      %3840 = vmatprep.mubr.bf16.mxu0 0
      %3841 = vmatmul.mubr.bf16.gmra.mxu0 %v3477
      %v3842 = vpop.f32.mrf.mxu0
      %v3843 = vadd.f32 %v3366, %v3842
      %v3844 = vpop.f32.mrf.mxu0
      %v3845 = vpop.f32.mrf.mxu0
      %v3846 = vadd.f32 %v3366, %v3845
      %v3847 = vpop.f32.mrf.mxu0
      %3848 = vmatprep.mubr.bf16.mxu0 0
      %3849 = vmatmul.mubr.bf16.gmra.mxu0 %v3480
      %v3850 = vpop.f32.mrf.mxu0
      %v3851 = vadd.f32 %v3366, %v3850
      %v3852 = vpop.f32.mrf.mxu0
      %v3853 = vpop.f32.mrf.mxu0
      %v3854 = vadd.f32 %v3366, %v3853
      %v3855 = vpop.f32.mrf.mxu0
      %3856 = vmatprep.mubr.bf16.mxu0 0
      %3857 = vmatmul.mubr.bf16.gmra.mxu0 %v3483
      %v3858 = vpop.f32.mrf.mxu0
      %v3859 = vadd.f32 %v3366, %v3858
      %v3860 = vpop.f32.mrf.mxu0
      %v3861 = vpop.f32.mrf.mxu0
      %v3862 = vadd.f32 %v3366, %v3861
      %v3863 = vpop.f32.mrf.mxu0
      %3864 = vmatprep.mubr.bf16.mxu0 0
      %3865 = vmatmul.mubr.bf16.gmra.mxu0 %v3486
      %v3866 = vpop.f32.mrf.mxu0
      %v3867 = vadd.f32 %v3366, %v3866
      %v3868 = vpop.f32.mrf.mxu0
      %v3869 = vpop.f32.mrf.mxu0
      %v3870 = vadd.f32 %v3366, %v3869
      %v3871 = vpop.f32.mrf.mxu0
      %3872 = vmatprep.mubr.bf16.mxu0 0
      %3873 = vmatmul.mubr.bf16.gmra.mxu0 %v3489
      %v3874 = vpop.f32.mrf.mxu0
      %v3875 = vadd.f32 %v3366, %v3874
      %v3876 = vpop.f32.mrf.mxu0
      %v3877 = vpop.f32.mrf.mxu0
      %v3878 = vadd.f32 %v3366, %v3877
      %v3879 = vpop.f32.mrf.mxu0
      %3880 = vmatprep.mubr.bf16.mxu0 0
      %3881 = vmatmul.mubr.bf16.gmra.mxu0 %v3492
      %v3882 = vpop.f32.mrf.mxu0
      %v3883 = vadd.f32 %v3366, %v3882
      %v3884 = vpop.f32.mrf.mxu0
      %v3885 = vpop.f32.mrf.mxu0
      %v3886 = vadd.f32 %v3366, %v3885
      %v3887 = vpop.f32.mrf.mxu0
      %3888 = vmatprep.mubr.bf16.mxu0 0
      %3889 = vmatmul.mubr.bf16.gmra.mxu0 %v3495
      %v3890 = vpop.f32.mrf.mxu0
      %v3891 = vadd.f32 %v3366, %v3890
      %v3892 = vpop.f32.mrf.mxu0
      %v3893 = vpop.f32.mrf.mxu0
      %v3894 = vadd.f32 %v3366, %v3893
      %v3895 = vpop.f32.mrf.mxu0
      %3896 = vmatprep.mubr.bf16.mxu0 0
      %3897 = vmatmul.mubr.bf16.gmra.mxu0 %v3498
      %v3898 = vpop.f32.mrf.mxu0
      %v3899 = vadd.f32 %v3366, %v3898
      %v3900 = vpop.f32.mrf.mxu0
      %v3901 = vpop.f32.mrf.mxu0
      %v3902 = vadd.f32 %v3366, %v3901
      %v3903 = vpop.f32.mrf.mxu0
      %3904 = vmatprep.mubr.bf16.mxu0 0
      %3905 = vmatmul.mubr.bf16.gmra.mxu0 %v3501
      %v3906 = vpop.f32.mrf.mxu0
      %v3907 = vadd.f32 %v3366, %v3906
      %v3908 = vpop.f32.mrf.mxu0
      %v3909 = vpop.f32.mrf.mxu0
      %v3910 = vadd.f32 %v3366, %v3909
      %v3911 = vpop.f32.mrf.mxu0
      %3912 = vmatprep.mubr.bf16.mxu0 0
      %3913 = vmatmul.mubr.bf16.gmra.mxu0 %v3504
      %v3914 = vpop.f32.mrf.mxu0
      %v3915 = vadd.f32 %v3366, %v3914
      %v3916 = vpop.f32.mrf.mxu0
      %v3917 = vpop.f32.mrf.mxu0
      %v3918 = vadd.f32 %v3366, %v3917
      %v3919 = vpop.f32.mrf.mxu0
      %3920 = vmatprep.mubr.bf16.mxu0 0
      %3921 = vmatmul.mubr.bf16.gmra.mxu0 %v3507
      %v3922 = vpop.f32.mrf.mxu0
      %v3923 = vadd.f32 %v3366, %v3922
      %v3924 = vpop.f32.mrf.mxu0
      %v3925 = vpop.f32.mrf.mxu0
      %v3926 = vadd.f32 %v3366, %v3925
      %v3927 = vpop.f32.mrf.mxu0
      %3928 = vmatprep.mubr.bf16.mxu0 0
      %3929 = vmatmul.mubr.bf16.gmra.mxu0 %v3510
      %v3930 = vpop.f32.mrf.mxu0
      %v3931 = vadd.f32 %v3366, %v3930
      %v3932 = vpop.f32.mrf.mxu0
      %v3933 = vpop.f32.mrf.mxu0
      %v3934 = vadd.f32 %v3366, %v3933
      %v3935 = vpop.f32.mrf.mxu0
      %3936 = vmatprep.mubr.bf16.mxu0 0
      %3937 = vmatmul.mubr.bf16.gmra.mxu0 %v3513
      %v3938 = vpop.f32.mrf.mxu0
      %v3939 = vadd.f32 %v3366, %v3938
      %v3940 = vpop.f32.mrf.mxu0
      %v3941 = vpop.f32.mrf.mxu0
      %v3942 = vadd.f32 %v3366, %v3941
      %v3943 = vpop.f32.mrf.mxu0
      %3944 = vmatprep.mubr.bf16.mxu0 0
      %3945 = vmatmul.mubr.bf16.gmra.mxu0 %v3516
      %v3946 = vpop.f32.mrf.mxu0
      %v3947 = vadd.f32 %v3366, %v3946
      %v3948 = vpop.f32.mrf.mxu0
      %v3949 = vpop.f32.mrf.mxu0
      %v3950 = vadd.f32 %v3366, %v3949
      %v3951 = vpop.f32.mrf.mxu0
      %3952 = vmatprep.mubr.bf16.mxu0 0
      %3953 = vmatmul.mubr.bf16.gmra.mxu0 %v3519
      %v3954 = vpop.f32.mrf.mxu0
      %v3955 = vadd.f32 %v3366, %v3954
      %v3956 = vpop.f32.mrf.mxu0
      %v3957 = vpop.f32.mrf.mxu0
      %v3958 = vadd.f32 %v3366, %v3957
      %v3959 = vpop.f32.mrf.mxu0
      %3960 = vmatprep.mubr.bf16.mxu0 0
      %3961 = vmatmul.mubr.bf16.gmra.mxu0 %v3522
      %v3962 = vpop.f32.mrf.mxu0
      %v3963 = vadd.f32 %v3366, %v3962
      %v3964 = vpop.f32.mrf.mxu0
      %v3965 = vpop.f32.mrf.mxu0
      %v3966 = vadd.f32 %v3366, %v3965
      %v3967 = vpop.f32.mrf.mxu0
      %3968 = vmatprep.mubr.bf16.mxu0 0
      %3969 = vmatmul.mubr.bf16.gmra.mxu0 %v3525
      %v3970 = vpop.f32.mrf.mxu0
      %v3971 = vadd.f32 %v3366, %v3970
      %v3972 = vpop.f32.mrf.mxu0
      %v3973 = vpop.f32.mrf.mxu0
      %v3974 = vadd.f32 %v3366, %v3973
      %v3975 = vpop.f32.mrf.mxu0
      %3976 = vmatprep.mubr.bf16.mxu0 0
      %3977 = vmatmul.mubr.bf16.gmra.mxu0 %v3528
      %v3978 = vpop.f32.mrf.mxu0
      %v3979 = vadd.f32 %v3366, %v3978
      %v3980 = vpop.f32.mrf.mxu0
      %v3981 = vpop.f32.mrf.mxu0
      %v3982 = vadd.f32 %v3366, %v3981
      %v3983 = vpop.f32.mrf.mxu0
      %3984 = vmatprep.mubr.bf16.mxu0 0
      %3985 = vmatmul.mubr.bf16.gmra.mxu0 %v3531
      %v3986 = vpop.f32.mrf.mxu0
      %v3987 = vadd.f32 %v3366, %v3986
      %v3988 = vpop.f32.mrf.mxu0
      %v3989 = vpop.f32.mrf.mxu0
      %v3990 = vadd.f32 %v3366, %v3989
      %v3991 = vpop.f32.mrf.mxu0
      %3992 = vmatprep.mubr.bf16.mxu0 0
      %3993 = vmatmul.mubr.bf16.gmra.mxu0 %v3534
      %v3994 = vpop.f32.mrf.mxu0
      %v3995 = vadd.f32 %v3366, %v3994
      %v3996 = vpop.f32.mrf.mxu0
      %v3997 = vpop.f32.mrf.mxu0
      %v3998 = vadd.f32 %v3366, %v3997
      %v3999 = vpop.f32.mrf.mxu0
      %4000 = vmatprep.mubr.bf16.mxu0 0
      %4001 = vmatmul.mubr.bf16.gmra.mxu0 %v3537
      %v4002 = vpop.f32.mrf.mxu0
      %v4003 = vadd.f32 %v3366, %v4002
      %v4004 = vpop.f32.mrf.mxu0
      %v4005 = vpop.f32.mrf.mxu0
      %v4006 = vadd.f32 %v3366, %v4005
      %v4007 = vpop.f32.mrf.mxu0
      %4008 = vmatprep.mubr.bf16.mxu0 0
      %4009 = vmatmul.mubr.bf16.gmra.mxu0 %v3540
      %v4010 = vpop.f32.mrf.mxu0
      %v4011 = vadd.f32 %v3366, %v4010
      %v4012 = vpop.f32.mrf.mxu0
      %v4013 = vpop.f32.mrf.mxu0
      %v4014 = vadd.f32 %v3366, %v4013
      %v4015 = vpop.f32.mrf.mxu0
      %4016 = vmatprep.mubr.bf16.mxu0 0
      %4017 = vmatmul.mubr.bf16.gmra.mxu0 %v3543
      %v4018 = vpop.f32.mrf.mxu0
      %v4019 = vadd.f32 %v3366, %v4018
      %v4020 = vpop.f32.mrf.mxu0
      %v4021 = vpop.f32.mrf.mxu0
      %v4022 = vadd.f32 %v3366, %v4021
      %v4023 = vpop.f32.mrf.mxu0
      %4024 = vmatprep.mubr.bf16.mxu0 0
      %4025 = vmatmul.mubr.bf16.gmra.mxu0 %v3546
      %v4026 = vpop.f32.mrf.mxu0
      %v4027 = vadd.f32 %v3366, %v4026
      %v4028 = vpop.f32.mrf.mxu0
      %v4029 = vpop.f32.mrf.mxu0
      %v4030 = vadd.f32 %v3366, %v4029
      %v4031 = vpop.f32.mrf.mxu0
      %4032 = vmatprep.mubr.bf16.mxu0 0
      %4033 = vmatmul.mubr.bf16.gmra.mxu0 %v3549
      %v4034 = vpop.f32.mrf.mxu0
      %v4035 = vadd.f32 %v3366, %v4034
      %v4036 = vpop.f32.mrf.mxu0
      %v4037 = vpop.f32.mrf.mxu0
      %v4038 = vadd.f32 %v3366, %v4037
      %v4039 = vpop.f32.mrf.mxu0
      %4040 = vmatprep.mubr.bf16.mxu0 0
      %4041 = vmatmul.mubr.bf16.gmra.mxu0 %v3552
      %v4042 = vpop.f32.mrf.mxu0
      %v4043 = vadd.f32 %v3366, %v4042
      %v4044 = vpop.f32.mrf.mxu0
      %v4045 = vpop.f32.mrf.mxu0
      %v4046 = vadd.f32 %v3366, %v4045
      %v4047 = vpop.f32.mrf.mxu0
      %4048 = vmatprep.mubr.bf16.mxu0 0
      %4049 = vmatmul.mubr.bf16.gmra.mxu0 %v3555
      %v4050 = vpop.f32.mrf.mxu0
      %v4051 = vadd.f32 %v3366, %v4050
      %v4052 = vpop.f32.mrf.mxu0
      %v4053 = vpop.f32.mrf.mxu0
      %v4054 = vadd.f32 %v3366, %v4053
      %v4055 = vpop.f32.mrf.mxu0
      %4056 = vmatprep.mubr.bf16.mxu0 0
      %4057 = vmatmul.mubr.bf16.gmra.mxu0 %v3558
      %v4058 = vpop.f32.mrf.mxu0
      %v4059 = vadd.f32 %v3366, %v4058
      %v4060 = vpop.f32.mrf.mxu0
      %v4061 = vpop.f32.mrf.mxu0
      %v4062 = vadd.f32 %v3366, %v4061
      %v4063 = vpop.f32.mrf.mxu0
      %4064 = vmatprep.mubr.bf16.mxu0 0
      %4065 = vmatmul.mubr.bf16.gmra.mxu0 %v3561
      %v4066 = vpop.f32.mrf.mxu0
      %v4067 = vadd.f32 %v3366, %v4066
      %v4068 = vpop.f32.mrf.mxu0
      %v4069 = vpop.f32.mrf.mxu0
      %v4070 = vadd.f32 %v3366, %v4069
      %v4071 = vpop.f32.mrf.mxu0
      %4072 = vmatprep.mubr.bf16.mxu0 0
      %4073 = vmatmul.mubr.bf16.gmra.mxu0 %v3564
      %v4074 = vpop.f32.mrf.mxu0
      %v4075 = vadd.f32 %v3366, %v4074
      %v4076 = vpop.f32.mrf.mxu0
      %v4077 = vpop.f32.mrf.mxu0
      %v4078 = vadd.f32 %v3366, %v4077
      %v4079 = vpop.f32.mrf.mxu0
      %4080 = vmatprep.mubr.bf16.mxu0 0
      %4081 = vmatmul.mubr.bf16.gmra.mxu0 %v3567
      %v4082 = vpop.f32.mrf.mxu0
      %v4083 = vadd.f32 %v3366, %v4082
      %v4084 = vpop.f32.mrf.mxu0
      %v4085 = vpop.f32.mrf.mxu0
      %v4086 = vadd.f32 %v3366, %v4085
      %v4087 = vpop.f32.mrf.mxu0
      %4088 = vmatprep.mubr.bf16.mxu0 0
      %4089 = vmatmul.mubr.bf16.gmra.mxu0 %v3570
      %v4090 = vpop.f32.mrf.mxu0
      %v4091 = vadd.f32 %v3366, %v4090
      %v4092 = vpop.f32.mrf.mxu0
      %v4093 = vpop.f32.mrf.mxu0
      %v4094 = vadd.f32 %v3366, %v4093
      %v4095 = vpop.f32.mrf.mxu0
      %4096 = vmatprep.mubr.bf16.mxu0 0
      %4097 = vmatmul.mubr.bf16.gmra.mxu0 %v3573
      %v4098 = vpop.f32.mrf.mxu0
      %v4099 = vadd.f32 %v3366, %v4098
      %v4100 = vpop.f32.mrf.mxu0
      %v4101 = vpop.f32.mrf.mxu0
      %v4102 = vadd.f32 %v3366, %v4101
      %v4103 = vpop.f32.mrf.mxu0
      %4104 = vmatprep.mubr.bf16.mxu0 0
      %4105 = vmatmul.mubr.bf16.gmra.mxu0 %v3576
      %v4106 = vpop.f32.mrf.mxu0
      %v4107 = vadd.f32 %v3366, %v4106
      %v4108 = vpop.f32.mrf.mxu0
      %v4109 = vpop.f32.mrf.mxu0
      %v4110 = vadd.f32 %v3366, %v4109
      %v4111 = vpop.f32.mrf.mxu0
      %4112 = vmatprep.mubr.bf16.mxu0 0
      %4113 = vmatmul.mubr.bf16.gmra.mxu0 %v3579
      %v4114 = vpop.f32.mrf.mxu0
      %v4115 = vadd.f32 %v3366, %v4114
      %v4116 = vpop.f32.mrf.mxu0
      %v4117 = vpop.f32.mrf.mxu0
      %v4118 = vadd.f32 %v3366, %v4117
      %v4119 = vpop.f32.mrf.mxu0
      %4120 = vmatprep.mubr.bf16.mxu0 0
      %4121 = vmatmul.mubr.bf16.gmra.mxu0 %v3582
      %v4122 = vpop.f32.mrf.mxu0
      %v4123 = vadd.f32 %v3366, %v4122
      %v4124 = vpop.f32.mrf.mxu0
      %v4125 = vpop.f32.mrf.mxu0
      %v4126 = vadd.f32 %v3366, %v4125
      %v4127 = vpop.f32.mrf.mxu0
      %4128 = vdwg.mxu0
      %v4129 = vmax.f32 %v3619, 0.0
      %v4130 = vmax.f32 %v3622, 0.0
      %v4131 = vmax.f32 %v3627, 0.0
      %v4132 = vmax.f32 %v3630, 0.0
      %v4133 = vmax.f32 %v3635, 0.0
      %v4134 = vmax.f32 %v3638, 0.0
      %v4135 = vmax.f32 %v3643, 0.0
      %v4136 = vmax.f32 %v3646, 0.0
      %v4137 = vmax.f32 %v3651, 0.0
      %v4138 = vmax.f32 %v3654, 0.0
      %v4139 = vmax.f32 %v3659, 0.0
      %v4140 = vmax.f32 %v3662, 0.0
      %v4141 = vmax.f32 %v3667, 0.0
      %v4142 = vmax.f32 %v3670, 0.0
      %v4143 = vmax.f32 %v3675, 0.0
      %v4144 = vmax.f32 %v3678, 0.0
      %v4145 = vmax.f32 %v3683, 0.0
      %v4146 = vmax.f32 %v3686, 0.0
      %v4147 = vmax.f32 %v3691, 0.0
      %v4148 = vmax.f32 %v3694, 0.0
      %v4149 = vmax.f32 %v3699, 0.0
      %v4150 = vmax.f32 %v3702, 0.0
      %v4151 = vmax.f32 %v3707, 0.0
      %v4152 = vmax.f32 %v3710, 0.0
      %v4153 = vmax.f32 %v3715, 0.0
      %v4154 = vmax.f32 %v3718, 0.0
      %v4155 = vmax.f32 %v3723, 0.0
      %v4156 = vmax.f32 %v3726, 0.0
      %v4157 = vmax.f32 %v3731, 0.0
      %v4158 = vmax.f32 %v3734, 0.0
      %v4159 = vmax.f32 %v3739, 0.0
      %v4160 = vmax.f32 %v3742, 0.0
      %v4161 = vmax.f32 %v3747, 0.0
      %v4162 = vmax.f32 %v3750, 0.0
      %v4163 = vmax.f32 %v3755, 0.0
      %v4164 = vmax.f32 %v3758, 0.0
      %v4165 = vmax.f32 %v3763, 0.0
      %v4166 = vmax.f32 %v3766, 0.0
      %v4167 = vmax.f32 %v3771, 0.0
      %v4168 = vmax.f32 %v3774, 0.0
      %v4169 = vmax.f32 %v3779, 0.0
      %v4170 = vmax.f32 %v3782, 0.0
      %v4171 = vmax.f32 %v3787, 0.0
      %v4172 = vmax.f32 %v3790, 0.0
      %v4173 = vmax.f32 %v3795, 0.0
      %v4174 = vmax.f32 %v3798, 0.0
      %v4175 = vmax.f32 %v3803, 0.0
      %v4176 = vmax.f32 %v3806, 0.0
      %v4177 = vmax.f32 %v3811, 0.0
      %v4178 = vmax.f32 %v3814, 0.0
      %v4179 = vmax.f32 %v3819, 0.0
      %v4180 = vmax.f32 %v3822, 0.0
      %v4181 = vmax.f32 %v3827, 0.0
      %v4182 = vmax.f32 %v3830, 0.0
      %v4183 = vmax.f32 %v3835, 0.0
      %v4184 = vmax.f32 %v3838, 0.0
      %v4185 = vmax.f32 %v3843, 0.0
      %v4186 = vmax.f32 %v3846, 0.0
      %v4187 = vmax.f32 %v3851, 0.0
      %v4188 = vmax.f32 %v3854, 0.0
      %v4189 = vmax.f32 %v3859, 0.0
      %v4190 = vmax.f32 %v3862, 0.0
      %v4191 = vmax.f32 %v3867, 0.0
      %v4192 = vmax.f32 %v3870, 0.0
      %v4193 = vmax.f32 %v3875, 0.0
      %v4194 = vmax.f32 %v3878, 0.0
      %v4195 = vmax.f32 %v3883, 0.0
      %v4196 = vmax.f32 %v3886, 0.0
      %v4197 = vmax.f32 %v3891, 0.0
      %v4198 = vmax.f32 %v3894, 0.0
      %v4199 = vmax.f32 %v3899, 0.0
      %v4200 = vmax.f32 %v3902, 0.0
      %v4201 = vmax.f32 %v3907, 0.0
      %v4202 = vmax.f32 %v3910, 0.0
      %v4203 = vmax.f32 %v3915, 0.0
      %v4204 = vmax.f32 %v3918, 0.0
      %v4205 = vmax.f32 %v3923, 0.0
      %v4206 = vmax.f32 %v3926, 0.0
      %v4207 = vmax.f32 %v3931, 0.0
      %v4208 = vmax.f32 %v3934, 0.0
      %v4209 = vmax.f32 %v3939, 0.0
      %v4210 = vmax.f32 %v3942, 0.0
      %v4211 = vmax.f32 %v3947, 0.0
      %v4212 = vmax.f32 %v3950, 0.0
      %v4213 = vmax.f32 %v3955, 0.0
      %v4214 = vmax.f32 %v3958, 0.0
      %v4215 = vmax.f32 %v3963, 0.0
      %v4216 = vmax.f32 %v3966, 0.0
      %v4217 = vmax.f32 %v3971, 0.0
      %v4218 = vmax.f32 %v3974, 0.0
      %v4219 = vmax.f32 %v3979, 0.0
      %v4220 = vmax.f32 %v3982, 0.0
      %v4221 = vmax.f32 %v3987, 0.0
      %v4222 = vmax.f32 %v3990, 0.0
      %v4223 = vmax.f32 %v3995, 0.0
      %v4224 = vmax.f32 %v3998, 0.0
      %v4225 = vmax.f32 %v4003, 0.0
      %v4226 = vmax.f32 %v4006, 0.0
      %v4227 = vmax.f32 %v4011, 0.0
      %v4228 = vmax.f32 %v4014, 0.0
      %v4229 = vmax.f32 %v4019, 0.0
      %v4230 = vmax.f32 %v4022, 0.0
      %v4231 = vmax.f32 %v4027, 0.0
      %v4232 = vmax.f32 %v4030, 0.0
      %v4233 = vmax.f32 %v4035, 0.0
      %v4234 = vmax.f32 %v4038, 0.0
      %v4235 = vmax.f32 %v4043, 0.0
      %v4236 = vmax.f32 %v4046, 0.0
      %v4237 = vmax.f32 %v4051, 0.0
      %v4238 = vmax.f32 %v4054, 0.0
      %v4239 = vmax.f32 %v4059, 0.0
      %v4240 = vmax.f32 %v4062, 0.0
      %v4241 = vmax.f32 %v4067, 0.0
      %v4242 = vmax.f32 %v4070, 0.0
      %v4243 = vmax.f32 %v4075, 0.0
      %v4244 = vmax.f32 %v4078, 0.0
      %v4245 = vmax.f32 %v4083, 0.0
      %v4246 = vmax.f32 %v4086, 0.0
      %v4247 = vmax.f32 %v4091, 0.0
      %v4248 = vmax.f32 %v4094, 0.0
      %v4249 = vmax.f32 %v4099, 0.0
      %v4250 = vmax.f32 %v4102, 0.0
      %v4251 = vmax.f32 %v4107, 0.0
      %v4252 = vmax.f32 %v4110, 0.0
      %v4253 = vmax.f32 %v4115, 0.0
      %v4254 = vmax.f32 %v4118, 0.0
      %v4255 = vmax.f32 %v4123, 0.0
      %v4256 = vmax.f32 %v4126, 0.0
      %s4257 = scalar_lea.vmem %s3, 96
      %v4258 = vld [vmem:[%s4257] sm:$0xf]
      %v4259 = vld [vmem:[%s4257 + $0x4] sm:$0xf]
      %v4260 = vld [vmem:[%s4257 + $0x8] sm:$0xf]
      %v4261 = vld [vmem:[%s4257 + $0xc] sm:$0xf]
      %v4262 = vld [vmem:[%s4257 + $0x10] sm:$0xf]
      %v4263 = vld [vmem:[%s4257 + $0x14] sm:$0xf]
      %v4264 = vld [vmem:[%s4257 + $0x18] sm:$0xf]
      %v4265 = vld [vmem:[%s4257 + $0x1c] sm:$0xf]
      %s4266 = scalar_lea.vmem %s4, 3
      %v4267 = vld [vmem:[%s4266] sm:$0x1]
      %v4268 = vpack.c.bf16 %v4130, %v4129
      %v4269 = vpack.c.bf16 %v4132, %v4131
      %v4270 = vpack.c.bf16 %v4134, %v4133
      %v4271 = vpack.c.bf16 %v4136, %v4135
      %v4272 = vpack.c.bf16 %v4138, %v4137
      %v4273 = vpack.c.bf16 %v4140, %v4139
      %v4274 = vpack.c.bf16 %v4142, %v4141
      %v4275 = vpack.c.bf16 %v4144, %v4143
      %v4276 = vpack.c.bf16 %v4146, %v4145
      %v4277 = vpack.c.bf16 %v4148, %v4147
      %v4278 = vpack.c.bf16 %v4150, %v4149
      %v4279 = vpack.c.bf16 %v4152, %v4151
      %v4280 = vpack.c.bf16 %v4154, %v4153
      %v4281 = vpack.c.bf16 %v4156, %v4155
      %v4282 = vpack.c.bf16 %v4158, %v4157
      %v4283 = vpack.c.bf16 %v4160, %v4159
      %v4284 = vpack.c.bf16 %v4162, %v4161
      %v4285 = vpack.c.bf16 %v4164, %v4163
      %v4286 = vpack.c.bf16 %v4166, %v4165
      %v4287 = vpack.c.bf16 %v4168, %v4167
      %v4288 = vpack.c.bf16 %v4170, %v4169
      %v4289 = vpack.c.bf16 %v4172, %v4171
      %v4290 = vpack.c.bf16 %v4174, %v4173
      %v4291 = vpack.c.bf16 %v4176, %v4175
      %v4292 = vpack.c.bf16 %v4178, %v4177
      %v4293 = vpack.c.bf16 %v4180, %v4179
      %v4294 = vpack.c.bf16 %v4182, %v4181
      %v4295 = vpack.c.bf16 %v4184, %v4183
      %v4296 = vpack.c.bf16 %v4186, %v4185
      %v4297 = vpack.c.bf16 %v4188, %v4187
      %v4298 = vpack.c.bf16 %v4190, %v4189
      %v4299 = vpack.c.bf16 %v4192, %v4191
      %v4300 = vpack.c.bf16 %v4194, %v4193
      %v4301 = vpack.c.bf16 %v4196, %v4195
      %v4302 = vpack.c.bf16 %v4198, %v4197
      %v4303 = vpack.c.bf16 %v4200, %v4199
      %v4304 = vpack.c.bf16 %v4202, %v4201
      %v4305 = vpack.c.bf16 %v4204, %v4203
      %v4306 = vpack.c.bf16 %v4206, %v4205
      %v4307 = vpack.c.bf16 %v4208, %v4207
      %v4308 = vpack.c.bf16 %v4210, %v4209
      %v4309 = vpack.c.bf16 %v4212, %v4211
      %v4310 = vpack.c.bf16 %v4214, %v4213
      %v4311 = vpack.c.bf16 %v4216, %v4215
      %v4312 = vpack.c.bf16 %v4218, %v4217
      %v4313 = vpack.c.bf16 %v4220, %v4219
      %v4314 = vpack.c.bf16 %v4222, %v4221
      %v4315 = vpack.c.bf16 %v4224, %v4223
      %v4316 = vpack.c.bf16 %v4226, %v4225
      %v4317 = vpack.c.bf16 %v4228, %v4227
      %v4318 = vpack.c.bf16 %v4230, %v4229
      %v4319 = vpack.c.bf16 %v4232, %v4231
      %v4320 = vpack.c.bf16 %v4234, %v4233
      %v4321 = vpack.c.bf16 %v4236, %v4235
      %v4322 = vpack.c.bf16 %v4238, %v4237
      %v4323 = vpack.c.bf16 %v4240, %v4239
      %v4324 = vpack.c.bf16 %v4242, %v4241
      %v4325 = vpack.c.bf16 %v4244, %v4243
      %v4326 = vpack.c.bf16 %v4246, %v4245
      %v4327 = vpack.c.bf16 %v4248, %v4247
      %v4328 = vpack.c.bf16 %v4250, %v4249
      %v4329 = vpack.c.bf16 %v4252, %v4251
      %v4330 = vpack.c.bf16 %v4254, %v4253
      %v4331 = vpack.c.bf16 %v4256, %v4255
      %v4333 = vlaneseq
      %v4334 = vshrl.u32 %v4333, 7
      %v4335 = vsub.s32 0, %v4334
      %v4336 = vrot.slane %v4267, %v4335
      %v4346 = vunpack.c.l.b16 %v4258
      %v4347 = vunpack.c.l.b16 %v4259
      %v4348 = vunpack.c.l.b16 %v4260
      %v4349 = vunpack.c.l.b16 %v4261
      %v4350 = vunpack.c.l.b16 %v4262
      %v4351 = vunpack.c.l.b16 %v4263
      %v4352 = vunpack.c.l.b16 %v4264
      %v4353 = vunpack.c.l.b16 %v4265
      %v4354 = vpack.c.b16 %v4347, %v4346
      %v4355 = vpack.c.b16 %v4349, %v4348
      %v4356 = vpack.c.b16 %v4351, %v4350
      %v4357 = vpack.c.b16 %v4353, %v4352
      %v4363 = vsel %vm1323, %v4268, 0
      %v4366 = vsel %vm1323, %v4269, 0
      %v4369 = vsel %vm1323, %v4270, 0
      %v4372 = vsel %vm1323, %v4271, 0
      %v4375 = vsel %vm1323, %v4272, 0
      %v4378 = vsel %vm1323, %v4273, 0
      %v4381 = vsel %vm1323, %v4274, 0
      %v4384 = vsel %vm1323, %v4275, 0
      %v4387 = vsel %vm1323, %v4276, 0
      %v4390 = vsel %vm1323, %v4277, 0
      %v4393 = vsel %vm1323, %v4278, 0
      %v4396 = vsel %vm1323, %v4279, 0
      %v4399 = vsel %vm1323, %v4280, 0
      %v4402 = vsel %vm1323, %v4281, 0
      %v4405 = vsel %vm1323, %v4282, 0
      %v4408 = vsel %vm1323, %v4283, 0
      %v4411 = vsel %vm1323, %v4284, 0
      %v4414 = vsel %vm1323, %v4285, 0
      %v4417 = vsel %vm1323, %v4286, 0
      %v4420 = vsel %vm1323, %v4287, 0
      %v4423 = vsel %vm1323, %v4288, 0
      %v4426 = vsel %vm1323, %v4289, 0
      %v4429 = vsel %vm1323, %v4290, 0
      %v4432 = vsel %vm1323, %v4291, 0
      %v4435 = vsel %vm1323, %v4292, 0
      %v4438 = vsel %vm1323, %v4293, 0
      %v4441 = vsel %vm1323, %v4294, 0
      %v4444 = vsel %vm1323, %v4295, 0
      %v4447 = vsel %vm1323, %v4296, 0
      %v4450 = vsel %vm1323, %v4297, 0
      %v4453 = vsel %vm1323, %v4298, 0
      %v4456 = vsel %vm1323, %v4299, 0
      %v4459 = vsel %vm1323, %v4300, 0
      %v4462 = vsel %vm1323, %v4301, 0
      %v4465 = vsel %vm1323, %v4302, 0
      %v4468 = vsel %vm1323, %v4303, 0
      %v4471 = vsel %vm1323, %v4304, 0
      %v4474 = vsel %vm1323, %v4305, 0
      %v4477 = vsel %vm1323, %v4306, 0
      %v4480 = vsel %vm1323, %v4307, 0
      %v4483 = vsel %vm1323, %v4308, 0
      %v4486 = vsel %vm1323, %v4309, 0
      %v4489 = vsel %vm1323, %v4310, 0
      %v4492 = vsel %vm1323, %v4311, 0
      %v4495 = vsel %vm1323, %v4312, 0
      %v4498 = vsel %vm1323, %v4313, 0
      %v4501 = vsel %vm1323, %v4314, 0
      %v4504 = vsel %vm1323, %v4315, 0
      %v4507 = vsel %vm1323, %v4316, 0
      %v4510 = vsel %vm1323, %v4317, 0
      %v4513 = vsel %vm1323, %v4318, 0
      %v4516 = vsel %vm1323, %v4319, 0
      %v4519 = vsel %vm1323, %v4320, 0
      %v4522 = vsel %vm1323, %v4321, 0
      %v4525 = vsel %vm1323, %v4322, 0
      %v4528 = vsel %vm1323, %v4323, 0
      %v4531 = vsel %vm1323, %v4324, 0
      %v4534 = vsel %vm1323, %v4325, 0
      %v4537 = vsel %vm1323, %v4326, 0
      %v4540 = vsel %vm1323, %v4327, 0
      %v4543 = vsel %vm1323, %v4328, 0
      %v4546 = vsel %vm1323, %v4329, 0
      %v4549 = vsel %vm1323, %v4330, 0
      %v4552 = vsel %vm1323, %v4331, 0
      %4554 = vmatprep.subr.bf16.mxu0 0
      %4555 = vmatpush1.bf16.msra.mxu0 0
      %4556 = vmatprep.subr.bf16.mxu0 0
      %4557 = vmatpush1.bf16.msra.mxu0 0
      %4558 = vmatprep.subr.bf16.mxu0 0
      %4559 = vmatpush1.bf16.msra.mxu0 0
      %4560 = vmatprep.subr.bf16.mxu0 0
      %4561 = vmatpush1.bf16.msra.mxu0 0
      %4562 = vmatprep.subr.bf16.mxu0 0
      %4563 = vmatpush1.bf16.msra.mxu0 %v4357
      %4564 = vmatprep.subr.bf16.mxu0 0
      %4565 = vmatpush1.bf16.msra.mxu0 %v4356
      %4566 = vmatprep.subr.bf16.mxu0 0
      %4567 = vmatpush1.bf16.msra.mxu0 %v4355
      %4568 = vmatprep.subr.bf16.mxu0 0
      %4569 = vmatpush1.bf16.msra.mxu0 %v4354
      %4570 = vmatprep.subr.bf16.mxu0 0
      %4571 = vmatpush2.bf16.msra.mxu0 0
      %4572 = vmatprep.subr.bf16.mxu0 0
      %4573 = vmatpush2.bf16.msra.mxu0 0
      %4574 = vmatprep.subr.bf16.mxu0 0
      %4575 = vmatpush2.bf16.msra.mxu0 0
      %4576 = vmatprep.subr.bf16.mxu0 0
      %4577 = vmatpush2.bf16.msra.mxu0 0
      %4578 = vmatprep.subr.bf16.mxu0 0
      %4579 = vmatpush2.bf16.msra.mxu0 0
      %4580 = vmatprep.subr.bf16.mxu0 0
      %4581 = vmatpush2.bf16.msra.mxu0 0
      %4582 = vmatprep.subr.bf16.mxu0 0
      %4583 = vmatpush2.bf16.msra.mxu0 0
      %4584 = vmatprep.subr.bf16.mxu0 0
      %4585 = vmatpush2.bf16.msra.mxu0 0
      %4586 = vmatprep.mubr.bf16.mxu0 0
      %4587 = vmatmul.mubr.bf16.gmra.mxu0 %v4363
      %v4588 = vpop.f32.mrf.mxu0
      %v4589 = vadd.f32 %v4336, %v4588
      %v4590 = vpop.f32.mrf.mxu0
      %v4591 = vpop.f32.mrf.mxu0
      %v4592 = vadd.f32 %v4336, %v4591
      %v4593 = vpop.f32.mrf.mxu0
      %4594 = vmatprep.mubr.bf16.mxu0 0
      %4595 = vmatmul.mubr.bf16.gmra.mxu0 %v4366
      %v4596 = vpop.f32.mrf.mxu0
      %v4597 = vadd.f32 %v4336, %v4596
      %v4598 = vpop.f32.mrf.mxu0
      %v4599 = vpop.f32.mrf.mxu0
      %v4600 = vadd.f32 %v4336, %v4599
      %v4601 = vpop.f32.mrf.mxu0
      %4602 = vmatprep.mubr.bf16.mxu0 0
      %4603 = vmatmul.mubr.bf16.gmra.mxu0 %v4369
      %v4604 = vpop.f32.mrf.mxu0
      %v4605 = vadd.f32 %v4336, %v4604
      %v4606 = vpop.f32.mrf.mxu0
      %v4607 = vpop.f32.mrf.mxu0
      %v4608 = vadd.f32 %v4336, %v4607
      %v4609 = vpop.f32.mrf.mxu0
      %4610 = vmatprep.mubr.bf16.mxu0 0
      %4611 = vmatmul.mubr.bf16.gmra.mxu0 %v4372
      %v4612 = vpop.f32.mrf.mxu0
      %v4613 = vadd.f32 %v4336, %v4612
      %v4614 = vpop.f32.mrf.mxu0
      %v4615 = vpop.f32.mrf.mxu0
      %v4616 = vadd.f32 %v4336, %v4615
      %v4617 = vpop.f32.mrf.mxu0
      %4618 = vmatprep.mubr.bf16.mxu0 0
      %4619 = vmatmul.mubr.bf16.gmra.mxu0 %v4375
      %v4620 = vpop.f32.mrf.mxu0
      %v4621 = vadd.f32 %v4336, %v4620
      %v4622 = vpop.f32.mrf.mxu0
      %v4623 = vpop.f32.mrf.mxu0
      %v4624 = vadd.f32 %v4336, %v4623
      %v4625 = vpop.f32.mrf.mxu0
      %4626 = vmatprep.mubr.bf16.mxu0 0
      %4627 = vmatmul.mubr.bf16.gmra.mxu0 %v4378
      %v4628 = vpop.f32.mrf.mxu0
      %v4629 = vadd.f32 %v4336, %v4628
      %v4630 = vpop.f32.mrf.mxu0
      %v4631 = vpop.f32.mrf.mxu0
      %v4632 = vadd.f32 %v4336, %v4631
      %v4633 = vpop.f32.mrf.mxu0
      %4634 = vmatprep.mubr.bf16.mxu0 0
      %4635 = vmatmul.mubr.bf16.gmra.mxu0 %v4381
      %v4636 = vpop.f32.mrf.mxu0
      %v4637 = vadd.f32 %v4336, %v4636
      %v4638 = vpop.f32.mrf.mxu0
      %v4639 = vpop.f32.mrf.mxu0
      %v4640 = vadd.f32 %v4336, %v4639
      %v4641 = vpop.f32.mrf.mxu0
      %4642 = vmatprep.mubr.bf16.mxu0 0
      %4643 = vmatmul.mubr.bf16.gmra.mxu0 %v4384
      %v4644 = vpop.f32.mrf.mxu0
      %v4645 = vadd.f32 %v4336, %v4644
      %v4646 = vpop.f32.mrf.mxu0
      %v4647 = vpop.f32.mrf.mxu0
      %v4648 = vadd.f32 %v4336, %v4647
      %v4649 = vpop.f32.mrf.mxu0
      %4650 = vmatprep.mubr.bf16.mxu0 0
      %4651 = vmatmul.mubr.bf16.gmra.mxu0 %v4387
      %v4652 = vpop.f32.mrf.mxu0
      %v4653 = vadd.f32 %v4336, %v4652
      %v4654 = vpop.f32.mrf.mxu0
      %v4655 = vpop.f32.mrf.mxu0
      %v4656 = vadd.f32 %v4336, %v4655
      %v4657 = vpop.f32.mrf.mxu0
      %4658 = vmatprep.mubr.bf16.mxu0 0
      %4659 = vmatmul.mubr.bf16.gmra.mxu0 %v4390
      %v4660 = vpop.f32.mrf.mxu0
      %v4661 = vadd.f32 %v4336, %v4660
      %v4662 = vpop.f32.mrf.mxu0
      %v4663 = vpop.f32.mrf.mxu0
      %v4664 = vadd.f32 %v4336, %v4663
      %v4665 = vpop.f32.mrf.mxu0
      %4666 = vmatprep.mubr.bf16.mxu0 0
      %4667 = vmatmul.mubr.bf16.gmra.mxu0 %v4393
      %v4668 = vpop.f32.mrf.mxu0
      %v4669 = vadd.f32 %v4336, %v4668
      %v4670 = vpop.f32.mrf.mxu0
      %v4671 = vpop.f32.mrf.mxu0
      %v4672 = vadd.f32 %v4336, %v4671
      %v4673 = vpop.f32.mrf.mxu0
      %4674 = vmatprep.mubr.bf16.mxu0 0
      %4675 = vmatmul.mubr.bf16.gmra.mxu0 %v4396
      %v4676 = vpop.f32.mrf.mxu0
      %v4677 = vadd.f32 %v4336, %v4676
      %v4678 = vpop.f32.mrf.mxu0
      %v4679 = vpop.f32.mrf.mxu0
      %v4680 = vadd.f32 %v4336, %v4679
      %v4681 = vpop.f32.mrf.mxu0
      %4682 = vmatprep.mubr.bf16.mxu0 0
      %4683 = vmatmul.mubr.bf16.gmra.mxu0 %v4399
      %v4684 = vpop.f32.mrf.mxu0
      %v4685 = vadd.f32 %v4336, %v4684
      %v4686 = vpop.f32.mrf.mxu0
      %v4687 = vpop.f32.mrf.mxu0
      %v4688 = vadd.f32 %v4336, %v4687
      %v4689 = vpop.f32.mrf.mxu0
      %4690 = vmatprep.mubr.bf16.mxu0 0
      %4691 = vmatmul.mubr.bf16.gmra.mxu0 %v4402
      %v4692 = vpop.f32.mrf.mxu0
      %v4693 = vadd.f32 %v4336, %v4692
      %v4694 = vpop.f32.mrf.mxu0
      %v4695 = vpop.f32.mrf.mxu0
      %v4696 = vadd.f32 %v4336, %v4695
      %v4697 = vpop.f32.mrf.mxu0
      %4698 = vmatprep.mubr.bf16.mxu0 0
      %4699 = vmatmul.mubr.bf16.gmra.mxu0 %v4405
      %v4700 = vpop.f32.mrf.mxu0
      %v4701 = vadd.f32 %v4336, %v4700
      %v4702 = vpop.f32.mrf.mxu0
      %v4703 = vpop.f32.mrf.mxu0
      %v4704 = vadd.f32 %v4336, %v4703
      %v4705 = vpop.f32.mrf.mxu0
      %4706 = vmatprep.mubr.bf16.mxu0 0
      %4707 = vmatmul.mubr.bf16.gmra.mxu0 %v4408
      %v4708 = vpop.f32.mrf.mxu0
      %v4709 = vadd.f32 %v4336, %v4708
      %v4710 = vpop.f32.mrf.mxu0
      %v4711 = vpop.f32.mrf.mxu0
      %v4712 = vadd.f32 %v4336, %v4711
      %v4713 = vpop.f32.mrf.mxu0
      %4714 = vmatprep.mubr.bf16.mxu0 0
      %4715 = vmatmul.mubr.bf16.gmra.mxu0 %v4411
      %v4716 = vpop.f32.mrf.mxu0
      %v4717 = vadd.f32 %v4336, %v4716
      %v4718 = vpop.f32.mrf.mxu0
      %v4719 = vpop.f32.mrf.mxu0
      %v4720 = vadd.f32 %v4336, %v4719
      %v4721 = vpop.f32.mrf.mxu0
      %4722 = vmatprep.mubr.bf16.mxu0 0
      %4723 = vmatmul.mubr.bf16.gmra.mxu0 %v4414
      %v4724 = vpop.f32.mrf.mxu0
      %v4725 = vadd.f32 %v4336, %v4724
      %v4726 = vpop.f32.mrf.mxu0
      %v4727 = vpop.f32.mrf.mxu0
      %v4728 = vadd.f32 %v4336, %v4727
      %v4729 = vpop.f32.mrf.mxu0
      %4730 = vmatprep.mubr.bf16.mxu0 0
      %4731 = vmatmul.mubr.bf16.gmra.mxu0 %v4417
      %v4732 = vpop.f32.mrf.mxu0
      %v4733 = vadd.f32 %v4336, %v4732
      %v4734 = vpop.f32.mrf.mxu0
      %v4735 = vpop.f32.mrf.mxu0
      %v4736 = vadd.f32 %v4336, %v4735
      %v4737 = vpop.f32.mrf.mxu0
      %4738 = vmatprep.mubr.bf16.mxu0 0
      %4739 = vmatmul.mubr.bf16.gmra.mxu0 %v4420
      %v4740 = vpop.f32.mrf.mxu0
      %v4741 = vadd.f32 %v4336, %v4740
      %v4742 = vpop.f32.mrf.mxu0
      %v4743 = vpop.f32.mrf.mxu0
      %v4744 = vadd.f32 %v4336, %v4743
      %v4745 = vpop.f32.mrf.mxu0
      %4746 = vmatprep.mubr.bf16.mxu0 0
      %4747 = vmatmul.mubr.bf16.gmra.mxu0 %v4423
      %v4748 = vpop.f32.mrf.mxu0
      %v4749 = vadd.f32 %v4336, %v4748
      %v4750 = vpop.f32.mrf.mxu0
      %v4751 = vpop.f32.mrf.mxu0
      %v4752 = vadd.f32 %v4336, %v4751
      %v4753 = vpop.f32.mrf.mxu0
      %4754 = vmatprep.mubr.bf16.mxu0 0
      %4755 = vmatmul.mubr.bf16.gmra.mxu0 %v4426
      %v4756 = vpop.f32.mrf.mxu0
      %v4757 = vadd.f32 %v4336, %v4756
      %v4758 = vpop.f32.mrf.mxu0
      %v4759 = vpop.f32.mrf.mxu0
      %v4760 = vadd.f32 %v4336, %v4759
      %v4761 = vpop.f32.mrf.mxu0
      %4762 = vmatprep.mubr.bf16.mxu0 0
      %4763 = vmatmul.mubr.bf16.gmra.mxu0 %v4429
      %v4764 = vpop.f32.mrf.mxu0
      %v4765 = vadd.f32 %v4336, %v4764
      %v4766 = vpop.f32.mrf.mxu0
      %v4767 = vpop.f32.mrf.mxu0
      %v4768 = vadd.f32 %v4336, %v4767
      %v4769 = vpop.f32.mrf.mxu0
      %4770 = vmatprep.mubr.bf16.mxu0 0
      %4771 = vmatmul.mubr.bf16.gmra.mxu0 %v4432
      %v4772 = vpop.f32.mrf.mxu0
      %v4773 = vadd.f32 %v4336, %v4772
      %v4774 = vpop.f32.mrf.mxu0
      %v4775 = vpop.f32.mrf.mxu0
      %v4776 = vadd.f32 %v4336, %v4775
      %v4777 = vpop.f32.mrf.mxu0
      %4778 = vmatprep.mubr.bf16.mxu0 0
      %4779 = vmatmul.mubr.bf16.gmra.mxu0 %v4435
      %v4780 = vpop.f32.mrf.mxu0
      %v4781 = vadd.f32 %v4336, %v4780
      %v4782 = vpop.f32.mrf.mxu0
      %v4783 = vpop.f32.mrf.mxu0
      %v4784 = vadd.f32 %v4336, %v4783
      %v4785 = vpop.f32.mrf.mxu0
      %4786 = vmatprep.mubr.bf16.mxu0 0
      %4787 = vmatmul.mubr.bf16.gmra.mxu0 %v4438
      %v4788 = vpop.f32.mrf.mxu0
      %v4789 = vadd.f32 %v4336, %v4788
      %v4790 = vpop.f32.mrf.mxu0
      %v4791 = vpop.f32.mrf.mxu0
      %v4792 = vadd.f32 %v4336, %v4791
      %v4793 = vpop.f32.mrf.mxu0
      %4794 = vmatprep.mubr.bf16.mxu0 0
      %4795 = vmatmul.mubr.bf16.gmra.mxu0 %v4441
      %v4796 = vpop.f32.mrf.mxu0
      %v4797 = vadd.f32 %v4336, %v4796
      %v4798 = vpop.f32.mrf.mxu0
      %v4799 = vpop.f32.mrf.mxu0
      %v4800 = vadd.f32 %v4336, %v4799
      %v4801 = vpop.f32.mrf.mxu0
      %4802 = vmatprep.mubr.bf16.mxu0 0
      %4803 = vmatmul.mubr.bf16.gmra.mxu0 %v4444
      %v4804 = vpop.f32.mrf.mxu0
      %v4805 = vadd.f32 %v4336, %v4804
      %v4806 = vpop.f32.mrf.mxu0
      %v4807 = vpop.f32.mrf.mxu0
      %v4808 = vadd.f32 %v4336, %v4807
      %v4809 = vpop.f32.mrf.mxu0
      %4810 = vmatprep.mubr.bf16.mxu0 0
      %4811 = vmatmul.mubr.bf16.gmra.mxu0 %v4447
      %v4812 = vpop.f32.mrf.mxu0
      %v4813 = vadd.f32 %v4336, %v4812
      %v4814 = vpop.f32.mrf.mxu0
      %v4815 = vpop.f32.mrf.mxu0
      %v4816 = vadd.f32 %v4336, %v4815
      %v4817 = vpop.f32.mrf.mxu0
      %4818 = vmatprep.mubr.bf16.mxu0 0
      %4819 = vmatmul.mubr.bf16.gmra.mxu0 %v4450
      %v4820 = vpop.f32.mrf.mxu0
      %v4821 = vadd.f32 %v4336, %v4820
      %v4822 = vpop.f32.mrf.mxu0
      %v4823 = vpop.f32.mrf.mxu0
      %v4824 = vadd.f32 %v4336, %v4823
      %v4825 = vpop.f32.mrf.mxu0
      %4826 = vmatprep.mubr.bf16.mxu0 0
      %4827 = vmatmul.mubr.bf16.gmra.mxu0 %v4453
      %v4828 = vpop.f32.mrf.mxu0
      %v4829 = vadd.f32 %v4336, %v4828
      %v4830 = vpop.f32.mrf.mxu0
      %v4831 = vpop.f32.mrf.mxu0
      %v4832 = vadd.f32 %v4336, %v4831
      %v4833 = vpop.f32.mrf.mxu0
      %4834 = vmatprep.mubr.bf16.mxu0 0
      %4835 = vmatmul.mubr.bf16.gmra.mxu0 %v4456
      %v4836 = vpop.f32.mrf.mxu0
      %v4837 = vadd.f32 %v4336, %v4836
      %v4838 = vpop.f32.mrf.mxu0
      %v4839 = vpop.f32.mrf.mxu0
      %v4840 = vadd.f32 %v4336, %v4839
      %v4841 = vpop.f32.mrf.mxu0
      %4842 = vmatprep.mubr.bf16.mxu0 0
      %4843 = vmatmul.mubr.bf16.gmra.mxu0 %v4459
      %v4844 = vpop.f32.mrf.mxu0
      %v4845 = vadd.f32 %v4336, %v4844
      %v4846 = vpop.f32.mrf.mxu0
      %v4847 = vpop.f32.mrf.mxu0
      %v4848 = vadd.f32 %v4336, %v4847
      %v4849 = vpop.f32.mrf.mxu0
      %4850 = vmatprep.mubr.bf16.mxu0 0
      %4851 = vmatmul.mubr.bf16.gmra.mxu0 %v4462
      %v4852 = vpop.f32.mrf.mxu0
      %v4853 = vadd.f32 %v4336, %v4852
      %v4854 = vpop.f32.mrf.mxu0
      %v4855 = vpop.f32.mrf.mxu0
      %v4856 = vadd.f32 %v4336, %v4855
      %v4857 = vpop.f32.mrf.mxu0
      %4858 = vmatprep.mubr.bf16.mxu0 0
      %4859 = vmatmul.mubr.bf16.gmra.mxu0 %v4465
      %v4860 = vpop.f32.mrf.mxu0
      %v4861 = vadd.f32 %v4336, %v4860
      %v4862 = vpop.f32.mrf.mxu0
      %v4863 = vpop.f32.mrf.mxu0
      %v4864 = vadd.f32 %v4336, %v4863
      %v4865 = vpop.f32.mrf.mxu0
      %4866 = vmatprep.mubr.bf16.mxu0 0
      %4867 = vmatmul.mubr.bf16.gmra.mxu0 %v4468
      %v4868 = vpop.f32.mrf.mxu0
      %v4869 = vadd.f32 %v4336, %v4868
      %v4870 = vpop.f32.mrf.mxu0
      %v4871 = vpop.f32.mrf.mxu0
      %v4872 = vadd.f32 %v4336, %v4871
      %v4873 = vpop.f32.mrf.mxu0
      %4874 = vmatprep.mubr.bf16.mxu0 0
      %4875 = vmatmul.mubr.bf16.gmra.mxu0 %v4471
      %v4876 = vpop.f32.mrf.mxu0
      %v4877 = vadd.f32 %v4336, %v4876
      %v4878 = vpop.f32.mrf.mxu0
      %v4879 = vpop.f32.mrf.mxu0
      %v4880 = vadd.f32 %v4336, %v4879
      %v4881 = vpop.f32.mrf.mxu0
      %4882 = vmatprep.mubr.bf16.mxu0 0
      %4883 = vmatmul.mubr.bf16.gmra.mxu0 %v4474
      %v4884 = vpop.f32.mrf.mxu0
      %v4885 = vadd.f32 %v4336, %v4884
      %v4886 = vpop.f32.mrf.mxu0
      %v4887 = vpop.f32.mrf.mxu0
      %v4888 = vadd.f32 %v4336, %v4887
      %v4889 = vpop.f32.mrf.mxu0
      %4890 = vmatprep.mubr.bf16.mxu0 0
      %4891 = vmatmul.mubr.bf16.gmra.mxu0 %v4477
      %v4892 = vpop.f32.mrf.mxu0
      %v4893 = vadd.f32 %v4336, %v4892
      %v4894 = vpop.f32.mrf.mxu0
      %v4895 = vpop.f32.mrf.mxu0
      %v4896 = vadd.f32 %v4336, %v4895
      %v4897 = vpop.f32.mrf.mxu0
      %4898 = vmatprep.mubr.bf16.mxu0 0
      %4899 = vmatmul.mubr.bf16.gmra.mxu0 %v4480
      %v4900 = vpop.f32.mrf.mxu0
      %v4901 = vadd.f32 %v4336, %v4900
      %v4902 = vpop.f32.mrf.mxu0
      %v4903 = vpop.f32.mrf.mxu0
      %v4904 = vadd.f32 %v4336, %v4903
      %v4905 = vpop.f32.mrf.mxu0
      %4906 = vmatprep.mubr.bf16.mxu0 0
      %4907 = vmatmul.mubr.bf16.gmra.mxu0 %v4483
      %v4908 = vpop.f32.mrf.mxu0
      %v4909 = vadd.f32 %v4336, %v4908
      %v4910 = vpop.f32.mrf.mxu0
      %v4911 = vpop.f32.mrf.mxu0
      %v4912 = vadd.f32 %v4336, %v4911
      %v4913 = vpop.f32.mrf.mxu0
      %4914 = vmatprep.mubr.bf16.mxu0 0
      %4915 = vmatmul.mubr.bf16.gmra.mxu0 %v4486
      %v4916 = vpop.f32.mrf.mxu0
      %v4917 = vadd.f32 %v4336, %v4916
      %v4918 = vpop.f32.mrf.mxu0
      %v4919 = vpop.f32.mrf.mxu0
      %v4920 = vadd.f32 %v4336, %v4919
      %v4921 = vpop.f32.mrf.mxu0
      %4922 = vmatprep.mubr.bf16.mxu0 0
      %4923 = vmatmul.mubr.bf16.gmra.mxu0 %v4489
      %v4924 = vpop.f32.mrf.mxu0
      %v4925 = vadd.f32 %v4336, %v4924
      %v4926 = vpop.f32.mrf.mxu0
      %v4927 = vpop.f32.mrf.mxu0
      %v4928 = vadd.f32 %v4336, %v4927
      %v4929 = vpop.f32.mrf.mxu0
      %4930 = vmatprep.mubr.bf16.mxu0 0
      %4931 = vmatmul.mubr.bf16.gmra.mxu0 %v4492
      %v4932 = vpop.f32.mrf.mxu0
      %v4933 = vadd.f32 %v4336, %v4932
      %v4934 = vpop.f32.mrf.mxu0
      %v4935 = vpop.f32.mrf.mxu0
      %v4936 = vadd.f32 %v4336, %v4935
      %v4937 = vpop.f32.mrf.mxu0
      %4938 = vmatprep.mubr.bf16.mxu0 0
      %4939 = vmatmul.mubr.bf16.gmra.mxu0 %v4495
      %v4940 = vpop.f32.mrf.mxu0
      %v4941 = vadd.f32 %v4336, %v4940
      %v4942 = vpop.f32.mrf.mxu0
      %v4943 = vpop.f32.mrf.mxu0
      %v4944 = vadd.f32 %v4336, %v4943
      %v4945 = vpop.f32.mrf.mxu0
      %4946 = vmatprep.mubr.bf16.mxu0 0
      %4947 = vmatmul.mubr.bf16.gmra.mxu0 %v4498
      %v4948 = vpop.f32.mrf.mxu0
      %v4949 = vadd.f32 %v4336, %v4948
      %v4950 = vpop.f32.mrf.mxu0
      %v4951 = vpop.f32.mrf.mxu0
      %v4952 = vadd.f32 %v4336, %v4951
      %v4953 = vpop.f32.mrf.mxu0
      %4954 = vmatprep.mubr.bf16.mxu0 0
      %4955 = vmatmul.mubr.bf16.gmra.mxu0 %v4501
      %v4956 = vpop.f32.mrf.mxu0
      %v4957 = vadd.f32 %v4336, %v4956
      %v4958 = vpop.f32.mrf.mxu0
      %v4959 = vpop.f32.mrf.mxu0
      %v4960 = vadd.f32 %v4336, %v4959
      %v4961 = vpop.f32.mrf.mxu0
      %4962 = vmatprep.mubr.bf16.mxu0 0
      %4963 = vmatmul.mubr.bf16.gmra.mxu0 %v4504
      %v4964 = vpop.f32.mrf.mxu0
      %v4965 = vadd.f32 %v4336, %v4964
      %v4966 = vpop.f32.mrf.mxu0
      %v4967 = vpop.f32.mrf.mxu0
      %v4968 = vadd.f32 %v4336, %v4967
      %v4969 = vpop.f32.mrf.mxu0
      %4970 = vmatprep.mubr.bf16.mxu0 0
      %4971 = vmatmul.mubr.bf16.gmra.mxu0 %v4507
      %v4972 = vpop.f32.mrf.mxu0
      %v4973 = vadd.f32 %v4336, %v4972
      %v4974 = vpop.f32.mrf.mxu0
      %v4975 = vpop.f32.mrf.mxu0
      %v4976 = vadd.f32 %v4336, %v4975
      %v4977 = vpop.f32.mrf.mxu0
      %4978 = vmatprep.mubr.bf16.mxu0 0
      %4979 = vmatmul.mubr.bf16.gmra.mxu0 %v4510
      %v4980 = vpop.f32.mrf.mxu0
      %v4981 = vadd.f32 %v4336, %v4980
      %v4982 = vpop.f32.mrf.mxu0
      %v4983 = vpop.f32.mrf.mxu0
      %v4984 = vadd.f32 %v4336, %v4983
      %v4985 = vpop.f32.mrf.mxu0
      %4986 = vmatprep.mubr.bf16.mxu0 0
      %4987 = vmatmul.mubr.bf16.gmra.mxu0 %v4513
      %v4988 = vpop.f32.mrf.mxu0
      %v4989 = vadd.f32 %v4336, %v4988
      %v4990 = vpop.f32.mrf.mxu0
      %v4991 = vpop.f32.mrf.mxu0
      %v4992 = vadd.f32 %v4336, %v4991
      %v4993 = vpop.f32.mrf.mxu0
      %4994 = vmatprep.mubr.bf16.mxu0 0
      %4995 = vmatmul.mubr.bf16.gmra.mxu0 %v4516
      %v4996 = vpop.f32.mrf.mxu0
      %v4997 = vadd.f32 %v4336, %v4996
      %v4998 = vpop.f32.mrf.mxu0
      %v4999 = vpop.f32.mrf.mxu0
      %v5000 = vadd.f32 %v4336, %v4999
      %v5001 = vpop.f32.mrf.mxu0
      %5002 = vmatprep.mubr.bf16.mxu0 0
      %5003 = vmatmul.mubr.bf16.gmra.mxu0 %v4519
      %v5004 = vpop.f32.mrf.mxu0
      %v5005 = vadd.f32 %v4336, %v5004
      %v5006 = vpop.f32.mrf.mxu0
      %v5007 = vpop.f32.mrf.mxu0
      %v5008 = vadd.f32 %v4336, %v5007
      %v5009 = vpop.f32.mrf.mxu0
      %5010 = vmatprep.mubr.bf16.mxu0 0
      %5011 = vmatmul.mubr.bf16.gmra.mxu0 %v4522
      %v5012 = vpop.f32.mrf.mxu0
      %v5013 = vadd.f32 %v4336, %v5012
      %v5014 = vpop.f32.mrf.mxu0
      %v5015 = vpop.f32.mrf.mxu0
      %v5016 = vadd.f32 %v4336, %v5015
      %v5017 = vpop.f32.mrf.mxu0
      %5018 = vmatprep.mubr.bf16.mxu0 0
      %5019 = vmatmul.mubr.bf16.gmra.mxu0 %v4525
      %v5020 = vpop.f32.mrf.mxu0
      %v5021 = vadd.f32 %v4336, %v5020
      %v5022 = vpop.f32.mrf.mxu0
      %v5023 = vpop.f32.mrf.mxu0
      %v5024 = vadd.f32 %v4336, %v5023
      %v5025 = vpop.f32.mrf.mxu0
      %5026 = vmatprep.mubr.bf16.mxu0 0
      %5027 = vmatmul.mubr.bf16.gmra.mxu0 %v4528
      %v5028 = vpop.f32.mrf.mxu0
      %v5029 = vadd.f32 %v4336, %v5028
      %v5030 = vpop.f32.mrf.mxu0
      %v5031 = vpop.f32.mrf.mxu0
      %v5032 = vadd.f32 %v4336, %v5031
      %v5033 = vpop.f32.mrf.mxu0
      %5034 = vmatprep.mubr.bf16.mxu0 0
      %5035 = vmatmul.mubr.bf16.gmra.mxu0 %v4531
      %v5036 = vpop.f32.mrf.mxu0
      %v5037 = vadd.f32 %v4336, %v5036
      %v5038 = vpop.f32.mrf.mxu0
      %v5039 = vpop.f32.mrf.mxu0
      %v5040 = vadd.f32 %v4336, %v5039
      %v5041 = vpop.f32.mrf.mxu0
      %5042 = vmatprep.mubr.bf16.mxu0 0
      %5043 = vmatmul.mubr.bf16.gmra.mxu0 %v4534
      %v5044 = vpop.f32.mrf.mxu0
      %v5045 = vadd.f32 %v4336, %v5044
      %v5046 = vpop.f32.mrf.mxu0
      %v5047 = vpop.f32.mrf.mxu0
      %v5048 = vadd.f32 %v4336, %v5047
      %v5049 = vpop.f32.mrf.mxu0
      %5050 = vmatprep.mubr.bf16.mxu0 0
      %5051 = vmatmul.mubr.bf16.gmra.mxu0 %v4537
      %v5052 = vpop.f32.mrf.mxu0
      %v5053 = vadd.f32 %v4336, %v5052
      %v5054 = vpop.f32.mrf.mxu0
      %v5055 = vpop.f32.mrf.mxu0
      %v5056 = vadd.f32 %v4336, %v5055
      %v5057 = vpop.f32.mrf.mxu0
      %5058 = vmatprep.mubr.bf16.mxu0 0
      %5059 = vmatmul.mubr.bf16.gmra.mxu0 %v4540
      %v5060 = vpop.f32.mrf.mxu0
      %v5061 = vadd.f32 %v4336, %v5060
      %v5062 = vpop.f32.mrf.mxu0
      %v5063 = vpop.f32.mrf.mxu0
      %v5064 = vadd.f32 %v4336, %v5063
      %v5065 = vpop.f32.mrf.mxu0
      %5066 = vmatprep.mubr.bf16.mxu0 0
      %5067 = vmatmul.mubr.bf16.gmra.mxu0 %v4543
      %v5068 = vpop.f32.mrf.mxu0
      %v5069 = vadd.f32 %v4336, %v5068
      %v5070 = vpop.f32.mrf.mxu0
      %v5071 = vpop.f32.mrf.mxu0
      %v5072 = vadd.f32 %v4336, %v5071
      %v5073 = vpop.f32.mrf.mxu0
      %5074 = vmatprep.mubr.bf16.mxu0 0
      %5075 = vmatmul.mubr.bf16.gmra.mxu0 %v4546
      %v5076 = vpop.f32.mrf.mxu0
      %v5077 = vadd.f32 %v4336, %v5076
      %v5078 = vpop.f32.mrf.mxu0
      %v5079 = vpop.f32.mrf.mxu0
      %v5080 = vadd.f32 %v4336, %v5079
      %v5081 = vpop.f32.mrf.mxu0
      %5082 = vmatprep.mubr.bf16.mxu0 0
      %5083 = vmatmul.mubr.bf16.gmra.mxu0 %v4549
      %v5084 = vpop.f32.mrf.mxu0
      %v5085 = vadd.f32 %v4336, %v5084
      %v5086 = vpop.f32.mrf.mxu0
      %v5087 = vpop.f32.mrf.mxu0
      %v5088 = vadd.f32 %v4336, %v5087
      %v5089 = vpop.f32.mrf.mxu0
      %5090 = vmatprep.mubr.bf16.mxu0 0
      %5091 = vmatmul.mubr.bf16.gmra.mxu0 %v4552
      %v5092 = vpop.f32.mrf.mxu0
      %v5093 = vadd.f32 %v4336, %v5092
      %v5094 = vpop.f32.mrf.mxu0
      %v5095 = vpop.f32.mrf.mxu0
      %v5096 = vadd.f32 %v4336, %v5095
      %v5097 = vpop.f32.mrf.mxu0
      %5098 = vdwg.mxu0
      %v5099 = vadd.f32 %v3031, %v4589
      %v5100 = vadd.f32 %v3032, %v4592
      %v5101 = vadd.f32 %v3033, %v4597
      %v5102 = vadd.f32 %v3034, %v4600
      %v5103 = vadd.f32 %v3035, %v4605
      %v5104 = vadd.f32 %v3036, %v4608
      %v5105 = vadd.f32 %v3037, %v4613
      %v5106 = vadd.f32 %v3038, %v4616
      %v5107 = vadd.f32 %v3039, %v4621
      %v5108 = vadd.f32 %v3040, %v4624
      %v5109 = vadd.f32 %v3041, %v4629
      %v5110 = vadd.f32 %v3042, %v4632
      %v5111 = vadd.f32 %v3043, %v4637
      %v5112 = vadd.f32 %v3044, %v4640
      %v5113 = vadd.f32 %v3045, %v4645
      %v5114 = vadd.f32 %v3046, %v4648
      %v5115 = vadd.f32 %v3047, %v4653
      %v5116 = vadd.f32 %v3048, %v4656
      %v5117 = vadd.f32 %v3049, %v4661
      %v5118 = vadd.f32 %v3050, %v4664
      %v5119 = vadd.f32 %v3051, %v4669
      %v5120 = vadd.f32 %v3052, %v4672
      %v5121 = vadd.f32 %v3053, %v4677
      %v5122 = vadd.f32 %v3054, %v4680
      %v5123 = vadd.f32 %v3055, %v4685
      %v5124 = vadd.f32 %v3056, %v4688
      %v5125 = vadd.f32 %v3057, %v4693
      %v5126 = vadd.f32 %v3058, %v4696
      %v5127 = vadd.f32 %v3059, %v4701
      %v5128 = vadd.f32 %v3060, %v4704
      %v5129 = vadd.f32 %v3061, %v4709
      %v5130 = vadd.f32 %v3062, %v4712
      %v5131 = vadd.f32 %v3063, %v4717
      %v5132 = vadd.f32 %v3064, %v4720
      %v5133 = vadd.f32 %v3065, %v4725
      %v5134 = vadd.f32 %v3066, %v4728
      %v5135 = vadd.f32 %v3067, %v4733
      %v5136 = vadd.f32 %v3068, %v4736
      %v5137 = vadd.f32 %v3069, %v4741
      %v5138 = vadd.f32 %v3070, %v4744
      %v5139 = vadd.f32 %v3071, %v4749
      %v5140 = vadd.f32 %v3072, %v4752
      %v5141 = vadd.f32 %v3073, %v4757
      %v5142 = vadd.f32 %v3074, %v4760
      %v5143 = vadd.f32 %v3075, %v4765
      %v5144 = vadd.f32 %v3076, %v4768
      %v5145 = vadd.f32 %v3077, %v4773
      %v5146 = vadd.f32 %v3078, %v4776
      %v5147 = vadd.f32 %v3079, %v4781
      %v5148 = vadd.f32 %v3080, %v4784
      %v5149 = vadd.f32 %v3081, %v4789
      %v5150 = vadd.f32 %v3082, %v4792
      %v5151 = vadd.f32 %v3083, %v4797
      %v5152 = vadd.f32 %v3084, %v4800
      %v5153 = vadd.f32 %v3085, %v4805
      %v5154 = vadd.f32 %v3086, %v4808
      %v5155 = vadd.f32 %v3087, %v4813
      %v5156 = vadd.f32 %v3088, %v4816
      %v5157 = vadd.f32 %v3089, %v4821
      %v5158 = vadd.f32 %v3090, %v4824
      %v5159 = vadd.f32 %v3091, %v4829
      %v5160 = vadd.f32 %v3092, %v4832
      %v5161 = vadd.f32 %v3093, %v4837
      %v5162 = vadd.f32 %v3094, %v4840
      %v5163 = vadd.f32 %v3095, %v4845
      %v5164 = vadd.f32 %v3096, %v4848
      %v5165 = vadd.f32 %v3097, %v4853
      %v5166 = vadd.f32 %v3098, %v4856
      %v5167 = vadd.f32 %v3099, %v4861
      %v5168 = vadd.f32 %v3100, %v4864
      %v5169 = vadd.f32 %v3101, %v4869
      %v5170 = vadd.f32 %v3102, %v4872
      %v5171 = vadd.f32 %v3103, %v4877
      %v5172 = vadd.f32 %v3104, %v4880
      %v5173 = vadd.f32 %v3105, %v4885
      %v5174 = vadd.f32 %v3106, %v4888
      %v5175 = vadd.f32 %v3107, %v4893
      %v5176 = vadd.f32 %v3108, %v4896
      %v5177 = vadd.f32 %v3109, %v4901
      %v5178 = vadd.f32 %v3110, %v4904
      %v5179 = vadd.f32 %v3111, %v4909
      %v5180 = vadd.f32 %v3112, %v4912
      %v5181 = vadd.f32 %v3113, %v4917
      %v5182 = vadd.f32 %v3114, %v4920
      %v5183 = vadd.f32 %v3115, %v4925
      %v5184 = vadd.f32 %v3116, %v4928
      %v5185 = vadd.f32 %v3117, %v4933
      %v5186 = vadd.f32 %v3118, %v4936
      %v5187 = vadd.f32 %v3119, %v4941
      %v5188 = vadd.f32 %v3120, %v4944
      %v5189 = vadd.f32 %v3121, %v4949
      %v5190 = vadd.f32 %v3122, %v4952
      %v5191 = vadd.f32 %v3123, %v4957
      %v5192 = vadd.f32 %v3124, %v4960
      %v5193 = vadd.f32 %v3125, %v4965
      %v5194 = vadd.f32 %v3126, %v4968
      %v5195 = vadd.f32 %v3127, %v4973
      %v5196 = vadd.f32 %v3128, %v4976
      %v5197 = vadd.f32 %v3129, %v4981
      %v5198 = vadd.f32 %v3130, %v4984
      %v5199 = vadd.f32 %v3131, %v4989
      %v5200 = vadd.f32 %v3132, %v4992
      %v5201 = vadd.f32 %v3133, %v4997
      %v5202 = vadd.f32 %v3134, %v5000
      %v5203 = vadd.f32 %v3135, %v5005
      %v5204 = vadd.f32 %v3136, %v5008
      %v5205 = vadd.f32 %v3137, %v5013
      %v5206 = vadd.f32 %v3138, %v5016
      %v5207 = vadd.f32 %v3139, %v5021
      %v5208 = vadd.f32 %v3140, %v5024
      %v5209 = vadd.f32 %v3141, %v5029
      %v5210 = vadd.f32 %v3142, %v5032
      %v5211 = vadd.f32 %v3143, %v5037
      %v5212 = vadd.f32 %v3144, %v5040
      %v5213 = vadd.f32 %v3145, %v5045
      %v5214 = vadd.f32 %v3146, %v5048
      %v5215 = vadd.f32 %v3147, %v5053
      %v5216 = vadd.f32 %v3148, %v5056
      %v5217 = vadd.f32 %v3149, %v5061
      %v5218 = vadd.f32 %v3150, %v5064
      %v5219 = vadd.f32 %v3151, %v5069
      %v5220 = vadd.f32 %v3152, %v5072
      %v5221 = vadd.f32 %v3153, %v5077
      %v5222 = vadd.f32 %v3154, %v5080
      %v5223 = vadd.f32 %v3155, %v5085
      %v5224 = vadd.f32 %v3156, %v5088
      %v5225 = vadd.f32 %v3157, %v5093
      %v5226 = vadd.f32 %v3158, %v5096
      %v5227 = vmax.f32 %v5099, 0.0
      %v5228 = vmax.f32 %v5100, 0.0
      %v5229 = vmax.f32 %v5101, 0.0
      %v5230 = vmax.f32 %v5102, 0.0
      %v5231 = vmax.f32 %v5103, 0.0
      %v5232 = vmax.f32 %v5104, 0.0
      %v5233 = vmax.f32 %v5105, 0.0
      %v5234 = vmax.f32 %v5106, 0.0
      %v5235 = vmax.f32 %v5107, 0.0
      %v5236 = vmax.f32 %v5108, 0.0
      %v5237 = vmax.f32 %v5109, 0.0
      %v5238 = vmax.f32 %v5110, 0.0
      %v5239 = vmax.f32 %v5111, 0.0
      %v5240 = vmax.f32 %v5112, 0.0
      %v5241 = vmax.f32 %v5113, 0.0
      %v5242 = vmax.f32 %v5114, 0.0
      %v5243 = vmax.f32 %v5115, 0.0
      %v5244 = vmax.f32 %v5116, 0.0
      %v5245 = vmax.f32 %v5117, 0.0
      %v5246 = vmax.f32 %v5118, 0.0
      %v5247 = vmax.f32 %v5119, 0.0
      %v5248 = vmax.f32 %v5120, 0.0
      %v5249 = vmax.f32 %v5121, 0.0
      %v5250 = vmax.f32 %v5122, 0.0
      %v5251 = vmax.f32 %v5123, 0.0
      %v5252 = vmax.f32 %v5124, 0.0
      %v5253 = vmax.f32 %v5125, 0.0
      %v5254 = vmax.f32 %v5126, 0.0
      %v5255 = vmax.f32 %v5127, 0.0
      %v5256 = vmax.f32 %v5128, 0.0
      %v5257 = vmax.f32 %v5129, 0.0
      %v5258 = vmax.f32 %v5130, 0.0
      %v5259 = vmax.f32 %v5131, 0.0
      %v5260 = vmax.f32 %v5132, 0.0
      %v5261 = vmax.f32 %v5133, 0.0
      %v5262 = vmax.f32 %v5134, 0.0
      %v5263 = vmax.f32 %v5135, 0.0
      %v5264 = vmax.f32 %v5136, 0.0
      %v5265 = vmax.f32 %v5137, 0.0
      %v5266 = vmax.f32 %v5138, 0.0
      %v5267 = vmax.f32 %v5139, 0.0
      %v5268 = vmax.f32 %v5140, 0.0
      %v5269 = vmax.f32 %v5141, 0.0
      %v5270 = vmax.f32 %v5142, 0.0
      %v5271 = vmax.f32 %v5143, 0.0
      %v5272 = vmax.f32 %v5144, 0.0
      %v5273 = vmax.f32 %v5145, 0.0
      %v5274 = vmax.f32 %v5146, 0.0
      %v5275 = vmax.f32 %v5147, 0.0
      %v5276 = vmax.f32 %v5148, 0.0
      %v5277 = vmax.f32 %v5149, 0.0
      %v5278 = vmax.f32 %v5150, 0.0
      %v5279 = vmax.f32 %v5151, 0.0
      %v5280 = vmax.f32 %v5152, 0.0
      %v5281 = vmax.f32 %v5153, 0.0
      %v5282 = vmax.f32 %v5154, 0.0
      %v5283 = vmax.f32 %v5155, 0.0
      %v5284 = vmax.f32 %v5156, 0.0
      %v5285 = vmax.f32 %v5157, 0.0
      %v5286 = vmax.f32 %v5158, 0.0
      %v5287 = vmax.f32 %v5159, 0.0
      %v5288 = vmax.f32 %v5160, 0.0
      %v5289 = vmax.f32 %v5161, 0.0
      %v5290 = vmax.f32 %v5162, 0.0
      %v5291 = vmax.f32 %v5163, 0.0
      %v5292 = vmax.f32 %v5164, 0.0
      %v5293 = vmax.f32 %v5165, 0.0
      %v5294 = vmax.f32 %v5166, 0.0
      %v5295 = vmax.f32 %v5167, 0.0
      %v5296 = vmax.f32 %v5168, 0.0
      %v5297 = vmax.f32 %v5169, 0.0
      %v5298 = vmax.f32 %v5170, 0.0
      %v5299 = vmax.f32 %v5171, 0.0
      %v5300 = vmax.f32 %v5172, 0.0
      %v5301 = vmax.f32 %v5173, 0.0
      %v5302 = vmax.f32 %v5174, 0.0
      %v5303 = vmax.f32 %v5175, 0.0
      %v5304 = vmax.f32 %v5176, 0.0
      %v5305 = vmax.f32 %v5177, 0.0
      %v5306 = vmax.f32 %v5178, 0.0
      %v5307 = vmax.f32 %v5179, 0.0
      %v5308 = vmax.f32 %v5180, 0.0
      %v5309 = vmax.f32 %v5181, 0.0
      %v5310 = vmax.f32 %v5182, 0.0
      %v5311 = vmax.f32 %v5183, 0.0
      %v5312 = vmax.f32 %v5184, 0.0
      %v5313 = vmax.f32 %v5185, 0.0
      %v5314 = vmax.f32 %v5186, 0.0
      %v5315 = vmax.f32 %v5187, 0.0
      %v5316 = vmax.f32 %v5188, 0.0
      %v5317 = vmax.f32 %v5189, 0.0
      %v5318 = vmax.f32 %v5190, 0.0
      %v5319 = vmax.f32 %v5191, 0.0
      %v5320 = vmax.f32 %v5192, 0.0
      %v5321 = vmax.f32 %v5193, 0.0
      %v5322 = vmax.f32 %v5194, 0.0
      %v5323 = vmax.f32 %v5195, 0.0
      %v5324 = vmax.f32 %v5196, 0.0
      %v5325 = vmax.f32 %v5197, 0.0
      %v5326 = vmax.f32 %v5198, 0.0
      %v5327 = vmax.f32 %v5199, 0.0
      %v5328 = vmax.f32 %v5200, 0.0
      %v5329 = vmax.f32 %v5201, 0.0
      %v5330 = vmax.f32 %v5202, 0.0
      %v5331 = vmax.f32 %v5203, 0.0
      %v5332 = vmax.f32 %v5204, 0.0
      %v5333 = vmax.f32 %v5205, 0.0
      %v5334 = vmax.f32 %v5206, 0.0
      %v5335 = vmax.f32 %v5207, 0.0
      %v5336 = vmax.f32 %v5208, 0.0
      %v5337 = vmax.f32 %v5209, 0.0
      %v5338 = vmax.f32 %v5210, 0.0
      %v5339 = vmax.f32 %v5211, 0.0
      %v5340 = vmax.f32 %v5212, 0.0
      %v5341 = vmax.f32 %v5213, 0.0
      %v5342 = vmax.f32 %v5214, 0.0
      %v5343 = vmax.f32 %v5215, 0.0
      %v5344 = vmax.f32 %v5216, 0.0
      %v5345 = vmax.f32 %v5217, 0.0
      %v5346 = vmax.f32 %v5218, 0.0
      %v5347 = vmax.f32 %v5219, 0.0
      %v5348 = vmax.f32 %v5220, 0.0
      %v5349 = vmax.f32 %v5221, 0.0
      %v5350 = vmax.f32 %v5222, 0.0
      %v5351 = vmax.f32 %v5223, 0.0
      %v5352 = vmax.f32 %v5224, 0.0
      %v5353 = vmax.f32 %v5225, 0.0
      %v5354 = vmax.f32 %v5226, 0.0
      %s5355 = scalar_lea.vmem %s3, 128
      %v5356 = vld [vmem:[%s5355] sm:$0xf]
      %v5357 = vld [vmem:[%s5355 + $0x4] sm:$0xf]
      %v5358 = vld [vmem:[%s5355 + $0x8] sm:$0xf]
      %v5359 = vld [vmem:[%s5355 + $0xc] sm:$0xf]
      %v5360 = vld [vmem:[%s5355 + $0x10] sm:$0xf]
      %v5361 = vld [vmem:[%s5355 + $0x14] sm:$0xf]
      %v5362 = vld [vmem:[%s5355 + $0x18] sm:$0xf]
      %v5363 = vld [vmem:[%s5355 + $0x1c] sm:$0xf]
      %s5364 = scalar_lea.vmem %s4, 4
      %v5365 = vld [vmem:[%s5364] sm:$0x1]
      %v5366 = vpack.c.bf16 %v5228, %v5227
      %v5367 = vpack.c.bf16 %v5230, %v5229
      %v5368 = vpack.c.bf16 %v5232, %v5231
      %v5369 = vpack.c.bf16 %v5234, %v5233
      %v5370 = vpack.c.bf16 %v5236, %v5235
      %v5371 = vpack.c.bf16 %v5238, %v5237
      %v5372 = vpack.c.bf16 %v5240, %v5239
      %v5373 = vpack.c.bf16 %v5242, %v5241
      %v5374 = vpack.c.bf16 %v5244, %v5243
      %v5375 = vpack.c.bf16 %v5246, %v5245
      %v5376 = vpack.c.bf16 %v5248, %v5247
      %v5377 = vpack.c.bf16 %v5250, %v5249
      %v5378 = vpack.c.bf16 %v5252, %v5251
      %v5379 = vpack.c.bf16 %v5254, %v5253
      %v5380 = vpack.c.bf16 %v5256, %v5255
      %v5381 = vpack.c.bf16 %v5258, %v5257
      %v5382 = vpack.c.bf16 %v5260, %v5259
      %v5383 = vpack.c.bf16 %v5262, %v5261
      %v5384 = vpack.c.bf16 %v5264, %v5263
      %v5385 = vpack.c.bf16 %v5266, %v5265
      %v5386 = vpack.c.bf16 %v5268, %v5267
      %v5387 = vpack.c.bf16 %v5270, %v5269
      %v5388 = vpack.c.bf16 %v5272, %v5271
      %v5389 = vpack.c.bf16 %v5274, %v5273
      %v5390 = vpack.c.bf16 %v5276, %v5275
      %v5391 = vpack.c.bf16 %v5278, %v5277
      %v5392 = vpack.c.bf16 %v5280, %v5279
      %v5393 = vpack.c.bf16 %v5282, %v5281
      %v5394 = vpack.c.bf16 %v5284, %v5283
      %v5395 = vpack.c.bf16 %v5286, %v5285
      %v5396 = vpack.c.bf16 %v5288, %v5287
      %v5397 = vpack.c.bf16 %v5290, %v5289
      %v5398 = vpack.c.bf16 %v5292, %v5291
      %v5399 = vpack.c.bf16 %v5294, %v5293
      %v5400 = vpack.c.bf16 %v5296, %v5295
      %v5401 = vpack.c.bf16 %v5298, %v5297
      %v5402 = vpack.c.bf16 %v5300, %v5299
      %v5403 = vpack.c.bf16 %v5302, %v5301
      %v5404 = vpack.c.bf16 %v5304, %v5303
      %v5405 = vpack.c.bf16 %v5306, %v5305
      %v5406 = vpack.c.bf16 %v5308, %v5307
      %v5407 = vpack.c.bf16 %v5310, %v5309
      %v5408 = vpack.c.bf16 %v5312, %v5311
      %v5409 = vpack.c.bf16 %v5314, %v5313
      %v5410 = vpack.c.bf16 %v5316, %v5315
      %v5411 = vpack.c.bf16 %v5318, %v5317
      %v5412 = vpack.c.bf16 %v5320, %v5319
      %v5413 = vpack.c.bf16 %v5322, %v5321
      %v5414 = vpack.c.bf16 %v5324, %v5323
      %v5415 = vpack.c.bf16 %v5326, %v5325
      %v5416 = vpack.c.bf16 %v5328, %v5327
      %v5417 = vpack.c.bf16 %v5330, %v5329
      %v5418 = vpack.c.bf16 %v5332, %v5331
      %v5419 = vpack.c.bf16 %v5334, %v5333
      %v5420 = vpack.c.bf16 %v5336, %v5335
      %v5421 = vpack.c.bf16 %v5338, %v5337
      %v5422 = vpack.c.bf16 %v5340, %v5339
      %v5423 = vpack.c.bf16 %v5342, %v5341
      %v5424 = vpack.c.bf16 %v5344, %v5343
      %v5425 = vpack.c.bf16 %v5346, %v5345
      %v5426 = vpack.c.bf16 %v5348, %v5347
      %v5427 = vpack.c.bf16 %v5350, %v5349
      %v5428 = vpack.c.bf16 %v5352, %v5351
      %v5429 = vpack.c.bf16 %v5354, %v5353
      %v5431 = vlaneseq
      %v5432 = vshrl.u32 %v5431, 7
      %v5433 = vsub.s32 0, %v5432
      %v5434 = vrot.slane %v5365, %v5433
      %v5444 = vunpack.c.l.b16 %v5356
      %v5445 = vunpack.c.l.b16 %v5357
      %v5446 = vunpack.c.l.b16 %v5358
      %v5447 = vunpack.c.l.b16 %v5359
      %v5448 = vunpack.c.l.b16 %v5360
      %v5449 = vunpack.c.l.b16 %v5361
      %v5450 = vunpack.c.l.b16 %v5362
      %v5451 = vunpack.c.l.b16 %v5363
      %v5452 = vpack.c.b16 %v5445, %v5444
      %v5453 = vpack.c.b16 %v5447, %v5446
      %v5454 = vpack.c.b16 %v5449, %v5448
      %v5455 = vpack.c.b16 %v5451, %v5450
      %v5461 = vsel %vm1323, %v5366, 0
      %v5464 = vsel %vm1323, %v5367, 0
      %v5467 = vsel %vm1323, %v5368, 0
      %v5470 = vsel %vm1323, %v5369, 0
      %v5473 = vsel %vm1323, %v5370, 0
      %v5476 = vsel %vm1323, %v5371, 0
      %v5479 = vsel %vm1323, %v5372, 0
      %v5482 = vsel %vm1323, %v5373, 0
      %v5485 = vsel %vm1323, %v5374, 0
      %v5488 = vsel %vm1323, %v5375, 0
      %v5491 = vsel %vm1323, %v5376, 0
      %v5494 = vsel %vm1323, %v5377, 0
      %v5497 = vsel %vm1323, %v5378, 0
      %v5500 = vsel %vm1323, %v5379, 0
      %v5503 = vsel %vm1323, %v5380, 0
      %v5506 = vsel %vm1323, %v5381, 0
      %v5509 = vsel %vm1323, %v5382, 0
      %v5512 = vsel %vm1323, %v5383, 0
      %v5515 = vsel %vm1323, %v5384, 0
      %v5518 = vsel %vm1323, %v5385, 0
      %v5521 = vsel %vm1323, %v5386, 0
      %v5524 = vsel %vm1323, %v5387, 0
      %v5527 = vsel %vm1323, %v5388, 0
      %v5530 = vsel %vm1323, %v5389, 0
      %v5533 = vsel %vm1323, %v5390, 0
      %v5536 = vsel %vm1323, %v5391, 0
      %v5539 = vsel %vm1323, %v5392, 0
      %v5542 = vsel %vm1323, %v5393, 0
      %v5545 = vsel %vm1323, %v5394, 0
      %v5548 = vsel %vm1323, %v5395, 0
      %v5551 = vsel %vm1323, %v5396, 0
      %v5554 = vsel %vm1323, %v5397, 0
      %v5557 = vsel %vm1323, %v5398, 0
      %v5560 = vsel %vm1323, %v5399, 0
      %v5563 = vsel %vm1323, %v5400, 0
      %v5566 = vsel %vm1323, %v5401, 0
      %v5569 = vsel %vm1323, %v5402, 0
      %v5572 = vsel %vm1323, %v5403, 0
      %v5575 = vsel %vm1323, %v5404, 0
      %v5578 = vsel %vm1323, %v5405, 0
      %v5581 = vsel %vm1323, %v5406, 0
      %v5584 = vsel %vm1323, %v5407, 0
      %v5587 = vsel %vm1323, %v5408, 0
      %v5590 = vsel %vm1323, %v5409, 0
      %v5593 = vsel %vm1323, %v5410, 0
      %v5596 = vsel %vm1323, %v5411, 0
      %v5599 = vsel %vm1323, %v5412, 0
      %v5602 = vsel %vm1323, %v5413, 0
      %v5605 = vsel %vm1323, %v5414, 0
      %v5608 = vsel %vm1323, %v5415, 0
      %v5611 = vsel %vm1323, %v5416, 0
      %v5614 = vsel %vm1323, %v5417, 0
      %v5617 = vsel %vm1323, %v5418, 0
      %v5620 = vsel %vm1323, %v5419, 0
      %v5623 = vsel %vm1323, %v5420, 0
      %v5626 = vsel %vm1323, %v5421, 0
      %v5629 = vsel %vm1323, %v5422, 0
      %v5632 = vsel %vm1323, %v5423, 0
      %v5635 = vsel %vm1323, %v5424, 0
      %v5638 = vsel %vm1323, %v5425, 0
      %v5641 = vsel %vm1323, %v5426, 0
      %v5644 = vsel %vm1323, %v5427, 0
      %v5647 = vsel %vm1323, %v5428, 0
      %v5650 = vsel %vm1323, %v5429, 0
      %5652 = vmatprep.subr.bf16.mxu0 0
      %5653 = vmatpush1.bf16.msra.mxu0 0
      %5654 = vmatprep.subr.bf16.mxu0 0
      %5655 = vmatpush1.bf16.msra.mxu0 0
      %5656 = vmatprep.subr.bf16.mxu0 0
      %5657 = vmatpush1.bf16.msra.mxu0 0
      %5658 = vmatprep.subr.bf16.mxu0 0
      %5659 = vmatpush1.bf16.msra.mxu0 0
      %5660 = vmatprep.subr.bf16.mxu0 0
      %5661 = vmatpush1.bf16.msra.mxu0 %v5455
      %5662 = vmatprep.subr.bf16.mxu0 0
      %5663 = vmatpush1.bf16.msra.mxu0 %v5454
      %5664 = vmatprep.subr.bf16.mxu0 0
      %5665 = vmatpush1.bf16.msra.mxu0 %v5453
      %5666 = vmatprep.subr.bf16.mxu0 0
      %5667 = vmatpush1.bf16.msra.mxu0 %v5452
      %5668 = vmatprep.subr.bf16.mxu0 0
      %5669 = vmatpush2.bf16.msra.mxu0 0
      %5670 = vmatprep.subr.bf16.mxu0 0
      %5671 = vmatpush2.bf16.msra.mxu0 0
      %5672 = vmatprep.subr.bf16.mxu0 0
      %5673 = vmatpush2.bf16.msra.mxu0 0
      %5674 = vmatprep.subr.bf16.mxu0 0
      %5675 = vmatpush2.bf16.msra.mxu0 0
      %5676 = vmatprep.subr.bf16.mxu0 0
      %5677 = vmatpush2.bf16.msra.mxu0 0
      %5678 = vmatprep.subr.bf16.mxu0 0
      %5679 = vmatpush2.bf16.msra.mxu0 0
      %5680 = vmatprep.subr.bf16.mxu0 0
      %5681 = vmatpush2.bf16.msra.mxu0 0
      %5682 = vmatprep.subr.bf16.mxu0 0
      %5683 = vmatpush2.bf16.msra.mxu0 0
      %5684 = vmatprep.mubr.bf16.mxu0 0
      %5685 = vmatmul.mubr.bf16.gmra.mxu0 %v5461
      %v5686 = vpop.f32.mrf.mxu0
      %v5687 = vadd.f32 %v5434, %v5686
      %v5688 = vpop.f32.mrf.mxu0
      %v5689 = vpop.f32.mrf.mxu0
      %v5690 = vadd.f32 %v5434, %v5689
      %v5691 = vpop.f32.mrf.mxu0
      %5692 = vmatprep.mubr.bf16.mxu0 0
      %5693 = vmatmul.mubr.bf16.gmra.mxu0 %v5464
      %v5694 = vpop.f32.mrf.mxu0
      %v5695 = vadd.f32 %v5434, %v5694
      %v5696 = vpop.f32.mrf.mxu0
      %v5697 = vpop.f32.mrf.mxu0
      %v5698 = vadd.f32 %v5434, %v5697
      %v5699 = vpop.f32.mrf.mxu0
      %5700 = vmatprep.mubr.bf16.mxu0 0
      %5701 = vmatmul.mubr.bf16.gmra.mxu0 %v5467
      %v5702 = vpop.f32.mrf.mxu0
      %v5703 = vadd.f32 %v5434, %v5702
      %v5704 = vpop.f32.mrf.mxu0
      %v5705 = vpop.f32.mrf.mxu0
      %v5706 = vadd.f32 %v5434, %v5705
      %v5707 = vpop.f32.mrf.mxu0
      %5708 = vmatprep.mubr.bf16.mxu0 0
      %5709 = vmatmul.mubr.bf16.gmra.mxu0 %v5470
      %v5710 = vpop.f32.mrf.mxu0
      %v5711 = vadd.f32 %v5434, %v5710
      %v5712 = vpop.f32.mrf.mxu0
      %v5713 = vpop.f32.mrf.mxu0
      %v5714 = vadd.f32 %v5434, %v5713
      %v5715 = vpop.f32.mrf.mxu0
      %5716 = vmatprep.mubr.bf16.mxu0 0
      %5717 = vmatmul.mubr.bf16.gmra.mxu0 %v5473
      %v5718 = vpop.f32.mrf.mxu0
      %v5719 = vadd.f32 %v5434, %v5718
      %v5720 = vpop.f32.mrf.mxu0
      %v5721 = vpop.f32.mrf.mxu0
      %v5722 = vadd.f32 %v5434, %v5721
      %v5723 = vpop.f32.mrf.mxu0
      %5724 = vmatprep.mubr.bf16.mxu0 0
      %5725 = vmatmul.mubr.bf16.gmra.mxu0 %v5476
      %v5726 = vpop.f32.mrf.mxu0
      %v5727 = vadd.f32 %v5434, %v5726
      %v5728 = vpop.f32.mrf.mxu0
      %v5729 = vpop.f32.mrf.mxu0
      %v5730 = vadd.f32 %v5434, %v5729
      %v5731 = vpop.f32.mrf.mxu0
      %5732 = vmatprep.mubr.bf16.mxu0 0
      %5733 = vmatmul.mubr.bf16.gmra.mxu0 %v5479
      %v5734 = vpop.f32.mrf.mxu0
      %v5735 = vadd.f32 %v5434, %v5734
      %v5736 = vpop.f32.mrf.mxu0
      %v5737 = vpop.f32.mrf.mxu0
      %v5738 = vadd.f32 %v5434, %v5737
      %v5739 = vpop.f32.mrf.mxu0
      %5740 = vmatprep.mubr.bf16.mxu0 0
      %5741 = vmatmul.mubr.bf16.gmra.mxu0 %v5482
      %v5742 = vpop.f32.mrf.mxu0
      %v5743 = vadd.f32 %v5434, %v5742
      %v5744 = vpop.f32.mrf.mxu0
      %v5745 = vpop.f32.mrf.mxu0
      %v5746 = vadd.f32 %v5434, %v5745
      %v5747 = vpop.f32.mrf.mxu0
      %5748 = vmatprep.mubr.bf16.mxu0 0
      %5749 = vmatmul.mubr.bf16.gmra.mxu0 %v5485
      %v5750 = vpop.f32.mrf.mxu0
      %v5751 = vadd.f32 %v5434, %v5750
      %v5752 = vpop.f32.mrf.mxu0
      %v5753 = vpop.f32.mrf.mxu0
      %v5754 = vadd.f32 %v5434, %v5753
      %v5755 = vpop.f32.mrf.mxu0
      %5756 = vmatprep.mubr.bf16.mxu0 0
      %5757 = vmatmul.mubr.bf16.gmra.mxu0 %v5488
      %v5758 = vpop.f32.mrf.mxu0
      %v5759 = vadd.f32 %v5434, %v5758
      %v5760 = vpop.f32.mrf.mxu0
      %v5761 = vpop.f32.mrf.mxu0
      %v5762 = vadd.f32 %v5434, %v5761
      %v5763 = vpop.f32.mrf.mxu0
      %5764 = vmatprep.mubr.bf16.mxu0 0
      %5765 = vmatmul.mubr.bf16.gmra.mxu0 %v5491
      %v5766 = vpop.f32.mrf.mxu0
      %v5767 = vadd.f32 %v5434, %v5766
      %v5768 = vpop.f32.mrf.mxu0
      %v5769 = vpop.f32.mrf.mxu0
      %v5770 = vadd.f32 %v5434, %v5769
      %v5771 = vpop.f32.mrf.mxu0
      %5772 = vmatprep.mubr.bf16.mxu0 0
      %5773 = vmatmul.mubr.bf16.gmra.mxu0 %v5494
      %v5774 = vpop.f32.mrf.mxu0
      %v5775 = vadd.f32 %v5434, %v5774
      %v5776 = vpop.f32.mrf.mxu0
      %v5777 = vpop.f32.mrf.mxu0
      %v5778 = vadd.f32 %v5434, %v5777
      %v5779 = vpop.f32.mrf.mxu0
      %5780 = vmatprep.mubr.bf16.mxu0 0
      %5781 = vmatmul.mubr.bf16.gmra.mxu0 %v5497
      %v5782 = vpop.f32.mrf.mxu0
      %v5783 = vadd.f32 %v5434, %v5782
      %v5784 = vpop.f32.mrf.mxu0
      %v5785 = vpop.f32.mrf.mxu0
      %v5786 = vadd.f32 %v5434, %v5785
      %v5787 = vpop.f32.mrf.mxu0
      %5788 = vmatprep.mubr.bf16.mxu0 0
      %5789 = vmatmul.mubr.bf16.gmra.mxu0 %v5500
      %v5790 = vpop.f32.mrf.mxu0
      %v5791 = vadd.f32 %v5434, %v5790
      %v5792 = vpop.f32.mrf.mxu0
      %v5793 = vpop.f32.mrf.mxu0
      %v5794 = vadd.f32 %v5434, %v5793
      %v5795 = vpop.f32.mrf.mxu0
      %5796 = vmatprep.mubr.bf16.mxu0 0
      %5797 = vmatmul.mubr.bf16.gmra.mxu0 %v5503
      %v5798 = vpop.f32.mrf.mxu0
      %v5799 = vadd.f32 %v5434, %v5798
      %v5800 = vpop.f32.mrf.mxu0
      %v5801 = vpop.f32.mrf.mxu0
      %v5802 = vadd.f32 %v5434, %v5801
      %v5803 = vpop.f32.mrf.mxu0
      %5804 = vmatprep.mubr.bf16.mxu0 0
      %5805 = vmatmul.mubr.bf16.gmra.mxu0 %v5506
      %v5806 = vpop.f32.mrf.mxu0
      %v5807 = vadd.f32 %v5434, %v5806
      %v5808 = vpop.f32.mrf.mxu0
      %v5809 = vpop.f32.mrf.mxu0
      %v5810 = vadd.f32 %v5434, %v5809
      %v5811 = vpop.f32.mrf.mxu0
      %5812 = vmatprep.mubr.bf16.mxu0 0
      %5813 = vmatmul.mubr.bf16.gmra.mxu0 %v5509
      %v5814 = vpop.f32.mrf.mxu0
      %v5815 = vadd.f32 %v5434, %v5814
      %v5816 = vpop.f32.mrf.mxu0
      %v5817 = vpop.f32.mrf.mxu0
      %v5818 = vadd.f32 %v5434, %v5817
      %v5819 = vpop.f32.mrf.mxu0
      %5820 = vmatprep.mubr.bf16.mxu0 0
      %5821 = vmatmul.mubr.bf16.gmra.mxu0 %v5512
      %v5822 = vpop.f32.mrf.mxu0
      %v5823 = vadd.f32 %v5434, %v5822
      %v5824 = vpop.f32.mrf.mxu0
      %v5825 = vpop.f32.mrf.mxu0
      %v5826 = vadd.f32 %v5434, %v5825
      %v5827 = vpop.f32.mrf.mxu0
      %5828 = vmatprep.mubr.bf16.mxu0 0
      %5829 = vmatmul.mubr.bf16.gmra.mxu0 %v5515
      %v5830 = vpop.f32.mrf.mxu0
      %v5831 = vadd.f32 %v5434, %v5830
      %v5832 = vpop.f32.mrf.mxu0
      %v5833 = vpop.f32.mrf.mxu0
      %v5834 = vadd.f32 %v5434, %v5833
      %v5835 = vpop.f32.mrf.mxu0
      %5836 = vmatprep.mubr.bf16.mxu0 0
      %5837 = vmatmul.mubr.bf16.gmra.mxu0 %v5518
      %v5838 = vpop.f32.mrf.mxu0
      %v5839 = vadd.f32 %v5434, %v5838
      %v5840 = vpop.f32.mrf.mxu0
      %v5841 = vpop.f32.mrf.mxu0
      %v5842 = vadd.f32 %v5434, %v5841
      %v5843 = vpop.f32.mrf.mxu0
      %5844 = vmatprep.mubr.bf16.mxu0 0
      %5845 = vmatmul.mubr.bf16.gmra.mxu0 %v5521
      %v5846 = vpop.f32.mrf.mxu0
      %v5847 = vadd.f32 %v5434, %v5846
      %v5848 = vpop.f32.mrf.mxu0
      %v5849 = vpop.f32.mrf.mxu0
      %v5850 = vadd.f32 %v5434, %v5849
      %v5851 = vpop.f32.mrf.mxu0
      %5852 = vmatprep.mubr.bf16.mxu0 0
      %5853 = vmatmul.mubr.bf16.gmra.mxu0 %v5524
      %v5854 = vpop.f32.mrf.mxu0
      %v5855 = vadd.f32 %v5434, %v5854
      %v5856 = vpop.f32.mrf.mxu0
      %v5857 = vpop.f32.mrf.mxu0
      %v5858 = vadd.f32 %v5434, %v5857
      %v5859 = vpop.f32.mrf.mxu0
      %5860 = vmatprep.mubr.bf16.mxu0 0
      %5861 = vmatmul.mubr.bf16.gmra.mxu0 %v5527
      %v5862 = vpop.f32.mrf.mxu0
      %v5863 = vadd.f32 %v5434, %v5862
      %v5864 = vpop.f32.mrf.mxu0
      %v5865 = vpop.f32.mrf.mxu0
      %v5866 = vadd.f32 %v5434, %v5865
      %v5867 = vpop.f32.mrf.mxu0
      %5868 = vmatprep.mubr.bf16.mxu0 0
      %5869 = vmatmul.mubr.bf16.gmra.mxu0 %v5530
      %v5870 = vpop.f32.mrf.mxu0
      %v5871 = vadd.f32 %v5434, %v5870
      %v5872 = vpop.f32.mrf.mxu0
      %v5873 = vpop.f32.mrf.mxu0
      %v5874 = vadd.f32 %v5434, %v5873
      %v5875 = vpop.f32.mrf.mxu0
      %5876 = vmatprep.mubr.bf16.mxu0 0
      %5877 = vmatmul.mubr.bf16.gmra.mxu0 %v5533
      %v5878 = vpop.f32.mrf.mxu0
      %v5879 = vadd.f32 %v5434, %v5878
      %v5880 = vpop.f32.mrf.mxu0
      %v5881 = vpop.f32.mrf.mxu0
      %v5882 = vadd.f32 %v5434, %v5881
      %v5883 = vpop.f32.mrf.mxu0
      %5884 = vmatprep.mubr.bf16.mxu0 0
      %5885 = vmatmul.mubr.bf16.gmra.mxu0 %v5536
      %v5886 = vpop.f32.mrf.mxu0
      %v5887 = vadd.f32 %v5434, %v5886
      %v5888 = vpop.f32.mrf.mxu0
      %v5889 = vpop.f32.mrf.mxu0
      %v5890 = vadd.f32 %v5434, %v5889
      %v5891 = vpop.f32.mrf.mxu0
      %5892 = vmatprep.mubr.bf16.mxu0 0
      %5893 = vmatmul.mubr.bf16.gmra.mxu0 %v5539
      %v5894 = vpop.f32.mrf.mxu0
      %v5895 = vadd.f32 %v5434, %v5894
      %v5896 = vpop.f32.mrf.mxu0
      %v5897 = vpop.f32.mrf.mxu0
      %v5898 = vadd.f32 %v5434, %v5897
      %v5899 = vpop.f32.mrf.mxu0
      %5900 = vmatprep.mubr.bf16.mxu0 0
      %5901 = vmatmul.mubr.bf16.gmra.mxu0 %v5542
      %v5902 = vpop.f32.mrf.mxu0
      %v5903 = vadd.f32 %v5434, %v5902
      %v5904 = vpop.f32.mrf.mxu0
      %v5905 = vpop.f32.mrf.mxu0
      %v5906 = vadd.f32 %v5434, %v5905
      %v5907 = vpop.f32.mrf.mxu0
      %5908 = vmatprep.mubr.bf16.mxu0 0
      %5909 = vmatmul.mubr.bf16.gmra.mxu0 %v5545
      %v5910 = vpop.f32.mrf.mxu0
      %v5911 = vadd.f32 %v5434, %v5910
      %v5912 = vpop.f32.mrf.mxu0
      %v5913 = vpop.f32.mrf.mxu0
      %v5914 = vadd.f32 %v5434, %v5913
      %v5915 = vpop.f32.mrf.mxu0
      %5916 = vmatprep.mubr.bf16.mxu0 0
      %5917 = vmatmul.mubr.bf16.gmra.mxu0 %v5548
      %v5918 = vpop.f32.mrf.mxu0
      %v5919 = vadd.f32 %v5434, %v5918
      %v5920 = vpop.f32.mrf.mxu0
      %v5921 = vpop.f32.mrf.mxu0
      %v5922 = vadd.f32 %v5434, %v5921
      %v5923 = vpop.f32.mrf.mxu0
      %5924 = vmatprep.mubr.bf16.mxu0 0
      %5925 = vmatmul.mubr.bf16.gmra.mxu0 %v5551
      %v5926 = vpop.f32.mrf.mxu0
      %v5927 = vadd.f32 %v5434, %v5926
      %v5928 = vpop.f32.mrf.mxu0
      %v5929 = vpop.f32.mrf.mxu0
      %v5930 = vadd.f32 %v5434, %v5929
      %v5931 = vpop.f32.mrf.mxu0
      %5932 = vmatprep.mubr.bf16.mxu0 0
      %5933 = vmatmul.mubr.bf16.gmra.mxu0 %v5554
      %v5934 = vpop.f32.mrf.mxu0
      %v5935 = vadd.f32 %v5434, %v5934
      %v5936 = vpop.f32.mrf.mxu0
      %v5937 = vpop.f32.mrf.mxu0
      %v5938 = vadd.f32 %v5434, %v5937
      %v5939 = vpop.f32.mrf.mxu0
      %5940 = vmatprep.mubr.bf16.mxu0 0
      %5941 = vmatmul.mubr.bf16.gmra.mxu0 %v5557
      %v5942 = vpop.f32.mrf.mxu0
      %v5943 = vadd.f32 %v5434, %v5942
      %v5944 = vpop.f32.mrf.mxu0
      %v5945 = vpop.f32.mrf.mxu0
      %v5946 = vadd.f32 %v5434, %v5945
      %v5947 = vpop.f32.mrf.mxu0
      %5948 = vmatprep.mubr.bf16.mxu0 0
      %5949 = vmatmul.mubr.bf16.gmra.mxu0 %v5560
      %v5950 = vpop.f32.mrf.mxu0
      %v5951 = vadd.f32 %v5434, %v5950
      %v5952 = vpop.f32.mrf.mxu0
      %v5953 = vpop.f32.mrf.mxu0
      %v5954 = vadd.f32 %v5434, %v5953
      %v5955 = vpop.f32.mrf.mxu0
      %5956 = vmatprep.mubr.bf16.mxu0 0
      %5957 = vmatmul.mubr.bf16.gmra.mxu0 %v5563
      %v5958 = vpop.f32.mrf.mxu0
      %v5959 = vadd.f32 %v5434, %v5958
      %v5960 = vpop.f32.mrf.mxu0
      %v5961 = vpop.f32.mrf.mxu0
      %v5962 = vadd.f32 %v5434, %v5961
      %v5963 = vpop.f32.mrf.mxu0
      %5964 = vmatprep.mubr.bf16.mxu0 0
      %5965 = vmatmul.mubr.bf16.gmra.mxu0 %v5566
      %v5966 = vpop.f32.mrf.mxu0
      %v5967 = vadd.f32 %v5434, %v5966
      %v5968 = vpop.f32.mrf.mxu0
      %v5969 = vpop.f32.mrf.mxu0
      %v5970 = vadd.f32 %v5434, %v5969
      %v5971 = vpop.f32.mrf.mxu0
      %5972 = vmatprep.mubr.bf16.mxu0 0
      %5973 = vmatmul.mubr.bf16.gmra.mxu0 %v5569
      %v5974 = vpop.f32.mrf.mxu0
      %v5975 = vadd.f32 %v5434, %v5974
      %v5976 = vpop.f32.mrf.mxu0
      %v5977 = vpop.f32.mrf.mxu0
      %v5978 = vadd.f32 %v5434, %v5977
      %v5979 = vpop.f32.mrf.mxu0
      %5980 = vmatprep.mubr.bf16.mxu0 0
      %5981 = vmatmul.mubr.bf16.gmra.mxu0 %v5572
      %v5982 = vpop.f32.mrf.mxu0
      %v5983 = vadd.f32 %v5434, %v5982
      %v5984 = vpop.f32.mrf.mxu0
      %v5985 = vpop.f32.mrf.mxu0
      %v5986 = vadd.f32 %v5434, %v5985
      %v5987 = vpop.f32.mrf.mxu0
      %5988 = vmatprep.mubr.bf16.mxu0 0
      %5989 = vmatmul.mubr.bf16.gmra.mxu0 %v5575
      %v5990 = vpop.f32.mrf.mxu0
      %v5991 = vadd.f32 %v5434, %v5990
      %v5992 = vpop.f32.mrf.mxu0
      %v5993 = vpop.f32.mrf.mxu0
      %v5994 = vadd.f32 %v5434, %v5993
      %v5995 = vpop.f32.mrf.mxu0
      %5996 = vmatprep.mubr.bf16.mxu0 0
      %5997 = vmatmul.mubr.bf16.gmra.mxu0 %v5578
      %v5998 = vpop.f32.mrf.mxu0
      %v5999 = vadd.f32 %v5434, %v5998
      %v6000 = vpop.f32.mrf.mxu0
      %v6001 = vpop.f32.mrf.mxu0
      %v6002 = vadd.f32 %v5434, %v6001
      %v6003 = vpop.f32.mrf.mxu0
      %6004 = vmatprep.mubr.bf16.mxu0 0
      %6005 = vmatmul.mubr.bf16.gmra.mxu0 %v5581
      %v6006 = vpop.f32.mrf.mxu0
      %v6007 = vadd.f32 %v5434, %v6006
      %v6008 = vpop.f32.mrf.mxu0
      %v6009 = vpop.f32.mrf.mxu0
      %v6010 = vadd.f32 %v5434, %v6009
      %v6011 = vpop.f32.mrf.mxu0
      %6012 = vmatprep.mubr.bf16.mxu0 0
      %6013 = vmatmul.mubr.bf16.gmra.mxu0 %v5584
      %v6014 = vpop.f32.mrf.mxu0
      %v6015 = vadd.f32 %v5434, %v6014
      %v6016 = vpop.f32.mrf.mxu0
      %v6017 = vpop.f32.mrf.mxu0
      %v6018 = vadd.f32 %v5434, %v6017
      %v6019 = vpop.f32.mrf.mxu0
      %6020 = vmatprep.mubr.bf16.mxu0 0
      %6021 = vmatmul.mubr.bf16.gmra.mxu0 %v5587
      %v6022 = vpop.f32.mrf.mxu0
      %v6023 = vadd.f32 %v5434, %v6022
      %v6024 = vpop.f32.mrf.mxu0
      %v6025 = vpop.f32.mrf.mxu0
      %v6026 = vadd.f32 %v5434, %v6025
      %v6027 = vpop.f32.mrf.mxu0
      %6028 = vmatprep.mubr.bf16.mxu0 0
      %6029 = vmatmul.mubr.bf16.gmra.mxu0 %v5590
      %v6030 = vpop.f32.mrf.mxu0
      %v6031 = vadd.f32 %v5434, %v6030
      %v6032 = vpop.f32.mrf.mxu0
      %v6033 = vpop.f32.mrf.mxu0
      %v6034 = vadd.f32 %v5434, %v6033
      %v6035 = vpop.f32.mrf.mxu0
      %6036 = vmatprep.mubr.bf16.mxu0 0
      %6037 = vmatmul.mubr.bf16.gmra.mxu0 %v5593
      %v6038 = vpop.f32.mrf.mxu0
      %v6039 = vadd.f32 %v5434, %v6038
      %v6040 = vpop.f32.mrf.mxu0
      %v6041 = vpop.f32.mrf.mxu0
      %v6042 = vadd.f32 %v5434, %v6041
      %v6043 = vpop.f32.mrf.mxu0
      %6044 = vmatprep.mubr.bf16.mxu0 0
      %6045 = vmatmul.mubr.bf16.gmra.mxu0 %v5596
      %v6046 = vpop.f32.mrf.mxu0
      %v6047 = vadd.f32 %v5434, %v6046
      %v6048 = vpop.f32.mrf.mxu0
      %v6049 = vpop.f32.mrf.mxu0
      %v6050 = vadd.f32 %v5434, %v6049
      %v6051 = vpop.f32.mrf.mxu0
      %6052 = vmatprep.mubr.bf16.mxu0 0
      %6053 = vmatmul.mubr.bf16.gmra.mxu0 %v5599
      %v6054 = vpop.f32.mrf.mxu0
      %v6055 = vadd.f32 %v5434, %v6054
      %v6056 = vpop.f32.mrf.mxu0
      %v6057 = vpop.f32.mrf.mxu0
      %v6058 = vadd.f32 %v5434, %v6057
      %v6059 = vpop.f32.mrf.mxu0
      %6060 = vmatprep.mubr.bf16.mxu0 0
      %6061 = vmatmul.mubr.bf16.gmra.mxu0 %v5602
      %v6062 = vpop.f32.mrf.mxu0
      %v6063 = vadd.f32 %v5434, %v6062
      %v6064 = vpop.f32.mrf.mxu0
      %v6065 = vpop.f32.mrf.mxu0
      %v6066 = vadd.f32 %v5434, %v6065
      %v6067 = vpop.f32.mrf.mxu0
      %6068 = vmatprep.mubr.bf16.mxu0 0
      %6069 = vmatmul.mubr.bf16.gmra.mxu0 %v5605
      %v6070 = vpop.f32.mrf.mxu0
      %v6071 = vadd.f32 %v5434, %v6070
      %v6072 = vpop.f32.mrf.mxu0
      %v6073 = vpop.f32.mrf.mxu0
      %v6074 = vadd.f32 %v5434, %v6073
      %v6075 = vpop.f32.mrf.mxu0
      %6076 = vmatprep.mubr.bf16.mxu0 0
      %6077 = vmatmul.mubr.bf16.gmra.mxu0 %v5608
      %v6078 = vpop.f32.mrf.mxu0
      %v6079 = vadd.f32 %v5434, %v6078
      %v6080 = vpop.f32.mrf.mxu0
      %v6081 = vpop.f32.mrf.mxu0
      %v6082 = vadd.f32 %v5434, %v6081
      %v6083 = vpop.f32.mrf.mxu0
      %6084 = vmatprep.mubr.bf16.mxu0 0
      %6085 = vmatmul.mubr.bf16.gmra.mxu0 %v5611
      %v6086 = vpop.f32.mrf.mxu0
      %v6087 = vadd.f32 %v5434, %v6086
      %v6088 = vpop.f32.mrf.mxu0
      %v6089 = vpop.f32.mrf.mxu0
      %v6090 = vadd.f32 %v5434, %v6089
      %v6091 = vpop.f32.mrf.mxu0
      %6092 = vmatprep.mubr.bf16.mxu0 0
      %6093 = vmatmul.mubr.bf16.gmra.mxu0 %v5614
      %v6094 = vpop.f32.mrf.mxu0
      %v6095 = vadd.f32 %v5434, %v6094
      %v6096 = vpop.f32.mrf.mxu0
      %v6097 = vpop.f32.mrf.mxu0
      %v6098 = vadd.f32 %v5434, %v6097
      %v6099 = vpop.f32.mrf.mxu0
      %6100 = vmatprep.mubr.bf16.mxu0 0
      %6101 = vmatmul.mubr.bf16.gmra.mxu0 %v5617
      %v6102 = vpop.f32.mrf.mxu0
      %v6103 = vadd.f32 %v5434, %v6102
      %v6104 = vpop.f32.mrf.mxu0
      %v6105 = vpop.f32.mrf.mxu0
      %v6106 = vadd.f32 %v5434, %v6105
      %v6107 = vpop.f32.mrf.mxu0
      %6108 = vmatprep.mubr.bf16.mxu0 0
      %6109 = vmatmul.mubr.bf16.gmra.mxu0 %v5620
      %v6110 = vpop.f32.mrf.mxu0
      %v6111 = vadd.f32 %v5434, %v6110
      %v6112 = vpop.f32.mrf.mxu0
      %v6113 = vpop.f32.mrf.mxu0
      %v6114 = vadd.f32 %v5434, %v6113
      %v6115 = vpop.f32.mrf.mxu0
      %6116 = vmatprep.mubr.bf16.mxu0 0
      %6117 = vmatmul.mubr.bf16.gmra.mxu0 %v5623
      %v6118 = vpop.f32.mrf.mxu0
      %v6119 = vadd.f32 %v5434, %v6118
      %v6120 = vpop.f32.mrf.mxu0
      %v6121 = vpop.f32.mrf.mxu0
      %v6122 = vadd.f32 %v5434, %v6121
      %v6123 = vpop.f32.mrf.mxu0
      %6124 = vmatprep.mubr.bf16.mxu0 0
      %6125 = vmatmul.mubr.bf16.gmra.mxu0 %v5626
      %v6126 = vpop.f32.mrf.mxu0
      %v6127 = vadd.f32 %v5434, %v6126
      %v6128 = vpop.f32.mrf.mxu0
      %v6129 = vpop.f32.mrf.mxu0
      %v6130 = vadd.f32 %v5434, %v6129
      %v6131 = vpop.f32.mrf.mxu0
      %6132 = vmatprep.mubr.bf16.mxu0 0
      %6133 = vmatmul.mubr.bf16.gmra.mxu0 %v5629
      %v6134 = vpop.f32.mrf.mxu0
      %v6135 = vadd.f32 %v5434, %v6134
      %v6136 = vpop.f32.mrf.mxu0
      %v6137 = vpop.f32.mrf.mxu0
      %v6138 = vadd.f32 %v5434, %v6137
      %v6139 = vpop.f32.mrf.mxu0
      %6140 = vmatprep.mubr.bf16.mxu0 0
      %6141 = vmatmul.mubr.bf16.gmra.mxu0 %v5632
      %v6142 = vpop.f32.mrf.mxu0
      %v6143 = vadd.f32 %v5434, %v6142
      %v6144 = vpop.f32.mrf.mxu0
      %v6145 = vpop.f32.mrf.mxu0
      %v6146 = vadd.f32 %v5434, %v6145
      %v6147 = vpop.f32.mrf.mxu0
      %6148 = vmatprep.mubr.bf16.mxu0 0
      %6149 = vmatmul.mubr.bf16.gmra.mxu0 %v5635
      %v6150 = vpop.f32.mrf.mxu0
      %v6151 = vadd.f32 %v5434, %v6150
      %v6152 = vpop.f32.mrf.mxu0
      %v6153 = vpop.f32.mrf.mxu0
      %v6154 = vadd.f32 %v5434, %v6153
      %v6155 = vpop.f32.mrf.mxu0
      %6156 = vmatprep.mubr.bf16.mxu0 0
      %6157 = vmatmul.mubr.bf16.gmra.mxu0 %v5638
      %v6158 = vpop.f32.mrf.mxu0
      %v6159 = vadd.f32 %v5434, %v6158
      %v6160 = vpop.f32.mrf.mxu0
      %v6161 = vpop.f32.mrf.mxu0
      %v6162 = vadd.f32 %v5434, %v6161
      %v6163 = vpop.f32.mrf.mxu0
      %6164 = vmatprep.mubr.bf16.mxu0 0
      %6165 = vmatmul.mubr.bf16.gmra.mxu0 %v5641
      %v6166 = vpop.f32.mrf.mxu0
      %v6167 = vadd.f32 %v5434, %v6166
      %v6168 = vpop.f32.mrf.mxu0
      %v6169 = vpop.f32.mrf.mxu0
      %v6170 = vadd.f32 %v5434, %v6169
      %v6171 = vpop.f32.mrf.mxu0
      %6172 = vmatprep.mubr.bf16.mxu0 0
      %6173 = vmatmul.mubr.bf16.gmra.mxu0 %v5644
      %v6174 = vpop.f32.mrf.mxu0
      %v6175 = vadd.f32 %v5434, %v6174
      %v6176 = vpop.f32.mrf.mxu0
      %v6177 = vpop.f32.mrf.mxu0
      %v6178 = vadd.f32 %v5434, %v6177
      %v6179 = vpop.f32.mrf.mxu0
      %6180 = vmatprep.mubr.bf16.mxu0 0
      %6181 = vmatmul.mubr.bf16.gmra.mxu0 %v5647
      %v6182 = vpop.f32.mrf.mxu0
      %v6183 = vadd.f32 %v5434, %v6182
      %v6184 = vpop.f32.mrf.mxu0
      %v6185 = vpop.f32.mrf.mxu0
      %v6186 = vadd.f32 %v5434, %v6185
      %v6187 = vpop.f32.mrf.mxu0
      %6188 = vmatprep.mubr.bf16.mxu0 0
      %6189 = vmatmul.mubr.bf16.gmra.mxu0 %v5650
      %v6190 = vpop.f32.mrf.mxu0
      %v6191 = vadd.f32 %v5434, %v6190
      %v6192 = vpop.f32.mrf.mxu0
      %v6193 = vpop.f32.mrf.mxu0
      %v6194 = vadd.f32 %v5434, %v6193
      %v6195 = vpop.f32.mrf.mxu0
      %6196 = vdwg.mxu0
      %v6197 = vmax.f32 %v5687, 0.0
      %v6198 = vmax.f32 %v5690, 0.0
      %v6199 = vmax.f32 %v5695, 0.0
      %v6200 = vmax.f32 %v5698, 0.0
      %v6201 = vmax.f32 %v5703, 0.0
      %v6202 = vmax.f32 %v5706, 0.0
      %v6203 = vmax.f32 %v5711, 0.0
      %v6204 = vmax.f32 %v5714, 0.0
      %v6205 = vmax.f32 %v5719, 0.0
      %v6206 = vmax.f32 %v5722, 0.0
      %v6207 = vmax.f32 %v5727, 0.0
      %v6208 = vmax.f32 %v5730, 0.0
      %v6209 = vmax.f32 %v5735, 0.0
      %v6210 = vmax.f32 %v5738, 0.0
      %v6211 = vmax.f32 %v5743, 0.0
      %v6212 = vmax.f32 %v5746, 0.0
      %v6213 = vmax.f32 %v5751, 0.0
      %v6214 = vmax.f32 %v5754, 0.0
      %v6215 = vmax.f32 %v5759, 0.0
      %v6216 = vmax.f32 %v5762, 0.0
      %v6217 = vmax.f32 %v5767, 0.0
      %v6218 = vmax.f32 %v5770, 0.0
      %v6219 = vmax.f32 %v5775, 0.0
      %v6220 = vmax.f32 %v5778, 0.0
      %v6221 = vmax.f32 %v5783, 0.0
      %v6222 = vmax.f32 %v5786, 0.0
      %v6223 = vmax.f32 %v5791, 0.0
      %v6224 = vmax.f32 %v5794, 0.0
      %v6225 = vmax.f32 %v5799, 0.0
      %v6226 = vmax.f32 %v5802, 0.0
      %v6227 = vmax.f32 %v5807, 0.0
      %v6228 = vmax.f32 %v5810, 0.0
      %v6229 = vmax.f32 %v5815, 0.0
      %v6230 = vmax.f32 %v5818, 0.0
      %v6231 = vmax.f32 %v5823, 0.0
      %v6232 = vmax.f32 %v5826, 0.0
      %v6233 = vmax.f32 %v5831, 0.0
      %v6234 = vmax.f32 %v5834, 0.0
      %v6235 = vmax.f32 %v5839, 0.0
      %v6236 = vmax.f32 %v5842, 0.0
      %v6237 = vmax.f32 %v5847, 0.0
      %v6238 = vmax.f32 %v5850, 0.0
      %v6239 = vmax.f32 %v5855, 0.0
      %v6240 = vmax.f32 %v5858, 0.0
      %v6241 = vmax.f32 %v5863, 0.0
      %v6242 = vmax.f32 %v5866, 0.0
      %v6243 = vmax.f32 %v5871, 0.0
      %v6244 = vmax.f32 %v5874, 0.0
      %v6245 = vmax.f32 %v5879, 0.0
      %v6246 = vmax.f32 %v5882, 0.0
      %v6247 = vmax.f32 %v5887, 0.0
      %v6248 = vmax.f32 %v5890, 0.0
      %v6249 = vmax.f32 %v5895, 0.0
      %v6250 = vmax.f32 %v5898, 0.0
      %v6251 = vmax.f32 %v5903, 0.0
      %v6252 = vmax.f32 %v5906, 0.0
      %v6253 = vmax.f32 %v5911, 0.0
      %v6254 = vmax.f32 %v5914, 0.0
      %v6255 = vmax.f32 %v5919, 0.0
      %v6256 = vmax.f32 %v5922, 0.0
      %v6257 = vmax.f32 %v5927, 0.0
      %v6258 = vmax.f32 %v5930, 0.0
      %v6259 = vmax.f32 %v5935, 0.0
      %v6260 = vmax.f32 %v5938, 0.0
      %v6261 = vmax.f32 %v5943, 0.0
      %v6262 = vmax.f32 %v5946, 0.0
      %v6263 = vmax.f32 %v5951, 0.0
      %v6264 = vmax.f32 %v5954, 0.0
      %v6265 = vmax.f32 %v5959, 0.0
      %v6266 = vmax.f32 %v5962, 0.0
      %v6267 = vmax.f32 %v5967, 0.0
      %v6268 = vmax.f32 %v5970, 0.0
      %v6269 = vmax.f32 %v5975, 0.0
      %v6270 = vmax.f32 %v5978, 0.0
      %v6271 = vmax.f32 %v5983, 0.0
      %v6272 = vmax.f32 %v5986, 0.0
      %v6273 = vmax.f32 %v5991, 0.0
      %v6274 = vmax.f32 %v5994, 0.0
      %v6275 = vmax.f32 %v5999, 0.0
      %v6276 = vmax.f32 %v6002, 0.0
      %v6277 = vmax.f32 %v6007, 0.0
      %v6278 = vmax.f32 %v6010, 0.0
      %v6279 = vmax.f32 %v6015, 0.0
      %v6280 = vmax.f32 %v6018, 0.0
      %v6281 = vmax.f32 %v6023, 0.0
      %v6282 = vmax.f32 %v6026, 0.0
      %v6283 = vmax.f32 %v6031, 0.0
      %v6284 = vmax.f32 %v6034, 0.0
      %v6285 = vmax.f32 %v6039, 0.0
      %v6286 = vmax.f32 %v6042, 0.0
      %v6287 = vmax.f32 %v6047, 0.0
      %v6288 = vmax.f32 %v6050, 0.0
      %v6289 = vmax.f32 %v6055, 0.0
      %v6290 = vmax.f32 %v6058, 0.0
      %v6291 = vmax.f32 %v6063, 0.0
      %v6292 = vmax.f32 %v6066, 0.0
      %v6293 = vmax.f32 %v6071, 0.0
      %v6294 = vmax.f32 %v6074, 0.0
      %v6295 = vmax.f32 %v6079, 0.0
      %v6296 = vmax.f32 %v6082, 0.0
      %v6297 = vmax.f32 %v6087, 0.0
      %v6298 = vmax.f32 %v6090, 0.0
      %v6299 = vmax.f32 %v6095, 0.0
      %v6300 = vmax.f32 %v6098, 0.0
      %v6301 = vmax.f32 %v6103, 0.0
      %v6302 = vmax.f32 %v6106, 0.0
      %v6303 = vmax.f32 %v6111, 0.0
      %v6304 = vmax.f32 %v6114, 0.0
      %v6305 = vmax.f32 %v6119, 0.0
      %v6306 = vmax.f32 %v6122, 0.0
      %v6307 = vmax.f32 %v6127, 0.0
      %v6308 = vmax.f32 %v6130, 0.0
      %v6309 = vmax.f32 %v6135, 0.0
      %v6310 = vmax.f32 %v6138, 0.0
      %v6311 = vmax.f32 %v6143, 0.0
      %v6312 = vmax.f32 %v6146, 0.0
      %v6313 = vmax.f32 %v6151, 0.0
      %v6314 = vmax.f32 %v6154, 0.0
      %v6315 = vmax.f32 %v6159, 0.0
      %v6316 = vmax.f32 %v6162, 0.0
      %v6317 = vmax.f32 %v6167, 0.0
      %v6318 = vmax.f32 %v6170, 0.0
      %v6319 = vmax.f32 %v6175, 0.0
      %v6320 = vmax.f32 %v6178, 0.0
      %v6321 = vmax.f32 %v6183, 0.0
      %v6322 = vmax.f32 %v6186, 0.0
      %v6323 = vmax.f32 %v6191, 0.0
      %v6324 = vmax.f32 %v6194, 0.0
      %s6325 = scalar_lea.vmem %s3, 160
      %v6326 = vld [vmem:[%s6325] sm:$0xf]
      %v6327 = vld [vmem:[%s6325 + $0x4] sm:$0xf]
      %v6328 = vld [vmem:[%s6325 + $0x8] sm:$0xf]
      %v6329 = vld [vmem:[%s6325 + $0xc] sm:$0xf]
      %v6330 = vld [vmem:[%s6325 + $0x10] sm:$0xf]
      %v6331 = vld [vmem:[%s6325 + $0x14] sm:$0xf]
      %v6332 = vld [vmem:[%s6325 + $0x18] sm:$0xf]
      %v6333 = vld [vmem:[%s6325 + $0x1c] sm:$0xf]
      %s6334 = scalar_lea.vmem %s4, 5
      %v6335 = vld [vmem:[%s6334] sm:$0x1]
      %v6336 = vpack.c.bf16 %v6198, %v6197
      %v6337 = vpack.c.bf16 %v6200, %v6199
      %v6338 = vpack.c.bf16 %v6202, %v6201
      %v6339 = vpack.c.bf16 %v6204, %v6203
      %v6340 = vpack.c.bf16 %v6206, %v6205
      %v6341 = vpack.c.bf16 %v6208, %v6207
      %v6342 = vpack.c.bf16 %v6210, %v6209
      %v6343 = vpack.c.bf16 %v6212, %v6211
      %v6344 = vpack.c.bf16 %v6214, %v6213
      %v6345 = vpack.c.bf16 %v6216, %v6215
      %v6346 = vpack.c.bf16 %v6218, %v6217
      %v6347 = vpack.c.bf16 %v6220, %v6219
      %v6348 = vpack.c.bf16 %v6222, %v6221
      %v6349 = vpack.c.bf16 %v6224, %v6223
      %v6350 = vpack.c.bf16 %v6226, %v6225
      %v6351 = vpack.c.bf16 %v6228, %v6227
      %v6352 = vpack.c.bf16 %v6230, %v6229
      %v6353 = vpack.c.bf16 %v6232, %v6231
      %v6354 = vpack.c.bf16 %v6234, %v6233
      %v6355 = vpack.c.bf16 %v6236, %v6235
      %v6356 = vpack.c.bf16 %v6238, %v6237
      %v6357 = vpack.c.bf16 %v6240, %v6239
      %v6358 = vpack.c.bf16 %v6242, %v6241
      %v6359 = vpack.c.bf16 %v6244, %v6243
      %v6360 = vpack.c.bf16 %v6246, %v6245
      %v6361 = vpack.c.bf16 %v6248, %v6247
      %v6362 = vpack.c.bf16 %v6250, %v6249
      %v6363 = vpack.c.bf16 %v6252, %v6251
      %v6364 = vpack.c.bf16 %v6254, %v6253
      %v6365 = vpack.c.bf16 %v6256, %v6255
      %v6366 = vpack.c.bf16 %v6258, %v6257
      %v6367 = vpack.c.bf16 %v6260, %v6259
      %v6368 = vpack.c.bf16 %v6262, %v6261
      %v6369 = vpack.c.bf16 %v6264, %v6263
      %v6370 = vpack.c.bf16 %v6266, %v6265
      %v6371 = vpack.c.bf16 %v6268, %v6267
      %v6372 = vpack.c.bf16 %v6270, %v6269
      %v6373 = vpack.c.bf16 %v6272, %v6271
      %v6374 = vpack.c.bf16 %v6274, %v6273
      %v6375 = vpack.c.bf16 %v6276, %v6275
      %v6376 = vpack.c.bf16 %v6278, %v6277
      %v6377 = vpack.c.bf16 %v6280, %v6279
      %v6378 = vpack.c.bf16 %v6282, %v6281
      %v6379 = vpack.c.bf16 %v6284, %v6283
      %v6380 = vpack.c.bf16 %v6286, %v6285
      %v6381 = vpack.c.bf16 %v6288, %v6287
      %v6382 = vpack.c.bf16 %v6290, %v6289
      %v6383 = vpack.c.bf16 %v6292, %v6291
      %v6384 = vpack.c.bf16 %v6294, %v6293
      %v6385 = vpack.c.bf16 %v6296, %v6295
      %v6386 = vpack.c.bf16 %v6298, %v6297
      %v6387 = vpack.c.bf16 %v6300, %v6299
      %v6388 = vpack.c.bf16 %v6302, %v6301
      %v6389 = vpack.c.bf16 %v6304, %v6303
      %v6390 = vpack.c.bf16 %v6306, %v6305
      %v6391 = vpack.c.bf16 %v6308, %v6307
      %v6392 = vpack.c.bf16 %v6310, %v6309
      %v6393 = vpack.c.bf16 %v6312, %v6311
      %v6394 = vpack.c.bf16 %v6314, %v6313
      %v6395 = vpack.c.bf16 %v6316, %v6315
      %v6396 = vpack.c.bf16 %v6318, %v6317
      %v6397 = vpack.c.bf16 %v6320, %v6319
      %v6398 = vpack.c.bf16 %v6322, %v6321
      %v6399 = vpack.c.bf16 %v6324, %v6323
      %v6401 = vlaneseq
      %v6402 = vshrl.u32 %v6401, 7
      %v6403 = vsub.s32 0, %v6402
      %v6404 = vrot.slane %v6335, %v6403
      %v6414 = vunpack.c.l.b16 %v6326
      %v6415 = vunpack.c.l.b16 %v6327
      %v6416 = vunpack.c.l.b16 %v6328
      %v6417 = vunpack.c.l.b16 %v6329
      %v6418 = vunpack.c.l.b16 %v6330
      %v6419 = vunpack.c.l.b16 %v6331
      %v6420 = vunpack.c.l.b16 %v6332
      %v6421 = vunpack.c.l.b16 %v6333
      %v6422 = vpack.c.b16 %v6415, %v6414
      %v6423 = vpack.c.b16 %v6417, %v6416
      %v6424 = vpack.c.b16 %v6419, %v6418
      %v6425 = vpack.c.b16 %v6421, %v6420
      %v6431 = vsel %vm1323, %v6336, 0
      %v6434 = vsel %vm1323, %v6337, 0
      %v6437 = vsel %vm1323, %v6338, 0
      %v6440 = vsel %vm1323, %v6339, 0
      %v6443 = vsel %vm1323, %v6340, 0
      %v6446 = vsel %vm1323, %v6341, 0
      %v6449 = vsel %vm1323, %v6342, 0
      %v6452 = vsel %vm1323, %v6343, 0
      %v6455 = vsel %vm1323, %v6344, 0
      %v6458 = vsel %vm1323, %v6345, 0
      %v6461 = vsel %vm1323, %v6346, 0
      %v6464 = vsel %vm1323, %v6347, 0
      %v6467 = vsel %vm1323, %v6348, 0
      %v6470 = vsel %vm1323, %v6349, 0
      %v6473 = vsel %vm1323, %v6350, 0
      %v6476 = vsel %vm1323, %v6351, 0
      %v6479 = vsel %vm1323, %v6352, 0
      %v6482 = vsel %vm1323, %v6353, 0
      %v6485 = vsel %vm1323, %v6354, 0
      %v6488 = vsel %vm1323, %v6355, 0
      %v6491 = vsel %vm1323, %v6356, 0
      %v6494 = vsel %vm1323, %v6357, 0
      %v6497 = vsel %vm1323, %v6358, 0
      %v6500 = vsel %vm1323, %v6359, 0
      %v6503 = vsel %vm1323, %v6360, 0
      %v6506 = vsel %vm1323, %v6361, 0
      %v6509 = vsel %vm1323, %v6362, 0
      %v6512 = vsel %vm1323, %v6363, 0
      %v6515 = vsel %vm1323, %v6364, 0
      %v6518 = vsel %vm1323, %v6365, 0
      %v6521 = vsel %vm1323, %v6366, 0
      %v6524 = vsel %vm1323, %v6367, 0
      %v6527 = vsel %vm1323, %v6368, 0
      %v6530 = vsel %vm1323, %v6369, 0
      %v6533 = vsel %vm1323, %v6370, 0
      %v6536 = vsel %vm1323, %v6371, 0
      %v6539 = vsel %vm1323, %v6372, 0
      %v6542 = vsel %vm1323, %v6373, 0
      %v6545 = vsel %vm1323, %v6374, 0
      %v6548 = vsel %vm1323, %v6375, 0
      %v6551 = vsel %vm1323, %v6376, 0
      %v6554 = vsel %vm1323, %v6377, 0
      %v6557 = vsel %vm1323, %v6378, 0
      %v6560 = vsel %vm1323, %v6379, 0
      %v6563 = vsel %vm1323, %v6380, 0
      %v6566 = vsel %vm1323, %v6381, 0
      %v6569 = vsel %vm1323, %v6382, 0
      %v6572 = vsel %vm1323, %v6383, 0
      %v6575 = vsel %vm1323, %v6384, 0
      %v6578 = vsel %vm1323, %v6385, 0
      %v6581 = vsel %vm1323, %v6386, 0
      %v6584 = vsel %vm1323, %v6387, 0
      %v6587 = vsel %vm1323, %v6388, 0
      %v6590 = vsel %vm1323, %v6389, 0
      %v6593 = vsel %vm1323, %v6390, 0
      %v6596 = vsel %vm1323, %v6391, 0
      %v6599 = vsel %vm1323, %v6392, 0
      %v6602 = vsel %vm1323, %v6393, 0
      %v6605 = vsel %vm1323, %v6394, 0
      %v6608 = vsel %vm1323, %v6395, 0
      %v6611 = vsel %vm1323, %v6396, 0
      %v6614 = vsel %vm1323, %v6397, 0
      %v6617 = vsel %vm1323, %v6398, 0
      %v6620 = vsel %vm1323, %v6399, 0
      %6622 = vmatprep.subr.bf16.mxu0 0
      %6623 = vmatpush1.bf16.msra.mxu0 0
      %6624 = vmatprep.subr.bf16.mxu0 0
      %6625 = vmatpush1.bf16.msra.mxu0 0
      %6626 = vmatprep.subr.bf16.mxu0 0
      %6627 = vmatpush1.bf16.msra.mxu0 0
      %6628 = vmatprep.subr.bf16.mxu0 0
      %6629 = vmatpush1.bf16.msra.mxu0 0
      %6630 = vmatprep.subr.bf16.mxu0 0
      %6631 = vmatpush1.bf16.msra.mxu0 %v6425
      %6632 = vmatprep.subr.bf16.mxu0 0
      %6633 = vmatpush1.bf16.msra.mxu0 %v6424
      %6634 = vmatprep.subr.bf16.mxu0 0
      %6635 = vmatpush1.bf16.msra.mxu0 %v6423
      %6636 = vmatprep.subr.bf16.mxu0 0
      %6637 = vmatpush1.bf16.msra.mxu0 %v6422
      %6638 = vmatprep.subr.bf16.mxu0 0
      %6639 = vmatpush2.bf16.msra.mxu0 0
      %6640 = vmatprep.subr.bf16.mxu0 0
      %6641 = vmatpush2.bf16.msra.mxu0 0
      %6642 = vmatprep.subr.bf16.mxu0 0
      %6643 = vmatpush2.bf16.msra.mxu0 0
      %6644 = vmatprep.subr.bf16.mxu0 0
      %6645 = vmatpush2.bf16.msra.mxu0 0
      %6646 = vmatprep.subr.bf16.mxu0 0
      %6647 = vmatpush2.bf16.msra.mxu0 0
      %6648 = vmatprep.subr.bf16.mxu0 0
      %6649 = vmatpush2.bf16.msra.mxu0 0
      %6650 = vmatprep.subr.bf16.mxu0 0
      %6651 = vmatpush2.bf16.msra.mxu0 0
      %6652 = vmatprep.subr.bf16.mxu0 0
      %6653 = vmatpush2.bf16.msra.mxu0 0
      %6654 = vmatprep.mubr.bf16.mxu0 0
      %6655 = vmatmul.mubr.bf16.gmra.mxu0 %v6431
      %v6656 = vpop.f32.mrf.mxu0
      %v6657 = vadd.f32 %v6404, %v6656
      %v6658 = vpop.f32.mrf.mxu0
      %v6659 = vpop.f32.mrf.mxu0
      %v6660 = vadd.f32 %v6404, %v6659
      %v6661 = vpop.f32.mrf.mxu0
      %6662 = vmatprep.mubr.bf16.mxu0 0
      %6663 = vmatmul.mubr.bf16.gmra.mxu0 %v6434
      %v6664 = vpop.f32.mrf.mxu0
      %v6665 = vadd.f32 %v6404, %v6664
      %v6666 = vpop.f32.mrf.mxu0
      %v6667 = vpop.f32.mrf.mxu0
      %v6668 = vadd.f32 %v6404, %v6667
      %v6669 = vpop.f32.mrf.mxu0
      %6670 = vmatprep.mubr.bf16.mxu0 0
      %6671 = vmatmul.mubr.bf16.gmra.mxu0 %v6437
      %v6672 = vpop.f32.mrf.mxu0
      %v6673 = vadd.f32 %v6404, %v6672
      %v6674 = vpop.f32.mrf.mxu0
      %v6675 = vpop.f32.mrf.mxu0
      %v6676 = vadd.f32 %v6404, %v6675
      %v6677 = vpop.f32.mrf.mxu0
      %6678 = vmatprep.mubr.bf16.mxu0 0
      %6679 = vmatmul.mubr.bf16.gmra.mxu0 %v6440
      %v6680 = vpop.f32.mrf.mxu0
      %v6681 = vadd.f32 %v6404, %v6680
      %v6682 = vpop.f32.mrf.mxu0
      %v6683 = vpop.f32.mrf.mxu0
      %v6684 = vadd.f32 %v6404, %v6683
      %v6685 = vpop.f32.mrf.mxu0
      %6686 = vmatprep.mubr.bf16.mxu0 0
      %6687 = vmatmul.mubr.bf16.gmra.mxu0 %v6443
      %v6688 = vpop.f32.mrf.mxu0
      %v6689 = vadd.f32 %v6404, %v6688
      %v6690 = vpop.f32.mrf.mxu0
      %v6691 = vpop.f32.mrf.mxu0
      %v6692 = vadd.f32 %v6404, %v6691
      %v6693 = vpop.f32.mrf.mxu0
      %6694 = vmatprep.mubr.bf16.mxu0 0
      %6695 = vmatmul.mubr.bf16.gmra.mxu0 %v6446
      %v6696 = vpop.f32.mrf.mxu0
      %v6697 = vadd.f32 %v6404, %v6696
      %v6698 = vpop.f32.mrf.mxu0
      %v6699 = vpop.f32.mrf.mxu0
      %v6700 = vadd.f32 %v6404, %v6699
      %v6701 = vpop.f32.mrf.mxu0
      %6702 = vmatprep.mubr.bf16.mxu0 0
      %6703 = vmatmul.mubr.bf16.gmra.mxu0 %v6449
      %v6704 = vpop.f32.mrf.mxu0
      %v6705 = vadd.f32 %v6404, %v6704
      %v6706 = vpop.f32.mrf.mxu0
      %v6707 = vpop.f32.mrf.mxu0
      %v6708 = vadd.f32 %v6404, %v6707
      %v6709 = vpop.f32.mrf.mxu0
      %6710 = vmatprep.mubr.bf16.mxu0 0
      %6711 = vmatmul.mubr.bf16.gmra.mxu0 %v6452
      %v6712 = vpop.f32.mrf.mxu0
      %v6713 = vadd.f32 %v6404, %v6712
      %v6714 = vpop.f32.mrf.mxu0
      %v6715 = vpop.f32.mrf.mxu0
      %v6716 = vadd.f32 %v6404, %v6715
      %v6717 = vpop.f32.mrf.mxu0
      %6718 = vmatprep.mubr.bf16.mxu0 0
      %6719 = vmatmul.mubr.bf16.gmra.mxu0 %v6455
      %v6720 = vpop.f32.mrf.mxu0
      %v6721 = vadd.f32 %v6404, %v6720
      %v6722 = vpop.f32.mrf.mxu0
      %v6723 = vpop.f32.mrf.mxu0
      %v6724 = vadd.f32 %v6404, %v6723
      %v6725 = vpop.f32.mrf.mxu0
      %6726 = vmatprep.mubr.bf16.mxu0 0
      %6727 = vmatmul.mubr.bf16.gmra.mxu0 %v6458
      %v6728 = vpop.f32.mrf.mxu0
      %v6729 = vadd.f32 %v6404, %v6728
      %v6730 = vpop.f32.mrf.mxu0
      %v6731 = vpop.f32.mrf.mxu0
      %v6732 = vadd.f32 %v6404, %v6731
      %v6733 = vpop.f32.mrf.mxu0
      %6734 = vmatprep.mubr.bf16.mxu0 0
      %6735 = vmatmul.mubr.bf16.gmra.mxu0 %v6461
      %v6736 = vpop.f32.mrf.mxu0
      %v6737 = vadd.f32 %v6404, %v6736
      %v6738 = vpop.f32.mrf.mxu0
      %v6739 = vpop.f32.mrf.mxu0
      %v6740 = vadd.f32 %v6404, %v6739
      %v6741 = vpop.f32.mrf.mxu0
      %6742 = vmatprep.mubr.bf16.mxu0 0
      %6743 = vmatmul.mubr.bf16.gmra.mxu0 %v6464
      %v6744 = vpop.f32.mrf.mxu0
      %v6745 = vadd.f32 %v6404, %v6744
      %v6746 = vpop.f32.mrf.mxu0
      %v6747 = vpop.f32.mrf.mxu0
      %v6748 = vadd.f32 %v6404, %v6747
      %v6749 = vpop.f32.mrf.mxu0
      %6750 = vmatprep.mubr.bf16.mxu0 0
      %6751 = vmatmul.mubr.bf16.gmra.mxu0 %v6467
      %v6752 = vpop.f32.mrf.mxu0
      %v6753 = vadd.f32 %v6404, %v6752
      %v6754 = vpop.f32.mrf.mxu0
      %v6755 = vpop.f32.mrf.mxu0
      %v6756 = vadd.f32 %v6404, %v6755
      %v6757 = vpop.f32.mrf.mxu0
      %6758 = vmatprep.mubr.bf16.mxu0 0
      %6759 = vmatmul.mubr.bf16.gmra.mxu0 %v6470
      %v6760 = vpop.f32.mrf.mxu0
      %v6761 = vadd.f32 %v6404, %v6760
      %v6762 = vpop.f32.mrf.mxu0
      %v6763 = vpop.f32.mrf.mxu0
      %v6764 = vadd.f32 %v6404, %v6763
      %v6765 = vpop.f32.mrf.mxu0
      %6766 = vmatprep.mubr.bf16.mxu0 0
      %6767 = vmatmul.mubr.bf16.gmra.mxu0 %v6473
      %v6768 = vpop.f32.mrf.mxu0
      %v6769 = vadd.f32 %v6404, %v6768
      %v6770 = vpop.f32.mrf.mxu0
      %v6771 = vpop.f32.mrf.mxu0
      %v6772 = vadd.f32 %v6404, %v6771
      %v6773 = vpop.f32.mrf.mxu0
      %6774 = vmatprep.mubr.bf16.mxu0 0
      %6775 = vmatmul.mubr.bf16.gmra.mxu0 %v6476
      %v6776 = vpop.f32.mrf.mxu0
      %v6777 = vadd.f32 %v6404, %v6776
      %v6778 = vpop.f32.mrf.mxu0
      %v6779 = vpop.f32.mrf.mxu0
      %v6780 = vadd.f32 %v6404, %v6779
      %v6781 = vpop.f32.mrf.mxu0
      %6782 = vmatprep.mubr.bf16.mxu0 0
      %6783 = vmatmul.mubr.bf16.gmra.mxu0 %v6479
      %v6784 = vpop.f32.mrf.mxu0
      %v6785 = vadd.f32 %v6404, %v6784
      %v6786 = vpop.f32.mrf.mxu0
      %v6787 = vpop.f32.mrf.mxu0
      %v6788 = vadd.f32 %v6404, %v6787
      %v6789 = vpop.f32.mrf.mxu0
      %6790 = vmatprep.mubr.bf16.mxu0 0
      %6791 = vmatmul.mubr.bf16.gmra.mxu0 %v6482
      %v6792 = vpop.f32.mrf.mxu0
      %v6793 = vadd.f32 %v6404, %v6792
      %v6794 = vpop.f32.mrf.mxu0
      %v6795 = vpop.f32.mrf.mxu0
      %v6796 = vadd.f32 %v6404, %v6795
      %v6797 = vpop.f32.mrf.mxu0
      %6798 = vmatprep.mubr.bf16.mxu0 0
      %6799 = vmatmul.mubr.bf16.gmra.mxu0 %v6485
      %v6800 = vpop.f32.mrf.mxu0
      %v6801 = vadd.f32 %v6404, %v6800
      %v6802 = vpop.f32.mrf.mxu0
      %v6803 = vpop.f32.mrf.mxu0
      %v6804 = vadd.f32 %v6404, %v6803
      %v6805 = vpop.f32.mrf.mxu0
      %6806 = vmatprep.mubr.bf16.mxu0 0
      %6807 = vmatmul.mubr.bf16.gmra.mxu0 %v6488
      %v6808 = vpop.f32.mrf.mxu0
      %v6809 = vadd.f32 %v6404, %v6808
      %v6810 = vpop.f32.mrf.mxu0
      %v6811 = vpop.f32.mrf.mxu0
      %v6812 = vadd.f32 %v6404, %v6811
      %v6813 = vpop.f32.mrf.mxu0
      %6814 = vmatprep.mubr.bf16.mxu0 0
      %6815 = vmatmul.mubr.bf16.gmra.mxu0 %v6491
      %v6816 = vpop.f32.mrf.mxu0
      %v6817 = vadd.f32 %v6404, %v6816
      %v6818 = vpop.f32.mrf.mxu0
      %v6819 = vpop.f32.mrf.mxu0
      %v6820 = vadd.f32 %v6404, %v6819
      %v6821 = vpop.f32.mrf.mxu0
      %6822 = vmatprep.mubr.bf16.mxu0 0
      %6823 = vmatmul.mubr.bf16.gmra.mxu0 %v6494
      %v6824 = vpop.f32.mrf.mxu0
      %v6825 = vadd.f32 %v6404, %v6824
      %v6826 = vpop.f32.mrf.mxu0
      %v6827 = vpop.f32.mrf.mxu0
      %v6828 = vadd.f32 %v6404, %v6827
      %v6829 = vpop.f32.mrf.mxu0
      %6830 = vmatprep.mubr.bf16.mxu0 0
      %6831 = vmatmul.mubr.bf16.gmra.mxu0 %v6497
      %v6832 = vpop.f32.mrf.mxu0
      %v6833 = vadd.f32 %v6404, %v6832
      %v6834 = vpop.f32.mrf.mxu0
      %v6835 = vpop.f32.mrf.mxu0
      %v6836 = vadd.f32 %v6404, %v6835
      %v6837 = vpop.f32.mrf.mxu0
      %6838 = vmatprep.mubr.bf16.mxu0 0
      %6839 = vmatmul.mubr.bf16.gmra.mxu0 %v6500
      %v6840 = vpop.f32.mrf.mxu0
      %v6841 = vadd.f32 %v6404, %v6840
      %v6842 = vpop.f32.mrf.mxu0
      %v6843 = vpop.f32.mrf.mxu0
      %v6844 = vadd.f32 %v6404, %v6843
      %v6845 = vpop.f32.mrf.mxu0
      %6846 = vmatprep.mubr.bf16.mxu0 0
      %6847 = vmatmul.mubr.bf16.gmra.mxu0 %v6503
      %v6848 = vpop.f32.mrf.mxu0
      %v6849 = vadd.f32 %v6404, %v6848
      %v6850 = vpop.f32.mrf.mxu0
      %v6851 = vpop.f32.mrf.mxu0
      %v6852 = vadd.f32 %v6404, %v6851
      %v6853 = vpop.f32.mrf.mxu0
      %6854 = vmatprep.mubr.bf16.mxu0 0
      %6855 = vmatmul.mubr.bf16.gmra.mxu0 %v6506
      %v6856 = vpop.f32.mrf.mxu0
      %v6857 = vadd.f32 %v6404, %v6856
      %v6858 = vpop.f32.mrf.mxu0
      %v6859 = vpop.f32.mrf.mxu0
      %v6860 = vadd.f32 %v6404, %v6859
      %v6861 = vpop.f32.mrf.mxu0
      %6862 = vmatprep.mubr.bf16.mxu0 0
      %6863 = vmatmul.mubr.bf16.gmra.mxu0 %v6509
      %v6864 = vpop.f32.mrf.mxu0
      %v6865 = vadd.f32 %v6404, %v6864
      %v6866 = vpop.f32.mrf.mxu0
      %v6867 = vpop.f32.mrf.mxu0
      %v6868 = vadd.f32 %v6404, %v6867
      %v6869 = vpop.f32.mrf.mxu0
      %6870 = vmatprep.mubr.bf16.mxu0 0
      %6871 = vmatmul.mubr.bf16.gmra.mxu0 %v6512
      %v6872 = vpop.f32.mrf.mxu0
      %v6873 = vadd.f32 %v6404, %v6872
      %v6874 = vpop.f32.mrf.mxu0
      %v6875 = vpop.f32.mrf.mxu0
      %v6876 = vadd.f32 %v6404, %v6875
      %v6877 = vpop.f32.mrf.mxu0
      %6878 = vmatprep.mubr.bf16.mxu0 0
      %6879 = vmatmul.mubr.bf16.gmra.mxu0 %v6515
      %v6880 = vpop.f32.mrf.mxu0
      %v6881 = vadd.f32 %v6404, %v6880
      %v6882 = vpop.f32.mrf.mxu0
      %v6883 = vpop.f32.mrf.mxu0
      %v6884 = vadd.f32 %v6404, %v6883
      %v6885 = vpop.f32.mrf.mxu0
      %6886 = vmatprep.mubr.bf16.mxu0 0
      %6887 = vmatmul.mubr.bf16.gmra.mxu0 %v6518
      %v6888 = vpop.f32.mrf.mxu0
      %v6889 = vadd.f32 %v6404, %v6888
      %v6890 = vpop.f32.mrf.mxu0
      %v6891 = vpop.f32.mrf.mxu0
      %v6892 = vadd.f32 %v6404, %v6891
      %v6893 = vpop.f32.mrf.mxu0
      %6894 = vmatprep.mubr.bf16.mxu0 0
      %6895 = vmatmul.mubr.bf16.gmra.mxu0 %v6521
      %v6896 = vpop.f32.mrf.mxu0
      %v6897 = vadd.f32 %v6404, %v6896
      %v6898 = vpop.f32.mrf.mxu0
      %v6899 = vpop.f32.mrf.mxu0
      %v6900 = vadd.f32 %v6404, %v6899
      %v6901 = vpop.f32.mrf.mxu0
      %6902 = vmatprep.mubr.bf16.mxu0 0
      %6903 = vmatmul.mubr.bf16.gmra.mxu0 %v6524
      %v6904 = vpop.f32.mrf.mxu0
      %v6905 = vadd.f32 %v6404, %v6904
      %v6906 = vpop.f32.mrf.mxu0
      %v6907 = vpop.f32.mrf.mxu0
      %v6908 = vadd.f32 %v6404, %v6907
      %v6909 = vpop.f32.mrf.mxu0
      %6910 = vmatprep.mubr.bf16.mxu0 0
      %6911 = vmatmul.mubr.bf16.gmra.mxu0 %v6527
      %v6912 = vpop.f32.mrf.mxu0
      %v6913 = vadd.f32 %v6404, %v6912
      %v6914 = vpop.f32.mrf.mxu0
      %v6915 = vpop.f32.mrf.mxu0
      %v6916 = vadd.f32 %v6404, %v6915
      %v6917 = vpop.f32.mrf.mxu0
      %6918 = vmatprep.mubr.bf16.mxu0 0
      %6919 = vmatmul.mubr.bf16.gmra.mxu0 %v6530
      %v6920 = vpop.f32.mrf.mxu0
      %v6921 = vadd.f32 %v6404, %v6920
      %v6922 = vpop.f32.mrf.mxu0
      %v6923 = vpop.f32.mrf.mxu0
      %v6924 = vadd.f32 %v6404, %v6923
      %v6925 = vpop.f32.mrf.mxu0
      %6926 = vmatprep.mubr.bf16.mxu0 0
      %6927 = vmatmul.mubr.bf16.gmra.mxu0 %v6533
      %v6928 = vpop.f32.mrf.mxu0
      %v6929 = vadd.f32 %v6404, %v6928
      %v6930 = vpop.f32.mrf.mxu0
      %v6931 = vpop.f32.mrf.mxu0
      %v6932 = vadd.f32 %v6404, %v6931
      %v6933 = vpop.f32.mrf.mxu0
      %6934 = vmatprep.mubr.bf16.mxu0 0
      %6935 = vmatmul.mubr.bf16.gmra.mxu0 %v6536
      %v6936 = vpop.f32.mrf.mxu0
      %v6937 = vadd.f32 %v6404, %v6936
      %v6938 = vpop.f32.mrf.mxu0
      %v6939 = vpop.f32.mrf.mxu0
      %v6940 = vadd.f32 %v6404, %v6939
      %v6941 = vpop.f32.mrf.mxu0
      %6942 = vmatprep.mubr.bf16.mxu0 0
      %6943 = vmatmul.mubr.bf16.gmra.mxu0 %v6539
      %v6944 = vpop.f32.mrf.mxu0
      %v6945 = vadd.f32 %v6404, %v6944
      %v6946 = vpop.f32.mrf.mxu0
      %v6947 = vpop.f32.mrf.mxu0
      %v6948 = vadd.f32 %v6404, %v6947
      %v6949 = vpop.f32.mrf.mxu0
      %6950 = vmatprep.mubr.bf16.mxu0 0
      %6951 = vmatmul.mubr.bf16.gmra.mxu0 %v6542
      %v6952 = vpop.f32.mrf.mxu0
      %v6953 = vadd.f32 %v6404, %v6952
      %v6954 = vpop.f32.mrf.mxu0
      %v6955 = vpop.f32.mrf.mxu0
      %v6956 = vadd.f32 %v6404, %v6955
      %v6957 = vpop.f32.mrf.mxu0
      %6958 = vmatprep.mubr.bf16.mxu0 0
      %6959 = vmatmul.mubr.bf16.gmra.mxu0 %v6545
      %v6960 = vpop.f32.mrf.mxu0
      %v6961 = vadd.f32 %v6404, %v6960
      %v6962 = vpop.f32.mrf.mxu0
      %v6963 = vpop.f32.mrf.mxu0
      %v6964 = vadd.f32 %v6404, %v6963
      %v6965 = vpop.f32.mrf.mxu0
      %6966 = vmatprep.mubr.bf16.mxu0 0
      %6967 = vmatmul.mubr.bf16.gmra.mxu0 %v6548
      %v6968 = vpop.f32.mrf.mxu0
      %v6969 = vadd.f32 %v6404, %v6968
      %v6970 = vpop.f32.mrf.mxu0
      %v6971 = vpop.f32.mrf.mxu0
      %v6972 = vadd.f32 %v6404, %v6971
      %v6973 = vpop.f32.mrf.mxu0
      %6974 = vmatprep.mubr.bf16.mxu0 0
      %6975 = vmatmul.mubr.bf16.gmra.mxu0 %v6551
      %v6976 = vpop.f32.mrf.mxu0
      %v6977 = vadd.f32 %v6404, %v6976
      %v6978 = vpop.f32.mrf.mxu0
      %v6979 = vpop.f32.mrf.mxu0
      %v6980 = vadd.f32 %v6404, %v6979
      %v6981 = vpop.f32.mrf.mxu0
      %6982 = vmatprep.mubr.bf16.mxu0 0
      %6983 = vmatmul.mubr.bf16.gmra.mxu0 %v6554
      %v6984 = vpop.f32.mrf.mxu0
      %v6985 = vadd.f32 %v6404, %v6984
      %v6986 = vpop.f32.mrf.mxu0
      %v6987 = vpop.f32.mrf.mxu0
      %v6988 = vadd.f32 %v6404, %v6987
      %v6989 = vpop.f32.mrf.mxu0
      %6990 = vmatprep.mubr.bf16.mxu0 0
      %6991 = vmatmul.mubr.bf16.gmra.mxu0 %v6557
      %v6992 = vpop.f32.mrf.mxu0
      %v6993 = vadd.f32 %v6404, %v6992
      %v6994 = vpop.f32.mrf.mxu0
      %v6995 = vpop.f32.mrf.mxu0
      %v6996 = vadd.f32 %v6404, %v6995
      %v6997 = vpop.f32.mrf.mxu0
      %6998 = vmatprep.mubr.bf16.mxu0 0
      %6999 = vmatmul.mubr.bf16.gmra.mxu0 %v6560
      %v7000 = vpop.f32.mrf.mxu0
      %v7001 = vadd.f32 %v6404, %v7000
      %v7002 = vpop.f32.mrf.mxu0
      %v7003 = vpop.f32.mrf.mxu0
      %v7004 = vadd.f32 %v6404, %v7003
      %v7005 = vpop.f32.mrf.mxu0
      %7006 = vmatprep.mubr.bf16.mxu0 0
      %7007 = vmatmul.mubr.bf16.gmra.mxu0 %v6563
      %v7008 = vpop.f32.mrf.mxu0
      %v7009 = vadd.f32 %v6404, %v7008
      %v7010 = vpop.f32.mrf.mxu0
      %v7011 = vpop.f32.mrf.mxu0
      %v7012 = vadd.f32 %v6404, %v7011
      %v7013 = vpop.f32.mrf.mxu0
      %7014 = vmatprep.mubr.bf16.mxu0 0
      %7015 = vmatmul.mubr.bf16.gmra.mxu0 %v6566
      %v7016 = vpop.f32.mrf.mxu0
      %v7017 = vadd.f32 %v6404, %v7016
      %v7018 = vpop.f32.mrf.mxu0
      %v7019 = vpop.f32.mrf.mxu0
      %v7020 = vadd.f32 %v6404, %v7019
      %v7021 = vpop.f32.mrf.mxu0
      %7022 = vmatprep.mubr.bf16.mxu0 0
      %7023 = vmatmul.mubr.bf16.gmra.mxu0 %v6569
      %v7024 = vpop.f32.mrf.mxu0
      %v7025 = vadd.f32 %v6404, %v7024
      %v7026 = vpop.f32.mrf.mxu0
      %v7027 = vpop.f32.mrf.mxu0
      %v7028 = vadd.f32 %v6404, %v7027
      %v7029 = vpop.f32.mrf.mxu0
      %7030 = vmatprep.mubr.bf16.mxu0 0
      %7031 = vmatmul.mubr.bf16.gmra.mxu0 %v6572
      %v7032 = vpop.f32.mrf.mxu0
      %v7033 = vadd.f32 %v6404, %v7032
      %v7034 = vpop.f32.mrf.mxu0
      %v7035 = vpop.f32.mrf.mxu0
      %v7036 = vadd.f32 %v6404, %v7035
      %v7037 = vpop.f32.mrf.mxu0
      %7038 = vmatprep.mubr.bf16.mxu0 0
      %7039 = vmatmul.mubr.bf16.gmra.mxu0 %v6575
      %v7040 = vpop.f32.mrf.mxu0
      %v7041 = vadd.f32 %v6404, %v7040
      %v7042 = vpop.f32.mrf.mxu0
      %v7043 = vpop.f32.mrf.mxu0
      %v7044 = vadd.f32 %v6404, %v7043
      %v7045 = vpop.f32.mrf.mxu0
      %7046 = vmatprep.mubr.bf16.mxu0 0
      %7047 = vmatmul.mubr.bf16.gmra.mxu0 %v6578
      %v7048 = vpop.f32.mrf.mxu0
      %v7049 = vadd.f32 %v6404, %v7048
      %v7050 = vpop.f32.mrf.mxu0
      %v7051 = vpop.f32.mrf.mxu0
      %v7052 = vadd.f32 %v6404, %v7051
      %v7053 = vpop.f32.mrf.mxu0
      %7054 = vmatprep.mubr.bf16.mxu0 0
      %7055 = vmatmul.mubr.bf16.gmra.mxu0 %v6581
      %v7056 = vpop.f32.mrf.mxu0
      %v7057 = vadd.f32 %v6404, %v7056
      %v7058 = vpop.f32.mrf.mxu0
      %v7059 = vpop.f32.mrf.mxu0
      %v7060 = vadd.f32 %v6404, %v7059
      %v7061 = vpop.f32.mrf.mxu0
      %7062 = vmatprep.mubr.bf16.mxu0 0
      %7063 = vmatmul.mubr.bf16.gmra.mxu0 %v6584
      %v7064 = vpop.f32.mrf.mxu0
      %v7065 = vadd.f32 %v6404, %v7064
      %v7066 = vpop.f32.mrf.mxu0
      %v7067 = vpop.f32.mrf.mxu0
      %v7068 = vadd.f32 %v6404, %v7067
      %v7069 = vpop.f32.mrf.mxu0
      %7070 = vmatprep.mubr.bf16.mxu0 0
      %7071 = vmatmul.mubr.bf16.gmra.mxu0 %v6587
      %v7072 = vpop.f32.mrf.mxu0
      %v7073 = vadd.f32 %v6404, %v7072
      %v7074 = vpop.f32.mrf.mxu0
      %v7075 = vpop.f32.mrf.mxu0
      %v7076 = vadd.f32 %v6404, %v7075
      %v7077 = vpop.f32.mrf.mxu0
      %7078 = vmatprep.mubr.bf16.mxu0 0
      %7079 = vmatmul.mubr.bf16.gmra.mxu0 %v6590
      %v7080 = vpop.f32.mrf.mxu0
      %v7081 = vadd.f32 %v6404, %v7080
      %v7082 = vpop.f32.mrf.mxu0
      %v7083 = vpop.f32.mrf.mxu0
      %v7084 = vadd.f32 %v6404, %v7083
      %v7085 = vpop.f32.mrf.mxu0
      %7086 = vmatprep.mubr.bf16.mxu0 0
      %7087 = vmatmul.mubr.bf16.gmra.mxu0 %v6593
      %v7088 = vpop.f32.mrf.mxu0
      %v7089 = vadd.f32 %v6404, %v7088
      %v7090 = vpop.f32.mrf.mxu0
      %v7091 = vpop.f32.mrf.mxu0
      %v7092 = vadd.f32 %v6404, %v7091
      %v7093 = vpop.f32.mrf.mxu0
      %7094 = vmatprep.mubr.bf16.mxu0 0
      %7095 = vmatmul.mubr.bf16.gmra.mxu0 %v6596
      %v7096 = vpop.f32.mrf.mxu0
      %v7097 = vadd.f32 %v6404, %v7096
      %v7098 = vpop.f32.mrf.mxu0
      %v7099 = vpop.f32.mrf.mxu0
      %v7100 = vadd.f32 %v6404, %v7099
      %v7101 = vpop.f32.mrf.mxu0
      %7102 = vmatprep.mubr.bf16.mxu0 0
      %7103 = vmatmul.mubr.bf16.gmra.mxu0 %v6599
      %v7104 = vpop.f32.mrf.mxu0
      %v7105 = vadd.f32 %v6404, %v7104
      %v7106 = vpop.f32.mrf.mxu0
      %v7107 = vpop.f32.mrf.mxu0
      %v7108 = vadd.f32 %v6404, %v7107
      %v7109 = vpop.f32.mrf.mxu0
      %7110 = vmatprep.mubr.bf16.mxu0 0
      %7111 = vmatmul.mubr.bf16.gmra.mxu0 %v6602
      %v7112 = vpop.f32.mrf.mxu0
      %v7113 = vadd.f32 %v6404, %v7112
      %v7114 = vpop.f32.mrf.mxu0
      %v7115 = vpop.f32.mrf.mxu0
      %v7116 = vadd.f32 %v6404, %v7115
      %v7117 = vpop.f32.mrf.mxu0
      %7118 = vmatprep.mubr.bf16.mxu0 0
      %7119 = vmatmul.mubr.bf16.gmra.mxu0 %v6605
      %v7120 = vpop.f32.mrf.mxu0
      %v7121 = vadd.f32 %v6404, %v7120
      %v7122 = vpop.f32.mrf.mxu0
      %v7123 = vpop.f32.mrf.mxu0
      %v7124 = vadd.f32 %v6404, %v7123
      %v7125 = vpop.f32.mrf.mxu0
      %7126 = vmatprep.mubr.bf16.mxu0 0
      %7127 = vmatmul.mubr.bf16.gmra.mxu0 %v6608
      %v7128 = vpop.f32.mrf.mxu0
      %v7129 = vadd.f32 %v6404, %v7128
      %v7130 = vpop.f32.mrf.mxu0
      %v7131 = vpop.f32.mrf.mxu0
      %v7132 = vadd.f32 %v6404, %v7131
      %v7133 = vpop.f32.mrf.mxu0
      %7134 = vmatprep.mubr.bf16.mxu0 0
      %7135 = vmatmul.mubr.bf16.gmra.mxu0 %v6611
      %v7136 = vpop.f32.mrf.mxu0
      %v7137 = vadd.f32 %v6404, %v7136
      %v7138 = vpop.f32.mrf.mxu0
      %v7139 = vpop.f32.mrf.mxu0
      %v7140 = vadd.f32 %v6404, %v7139
      %v7141 = vpop.f32.mrf.mxu0
      %7142 = vmatprep.mubr.bf16.mxu0 0
      %7143 = vmatmul.mubr.bf16.gmra.mxu0 %v6614
      %v7144 = vpop.f32.mrf.mxu0
      %v7145 = vadd.f32 %v6404, %v7144
      %v7146 = vpop.f32.mrf.mxu0
      %v7147 = vpop.f32.mrf.mxu0
      %v7148 = vadd.f32 %v6404, %v7147
      %v7149 = vpop.f32.mrf.mxu0
      %7150 = vmatprep.mubr.bf16.mxu0 0
      %7151 = vmatmul.mubr.bf16.gmra.mxu0 %v6617
      %v7152 = vpop.f32.mrf.mxu0
      %v7153 = vadd.f32 %v6404, %v7152
      %v7154 = vpop.f32.mrf.mxu0
      %v7155 = vpop.f32.mrf.mxu0
      %v7156 = vadd.f32 %v6404, %v7155
      %v7157 = vpop.f32.mrf.mxu0
      %7158 = vmatprep.mubr.bf16.mxu0 0
      %7159 = vmatmul.mubr.bf16.gmra.mxu0 %v6620
      %v7160 = vpop.f32.mrf.mxu0
      %v7161 = vadd.f32 %v6404, %v7160
      %v7162 = vpop.f32.mrf.mxu0
      %v7163 = vpop.f32.mrf.mxu0
      %v7164 = vadd.f32 %v6404, %v7163
      %v7165 = vpop.f32.mrf.mxu0
      %7166 = vdwg.mxu0
      %v7167 = vsel %vm1323, %v6657, -inf
      %v7168 = vsel %vm1323, %v6913, -inf
      %v7169 = vmax.f32 %v7167, %v7168
      %v7170 = vsel %vm1323, %v6660, -inf
      %v7171 = vsel %vm1323, %v6916, -inf
      %v7172 = vmax.f32 %v7170, %v7171
      %v7173 = vsel %vm1323, %v6665, -inf
      %v7174 = vsel %vm1323, %v6921, -inf
      %v7175 = vmax.f32 %v7173, %v7174
      %v7176 = vsel %vm1323, %v6668, -inf
      %v7177 = vsel %vm1323, %v6924, -inf
      %v7178 = vmax.f32 %v7176, %v7177
      %v7179 = vsel %vm1323, %v6673, -inf
      %v7180 = vsel %vm1323, %v6929, -inf
      %v7181 = vmax.f32 %v7179, %v7180
      %v7182 = vsel %vm1323, %v6676, -inf
      %v7183 = vsel %vm1323, %v6932, -inf
      %v7184 = vmax.f32 %v7182, %v7183
      %v7185 = vsel %vm1323, %v6681, -inf
      %v7186 = vsel %vm1323, %v6937, -inf
      %v7187 = vmax.f32 %v7185, %v7186
      %v7188 = vsel %vm1323, %v6684, -inf
      %v7189 = vsel %vm1323, %v6940, -inf
      %v7190 = vmax.f32 %v7188, %v7189
      %v7191 = vsel %vm1323, %v6689, -inf
      %v7192 = vsel %vm1323, %v6945, -inf
      %v7193 = vmax.f32 %v7191, %v7192
      %v7194 = vsel %vm1323, %v6692, -inf
      %v7195 = vsel %vm1323, %v6948, -inf
      %v7196 = vmax.f32 %v7194, %v7195
      %v7197 = vsel %vm1323, %v6697, -inf
      %v7198 = vsel %vm1323, %v6953, -inf
      %v7199 = vmax.f32 %v7197, %v7198
      %v7200 = vsel %vm1323, %v6700, -inf
      %v7201 = vsel %vm1323, %v6956, -inf
      %v7202 = vmax.f32 %v7200, %v7201
      %v7203 = vsel %vm1323, %v6705, -inf
      %v7204 = vsel %vm1323, %v6961, -inf
      %v7205 = vmax.f32 %v7203, %v7204
      %v7206 = vsel %vm1323, %v6708, -inf
      %v7207 = vsel %vm1323, %v6964, -inf
      %v7208 = vmax.f32 %v7206, %v7207
      %v7209 = vsel %vm1323, %v6713, -inf
      %v7210 = vsel %vm1323, %v6969, -inf
      %v7211 = vmax.f32 %v7209, %v7210
      %v7212 = vsel %vm1323, %v6716, -inf
      %v7213 = vsel %vm1323, %v6972, -inf
      %v7214 = vmax.f32 %v7212, %v7213
      %v7215 = vsel %vm1323, %v6721, -inf
      %v7216 = vsel %vm1323, %v6977, -inf
      %v7217 = vmax.f32 %v7215, %v7216
      %v7218 = vsel %vm1323, %v6724, -inf
      %v7219 = vsel %vm1323, %v6980, -inf
      %v7220 = vmax.f32 %v7218, %v7219
      %v7221 = vsel %vm1323, %v6729, -inf
      %v7222 = vsel %vm1323, %v6985, -inf
      %v7223 = vmax.f32 %v7221, %v7222
      %v7224 = vsel %vm1323, %v6732, -inf
      %v7225 = vsel %vm1323, %v6988, -inf
      %v7226 = vmax.f32 %v7224, %v7225
      %v7227 = vsel %vm1323, %v6737, -inf
      %v7228 = vsel %vm1323, %v6993, -inf
      %v7229 = vmax.f32 %v7227, %v7228
      %v7230 = vsel %vm1323, %v6740, -inf
      %v7231 = vsel %vm1323, %v6996, -inf
      %v7232 = vmax.f32 %v7230, %v7231
      %v7233 = vsel %vm1323, %v6745, -inf
      %v7234 = vsel %vm1323, %v7001, -inf
      %v7235 = vmax.f32 %v7233, %v7234
      %v7236 = vsel %vm1323, %v6748, -inf
      %v7237 = vsel %vm1323, %v7004, -inf
      %v7238 = vmax.f32 %v7236, %v7237
      %v7239 = vsel %vm1323, %v6753, -inf
      %v7240 = vsel %vm1323, %v7009, -inf
      %v7241 = vmax.f32 %v7239, %v7240
      %v7242 = vsel %vm1323, %v6756, -inf
      %v7243 = vsel %vm1323, %v7012, -inf
      %v7244 = vmax.f32 %v7242, %v7243
      %v7245 = vsel %vm1323, %v6761, -inf
      %v7246 = vsel %vm1323, %v7017, -inf
      %v7247 = vmax.f32 %v7245, %v7246
      %v7248 = vsel %vm1323, %v6764, -inf
      %v7249 = vsel %vm1323, %v7020, -inf
      %v7250 = vmax.f32 %v7248, %v7249
      %v7251 = vsel %vm1323, %v6769, -inf
      %v7252 = vsel %vm1323, %v7025, -inf
      %v7253 = vmax.f32 %v7251, %v7252
      %v7254 = vsel %vm1323, %v6772, -inf
      %v7255 = vsel %vm1323, %v7028, -inf
      %v7256 = vmax.f32 %v7254, %v7255
      %v7257 = vsel %vm1323, %v6777, -inf
      %v7258 = vsel %vm1323, %v7033, -inf
      %v7259 = vmax.f32 %v7257, %v7258
      %v7260 = vsel %vm1323, %v6780, -inf
      %v7261 = vsel %vm1323, %v7036, -inf
      %v7262 = vmax.f32 %v7260, %v7261
      %v7263 = vsel %vm1323, %v6785, -inf
      %v7264 = vsel %vm1323, %v7041, -inf
      %v7265 = vmax.f32 %v7263, %v7264
      %v7266 = vsel %vm1323, %v6788, -inf
      %v7267 = vsel %vm1323, %v7044, -inf
      %v7268 = vmax.f32 %v7266, %v7267
      %v7269 = vsel %vm1323, %v6793, -inf
      %v7270 = vsel %vm1323, %v7049, -inf
      %v7271 = vmax.f32 %v7269, %v7270
      %v7272 = vsel %vm1323, %v6796, -inf
      %v7273 = vsel %vm1323, %v7052, -inf
      %v7274 = vmax.f32 %v7272, %v7273
      %v7275 = vsel %vm1323, %v6801, -inf
      %v7276 = vsel %vm1323, %v7057, -inf
      %v7277 = vmax.f32 %v7275, %v7276
      %v7278 = vsel %vm1323, %v6804, -inf
      %v7279 = vsel %vm1323, %v7060, -inf
      %v7280 = vmax.f32 %v7278, %v7279
      %v7281 = vsel %vm1323, %v6809, -inf
      %v7282 = vsel %vm1323, %v7065, -inf
      %v7283 = vmax.f32 %v7281, %v7282
      %v7284 = vsel %vm1323, %v6812, -inf
      %v7285 = vsel %vm1323, %v7068, -inf
      %v7286 = vmax.f32 %v7284, %v7285
      %v7287 = vsel %vm1323, %v6817, -inf
      %v7288 = vsel %vm1323, %v7073, -inf
      %v7289 = vmax.f32 %v7287, %v7288
      %v7290 = vsel %vm1323, %v6820, -inf
      %v7291 = vsel %vm1323, %v7076, -inf
      %v7292 = vmax.f32 %v7290, %v7291
      %v7293 = vsel %vm1323, %v6825, -inf
      %v7294 = vsel %vm1323, %v7081, -inf
      %v7295 = vmax.f32 %v7293, %v7294
      %v7296 = vsel %vm1323, %v6828, -inf
      %v7297 = vsel %vm1323, %v7084, -inf
      %v7298 = vmax.f32 %v7296, %v7297
      %v7299 = vsel %vm1323, %v6833, -inf
      %v7300 = vsel %vm1323, %v7089, -inf
      %v7301 = vmax.f32 %v7299, %v7300
      %v7302 = vsel %vm1323, %v6836, -inf
      %v7303 = vsel %vm1323, %v7092, -inf
      %v7304 = vmax.f32 %v7302, %v7303
      %v7305 = vsel %vm1323, %v6841, -inf
      %v7306 = vsel %vm1323, %v7097, -inf
      %v7307 = vmax.f32 %v7305, %v7306
      %v7308 = vsel %vm1323, %v6844, -inf
      %v7309 = vsel %vm1323, %v7100, -inf
      %v7310 = vmax.f32 %v7308, %v7309
      %v7311 = vsel %vm1323, %v6849, -inf
      %v7312 = vsel %vm1323, %v7105, -inf
      %v7313 = vmax.f32 %v7311, %v7312
      %v7314 = vsel %vm1323, %v6852, -inf
      %v7315 = vsel %vm1323, %v7108, -inf
      %v7316 = vmax.f32 %v7314, %v7315
      %v7317 = vsel %vm1323, %v6857, -inf
      %v7318 = vsel %vm1323, %v7113, -inf
      %v7319 = vmax.f32 %v7317, %v7318
      %v7320 = vsel %vm1323, %v6860, -inf
      %v7321 = vsel %vm1323, %v7116, -inf
      %v7322 = vmax.f32 %v7320, %v7321
      %v7323 = vsel %vm1323, %v6865, -inf
      %v7324 = vsel %vm1323, %v7121, -inf
      %v7325 = vmax.f32 %v7323, %v7324
      %v7326 = vsel %vm1323, %v6868, -inf
      %v7327 = vsel %vm1323, %v7124, -inf
      %v7328 = vmax.f32 %v7326, %v7327
      %v7329 = vsel %vm1323, %v6873, -inf
      %v7330 = vsel %vm1323, %v7129, -inf
      %v7331 = vmax.f32 %v7329, %v7330
      %v7332 = vsel %vm1323, %v6876, -inf
      %v7333 = vsel %vm1323, %v7132, -inf
      %v7334 = vmax.f32 %v7332, %v7333
      %v7335 = vsel %vm1323, %v6881, -inf
      %v7336 = vsel %vm1323, %v7137, -inf
      %v7337 = vmax.f32 %v7335, %v7336
      %v7338 = vsel %vm1323, %v6884, -inf
      %v7339 = vsel %vm1323, %v7140, -inf
      %v7340 = vmax.f32 %v7338, %v7339
      %v7341 = vsel %vm1323, %v6889, -inf
      %v7342 = vsel %vm1323, %v7145, -inf
      %v7343 = vmax.f32 %v7341, %v7342
      %v7344 = vsel %vm1323, %v6892, -inf
      %v7345 = vsel %vm1323, %v7148, -inf
      %v7346 = vmax.f32 %v7344, %v7345
      %v7347 = vsel %vm1323, %v6897, -inf
      %v7348 = vsel %vm1323, %v7153, -inf
      %v7349 = vmax.f32 %v7347, %v7348
      %v7350 = vsel %vm1323, %v6900, -inf
      %v7351 = vsel %vm1323, %v7156, -inf
      %v7352 = vmax.f32 %v7350, %v7351
      %v7353 = vsel %vm1323, %v6905, -inf
      %v7354 = vsel %vm1323, %v7161, -inf
      %v7355 = vmax.f32 %v7353, %v7354
      %v7356 = vsel %vm1323, %v6908, -inf
      %v7357 = vsel %vm1323, %v7164, -inf
      %v7358 = vmax.f32 %v7356, %v7357
      %v7359 = vmax.f32 %v6657, 0.0
      %v7360 = vmax.f32 %v6660, 0.0
      %v7361 = vmax.f32 %v6665, 0.0
      %v7362 = vmax.f32 %v6668, 0.0
      %v7363 = vmax.f32 %v6673, 0.0
      %v7364 = vmax.f32 %v6676, 0.0
      %v7365 = vmax.f32 %v6681, 0.0
      %v7366 = vmax.f32 %v6684, 0.0
      %v7367 = vmax.f32 %v6689, 0.0
      %v7368 = vmax.f32 %v6692, 0.0
      %v7369 = vmax.f32 %v6697, 0.0
      %v7370 = vmax.f32 %v6700, 0.0
      %v7371 = vmax.f32 %v6705, 0.0
      %v7372 = vmax.f32 %v6708, 0.0
      %v7373 = vmax.f32 %v6713, 0.0
      %v7374 = vmax.f32 %v6716, 0.0
      %v7375 = vmax.f32 %v6721, 0.0
      %v7376 = vmax.f32 %v6724, 0.0
      %v7377 = vmax.f32 %v6729, 0.0
      %v7378 = vmax.f32 %v6732, 0.0
      %v7379 = vmax.f32 %v6737, 0.0
      %v7380 = vmax.f32 %v6740, 0.0
      %v7381 = vmax.f32 %v6745, 0.0
      %v7382 = vmax.f32 %v6748, 0.0
      %v7383 = vmax.f32 %v6753, 0.0
      %v7384 = vmax.f32 %v6756, 0.0
      %v7385 = vmax.f32 %v6761, 0.0
      %v7386 = vmax.f32 %v6764, 0.0
      %v7387 = vmax.f32 %v6769, 0.0
      %v7388 = vmax.f32 %v6772, 0.0
      %v7389 = vmax.f32 %v6777, 0.0
      %v7390 = vmax.f32 %v6780, 0.0
      %v7391 = vmax.f32 %v6785, 0.0
      %v7392 = vmax.f32 %v6788, 0.0
      %v7393 = vmax.f32 %v6793, 0.0
      %v7394 = vmax.f32 %v6796, 0.0
      %v7395 = vmax.f32 %v6801, 0.0
      %v7396 = vmax.f32 %v6804, 0.0
      %v7397 = vmax.f32 %v6809, 0.0
      %v7398 = vmax.f32 %v6812, 0.0
      %v7399 = vmax.f32 %v6817, 0.0
      %v7400 = vmax.f32 %v6820, 0.0
      %v7401 = vmax.f32 %v6825, 0.0
      %v7402 = vmax.f32 %v6828, 0.0
      %v7403 = vmax.f32 %v6833, 0.0
      %v7404 = vmax.f32 %v6836, 0.0
      %v7405 = vmax.f32 %v6841, 0.0
      %v7406 = vmax.f32 %v6844, 0.0
      %v7407 = vmax.f32 %v6849, 0.0
      %v7408 = vmax.f32 %v6852, 0.0
      %v7409 = vmax.f32 %v6857, 0.0
      %v7410 = vmax.f32 %v6860, 0.0
      %v7411 = vmax.f32 %v6865, 0.0
      %v7412 = vmax.f32 %v6868, 0.0
      %v7413 = vmax.f32 %v6873, 0.0
      %v7414 = vmax.f32 %v6876, 0.0
      %v7415 = vmax.f32 %v6881, 0.0
      %v7416 = vmax.f32 %v6884, 0.0
      %v7417 = vmax.f32 %v6889, 0.0
      %v7418 = vmax.f32 %v6892, 0.0
      %v7419 = vmax.f32 %v6897, 0.0
      %v7420 = vmax.f32 %v6900, 0.0
      %v7421 = vmax.f32 %v6905, 0.0
      %v7422 = vmax.f32 %v6908, 0.0
      %v7423 = vmax.f32 %v6913, 0.0
      %v7424 = vmax.f32 %v6916, 0.0
      %v7425 = vmax.f32 %v6921, 0.0
      %v7426 = vmax.f32 %v6924, 0.0
      %v7427 = vmax.f32 %v6929, 0.0
      %v7428 = vmax.f32 %v6932, 0.0
      %v7429 = vmax.f32 %v6937, 0.0
      %v7430 = vmax.f32 %v6940, 0.0
      %v7431 = vmax.f32 %v6945, 0.0
      %v7432 = vmax.f32 %v6948, 0.0
      %v7433 = vmax.f32 %v6953, 0.0
      %v7434 = vmax.f32 %v6956, 0.0
      %v7435 = vmax.f32 %v6961, 0.0
      %v7436 = vmax.f32 %v6964, 0.0
      %v7437 = vmax.f32 %v6969, 0.0
      %v7438 = vmax.f32 %v6972, 0.0
      %v7439 = vmax.f32 %v6977, 0.0
      %v7440 = vmax.f32 %v6980, 0.0
      %v7441 = vmax.f32 %v6985, 0.0
      %v7442 = vmax.f32 %v6988, 0.0
      %v7443 = vmax.f32 %v6993, 0.0
      %v7444 = vmax.f32 %v6996, 0.0
      %v7445 = vmax.f32 %v7001, 0.0
      %v7446 = vmax.f32 %v7004, 0.0
      %v7447 = vmax.f32 %v7009, 0.0
      %v7448 = vmax.f32 %v7012, 0.0
      %v7449 = vmax.f32 %v7017, 0.0
      %v7450 = vmax.f32 %v7020, 0.0
      %v7451 = vmax.f32 %v7025, 0.0
      %v7452 = vmax.f32 %v7028, 0.0
      %v7453 = vmax.f32 %v7033, 0.0
      %v7454 = vmax.f32 %v7036, 0.0
      %v7455 = vmax.f32 %v7041, 0.0
      %v7456 = vmax.f32 %v7044, 0.0
      %v7457 = vmax.f32 %v7049, 0.0
      %v7458 = vmax.f32 %v7052, 0.0
      %v7459 = vmax.f32 %v7057, 0.0
      %v7460 = vmax.f32 %v7060, 0.0
      %v7461 = vmax.f32 %v7065, 0.0
      %v7462 = vmax.f32 %v7068, 0.0
      %v7463 = vmax.f32 %v7073, 0.0
      %v7464 = vmax.f32 %v7076, 0.0
      %v7465 = vmax.f32 %v7081, 0.0
      %v7466 = vmax.f32 %v7084, 0.0
      %v7467 = vmax.f32 %v7089, 0.0
      %v7468 = vmax.f32 %v7092, 0.0
      %v7469 = vmax.f32 %v7097, 0.0
      %v7470 = vmax.f32 %v7100, 0.0
      %v7471 = vmax.f32 %v7105, 0.0
      %v7472 = vmax.f32 %v7108, 0.0
      %v7473 = vmax.f32 %v7113, 0.0
      %v7474 = vmax.f32 %v7116, 0.0
      %v7475 = vmax.f32 %v7121, 0.0
      %v7476 = vmax.f32 %v7124, 0.0
      %v7477 = vmax.f32 %v7129, 0.0
      %v7478 = vmax.f32 %v7132, 0.0
      %v7479 = vmax.f32 %v7137, 0.0
      %v7480 = vmax.f32 %v7140, 0.0
      %v7481 = vmax.f32 %v7145, 0.0
      %v7482 = vmax.f32 %v7148, 0.0
      %v7483 = vmax.f32 %v7153, 0.0
      %v7484 = vmax.f32 %v7156, 0.0
      %v7485 = vmax.f32 %v7161, 0.0
      %v7486 = vmax.f32 %v7164, 0.0
      %s7487 = scalar_lea.vmem %s3, 192
      %v7488 = vld [vmem:[%s7487] sm:$0xf]
      %v7489 = vld [vmem:[%s7487 + $0x4] sm:$0xf]
      %v7490 = vld [vmem:[%s7487 + $0x8] sm:$0xf]
      %v7491 = vld [vmem:[%s7487 + $0xc] sm:$0xf]
      %v7492 = vld [vmem:[%s7487 + $0x10] sm:$0xf]
      %v7493 = vld [vmem:[%s7487 + $0x14] sm:$0xf]
      %v7494 = vld [vmem:[%s7487 + $0x18] sm:$0xf]
      %v7495 = vld [vmem:[%s7487 + $0x1c] sm:$0xf]
      %v7496 = vpack.c.bf16 %v7360, %v7359
      %v7497 = vpack.c.bf16 %v7362, %v7361
      %v7498 = vpack.c.bf16 %v7364, %v7363
      %v7499 = vpack.c.bf16 %v7366, %v7365
      %v7500 = vpack.c.bf16 %v7368, %v7367
      %v7501 = vpack.c.bf16 %v7370, %v7369
      %v7502 = vpack.c.bf16 %v7372, %v7371
      %v7503 = vpack.c.bf16 %v7374, %v7373
      %v7504 = vpack.c.bf16 %v7376, %v7375
      %v7505 = vpack.c.bf16 %v7378, %v7377
      %v7506 = vpack.c.bf16 %v7380, %v7379
      %v7507 = vpack.c.bf16 %v7382, %v7381
      %v7508 = vpack.c.bf16 %v7384, %v7383
      %v7509 = vpack.c.bf16 %v7386, %v7385
      %v7510 = vpack.c.bf16 %v7388, %v7387
      %v7511 = vpack.c.bf16 %v7390, %v7389
      %v7512 = vpack.c.bf16 %v7392, %v7391
      %v7513 = vpack.c.bf16 %v7394, %v7393
      %v7514 = vpack.c.bf16 %v7396, %v7395
      %v7515 = vpack.c.bf16 %v7398, %v7397
      %v7516 = vpack.c.bf16 %v7400, %v7399
      %v7517 = vpack.c.bf16 %v7402, %v7401
      %v7518 = vpack.c.bf16 %v7404, %v7403
      %v7519 = vpack.c.bf16 %v7406, %v7405
      %v7520 = vpack.c.bf16 %v7408, %v7407
      %v7521 = vpack.c.bf16 %v7410, %v7409
      %v7522 = vpack.c.bf16 %v7412, %v7411
      %v7523 = vpack.c.bf16 %v7414, %v7413
      %v7524 = vpack.c.bf16 %v7416, %v7415
      %v7525 = vpack.c.bf16 %v7418, %v7417
      %v7526 = vpack.c.bf16 %v7420, %v7419
      %v7527 = vpack.c.bf16 %v7422, %v7421
      %v7528 = vpack.c.bf16 %v7424, %v7423
      %v7529 = vpack.c.bf16 %v7426, %v7425
      %v7530 = vpack.c.bf16 %v7428, %v7427
      %v7531 = vpack.c.bf16 %v7430, %v7429
      %v7532 = vpack.c.bf16 %v7432, %v7431
      %v7533 = vpack.c.bf16 %v7434, %v7433
      %v7534 = vpack.c.bf16 %v7436, %v7435
      %v7535 = vpack.c.bf16 %v7438, %v7437
      %v7536 = vpack.c.bf16 %v7440, %v7439
      %v7537 = vpack.c.bf16 %v7442, %v7441
      %v7538 = vpack.c.bf16 %v7444, %v7443
      %v7539 = vpack.c.bf16 %v7446, %v7445
      %v7540 = vpack.c.bf16 %v7448, %v7447
      %v7541 = vpack.c.bf16 %v7450, %v7449
      %v7542 = vpack.c.bf16 %v7452, %v7451
      %v7543 = vpack.c.bf16 %v7454, %v7453
      %v7544 = vpack.c.bf16 %v7456, %v7455
      %v7545 = vpack.c.bf16 %v7458, %v7457
      %v7546 = vpack.c.bf16 %v7460, %v7459
      %v7547 = vpack.c.bf16 %v7462, %v7461
      %v7548 = vpack.c.bf16 %v7464, %v7463
      %v7549 = vpack.c.bf16 %v7466, %v7465
      %v7550 = vpack.c.bf16 %v7468, %v7467
      %v7551 = vpack.c.bf16 %v7470, %v7469
      %v7552 = vpack.c.bf16 %v7472, %v7471
      %v7553 = vpack.c.bf16 %v7474, %v7473
      %v7554 = vpack.c.bf16 %v7476, %v7475
      %v7555 = vpack.c.bf16 %v7478, %v7477
      %v7556 = vpack.c.bf16 %v7480, %v7479
      %v7557 = vpack.c.bf16 %v7482, %v7481
      %v7558 = vpack.c.bf16 %v7484, %v7483
      %v7559 = vpack.c.bf16 %v7486, %v7485
      %v7568 = vunpack.c.l.b16 %v7488
      %v7569 = vunpack.c.l.b16 %v7489
      %v7570 = vunpack.c.l.b16 %v7490
      %v7571 = vunpack.c.l.b16 %v7491
      %v7572 = vunpack.c.l.b16 %v7492
      %v7573 = vunpack.c.l.b16 %v7493
      %v7574 = vunpack.c.l.b16 %v7494
      %v7575 = vunpack.c.l.b16 %v7495
      %v7576 = vpack.c.b16 %v7569, %v7568
      %v7577 = vpack.c.b16 %v7571, %v7570
      %v7578 = vpack.c.b16 %v7573, %v7572
      %v7579 = vpack.c.b16 %v7575, %v7574
      %v7585 = vsel %vm1323, %v7496, 0
      %v7588 = vsel %vm1323, %v7497, 0
      %v7591 = vsel %vm1323, %v7498, 0
      %v7594 = vsel %vm1323, %v7499, 0
      %v7597 = vsel %vm1323, %v7500, 0
      %v7600 = vsel %vm1323, %v7501, 0
      %v7603 = vsel %vm1323, %v7502, 0
      %v7606 = vsel %vm1323, %v7503, 0
      %v7609 = vsel %vm1323, %v7504, 0
      %v7612 = vsel %vm1323, %v7505, 0
      %v7615 = vsel %vm1323, %v7506, 0
      %v7618 = vsel %vm1323, %v7507, 0
      %v7621 = vsel %vm1323, %v7508, 0
      %v7624 = vsel %vm1323, %v7509, 0
      %v7627 = vsel %vm1323, %v7510, 0
      %v7630 = vsel %vm1323, %v7511, 0
      %v7633 = vsel %vm1323, %v7512, 0
      %v7636 = vsel %vm1323, %v7513, 0
      %v7639 = vsel %vm1323, %v7514, 0
      %v7642 = vsel %vm1323, %v7515, 0
      %v7645 = vsel %vm1323, %v7516, 0
      %v7648 = vsel %vm1323, %v7517, 0
      %v7651 = vsel %vm1323, %v7518, 0
      %v7654 = vsel %vm1323, %v7519, 0
      %v7657 = vsel %vm1323, %v7520, 0
      %v7660 = vsel %vm1323, %v7521, 0
      %v7663 = vsel %vm1323, %v7522, 0
      %v7666 = vsel %vm1323, %v7523, 0
      %v7669 = vsel %vm1323, %v7524, 0
      %v7672 = vsel %vm1323, %v7525, 0
      %v7675 = vsel %vm1323, %v7526, 0
      %v7678 = vsel %vm1323, %v7527, 0
      %v7681 = vsel %vm1323, %v7528, 0
      %v7684 = vsel %vm1323, %v7529, 0
      %v7687 = vsel %vm1323, %v7530, 0
      %v7690 = vsel %vm1323, %v7531, 0
      %v7693 = vsel %vm1323, %v7532, 0
      %v7696 = vsel %vm1323, %v7533, 0
      %v7699 = vsel %vm1323, %v7534, 0
      %v7702 = vsel %vm1323, %v7535, 0
      %v7705 = vsel %vm1323, %v7536, 0
      %v7708 = vsel %vm1323, %v7537, 0
      %v7711 = vsel %vm1323, %v7538, 0
      %v7714 = vsel %vm1323, %v7539, 0
      %v7717 = vsel %vm1323, %v7540, 0
      %v7720 = vsel %vm1323, %v7541, 0
      %v7723 = vsel %vm1323, %v7542, 0
      %v7726 = vsel %vm1323, %v7543, 0
      %v7729 = vsel %vm1323, %v7544, 0
      %v7732 = vsel %vm1323, %v7545, 0
      %v7735 = vsel %vm1323, %v7546, 0
      %v7738 = vsel %vm1323, %v7547, 0
      %v7741 = vsel %vm1323, %v7548, 0
      %v7744 = vsel %vm1323, %v7549, 0
      %v7747 = vsel %vm1323, %v7550, 0
      %v7750 = vsel %vm1323, %v7551, 0
      %v7753 = vsel %vm1323, %v7552, 0
      %v7756 = vsel %vm1323, %v7553, 0
      %v7759 = vsel %vm1323, %v7554, 0
      %v7762 = vsel %vm1323, %v7555, 0
      %v7765 = vsel %vm1323, %v7556, 0
      %v7768 = vsel %vm1323, %v7557, 0
      %v7771 = vsel %vm1323, %v7558, 0
      %v7774 = vsel %vm1323, %v7559, 0
      %7776 = vmatprep.subr.bf16.mxu0 0
      %7777 = vmatpush1.bf16.msra.mxu0 0
      %7778 = vmatprep.subr.bf16.mxu0 0
      %7779 = vmatpush1.bf16.msra.mxu0 0
      %7780 = vmatprep.subr.bf16.mxu0 0
      %7781 = vmatpush1.bf16.msra.mxu0 0
      %7782 = vmatprep.subr.bf16.mxu0 0
      %7783 = vmatpush1.bf16.msra.mxu0 0
      %7784 = vmatprep.subr.bf16.mxu0 0
      %7785 = vmatpush1.bf16.msra.mxu0 %v7579
      %7786 = vmatprep.subr.bf16.mxu0 0
      %7787 = vmatpush1.bf16.msra.mxu0 %v7578
      %7788 = vmatprep.subr.bf16.mxu0 0
      %7789 = vmatpush1.bf16.msra.mxu0 %v7577
      %7790 = vmatprep.subr.bf16.mxu0 0
      %7791 = vmatpush1.bf16.msra.mxu0 %v7576
      %7792 = vmatprep.subr.bf16.mxu0 0
      %7793 = vmatpush2.bf16.msra.mxu0 0
      %7794 = vmatprep.subr.bf16.mxu0 0
      %7795 = vmatpush2.bf16.msra.mxu0 0
      %7796 = vmatprep.subr.bf16.mxu0 0
      %7797 = vmatpush2.bf16.msra.mxu0 0
      %7798 = vmatprep.subr.bf16.mxu0 0
      %7799 = vmatpush2.bf16.msra.mxu0 0
      %7800 = vmatprep.subr.bf16.mxu0 0
      %7801 = vmatpush2.bf16.msra.mxu0 0
      %7802 = vmatprep.subr.bf16.mxu0 0
      %7803 = vmatpush2.bf16.msra.mxu0 0
      %7804 = vmatprep.subr.bf16.mxu0 0
      %7805 = vmatpush2.bf16.msra.mxu0 0
      %7806 = vmatprep.subr.bf16.mxu0 0
      %7807 = vmatpush2.bf16.msra.mxu0 0
      %7808 = vmatprep.mubr.bf16.mxu0 0
      %7809 = vmatmul.mubr.bf16.gmra.mxu0 %v7585
      %v7810 = vpop.f32.mrf.mxu0
      %v7811 = vadd.f32 0.0, %v7810
      %v7812 = vpop.f32.mrf.mxu0
      %v7813 = vpop.f32.mrf.mxu0
      %v7814 = vadd.f32 0.0, %v7813
      %v7815 = vpop.f32.mrf.mxu0
      %7816 = vmatprep.mubr.bf16.mxu0 0
      %7817 = vmatmul.mubr.bf16.gmra.mxu0 %v7588
      %v7818 = vpop.f32.mrf.mxu0
      %v7819 = vadd.f32 0.0, %v7818
      %v7820 = vpop.f32.mrf.mxu0
      %v7821 = vpop.f32.mrf.mxu0
      %v7822 = vadd.f32 0.0, %v7821
      %v7823 = vpop.f32.mrf.mxu0
      %7824 = vmatprep.mubr.bf16.mxu0 0
      %7825 = vmatmul.mubr.bf16.gmra.mxu0 %v7591
      %v7826 = vpop.f32.mrf.mxu0
      %v7827 = vadd.f32 0.0, %v7826
      %v7828 = vpop.f32.mrf.mxu0
      %v7829 = vpop.f32.mrf.mxu0
      %v7830 = vadd.f32 0.0, %v7829
      %v7831 = vpop.f32.mrf.mxu0
      %7832 = vmatprep.mubr.bf16.mxu0 0
      %7833 = vmatmul.mubr.bf16.gmra.mxu0 %v7594
      %v7834 = vpop.f32.mrf.mxu0
      %v7835 = vadd.f32 0.0, %v7834
      %v7836 = vpop.f32.mrf.mxu0
      %v7837 = vpop.f32.mrf.mxu0
      %v7838 = vadd.f32 0.0, %v7837
      %v7839 = vpop.f32.mrf.mxu0
      %7840 = vmatprep.mubr.bf16.mxu0 0
      %7841 = vmatmul.mubr.bf16.gmra.mxu0 %v7597
      %v7842 = vpop.f32.mrf.mxu0
      %v7843 = vadd.f32 0.0, %v7842
      %v7844 = vpop.f32.mrf.mxu0
      %v7845 = vpop.f32.mrf.mxu0
      %v7846 = vadd.f32 0.0, %v7845
      %v7847 = vpop.f32.mrf.mxu0
      %7848 = vmatprep.mubr.bf16.mxu0 0
      %7849 = vmatmul.mubr.bf16.gmra.mxu0 %v7600
      %v7850 = vpop.f32.mrf.mxu0
      %v7851 = vadd.f32 0.0, %v7850
      %v7852 = vpop.f32.mrf.mxu0
      %v7853 = vpop.f32.mrf.mxu0
      %v7854 = vadd.f32 0.0, %v7853
      %v7855 = vpop.f32.mrf.mxu0
      %7856 = vmatprep.mubr.bf16.mxu0 0
      %7857 = vmatmul.mubr.bf16.gmra.mxu0 %v7603
      %v7858 = vpop.f32.mrf.mxu0
      %v7859 = vadd.f32 0.0, %v7858
      %v7860 = vpop.f32.mrf.mxu0
      %v7861 = vpop.f32.mrf.mxu0
      %v7862 = vadd.f32 0.0, %v7861
      %v7863 = vpop.f32.mrf.mxu0
      %7864 = vmatprep.mubr.bf16.mxu0 0
      %7865 = vmatmul.mubr.bf16.gmra.mxu0 %v7606
      %v7866 = vpop.f32.mrf.mxu0
      %v7867 = vadd.f32 0.0, %v7866
      %v7868 = vpop.f32.mrf.mxu0
      %v7869 = vpop.f32.mrf.mxu0
      %v7870 = vadd.f32 0.0, %v7869
      %v7871 = vpop.f32.mrf.mxu0
      %7872 = vmatprep.mubr.bf16.mxu0 0
      %7873 = vmatmul.mubr.bf16.gmra.mxu0 %v7609
      %v7874 = vpop.f32.mrf.mxu0
      %v7875 = vadd.f32 0.0, %v7874
      %v7876 = vpop.f32.mrf.mxu0
      %v7877 = vpop.f32.mrf.mxu0
      %v7878 = vadd.f32 0.0, %v7877
      %v7879 = vpop.f32.mrf.mxu0
      %7880 = vmatprep.mubr.bf16.mxu0 0
      %7881 = vmatmul.mubr.bf16.gmra.mxu0 %v7612
      %v7882 = vpop.f32.mrf.mxu0
      %v7883 = vadd.f32 0.0, %v7882
      %v7884 = vpop.f32.mrf.mxu0
      %v7885 = vpop.f32.mrf.mxu0
      %v7886 = vadd.f32 0.0, %v7885
      %v7887 = vpop.f32.mrf.mxu0
      %7888 = vmatprep.mubr.bf16.mxu0 0
      %7889 = vmatmul.mubr.bf16.gmra.mxu0 %v7615
      %v7890 = vpop.f32.mrf.mxu0
      %v7891 = vadd.f32 0.0, %v7890
      %v7892 = vpop.f32.mrf.mxu0
      %v7893 = vpop.f32.mrf.mxu0
      %v7894 = vadd.f32 0.0, %v7893
      %v7895 = vpop.f32.mrf.mxu0
      %7896 = vmatprep.mubr.bf16.mxu0 0
      %7897 = vmatmul.mubr.bf16.gmra.mxu0 %v7618
      %v7898 = vpop.f32.mrf.mxu0
      %v7899 = vadd.f32 0.0, %v7898
      %v7900 = vpop.f32.mrf.mxu0
      %v7901 = vpop.f32.mrf.mxu0
      %v7902 = vadd.f32 0.0, %v7901
      %v7903 = vpop.f32.mrf.mxu0
      %7904 = vmatprep.mubr.bf16.mxu0 0
      %7905 = vmatmul.mubr.bf16.gmra.mxu0 %v7621
      %v7906 = vpop.f32.mrf.mxu0
      %v7907 = vadd.f32 0.0, %v7906
      %v7908 = vpop.f32.mrf.mxu0
      %v7909 = vpop.f32.mrf.mxu0
      %v7910 = vadd.f32 0.0, %v7909
      %v7911 = vpop.f32.mrf.mxu0
      %7912 = vmatprep.mubr.bf16.mxu0 0
      %7913 = vmatmul.mubr.bf16.gmra.mxu0 %v7624
      %v7914 = vpop.f32.mrf.mxu0
      %v7915 = vadd.f32 0.0, %v7914
      %v7916 = vpop.f32.mrf.mxu0
      %v7917 = vpop.f32.mrf.mxu0
      %v7918 = vadd.f32 0.0, %v7917
      %v7919 = vpop.f32.mrf.mxu0
      %7920 = vmatprep.mubr.bf16.mxu0 0
      %7921 = vmatmul.mubr.bf16.gmra.mxu0 %v7627
      %v7922 = vpop.f32.mrf.mxu0
      %v7923 = vadd.f32 0.0, %v7922
      %v7924 = vpop.f32.mrf.mxu0
      %v7925 = vpop.f32.mrf.mxu0
      %v7926 = vadd.f32 0.0, %v7925
      %v7927 = vpop.f32.mrf.mxu0
      %7928 = vmatprep.mubr.bf16.mxu0 0
      %7929 = vmatmul.mubr.bf16.gmra.mxu0 %v7630
      %v7930 = vpop.f32.mrf.mxu0
      %v7931 = vadd.f32 0.0, %v7930
      %v7932 = vpop.f32.mrf.mxu0
      %v7933 = vpop.f32.mrf.mxu0
      %v7934 = vadd.f32 0.0, %v7933
      %v7935 = vpop.f32.mrf.mxu0
      %7936 = vmatprep.mubr.bf16.mxu0 0
      %7937 = vmatmul.mubr.bf16.gmra.mxu0 %v7633
      %v7938 = vpop.f32.mrf.mxu0
      %v7939 = vadd.f32 0.0, %v7938
      %v7940 = vpop.f32.mrf.mxu0
      %v7941 = vpop.f32.mrf.mxu0
      %v7942 = vadd.f32 0.0, %v7941
      %v7943 = vpop.f32.mrf.mxu0
      %7944 = vmatprep.mubr.bf16.mxu0 0
      %7945 = vmatmul.mubr.bf16.gmra.mxu0 %v7636
      %v7946 = vpop.f32.mrf.mxu0
      %v7947 = vadd.f32 0.0, %v7946
      %v7948 = vpop.f32.mrf.mxu0
      %v7949 = vpop.f32.mrf.mxu0
      %v7950 = vadd.f32 0.0, %v7949
      %v7951 = vpop.f32.mrf.mxu0
      %7952 = vmatprep.mubr.bf16.mxu0 0
      %7953 = vmatmul.mubr.bf16.gmra.mxu0 %v7639
      %v7954 = vpop.f32.mrf.mxu0
      %v7955 = vadd.f32 0.0, %v7954
      %v7956 = vpop.f32.mrf.mxu0
      %v7957 = vpop.f32.mrf.mxu0
      %v7958 = vadd.f32 0.0, %v7957
      %v7959 = vpop.f32.mrf.mxu0
      %7960 = vmatprep.mubr.bf16.mxu0 0
      %7961 = vmatmul.mubr.bf16.gmra.mxu0 %v7642
      %v7962 = vpop.f32.mrf.mxu0
      %v7963 = vadd.f32 0.0, %v7962
      %v7964 = vpop.f32.mrf.mxu0
      %v7965 = vpop.f32.mrf.mxu0
      %v7966 = vadd.f32 0.0, %v7965
      %v7967 = vpop.f32.mrf.mxu0
      %7968 = vmatprep.mubr.bf16.mxu0 0
      %7969 = vmatmul.mubr.bf16.gmra.mxu0 %v7645
      %v7970 = vpop.f32.mrf.mxu0
      %v7971 = vadd.f32 0.0, %v7970
      %v7972 = vpop.f32.mrf.mxu0
      %v7973 = vpop.f32.mrf.mxu0
      %v7974 = vadd.f32 0.0, %v7973
      %v7975 = vpop.f32.mrf.mxu0
      %7976 = vmatprep.mubr.bf16.mxu0 0
      %7977 = vmatmul.mubr.bf16.gmra.mxu0 %v7648
      %v7978 = vpop.f32.mrf.mxu0
      %v7979 = vadd.f32 0.0, %v7978
      %v7980 = vpop.f32.mrf.mxu0
      %v7981 = vpop.f32.mrf.mxu0
      %v7982 = vadd.f32 0.0, %v7981
      %v7983 = vpop.f32.mrf.mxu0
      %7984 = vmatprep.mubr.bf16.mxu0 0
      %7985 = vmatmul.mubr.bf16.gmra.mxu0 %v7651
      %v7986 = vpop.f32.mrf.mxu0
      %v7987 = vadd.f32 0.0, %v7986
      %v7988 = vpop.f32.mrf.mxu0
      %v7989 = vpop.f32.mrf.mxu0
      %v7990 = vadd.f32 0.0, %v7989
      %v7991 = vpop.f32.mrf.mxu0
      %7992 = vmatprep.mubr.bf16.mxu0 0
      %7993 = vmatmul.mubr.bf16.gmra.mxu0 %v7654
      %v7994 = vpop.f32.mrf.mxu0
      %v7995 = vadd.f32 0.0, %v7994
      %v7996 = vpop.f32.mrf.mxu0
      %v7997 = vpop.f32.mrf.mxu0
      %v7998 = vadd.f32 0.0, %v7997
      %v7999 = vpop.f32.mrf.mxu0
      %8000 = vmatprep.mubr.bf16.mxu0 0
      %8001 = vmatmul.mubr.bf16.gmra.mxu0 %v7657
      %v8002 = vpop.f32.mrf.mxu0
      %v8003 = vadd.f32 0.0, %v8002
      %v8004 = vpop.f32.mrf.mxu0
      %v8005 = vpop.f32.mrf.mxu0
      %v8006 = vadd.f32 0.0, %v8005
      %v8007 = vpop.f32.mrf.mxu0
      %8008 = vmatprep.mubr.bf16.mxu0 0
      %8009 = vmatmul.mubr.bf16.gmra.mxu0 %v7660
      %v8010 = vpop.f32.mrf.mxu0
      %v8011 = vadd.f32 0.0, %v8010
      %v8012 = vpop.f32.mrf.mxu0
      %v8013 = vpop.f32.mrf.mxu0
      %v8014 = vadd.f32 0.0, %v8013
      %v8015 = vpop.f32.mrf.mxu0
      %8016 = vmatprep.mubr.bf16.mxu0 0
      %8017 = vmatmul.mubr.bf16.gmra.mxu0 %v7663
      %v8018 = vpop.f32.mrf.mxu0
      %v8019 = vadd.f32 0.0, %v8018
      %v8020 = vpop.f32.mrf.mxu0
      %v8021 = vpop.f32.mrf.mxu0
      %v8022 = vadd.f32 0.0, %v8021
      %v8023 = vpop.f32.mrf.mxu0
      %8024 = vmatprep.mubr.bf16.mxu0 0
      %8025 = vmatmul.mubr.bf16.gmra.mxu0 %v7666
      %v8026 = vpop.f32.mrf.mxu0
      %v8027 = vadd.f32 0.0, %v8026
      %v8028 = vpop.f32.mrf.mxu0
      %v8029 = vpop.f32.mrf.mxu0
      %v8030 = vadd.f32 0.0, %v8029
      %v8031 = vpop.f32.mrf.mxu0
      %8032 = vmatprep.mubr.bf16.mxu0 0
      %8033 = vmatmul.mubr.bf16.gmra.mxu0 %v7669
      %v8034 = vpop.f32.mrf.mxu0
      %v8035 = vadd.f32 0.0, %v8034
      %v8036 = vpop.f32.mrf.mxu0
      %v8037 = vpop.f32.mrf.mxu0
      %v8038 = vadd.f32 0.0, %v8037
      %v8039 = vpop.f32.mrf.mxu0
      %8040 = vmatprep.mubr.bf16.mxu0 0
      %8041 = vmatmul.mubr.bf16.gmra.mxu0 %v7672
      %v8042 = vpop.f32.mrf.mxu0
      %v8043 = vadd.f32 0.0, %v8042
      %v8044 = vpop.f32.mrf.mxu0
      %v8045 = vpop.f32.mrf.mxu0
      %v8046 = vadd.f32 0.0, %v8045
      %v8047 = vpop.f32.mrf.mxu0
      %8048 = vmatprep.mubr.bf16.mxu0 0
      %8049 = vmatmul.mubr.bf16.gmra.mxu0 %v7675
      %v8050 = vpop.f32.mrf.mxu0
      %v8051 = vadd.f32 0.0, %v8050
      %v8052 = vpop.f32.mrf.mxu0
      %v8053 = vpop.f32.mrf.mxu0
      %v8054 = vadd.f32 0.0, %v8053
      %v8055 = vpop.f32.mrf.mxu0
      %8056 = vmatprep.mubr.bf16.mxu0 0
      %8057 = vmatmul.mubr.bf16.gmra.mxu0 %v7678
      %v8058 = vpop.f32.mrf.mxu0
      %v8059 = vadd.f32 0.0, %v8058
      %v8060 = vpop.f32.mrf.mxu0
      %v8061 = vpop.f32.mrf.mxu0
      %v8062 = vadd.f32 0.0, %v8061
      %v8063 = vpop.f32.mrf.mxu0
      %8064 = vmatprep.mubr.bf16.mxu0 0
      %8065 = vmatmul.mubr.bf16.gmra.mxu0 %v7681
      %v8066 = vpop.f32.mrf.mxu0
      %v8067 = vadd.f32 0.0, %v8066
      %v8068 = vpop.f32.mrf.mxu0
      %v8069 = vpop.f32.mrf.mxu0
      %v8070 = vadd.f32 0.0, %v8069
      %v8071 = vpop.f32.mrf.mxu0
      %8072 = vmatprep.mubr.bf16.mxu0 0
      %8073 = vmatmul.mubr.bf16.gmra.mxu0 %v7684
      %v8074 = vpop.f32.mrf.mxu0
      %v8075 = vadd.f32 0.0, %v8074
      %v8076 = vpop.f32.mrf.mxu0
      %v8077 = vpop.f32.mrf.mxu0
      %v8078 = vadd.f32 0.0, %v8077
      %v8079 = vpop.f32.mrf.mxu0
      %8080 = vmatprep.mubr.bf16.mxu0 0
      %8081 = vmatmul.mubr.bf16.gmra.mxu0 %v7687
      %v8082 = vpop.f32.mrf.mxu0
      %v8083 = vadd.f32 0.0, %v8082
      %v8084 = vpop.f32.mrf.mxu0
      %v8085 = vpop.f32.mrf.mxu0
      %v8086 = vadd.f32 0.0, %v8085
      %v8087 = vpop.f32.mrf.mxu0
      %8088 = vmatprep.mubr.bf16.mxu0 0
      %8089 = vmatmul.mubr.bf16.gmra.mxu0 %v7690
      %v8090 = vpop.f32.mrf.mxu0
      %v8091 = vadd.f32 0.0, %v8090
      %v8092 = vpop.f32.mrf.mxu0
      %v8093 = vpop.f32.mrf.mxu0
      %v8094 = vadd.f32 0.0, %v8093
      %v8095 = vpop.f32.mrf.mxu0
      %8096 = vmatprep.mubr.bf16.mxu0 0
      %8097 = vmatmul.mubr.bf16.gmra.mxu0 %v7693
      %v8098 = vpop.f32.mrf.mxu0
      %v8099 = vadd.f32 0.0, %v8098
      %v8100 = vpop.f32.mrf.mxu0
      %v8101 = vpop.f32.mrf.mxu0
      %v8102 = vadd.f32 0.0, %v8101
      %v8103 = vpop.f32.mrf.mxu0
      %8104 = vmatprep.mubr.bf16.mxu0 0
      %8105 = vmatmul.mubr.bf16.gmra.mxu0 %v7696
      %v8106 = vpop.f32.mrf.mxu0
      %v8107 = vadd.f32 0.0, %v8106
      %v8108 = vpop.f32.mrf.mxu0
      %v8109 = vpop.f32.mrf.mxu0
      %v8110 = vadd.f32 0.0, %v8109
      %v8111 = vpop.f32.mrf.mxu0
      %8112 = vmatprep.mubr.bf16.mxu0 0
      %8113 = vmatmul.mubr.bf16.gmra.mxu0 %v7699
      %v8114 = vpop.f32.mrf.mxu0
      %v8115 = vadd.f32 0.0, %v8114
      %v8116 = vpop.f32.mrf.mxu0
      %v8117 = vpop.f32.mrf.mxu0
      %v8118 = vadd.f32 0.0, %v8117
      %v8119 = vpop.f32.mrf.mxu0
      %8120 = vmatprep.mubr.bf16.mxu0 0
      %8121 = vmatmul.mubr.bf16.gmra.mxu0 %v7702
      %v8122 = vpop.f32.mrf.mxu0
      %v8123 = vadd.f32 0.0, %v8122
      %v8124 = vpop.f32.mrf.mxu0
      %v8125 = vpop.f32.mrf.mxu0
      %v8126 = vadd.f32 0.0, %v8125
      %v8127 = vpop.f32.mrf.mxu0
      %8128 = vmatprep.mubr.bf16.mxu0 0
      %8129 = vmatmul.mubr.bf16.gmra.mxu0 %v7705
      %v8130 = vpop.f32.mrf.mxu0
      %v8131 = vadd.f32 0.0, %v8130
      %v8132 = vpop.f32.mrf.mxu0
      %v8133 = vpop.f32.mrf.mxu0
      %v8134 = vadd.f32 0.0, %v8133
      %v8135 = vpop.f32.mrf.mxu0
      %8136 = vmatprep.mubr.bf16.mxu0 0
      %8137 = vmatmul.mubr.bf16.gmra.mxu0 %v7708
      %v8138 = vpop.f32.mrf.mxu0
      %v8139 = vadd.f32 0.0, %v8138
      %v8140 = vpop.f32.mrf.mxu0
      %v8141 = vpop.f32.mrf.mxu0
      %v8142 = vadd.f32 0.0, %v8141
      %v8143 = vpop.f32.mrf.mxu0
      %8144 = vmatprep.mubr.bf16.mxu0 0
      %8145 = vmatmul.mubr.bf16.gmra.mxu0 %v7711
      %v8146 = vpop.f32.mrf.mxu0
      %v8147 = vadd.f32 0.0, %v8146
      %v8148 = vpop.f32.mrf.mxu0
      %v8149 = vpop.f32.mrf.mxu0
      %v8150 = vadd.f32 0.0, %v8149
      %v8151 = vpop.f32.mrf.mxu0
      %8152 = vmatprep.mubr.bf16.mxu0 0
      %8153 = vmatmul.mubr.bf16.gmra.mxu0 %v7714
      %v8154 = vpop.f32.mrf.mxu0
      %v8155 = vadd.f32 0.0, %v8154
      %v8156 = vpop.f32.mrf.mxu0
      %v8157 = vpop.f32.mrf.mxu0
      %v8158 = vadd.f32 0.0, %v8157
      %v8159 = vpop.f32.mrf.mxu0
      %8160 = vmatprep.mubr.bf16.mxu0 0
      %8161 = vmatmul.mubr.bf16.gmra.mxu0 %v7717
      %v8162 = vpop.f32.mrf.mxu0
      %v8163 = vadd.f32 0.0, %v8162
      %v8164 = vpop.f32.mrf.mxu0
      %v8165 = vpop.f32.mrf.mxu0
      %v8166 = vadd.f32 0.0, %v8165
      %v8167 = vpop.f32.mrf.mxu0
      %8168 = vmatprep.mubr.bf16.mxu0 0
      %8169 = vmatmul.mubr.bf16.gmra.mxu0 %v7720
      %v8170 = vpop.f32.mrf.mxu0
      %v8171 = vadd.f32 0.0, %v8170
      %v8172 = vpop.f32.mrf.mxu0
      %v8173 = vpop.f32.mrf.mxu0
      %v8174 = vadd.f32 0.0, %v8173
      %v8175 = vpop.f32.mrf.mxu0
      %8176 = vmatprep.mubr.bf16.mxu0 0
      %8177 = vmatmul.mubr.bf16.gmra.mxu0 %v7723
      %v8178 = vpop.f32.mrf.mxu0
      %v8179 = vadd.f32 0.0, %v8178
      %v8180 = vpop.f32.mrf.mxu0
      %v8181 = vpop.f32.mrf.mxu0
      %v8182 = vadd.f32 0.0, %v8181
      %v8183 = vpop.f32.mrf.mxu0
      %8184 = vmatprep.mubr.bf16.mxu0 0
      %8185 = vmatmul.mubr.bf16.gmra.mxu0 %v7726
      %v8186 = vpop.f32.mrf.mxu0
      %v8187 = vadd.f32 0.0, %v8186
      %v8188 = vpop.f32.mrf.mxu0
      %v8189 = vpop.f32.mrf.mxu0
      %v8190 = vadd.f32 0.0, %v8189
      %v8191 = vpop.f32.mrf.mxu0
      %8192 = vmatprep.mubr.bf16.mxu0 0
      %8193 = vmatmul.mubr.bf16.gmra.mxu0 %v7729
      %v8194 = vpop.f32.mrf.mxu0
      %v8195 = vadd.f32 0.0, %v8194
      %v8196 = vpop.f32.mrf.mxu0
      %v8197 = vpop.f32.mrf.mxu0
      %v8198 = vadd.f32 0.0, %v8197
      %v8199 = vpop.f32.mrf.mxu0
      %8200 = vmatprep.mubr.bf16.mxu0 0
      %8201 = vmatmul.mubr.bf16.gmra.mxu0 %v7732
      %v8202 = vpop.f32.mrf.mxu0
      %v8203 = vadd.f32 0.0, %v8202
      %v8204 = vpop.f32.mrf.mxu0
      %v8205 = vpop.f32.mrf.mxu0
      %v8206 = vadd.f32 0.0, %v8205
      %v8207 = vpop.f32.mrf.mxu0
      %8208 = vmatprep.mubr.bf16.mxu0 0
      %8209 = vmatmul.mubr.bf16.gmra.mxu0 %v7735
      %v8210 = vpop.f32.mrf.mxu0
      %v8211 = vadd.f32 0.0, %v8210
      %v8212 = vpop.f32.mrf.mxu0
      %v8213 = vpop.f32.mrf.mxu0
      %v8214 = vadd.f32 0.0, %v8213
      %v8215 = vpop.f32.mrf.mxu0
      %8216 = vmatprep.mubr.bf16.mxu0 0
      %8217 = vmatmul.mubr.bf16.gmra.mxu0 %v7738
      %v8218 = vpop.f32.mrf.mxu0
      %v8219 = vadd.f32 0.0, %v8218
      %v8220 = vpop.f32.mrf.mxu0
      %v8221 = vpop.f32.mrf.mxu0
      %v8222 = vadd.f32 0.0, %v8221
      %v8223 = vpop.f32.mrf.mxu0
      %8224 = vmatprep.mubr.bf16.mxu0 0
      %8225 = vmatmul.mubr.bf16.gmra.mxu0 %v7741
      %v8226 = vpop.f32.mrf.mxu0
      %v8227 = vadd.f32 0.0, %v8226
      %v8228 = vpop.f32.mrf.mxu0
      %v8229 = vpop.f32.mrf.mxu0
      %v8230 = vadd.f32 0.0, %v8229
      %v8231 = vpop.f32.mrf.mxu0
      %8232 = vmatprep.mubr.bf16.mxu0 0
      %8233 = vmatmul.mubr.bf16.gmra.mxu0 %v7744
      %v8234 = vpop.f32.mrf.mxu0
      %v8235 = vadd.f32 0.0, %v8234
      %v8236 = vpop.f32.mrf.mxu0
      %v8237 = vpop.f32.mrf.mxu0
      %v8238 = vadd.f32 0.0, %v8237
      %v8239 = vpop.f32.mrf.mxu0
      %8240 = vmatprep.mubr.bf16.mxu0 0
      %8241 = vmatmul.mubr.bf16.gmra.mxu0 %v7747
      %v8242 = vpop.f32.mrf.mxu0
      %v8243 = vadd.f32 0.0, %v8242
      %v8244 = vpop.f32.mrf.mxu0
      %v8245 = vpop.f32.mrf.mxu0
      %v8246 = vadd.f32 0.0, %v8245
      %v8247 = vpop.f32.mrf.mxu0
      %8248 = vmatprep.mubr.bf16.mxu0 0
      %8249 = vmatmul.mubr.bf16.gmra.mxu0 %v7750
      %v8250 = vpop.f32.mrf.mxu0
      %v8251 = vadd.f32 0.0, %v8250
      %v8252 = vpop.f32.mrf.mxu0
      %v8253 = vpop.f32.mrf.mxu0
      %v8254 = vadd.f32 0.0, %v8253
      %v8255 = vpop.f32.mrf.mxu0
      %8256 = vmatprep.mubr.bf16.mxu0 0
      %8257 = vmatmul.mubr.bf16.gmra.mxu0 %v7753
      %v8258 = vpop.f32.mrf.mxu0
      %v8259 = vadd.f32 0.0, %v8258
      %v8260 = vpop.f32.mrf.mxu0
      %v8261 = vpop.f32.mrf.mxu0
      %v8262 = vadd.f32 0.0, %v8261
      %v8263 = vpop.f32.mrf.mxu0
      %8264 = vmatprep.mubr.bf16.mxu0 0
      %8265 = vmatmul.mubr.bf16.gmra.mxu0 %v7756
      %v8266 = vpop.f32.mrf.mxu0
      %v8267 = vadd.f32 0.0, %v8266
      %v8268 = vpop.f32.mrf.mxu0
      %v8269 = vpop.f32.mrf.mxu0
      %v8270 = vadd.f32 0.0, %v8269
      %v8271 = vpop.f32.mrf.mxu0
      %8272 = vmatprep.mubr.bf16.mxu0 0
      %8273 = vmatmul.mubr.bf16.gmra.mxu0 %v7759
      %v8274 = vpop.f32.mrf.mxu0
      %v8275 = vadd.f32 0.0, %v8274
      %v8276 = vpop.f32.mrf.mxu0
      %v8277 = vpop.f32.mrf.mxu0
      %v8278 = vadd.f32 0.0, %v8277
      %v8279 = vpop.f32.mrf.mxu0
      %8280 = vmatprep.mubr.bf16.mxu0 0
      %8281 = vmatmul.mubr.bf16.gmra.mxu0 %v7762
      %v8282 = vpop.f32.mrf.mxu0
      %v8283 = vadd.f32 0.0, %v8282
      %v8284 = vpop.f32.mrf.mxu0
      %v8285 = vpop.f32.mrf.mxu0
      %v8286 = vadd.f32 0.0, %v8285
      %v8287 = vpop.f32.mrf.mxu0
      %8288 = vmatprep.mubr.bf16.mxu0 0
      %8289 = vmatmul.mubr.bf16.gmra.mxu0 %v7765
      %v8290 = vpop.f32.mrf.mxu0
      %v8291 = vadd.f32 0.0, %v8290
      %v8292 = vpop.f32.mrf.mxu0
      %v8293 = vpop.f32.mrf.mxu0
      %v8294 = vadd.f32 0.0, %v8293
      %v8295 = vpop.f32.mrf.mxu0
      %8296 = vmatprep.mubr.bf16.mxu0 0
      %8297 = vmatmul.mubr.bf16.gmra.mxu0 %v7768
      %v8298 = vpop.f32.mrf.mxu0
      %v8299 = vadd.f32 0.0, %v8298
      %v8300 = vpop.f32.mrf.mxu0
      %v8301 = vpop.f32.mrf.mxu0
      %v8302 = vadd.f32 0.0, %v8301
      %v8303 = vpop.f32.mrf.mxu0
      %8304 = vmatprep.mubr.bf16.mxu0 0
      %8305 = vmatmul.mubr.bf16.gmra.mxu0 %v7771
      %v8306 = vpop.f32.mrf.mxu0
      %v8307 = vadd.f32 0.0, %v8306
      %v8308 = vpop.f32.mrf.mxu0
      %v8309 = vpop.f32.mrf.mxu0
      %v8310 = vadd.f32 0.0, %v8309
      %v8311 = vpop.f32.mrf.mxu0
      %8312 = vmatprep.mubr.bf16.mxu0 0
      %8313 = vmatmul.mubr.bf16.gmra.mxu0 %v7774
      %v8314 = vpop.f32.mrf.mxu0
      %v8315 = vadd.f32 0.0, %v8314
      %v8316 = vpop.f32.mrf.mxu0
      %v8317 = vpop.f32.mrf.mxu0
      %v8318 = vadd.f32 0.0, %v8317
      %v8319 = vpop.f32.mrf.mxu0
      %8320 = vdwg.mxu0
      %v8321 = vsel %vm1323, %v7811, -inf
      %v8322 = vsel %vm1323, %v8067, -inf
      %v8323 = vmax.f32 %v8321, %v8322
      %v8324 = vsel %vm1323, %v7814, -inf
      %v8325 = vsel %vm1323, %v8070, -inf
      %v8326 = vmax.f32 %v8324, %v8325
      %v8327 = vsel %vm1323, %v7819, -inf
      %v8328 = vsel %vm1323, %v8075, -inf
      %v8329 = vmax.f32 %v8327, %v8328
      %v8330 = vsel %vm1323, %v7822, -inf
      %v8331 = vsel %vm1323, %v8078, -inf
      %v8332 = vmax.f32 %v8330, %v8331
      %v8333 = vsel %vm1323, %v7827, -inf
      %v8334 = vsel %vm1323, %v8083, -inf
      %v8335 = vmax.f32 %v8333, %v8334
      %v8336 = vsel %vm1323, %v7830, -inf
      %v8337 = vsel %vm1323, %v8086, -inf
      %v8338 = vmax.f32 %v8336, %v8337
      %v8339 = vsel %vm1323, %v7835, -inf
      %v8340 = vsel %vm1323, %v8091, -inf
      %v8341 = vmax.f32 %v8339, %v8340
      %v8342 = vsel %vm1323, %v7838, -inf
      %v8343 = vsel %vm1323, %v8094, -inf
      %v8344 = vmax.f32 %v8342, %v8343
      %v8345 = vsel %vm1323, %v7843, -inf
      %v8346 = vsel %vm1323, %v8099, -inf
      %v8347 = vmax.f32 %v8345, %v8346
      %v8348 = vsel %vm1323, %v7846, -inf
      %v8349 = vsel %vm1323, %v8102, -inf
      %v8350 = vmax.f32 %v8348, %v8349
      %v8351 = vsel %vm1323, %v7851, -inf
      %v8352 = vsel %vm1323, %v8107, -inf
      %v8353 = vmax.f32 %v8351, %v8352
      %v8354 = vsel %vm1323, %v7854, -inf
      %v8355 = vsel %vm1323, %v8110, -inf
      %v8356 = vmax.f32 %v8354, %v8355
      %v8357 = vsel %vm1323, %v7859, -inf
      %v8358 = vsel %vm1323, %v8115, -inf
      %v8359 = vmax.f32 %v8357, %v8358
      %v8360 = vsel %vm1323, %v7862, -inf
      %v8361 = vsel %vm1323, %v8118, -inf
      %v8362 = vmax.f32 %v8360, %v8361
      %v8363 = vsel %vm1323, %v7867, -inf
      %v8364 = vsel %vm1323, %v8123, -inf
      %v8365 = vmax.f32 %v8363, %v8364
      %v8366 = vsel %vm1323, %v7870, -inf
      %v8367 = vsel %vm1323, %v8126, -inf
      %v8368 = vmax.f32 %v8366, %v8367
      %v8369 = vsel %vm1323, %v7875, -inf
      %v8370 = vsel %vm1323, %v8131, -inf
      %v8371 = vmax.f32 %v8369, %v8370
      %v8372 = vsel %vm1323, %v7878, -inf
      %v8373 = vsel %vm1323, %v8134, -inf
      %v8374 = vmax.f32 %v8372, %v8373
      %v8375 = vsel %vm1323, %v7883, -inf
      %v8376 = vsel %vm1323, %v8139, -inf
      %v8377 = vmax.f32 %v8375, %v8376
      %v8378 = vsel %vm1323, %v7886, -inf
      %v8379 = vsel %vm1323, %v8142, -inf
      %v8380 = vmax.f32 %v8378, %v8379
      %v8381 = vsel %vm1323, %v7891, -inf
      %v8382 = vsel %vm1323, %v8147, -inf
      %v8383 = vmax.f32 %v8381, %v8382
      %v8384 = vsel %vm1323, %v7894, -inf
      %v8385 = vsel %vm1323, %v8150, -inf
      %v8386 = vmax.f32 %v8384, %v8385
      %v8387 = vsel %vm1323, %v7899, -inf
      %v8388 = vsel %vm1323, %v8155, -inf
      %v8389 = vmax.f32 %v8387, %v8388
      %v8390 = vsel %vm1323, %v7902, -inf
      %v8391 = vsel %vm1323, %v8158, -inf
      %v8392 = vmax.f32 %v8390, %v8391
      %v8393 = vsel %vm1323, %v7907, -inf
      %v8394 = vsel %vm1323, %v8163, -inf
      %v8395 = vmax.f32 %v8393, %v8394
      %v8396 = vsel %vm1323, %v7910, -inf
      %v8397 = vsel %vm1323, %v8166, -inf
      %v8398 = vmax.f32 %v8396, %v8397
      %v8399 = vsel %vm1323, %v7915, -inf
      %v8400 = vsel %vm1323, %v8171, -inf
      %v8401 = vmax.f32 %v8399, %v8400
      %v8402 = vsel %vm1323, %v7918, -inf
      %v8403 = vsel %vm1323, %v8174, -inf
      %v8404 = vmax.f32 %v8402, %v8403
      %v8405 = vsel %vm1323, %v7923, -inf
      %v8406 = vsel %vm1323, %v8179, -inf
      %v8407 = vmax.f32 %v8405, %v8406
      %v8408 = vsel %vm1323, %v7926, -inf
      %v8409 = vsel %vm1323, %v8182, -inf
      %v8410 = vmax.f32 %v8408, %v8409
      %v8411 = vsel %vm1323, %v7931, -inf
      %v8412 = vsel %vm1323, %v8187, -inf
      %v8413 = vmax.f32 %v8411, %v8412
      %v8414 = vsel %vm1323, %v7934, -inf
      %v8415 = vsel %vm1323, %v8190, -inf
      %v8416 = vmax.f32 %v8414, %v8415
      %v8417 = vsel %vm1323, %v7939, -inf
      %v8418 = vsel %vm1323, %v8195, -inf
      %v8419 = vmax.f32 %v8417, %v8418
      %v8420 = vsel %vm1323, %v7942, -inf
      %v8421 = vsel %vm1323, %v8198, -inf
      %v8422 = vmax.f32 %v8420, %v8421
      %v8423 = vsel %vm1323, %v7947, -inf
      %v8424 = vsel %vm1323, %v8203, -inf
      %v8425 = vmax.f32 %v8423, %v8424
      %v8426 = vsel %vm1323, %v7950, -inf
      %v8427 = vsel %vm1323, %v8206, -inf
      %v8428 = vmax.f32 %v8426, %v8427
      %v8429 = vsel %vm1323, %v7955, -inf
      %v8430 = vsel %vm1323, %v8211, -inf
      %v8431 = vmax.f32 %v8429, %v8430
      %v8432 = vsel %vm1323, %v7958, -inf
      %v8433 = vsel %vm1323, %v8214, -inf
      %v8434 = vmax.f32 %v8432, %v8433
      %v8435 = vsel %vm1323, %v7963, -inf
      %v8436 = vsel %vm1323, %v8219, -inf
      %v8437 = vmax.f32 %v8435, %v8436
      %v8438 = vsel %vm1323, %v7966, -inf
      %v8439 = vsel %vm1323, %v8222, -inf
      %v8440 = vmax.f32 %v8438, %v8439
      %v8441 = vsel %vm1323, %v7971, -inf
      %v8442 = vsel %vm1323, %v8227, -inf
      %v8443 = vmax.f32 %v8441, %v8442
      %v8444 = vsel %vm1323, %v7974, -inf
      %v8445 = vsel %vm1323, %v8230, -inf
      %v8446 = vmax.f32 %v8444, %v8445
      %v8447 = vsel %vm1323, %v7979, -inf
      %v8448 = vsel %vm1323, %v8235, -inf
      %v8449 = vmax.f32 %v8447, %v8448
      %v8450 = vsel %vm1323, %v7982, -inf
      %v8451 = vsel %vm1323, %v8238, -inf
      %v8452 = vmax.f32 %v8450, %v8451
      %v8453 = vsel %vm1323, %v7987, -inf
      %v8454 = vsel %vm1323, %v8243, -inf
      %v8455 = vmax.f32 %v8453, %v8454
      %v8456 = vsel %vm1323, %v7990, -inf
      %v8457 = vsel %vm1323, %v8246, -inf
      %v8458 = vmax.f32 %v8456, %v8457
      %v8459 = vsel %vm1323, %v7995, -inf
      %v8460 = vsel %vm1323, %v8251, -inf
      %v8461 = vmax.f32 %v8459, %v8460
      %v8462 = vsel %vm1323, %v7998, -inf
      %v8463 = vsel %vm1323, %v8254, -inf
      %v8464 = vmax.f32 %v8462, %v8463
      %v8465 = vsel %vm1323, %v8003, -inf
      %v8466 = vsel %vm1323, %v8259, -inf
      %v8467 = vmax.f32 %v8465, %v8466
      %v8468 = vsel %vm1323, %v8006, -inf
      %v8469 = vsel %vm1323, %v8262, -inf
      %v8470 = vmax.f32 %v8468, %v8469
      %v8471 = vsel %vm1323, %v8011, -inf
      %v8472 = vsel %vm1323, %v8267, -inf
      %v8473 = vmax.f32 %v8471, %v8472
      %v8474 = vsel %vm1323, %v8014, -inf
      %v8475 = vsel %vm1323, %v8270, -inf
      %v8476 = vmax.f32 %v8474, %v8475
      %v8477 = vsel %vm1323, %v8019, -inf
      %v8478 = vsel %vm1323, %v8275, -inf
      %v8479 = vmax.f32 %v8477, %v8478
      %v8480 = vsel %vm1323, %v8022, -inf
      %v8481 = vsel %vm1323, %v8278, -inf
      %v8482 = vmax.f32 %v8480, %v8481
      %v8483 = vsel %vm1323, %v8027, -inf
      %v8484 = vsel %vm1323, %v8283, -inf
      %v8485 = vmax.f32 %v8483, %v8484
      %v8486 = vsel %vm1323, %v8030, -inf
      %v8487 = vsel %vm1323, %v8286, -inf
      %v8488 = vmax.f32 %v8486, %v8487
      %v8489 = vsel %vm1323, %v8035, -inf
      %v8490 = vsel %vm1323, %v8291, -inf
      %v8491 = vmax.f32 %v8489, %v8490
      %v8492 = vsel %vm1323, %v8038, -inf
      %v8493 = vsel %vm1323, %v8294, -inf
      %v8494 = vmax.f32 %v8492, %v8493
      %v8495 = vsel %vm1323, %v8043, -inf
      %v8496 = vsel %vm1323, %v8299, -inf
      %v8497 = vmax.f32 %v8495, %v8496
      %v8498 = vsel %vm1323, %v8046, -inf
      %v8499 = vsel %vm1323, %v8302, -inf
      %v8500 = vmax.f32 %v8498, %v8499
      %v8501 = vsel %vm1323, %v8051, -inf
      %v8502 = vsel %vm1323, %v8307, -inf
      %v8503 = vmax.f32 %v8501, %v8502
      %v8504 = vsel %vm1323, %v8054, -inf
      %v8505 = vsel %vm1323, %v8310, -inf
      %v8506 = vmax.f32 %v8504, %v8505
      %v8507 = vsel %vm1323, %v8059, -inf
      %v8508 = vsel %vm1323, %v8315, -inf
      %v8509 = vmax.f32 %v8507, %v8508
      %v8510 = vsel %vm1323, %v8062, -inf
      %v8511 = vsel %vm1323, %v8318, -inf
      %v8512 = vmax.f32 %v8510, %v8511
      %v8513 = vmax.f32 %v7169, 0.0
      %v8514 = vmax.f32 %v7172, 0.0
      %v8515 = vmax.f32 %v7175, 0.0
      %v8516 = vmax.f32 %v7178, 0.0
      %v8517 = vmax.f32 %v7181, 0.0
      %v8518 = vmax.f32 %v7184, 0.0
      %v8519 = vmax.f32 %v7187, 0.0
      %v8520 = vmax.f32 %v7190, 0.0
      %v8521 = vmax.f32 %v7193, 0.0
      %v8522 = vmax.f32 %v7196, 0.0
      %v8523 = vmax.f32 %v7199, 0.0
      %v8524 = vmax.f32 %v7202, 0.0
      %v8525 = vmax.f32 %v7205, 0.0
      %v8526 = vmax.f32 %v7208, 0.0
      %v8527 = vmax.f32 %v7211, 0.0
      %v8528 = vmax.f32 %v7214, 0.0
      %v8529 = vmax.f32 %v7217, 0.0
      %v8530 = vmax.f32 %v7220, 0.0
      %v8531 = vmax.f32 %v7223, 0.0
      %v8532 = vmax.f32 %v7226, 0.0
      %v8533 = vmax.f32 %v7229, 0.0
      %v8534 = vmax.f32 %v7232, 0.0
      %v8535 = vmax.f32 %v7235, 0.0
      %v8536 = vmax.f32 %v7238, 0.0
      %v8537 = vmax.f32 %v7241, 0.0
      %v8538 = vmax.f32 %v7244, 0.0
      %v8539 = vmax.f32 %v7247, 0.0
      %v8540 = vmax.f32 %v7250, 0.0
      %v8541 = vmax.f32 %v7253, 0.0
      %v8542 = vmax.f32 %v7256, 0.0
      %v8543 = vmax.f32 %v7259, 0.0
      %v8544 = vmax.f32 %v7262, 0.0
      %v8545 = vmax.f32 %v7265, 0.0
      %v8546 = vmax.f32 %v7268, 0.0
      %v8547 = vmax.f32 %v7271, 0.0
      %v8548 = vmax.f32 %v7274, 0.0
      %v8549 = vmax.f32 %v7277, 0.0
      %v8550 = vmax.f32 %v7280, 0.0
      %v8551 = vmax.f32 %v7283, 0.0
      %v8552 = vmax.f32 %v7286, 0.0
      %v8553 = vmax.f32 %v7289, 0.0
      %v8554 = vmax.f32 %v7292, 0.0
      %v8555 = vmax.f32 %v7295, 0.0
      %v8556 = vmax.f32 %v7298, 0.0
      %v8557 = vmax.f32 %v7301, 0.0
      %v8558 = vmax.f32 %v7304, 0.0
      %v8559 = vmax.f32 %v7307, 0.0
      %v8560 = vmax.f32 %v7310, 0.0
      %v8561 = vmax.f32 %v7313, 0.0
      %v8562 = vmax.f32 %v7316, 0.0
      %v8563 = vmax.f32 %v7319, 0.0
      %v8564 = vmax.f32 %v7322, 0.0
      %v8565 = vmax.f32 %v7325, 0.0
      %v8566 = vmax.f32 %v7328, 0.0
      %v8567 = vmax.f32 %v7331, 0.0
      %v8568 = vmax.f32 %v7334, 0.0
      %v8569 = vmax.f32 %v7337, 0.0
      %v8570 = vmax.f32 %v7340, 0.0
      %v8571 = vmax.f32 %v7343, 0.0
      %v8572 = vmax.f32 %v7346, 0.0
      %v8573 = vmax.f32 %v7349, 0.0
      %v8574 = vmax.f32 %v7352, 0.0
      %v8575 = vmax.f32 %v7355, 0.0
      %v8576 = vmax.f32 %v7358, 0.0
      %s8577 = scalar_lea.vmem %s3, 224
      %v8578 = vld [vmem:[%s8577] sm:$0xf]
      %v8579 = vld [vmem:[%s8577 + $0x4] sm:$0xf]
      %v8580 = vld [vmem:[%s8577 + $0x8] sm:$0xf]
      %v8581 = vld [vmem:[%s8577 + $0xc] sm:$0xf]
      %v8582 = vld [vmem:[%s8577 + $0x10] sm:$0xf]
      %v8583 = vld [vmem:[%s8577 + $0x14] sm:$0xf]
      %v8584 = vld [vmem:[%s8577 + $0x18] sm:$0xf]
      %v8585 = vld [vmem:[%s8577 + $0x1c] sm:$0xf]
      %s8586 = scalar_lea.vmem %s4, 6
      %v8587 = vld [vmem:[%s8586] sm:$0x1]
      %v8588 = vpack.c.bf16 %v8514, %v8513
      %v8589 = vpack.c.bf16 %v8516, %v8515
      %v8590 = vpack.c.bf16 %v8518, %v8517
      %v8591 = vpack.c.bf16 %v8520, %v8519
      %v8592 = vpack.c.bf16 %v8522, %v8521
      %v8593 = vpack.c.bf16 %v8524, %v8523
      %v8594 = vpack.c.bf16 %v8526, %v8525
      %v8595 = vpack.c.bf16 %v8528, %v8527
      %v8596 = vpack.c.bf16 %v8530, %v8529
      %v8597 = vpack.c.bf16 %v8532, %v8531
      %v8598 = vpack.c.bf16 %v8534, %v8533
      %v8599 = vpack.c.bf16 %v8536, %v8535
      %v8600 = vpack.c.bf16 %v8538, %v8537
      %v8601 = vpack.c.bf16 %v8540, %v8539
      %v8602 = vpack.c.bf16 %v8542, %v8541
      %v8603 = vpack.c.bf16 %v8544, %v8543
      %v8604 = vpack.c.bf16 %v8546, %v8545
      %v8605 = vpack.c.bf16 %v8548, %v8547
      %v8606 = vpack.c.bf16 %v8550, %v8549
      %v8607 = vpack.c.bf16 %v8552, %v8551
      %v8608 = vpack.c.bf16 %v8554, %v8553
      %v8609 = vpack.c.bf16 %v8556, %v8555
      %v8610 = vpack.c.bf16 %v8558, %v8557
      %v8611 = vpack.c.bf16 %v8560, %v8559
      %v8612 = vpack.c.bf16 %v8562, %v8561
      %v8613 = vpack.c.bf16 %v8564, %v8563
      %v8614 = vpack.c.bf16 %v8566, %v8565
      %v8615 = vpack.c.bf16 %v8568, %v8567
      %v8616 = vpack.c.bf16 %v8570, %v8569
      %v8617 = vpack.c.bf16 %v8572, %v8571
      %v8618 = vpack.c.bf16 %v8574, %v8573
      %v8619 = vpack.c.bf16 %v8576, %v8575
      %v8621 = vlaneseq
      %v8622 = vshrl.u32 %v8621, 7
      %v8623 = vsub.s32 0, %v8622
      %v8624 = vrot.slane %v8587, %v8623
      %v8634 = vunpack.c.l.b16 %v8578
      %v8635 = vunpack.c.l.b16 %v8579
      %v8636 = vunpack.c.l.b16 %v8580
      %v8637 = vunpack.c.l.b16 %v8581
      %v8638 = vunpack.c.l.b16 %v8582
      %v8639 = vunpack.c.l.b16 %v8583
      %v8640 = vunpack.c.l.b16 %v8584
      %v8641 = vunpack.c.l.b16 %v8585
      %v8642 = vpack.c.b16 %v8635, %v8634
      %v8643 = vpack.c.b16 %v8637, %v8636
      %v8644 = vpack.c.b16 %v8639, %v8638
      %v8645 = vpack.c.b16 %v8641, %v8640
      %v8651 = vsel %vm1323, %v8588, 0
      %v8654 = vsel %vm1323, %v8589, 0
      %v8657 = vsel %vm1323, %v8590, 0
      %v8660 = vsel %vm1323, %v8591, 0
      %v8663 = vsel %vm1323, %v8592, 0
      %v8666 = vsel %vm1323, %v8593, 0
      %v8669 = vsel %vm1323, %v8594, 0
      %v8672 = vsel %vm1323, %v8595, 0
      %v8675 = vsel %vm1323, %v8596, 0
      %v8678 = vsel %vm1323, %v8597, 0
      %v8681 = vsel %vm1323, %v8598, 0
      %v8684 = vsel %vm1323, %v8599, 0
      %v8687 = vsel %vm1323, %v8600, 0
      %v8690 = vsel %vm1323, %v8601, 0
      %v8693 = vsel %vm1323, %v8602, 0
      %v8696 = vsel %vm1323, %v8603, 0
      %v8699 = vsel %vm1323, %v8604, 0
      %v8702 = vsel %vm1323, %v8605, 0
      %v8705 = vsel %vm1323, %v8606, 0
      %v8708 = vsel %vm1323, %v8607, 0
      %v8711 = vsel %vm1323, %v8608, 0
      %v8714 = vsel %vm1323, %v8609, 0
      %v8717 = vsel %vm1323, %v8610, 0
      %v8720 = vsel %vm1323, %v8611, 0
      %v8723 = vsel %vm1323, %v8612, 0
      %v8726 = vsel %vm1323, %v8613, 0
      %v8729 = vsel %vm1323, %v8614, 0
      %v8732 = vsel %vm1323, %v8615, 0
      %v8735 = vsel %vm1323, %v8616, 0
      %v8738 = vsel %vm1323, %v8617, 0
      %v8741 = vsel %vm1323, %v8618, 0
      %v8744 = vsel %vm1323, %v8619, 0
      %8746 = vmatprep.subr.bf16.mxu0 0
      %8747 = vmatpush1.bf16.msra.mxu0 0
      %8748 = vmatprep.subr.bf16.mxu0 0
      %8749 = vmatpush1.bf16.msra.mxu0 0
      %8750 = vmatprep.subr.bf16.mxu0 0
      %8751 = vmatpush1.bf16.msra.mxu0 0
      %8752 = vmatprep.subr.bf16.mxu0 0
      %8753 = vmatpush1.bf16.msra.mxu0 0
      %8754 = vmatprep.subr.bf16.mxu0 0
      %8755 = vmatpush1.bf16.msra.mxu0 %v8645
      %8756 = vmatprep.subr.bf16.mxu0 0
      %8757 = vmatpush1.bf16.msra.mxu0 %v8644
      %8758 = vmatprep.subr.bf16.mxu0 0
      %8759 = vmatpush1.bf16.msra.mxu0 %v8643
      %8760 = vmatprep.subr.bf16.mxu0 0
      %8761 = vmatpush1.bf16.msra.mxu0 %v8642
      %8762 = vmatprep.subr.bf16.mxu0 0
      %8763 = vmatpush2.bf16.msra.mxu0 0
      %8764 = vmatprep.subr.bf16.mxu0 0
      %8765 = vmatpush2.bf16.msra.mxu0 0
      %8766 = vmatprep.subr.bf16.mxu0 0
      %8767 = vmatpush2.bf16.msra.mxu0 0
      %8768 = vmatprep.subr.bf16.mxu0 0
      %8769 = vmatpush2.bf16.msra.mxu0 0
      %8770 = vmatprep.subr.bf16.mxu0 0
      %8771 = vmatpush2.bf16.msra.mxu0 0
      %8772 = vmatprep.subr.bf16.mxu0 0
      %8773 = vmatpush2.bf16.msra.mxu0 0
      %8774 = vmatprep.subr.bf16.mxu0 0
      %8775 = vmatpush2.bf16.msra.mxu0 0
      %8776 = vmatprep.subr.bf16.mxu0 0
      %8777 = vmatpush2.bf16.msra.mxu0 0
      %8778 = vmatprep.mubr.bf16.mxu0 0
      %8779 = vmatmul.mubr.bf16.gmra.mxu0 %v8651
      %v8780 = vpop.f32.mrf.mxu0
      %v8781 = vadd.f32 %v8624, %v8780
      %v8782 = vpop.f32.mrf.mxu0
      %v8783 = vpop.f32.mrf.mxu0
      %v8784 = vadd.f32 %v8624, %v8783
      %v8785 = vpop.f32.mrf.mxu0
      %8786 = vmatprep.mubr.bf16.mxu0 0
      %8787 = vmatmul.mubr.bf16.gmra.mxu0 %v8654
      %v8788 = vpop.f32.mrf.mxu0
      %v8789 = vadd.f32 %v8624, %v8788
      %v8790 = vpop.f32.mrf.mxu0
      %v8791 = vpop.f32.mrf.mxu0
      %v8792 = vadd.f32 %v8624, %v8791
      %v8793 = vpop.f32.mrf.mxu0
      %8794 = vmatprep.mubr.bf16.mxu0 0
      %8795 = vmatmul.mubr.bf16.gmra.mxu0 %v8657
      %v8796 = vpop.f32.mrf.mxu0
      %v8797 = vadd.f32 %v8624, %v8796
      %v8798 = vpop.f32.mrf.mxu0
      %v8799 = vpop.f32.mrf.mxu0
      %v8800 = vadd.f32 %v8624, %v8799
      %v8801 = vpop.f32.mrf.mxu0
      %8802 = vmatprep.mubr.bf16.mxu0 0
      %8803 = vmatmul.mubr.bf16.gmra.mxu0 %v8660
      %v8804 = vpop.f32.mrf.mxu0
      %v8805 = vadd.f32 %v8624, %v8804
      %v8806 = vpop.f32.mrf.mxu0
      %v8807 = vpop.f32.mrf.mxu0
      %v8808 = vadd.f32 %v8624, %v8807
      %v8809 = vpop.f32.mrf.mxu0
      %8810 = vmatprep.mubr.bf16.mxu0 0
      %8811 = vmatmul.mubr.bf16.gmra.mxu0 %v8663
      %v8812 = vpop.f32.mrf.mxu0
      %v8813 = vadd.f32 %v8624, %v8812
      %v8814 = vpop.f32.mrf.mxu0
      %v8815 = vpop.f32.mrf.mxu0
      %v8816 = vadd.f32 %v8624, %v8815
      %v8817 = vpop.f32.mrf.mxu0
      %8818 = vmatprep.mubr.bf16.mxu0 0
      %8819 = vmatmul.mubr.bf16.gmra.mxu0 %v8666
      %v8820 = vpop.f32.mrf.mxu0
      %v8821 = vadd.f32 %v8624, %v8820
      %v8822 = vpop.f32.mrf.mxu0
      %v8823 = vpop.f32.mrf.mxu0
      %v8824 = vadd.f32 %v8624, %v8823
      %v8825 = vpop.f32.mrf.mxu0
      %8826 = vmatprep.mubr.bf16.mxu0 0
      %8827 = vmatmul.mubr.bf16.gmra.mxu0 %v8669
      %v8828 = vpop.f32.mrf.mxu0
      %v8829 = vadd.f32 %v8624, %v8828
      %v8830 = vpop.f32.mrf.mxu0
      %v8831 = vpop.f32.mrf.mxu0
      %v8832 = vadd.f32 %v8624, %v8831
      %v8833 = vpop.f32.mrf.mxu0
      %8834 = vmatprep.mubr.bf16.mxu0 0
      %8835 = vmatmul.mubr.bf16.gmra.mxu0 %v8672
      %v8836 = vpop.f32.mrf.mxu0
      %v8837 = vadd.f32 %v8624, %v8836
      %v8838 = vpop.f32.mrf.mxu0
      %v8839 = vpop.f32.mrf.mxu0
      %v8840 = vadd.f32 %v8624, %v8839
      %v8841 = vpop.f32.mrf.mxu0
      %8842 = vmatprep.mubr.bf16.mxu0 0
      %8843 = vmatmul.mubr.bf16.gmra.mxu0 %v8675
      %v8844 = vpop.f32.mrf.mxu0
      %v8845 = vadd.f32 %v8624, %v8844
      %v8846 = vpop.f32.mrf.mxu0
      %v8847 = vpop.f32.mrf.mxu0
      %v8848 = vadd.f32 %v8624, %v8847
      %v8849 = vpop.f32.mrf.mxu0
      %8850 = vmatprep.mubr.bf16.mxu0 0
      %8851 = vmatmul.mubr.bf16.gmra.mxu0 %v8678
      %v8852 = vpop.f32.mrf.mxu0
      %v8853 = vadd.f32 %v8624, %v8852
      %v8854 = vpop.f32.mrf.mxu0
      %v8855 = vpop.f32.mrf.mxu0
      %v8856 = vadd.f32 %v8624, %v8855
      %v8857 = vpop.f32.mrf.mxu0
      %8858 = vmatprep.mubr.bf16.mxu0 0
      %8859 = vmatmul.mubr.bf16.gmra.mxu0 %v8681
      %v8860 = vpop.f32.mrf.mxu0
      %v8861 = vadd.f32 %v8624, %v8860
      %v8862 = vpop.f32.mrf.mxu0
      %v8863 = vpop.f32.mrf.mxu0
      %v8864 = vadd.f32 %v8624, %v8863
      %v8865 = vpop.f32.mrf.mxu0
      %8866 = vmatprep.mubr.bf16.mxu0 0
      %8867 = vmatmul.mubr.bf16.gmra.mxu0 %v8684
      %v8868 = vpop.f32.mrf.mxu0
      %v8869 = vadd.f32 %v8624, %v8868
      %v8870 = vpop.f32.mrf.mxu0
      %v8871 = vpop.f32.mrf.mxu0
      %v8872 = vadd.f32 %v8624, %v8871
      %v8873 = vpop.f32.mrf.mxu0
      %8874 = vmatprep.mubr.bf16.mxu0 0
      %8875 = vmatmul.mubr.bf16.gmra.mxu0 %v8687
      %v8876 = vpop.f32.mrf.mxu0
      %v8877 = vadd.f32 %v8624, %v8876
      %v8878 = vpop.f32.mrf.mxu0
      %v8879 = vpop.f32.mrf.mxu0
      %v8880 = vadd.f32 %v8624, %v8879
      %v8881 = vpop.f32.mrf.mxu0
      %8882 = vmatprep.mubr.bf16.mxu0 0
      %8883 = vmatmul.mubr.bf16.gmra.mxu0 %v8690
      %v8884 = vpop.f32.mrf.mxu0
      %v8885 = vadd.f32 %v8624, %v8884
      %v8886 = vpop.f32.mrf.mxu0
      %v8887 = vpop.f32.mrf.mxu0
      %v8888 = vadd.f32 %v8624, %v8887
      %v8889 = vpop.f32.mrf.mxu0
      %8890 = vmatprep.mubr.bf16.mxu0 0
      %8891 = vmatmul.mubr.bf16.gmra.mxu0 %v8693
      %v8892 = vpop.f32.mrf.mxu0
      %v8893 = vadd.f32 %v8624, %v8892
      %v8894 = vpop.f32.mrf.mxu0
      %v8895 = vpop.f32.mrf.mxu0
      %v8896 = vadd.f32 %v8624, %v8895
      %v8897 = vpop.f32.mrf.mxu0
      %8898 = vmatprep.mubr.bf16.mxu0 0
      %8899 = vmatmul.mubr.bf16.gmra.mxu0 %v8696
      %v8900 = vpop.f32.mrf.mxu0
      %v8901 = vadd.f32 %v8624, %v8900
      %v8902 = vpop.f32.mrf.mxu0
      %v8903 = vpop.f32.mrf.mxu0
      %v8904 = vadd.f32 %v8624, %v8903
      %v8905 = vpop.f32.mrf.mxu0
      %8906 = vmatprep.mubr.bf16.mxu0 0
      %8907 = vmatmul.mubr.bf16.gmra.mxu0 %v8699
      %v8908 = vpop.f32.mrf.mxu0
      %v8909 = vadd.f32 %v8624, %v8908
      %v8910 = vpop.f32.mrf.mxu0
      %v8911 = vpop.f32.mrf.mxu0
      %v8912 = vadd.f32 %v8624, %v8911
      %v8913 = vpop.f32.mrf.mxu0
      %8914 = vmatprep.mubr.bf16.mxu0 0
      %8915 = vmatmul.mubr.bf16.gmra.mxu0 %v8702
      %v8916 = vpop.f32.mrf.mxu0
      %v8917 = vadd.f32 %v8624, %v8916
      %v8918 = vpop.f32.mrf.mxu0
      %v8919 = vpop.f32.mrf.mxu0
      %v8920 = vadd.f32 %v8624, %v8919
      %v8921 = vpop.f32.mrf.mxu0
      %8922 = vmatprep.mubr.bf16.mxu0 0
      %8923 = vmatmul.mubr.bf16.gmra.mxu0 %v8705
      %v8924 = vpop.f32.mrf.mxu0
      %v8925 = vadd.f32 %v8624, %v8924
      %v8926 = vpop.f32.mrf.mxu0
      %v8927 = vpop.f32.mrf.mxu0
      %v8928 = vadd.f32 %v8624, %v8927
      %v8929 = vpop.f32.mrf.mxu0
      %8930 = vmatprep.mubr.bf16.mxu0 0
      %8931 = vmatmul.mubr.bf16.gmra.mxu0 %v8708
      %v8932 = vpop.f32.mrf.mxu0
      %v8933 = vadd.f32 %v8624, %v8932
      %v8934 = vpop.f32.mrf.mxu0
      %v8935 = vpop.f32.mrf.mxu0
      %v8936 = vadd.f32 %v8624, %v8935
      %v8937 = vpop.f32.mrf.mxu0
      %8938 = vmatprep.mubr.bf16.mxu0 0
      %8939 = vmatmul.mubr.bf16.gmra.mxu0 %v8711
      %v8940 = vpop.f32.mrf.mxu0
      %v8941 = vadd.f32 %v8624, %v8940
      %v8942 = vpop.f32.mrf.mxu0
      %v8943 = vpop.f32.mrf.mxu0
      %v8944 = vadd.f32 %v8624, %v8943
      %v8945 = vpop.f32.mrf.mxu0
      %8946 = vmatprep.mubr.bf16.mxu0 0
      %8947 = vmatmul.mubr.bf16.gmra.mxu0 %v8714
      %v8948 = vpop.f32.mrf.mxu0
      %v8949 = vadd.f32 %v8624, %v8948
      %v8950 = vpop.f32.mrf.mxu0
      %v8951 = vpop.f32.mrf.mxu0
      %v8952 = vadd.f32 %v8624, %v8951
      %v8953 = vpop.f32.mrf.mxu0
      %8954 = vmatprep.mubr.bf16.mxu0 0
      %8955 = vmatmul.mubr.bf16.gmra.mxu0 %v8717
      %v8956 = vpop.f32.mrf.mxu0
      %v8957 = vadd.f32 %v8624, %v8956
      %v8958 = vpop.f32.mrf.mxu0
      %v8959 = vpop.f32.mrf.mxu0
      %v8960 = vadd.f32 %v8624, %v8959
      %v8961 = vpop.f32.mrf.mxu0
      %8962 = vmatprep.mubr.bf16.mxu0 0
      %8963 = vmatmul.mubr.bf16.gmra.mxu0 %v8720
      %v8964 = vpop.f32.mrf.mxu0
      %v8965 = vadd.f32 %v8624, %v8964
      %v8966 = vpop.f32.mrf.mxu0
      %v8967 = vpop.f32.mrf.mxu0
      %v8968 = vadd.f32 %v8624, %v8967
      %v8969 = vpop.f32.mrf.mxu0
      %8970 = vmatprep.mubr.bf16.mxu0 0
      %8971 = vmatmul.mubr.bf16.gmra.mxu0 %v8723
      %v8972 = vpop.f32.mrf.mxu0
      %v8973 = vadd.f32 %v8624, %v8972
      %v8974 = vpop.f32.mrf.mxu0
      %v8975 = vpop.f32.mrf.mxu0
      %v8976 = vadd.f32 %v8624, %v8975
      %v8977 = vpop.f32.mrf.mxu0
      %8978 = vmatprep.mubr.bf16.mxu0 0
      %8979 = vmatmul.mubr.bf16.gmra.mxu0 %v8726
      %v8980 = vpop.f32.mrf.mxu0
      %v8981 = vadd.f32 %v8624, %v8980
      %v8982 = vpop.f32.mrf.mxu0
      %v8983 = vpop.f32.mrf.mxu0
      %v8984 = vadd.f32 %v8624, %v8983
      %v8985 = vpop.f32.mrf.mxu0
      %8986 = vmatprep.mubr.bf16.mxu0 0
      %8987 = vmatmul.mubr.bf16.gmra.mxu0 %v8729
      %v8988 = vpop.f32.mrf.mxu0
      %v8989 = vadd.f32 %v8624, %v8988
      %v8990 = vpop.f32.mrf.mxu0
      %v8991 = vpop.f32.mrf.mxu0
      %v8992 = vadd.f32 %v8624, %v8991
      %v8993 = vpop.f32.mrf.mxu0
      %8994 = vmatprep.mubr.bf16.mxu0 0
      %8995 = vmatmul.mubr.bf16.gmra.mxu0 %v8732
      %v8996 = vpop.f32.mrf.mxu0
      %v8997 = vadd.f32 %v8624, %v8996
      %v8998 = vpop.f32.mrf.mxu0
      %v8999 = vpop.f32.mrf.mxu0
      %v9000 = vadd.f32 %v8624, %v8999
      %v9001 = vpop.f32.mrf.mxu0
      %9002 = vmatprep.mubr.bf16.mxu0 0
      %9003 = vmatmul.mubr.bf16.gmra.mxu0 %v8735
      %v9004 = vpop.f32.mrf.mxu0
      %v9005 = vadd.f32 %v8624, %v9004
      %v9006 = vpop.f32.mrf.mxu0
      %v9007 = vpop.f32.mrf.mxu0
      %v9008 = vadd.f32 %v8624, %v9007
      %v9009 = vpop.f32.mrf.mxu0
      %9010 = vmatprep.mubr.bf16.mxu0 0
      %9011 = vmatmul.mubr.bf16.gmra.mxu0 %v8738
      %v9012 = vpop.f32.mrf.mxu0
      %v9013 = vadd.f32 %v8624, %v9012
      %v9014 = vpop.f32.mrf.mxu0
      %v9015 = vpop.f32.mrf.mxu0
      %v9016 = vadd.f32 %v8624, %v9015
      %v9017 = vpop.f32.mrf.mxu0
      %9018 = vmatprep.mubr.bf16.mxu0 0
      %9019 = vmatmul.mubr.bf16.gmra.mxu0 %v8741
      %v9020 = vpop.f32.mrf.mxu0
      %v9021 = vadd.f32 %v8624, %v9020
      %v9022 = vpop.f32.mrf.mxu0
      %v9023 = vpop.f32.mrf.mxu0
      %v9024 = vadd.f32 %v8624, %v9023
      %v9025 = vpop.f32.mrf.mxu0
      %9026 = vmatprep.mubr.bf16.mxu0 0
      %9027 = vmatmul.mubr.bf16.gmra.mxu0 %v8744
      %v9028 = vpop.f32.mrf.mxu0
      %v9029 = vadd.f32 %v8624, %v9028
      %v9030 = vpop.f32.mrf.mxu0
      %v9031 = vpop.f32.mrf.mxu0
      %v9032 = vadd.f32 %v8624, %v9031
      %v9033 = vpop.f32.mrf.mxu0
      %9034 = vdwg.mxu0
      %v9035 = vadd.f32 %v8323, %v8781
      %v9036 = vadd.f32 %v8326, %v8784
      %v9037 = vadd.f32 %v8329, %v8789
      %v9038 = vadd.f32 %v8332, %v8792
      %v9039 = vadd.f32 %v8335, %v8797
      %v9040 = vadd.f32 %v8338, %v8800
      %v9041 = vadd.f32 %v8341, %v8805
      %v9042 = vadd.f32 %v8344, %v8808
      %v9043 = vadd.f32 %v8347, %v8813
      %v9044 = vadd.f32 %v8350, %v8816
      %v9045 = vadd.f32 %v8353, %v8821
      %v9046 = vadd.f32 %v8356, %v8824
      %v9047 = vadd.f32 %v8359, %v8829
      %v9048 = vadd.f32 %v8362, %v8832
      %v9049 = vadd.f32 %v8365, %v8837
      %v9050 = vadd.f32 %v8368, %v8840
      %v9051 = vadd.f32 %v8371, %v8845
      %v9052 = vadd.f32 %v8374, %v8848
      %v9053 = vadd.f32 %v8377, %v8853
      %v9054 = vadd.f32 %v8380, %v8856
      %v9055 = vadd.f32 %v8383, %v8861
      %v9056 = vadd.f32 %v8386, %v8864
      %v9057 = vadd.f32 %v8389, %v8869
      %v9058 = vadd.f32 %v8392, %v8872
      %v9059 = vadd.f32 %v8395, %v8877
      %v9060 = vadd.f32 %v8398, %v8880
      %v9061 = vadd.f32 %v8401, %v8885
      %v9062 = vadd.f32 %v8404, %v8888
      %v9063 = vadd.f32 %v8407, %v8893
      %v9064 = vadd.f32 %v8410, %v8896
      %v9065 = vadd.f32 %v8413, %v8901
      %v9066 = vadd.f32 %v8416, %v8904
      %v9067 = vadd.f32 %v8419, %v8909
      %v9068 = vadd.f32 %v8422, %v8912
      %v9069 = vadd.f32 %v8425, %v8917
      %v9070 = vadd.f32 %v8428, %v8920
      %v9071 = vadd.f32 %v8431, %v8925
      %v9072 = vadd.f32 %v8434, %v8928
      %v9073 = vadd.f32 %v8437, %v8933
      %v9074 = vadd.f32 %v8440, %v8936
      %v9075 = vadd.f32 %v8443, %v8941
      %v9076 = vadd.f32 %v8446, %v8944
      %v9077 = vadd.f32 %v8449, %v8949
      %v9078 = vadd.f32 %v8452, %v8952
      %v9079 = vadd.f32 %v8455, %v8957
      %v9080 = vadd.f32 %v8458, %v8960
      %v9081 = vadd.f32 %v8461, %v8965
      %v9082 = vadd.f32 %v8464, %v8968
      %v9083 = vadd.f32 %v8467, %v8973
      %v9084 = vadd.f32 %v8470, %v8976
      %v9085 = vadd.f32 %v8473, %v8981
      %v9086 = vadd.f32 %v8476, %v8984
      %v9087 = vadd.f32 %v8479, %v8989
      %v9088 = vadd.f32 %v8482, %v8992
      %v9089 = vadd.f32 %v8485, %v8997
      %v9090 = vadd.f32 %v8488, %v9000
      %v9091 = vadd.f32 %v8491, %v9005
      %v9092 = vadd.f32 %v8494, %v9008
      %v9093 = vadd.f32 %v8497, %v9013
      %v9094 = vadd.f32 %v8500, %v9016
      %v9095 = vadd.f32 %v8503, %v9021
      %v9096 = vadd.f32 %v8506, %v9024
      %v9097 = vadd.f32 %v8509, %v9029
      %v9098 = vadd.f32 %v8512, %v9032
      %v9099 = vpack.c.bf16 %v9036, %v9035
      %v9100 = vpack.c.bf16 %v9038, %v9037
      %v9101 = vpack.c.bf16 %v9040, %v9039
      %v9102 = vpack.c.bf16 %v9042, %v9041
      %v9103 = vpack.c.bf16 %v9044, %v9043
      %v9104 = vpack.c.bf16 %v9046, %v9045
      %v9105 = vpack.c.bf16 %v9048, %v9047
      %v9106 = vpack.c.bf16 %v9050, %v9049
      %v9107 = vpack.c.bf16 %v9052, %v9051
      %v9108 = vpack.c.bf16 %v9054, %v9053
      %v9109 = vpack.c.bf16 %v9056, %v9055
      %v9110 = vpack.c.bf16 %v9058, %v9057
      %v9111 = vpack.c.bf16 %v9060, %v9059
      %v9112 = vpack.c.bf16 %v9062, %v9061
      %v9113 = vpack.c.bf16 %v9064, %v9063
      %v9114 = vpack.c.bf16 %v9066, %v9065
      %v9115 = vpack.c.bf16 %v9068, %v9067
      %v9116 = vpack.c.bf16 %v9070, %v9069
      %v9117 = vpack.c.bf16 %v9072, %v9071
      %v9118 = vpack.c.bf16 %v9074, %v9073
      %v9119 = vpack.c.bf16 %v9076, %v9075
      %v9120 = vpack.c.bf16 %v9078, %v9077
      %v9121 = vpack.c.bf16 %v9080, %v9079
      %v9122 = vpack.c.bf16 %v9082, %v9081
      %v9123 = vpack.c.bf16 %v9084, %v9083
      %v9124 = vpack.c.bf16 %v9086, %v9085
      %v9125 = vpack.c.bf16 %v9088, %v9087
      %v9126 = vpack.c.bf16 %v9090, %v9089
      %v9127 = vpack.c.bf16 %v9092, %v9091
      %v9128 = vpack.c.bf16 %v9094, %v9093
      %v9129 = vpack.c.bf16 %v9096, %v9095
      %v9130 = vpack.c.bf16 %v9098, %v9097
      %v9163 = vunpack.c.l.b16 %v9099
      %v9164 = vunpack.c.h.b16 %v9099
      %v9165 = vunpack.c.l.b16 %v9100
      %v9166 = vunpack.c.h.b16 %v9100
      %v9167 = vunpack.c.l.b16 %v9101
      %v9168 = vunpack.c.h.b16 %v9101
      %v9169 = vunpack.c.l.b16 %v9102
      %v9170 = vunpack.c.h.b16 %v9102
      %v9171 = vunpack.c.l.b16 %v9103
      %v9172 = vunpack.c.h.b16 %v9103
      %v9173 = vunpack.c.l.b16 %v9104
      %v9174 = vunpack.c.h.b16 %v9104
      %v9175 = vunpack.c.l.b16 %v9105
      %v9176 = vunpack.c.h.b16 %v9105
      %v9177 = vunpack.c.l.b16 %v9106
      %v9178 = vunpack.c.h.b16 %v9106
      %v9179 = vunpack.c.l.b16 %v9107
      %v9180 = vunpack.c.h.b16 %v9107
      %v9181 = vunpack.c.l.b16 %v9108
      %v9182 = vunpack.c.h.b16 %v9108
      %v9183 = vunpack.c.l.b16 %v9109
      %v9184 = vunpack.c.h.b16 %v9109
      %v9185 = vunpack.c.l.b16 %v9110
      %v9186 = vunpack.c.h.b16 %v9110
      %v9187 = vunpack.c.l.b16 %v9111
      %v9188 = vunpack.c.h.b16 %v9111
      %v9189 = vunpack.c.l.b16 %v9112
      %v9190 = vunpack.c.h.b16 %v9112
      %v9191 = vunpack.c.l.b16 %v9113
      %v9192 = vunpack.c.h.b16 %v9113
      %v9193 = vunpack.c.l.b16 %v9114
      %v9194 = vunpack.c.h.b16 %v9114
      %v9195 = vunpack.c.l.b16 %v9115
      %v9196 = vunpack.c.h.b16 %v9115
      %v9197 = vunpack.c.l.b16 %v9116
      %v9198 = vunpack.c.h.b16 %v9116
      %v9199 = vunpack.c.l.b16 %v9117
      %v9200 = vunpack.c.h.b16 %v9117
      %v9201 = vunpack.c.l.b16 %v9118
      %v9202 = vunpack.c.h.b16 %v9118
      %v9203 = vunpack.c.l.b16 %v9119
      %v9204 = vunpack.c.h.b16 %v9119
      %v9205 = vunpack.c.l.b16 %v9120
      %v9206 = vunpack.c.h.b16 %v9120
      %v9207 = vunpack.c.l.b16 %v9121
      %v9208 = vunpack.c.h.b16 %v9121
      %v9209 = vunpack.c.l.b16 %v9122
      %v9210 = vunpack.c.h.b16 %v9122
      %v9211 = vunpack.c.l.b16 %v9123
      %v9212 = vunpack.c.h.b16 %v9123
      %v9213 = vunpack.c.l.b16 %v9124
      %v9214 = vunpack.c.h.b16 %v9124
      %v9215 = vunpack.c.l.b16 %v9125
      %v9216 = vunpack.c.h.b16 %v9125
      %v9217 = vunpack.c.l.b16 %v9126
      %v9218 = vunpack.c.h.b16 %v9126
      %v9219 = vunpack.c.l.b16 %v9127
      %v9220 = vunpack.c.h.b16 %v9127
      %v9221 = vunpack.c.l.b16 %v9128
      %v9222 = vunpack.c.h.b16 %v9128
      %v9223 = vunpack.c.l.b16 %v9129
      %v9224 = vunpack.c.h.b16 %v9129
      %v9225 = vunpack.c.l.b16 %v9130
      %v9226 = vunpack.c.h.b16 %v9130
      %v9227 = vpack.c.b16 %v9163, %v9163
      %v9228 = vpack.c.b16 %v9164, %v9164
      %v9229 = vpack.c.b16 %v9165, %v9165
      %v9230 = vpack.c.b16 %v9166, %v9166
      %v9231 = vpack.c.b16 %v9167, %v9167
      %v9232 = vpack.c.b16 %v9168, %v9168
      %v9233 = vpack.c.b16 %v9169, %v9169
      %v9234 = vpack.c.b16 %v9170, %v9170
      %v9235 = vpack.c.b16 %v9171, %v9171
      %v9236 = vpack.c.b16 %v9172, %v9172
      %v9237 = vpack.c.b16 %v9173, %v9173
      %v9238 = vpack.c.b16 %v9174, %v9174
      %v9239 = vpack.c.b16 %v9175, %v9175
      %v9240 = vpack.c.b16 %v9176, %v9176
      %v9241 = vpack.c.b16 %v9177, %v9177
      %v9242 = vpack.c.b16 %v9178, %v9178
      %v9243 = vpack.c.b16 %v9179, %v9179
      %v9244 = vpack.c.b16 %v9180, %v9180
      %v9245 = vpack.c.b16 %v9181, %v9181
      %v9246 = vpack.c.b16 %v9182, %v9182
      %v9247 = vpack.c.b16 %v9183, %v9183
      %v9248 = vpack.c.b16 %v9184, %v9184
      %v9249 = vpack.c.b16 %v9185, %v9185
      %v9250 = vpack.c.b16 %v9186, %v9186
      %v9251 = vpack.c.b16 %v9187, %v9187
      %v9252 = vpack.c.b16 %v9188, %v9188
      %v9253 = vpack.c.b16 %v9189, %v9189
      %v9254 = vpack.c.b16 %v9190, %v9190
      %v9255 = vpack.c.b16 %v9191, %v9191
      %v9256 = vpack.c.b16 %v9192, %v9192
      %v9257 = vpack.c.b16 %v9193, %v9193
      %v9258 = vpack.c.b16 %v9194, %v9194
      %v9259 = vpack.c.b16 %v9195, %v9195
      %v9260 = vpack.c.b16 %v9196, %v9196
      %v9261 = vpack.c.b16 %v9197, %v9197
      %v9262 = vpack.c.b16 %v9198, %v9198
      %v9263 = vpack.c.b16 %v9199, %v9199
      %v9264 = vpack.c.b16 %v9200, %v9200
      %v9265 = vpack.c.b16 %v9201, %v9201
      %v9266 = vpack.c.b16 %v9202, %v9202
      %v9267 = vpack.c.b16 %v9203, %v9203
      %v9268 = vpack.c.b16 %v9204, %v9204
      %v9269 = vpack.c.b16 %v9205, %v9205
      %v9270 = vpack.c.b16 %v9206, %v9206
      %v9271 = vpack.c.b16 %v9207, %v9207
      %v9272 = vpack.c.b16 %v9208, %v9208
      %v9273 = vpack.c.b16 %v9209, %v9209
      %v9274 = vpack.c.b16 %v9210, %v9210
      %v9275 = vpack.c.b16 %v9211, %v9211
      %v9276 = vpack.c.b16 %v9212, %v9212
      %v9277 = vpack.c.b16 %v9213, %v9213
      %v9278 = vpack.c.b16 %v9214, %v9214
      %v9279 = vpack.c.b16 %v9215, %v9215
      %v9280 = vpack.c.b16 %v9216, %v9216
      %v9281 = vpack.c.b16 %v9217, %v9217
      %v9282 = vpack.c.b16 %v9218, %v9218
      %v9283 = vpack.c.b16 %v9219, %v9219
      %v9284 = vpack.c.b16 %v9220, %v9220
      %v9285 = vpack.c.b16 %v9221, %v9221
      %v9286 = vpack.c.b16 %v9222, %v9222
      %v9287 = vpack.c.b16 %v9223, %v9223
      %v9288 = vpack.c.b16 %v9224, %v9224
      %v9289 = vpack.c.b16 %v9225, %v9225
      %v9290 = vpack.c.b16 %v9226, %v9226
      %vm9355 = vcmask 519168
      %9356 = vst.msk [vmem:[%s279] sm:$0xf] %vm9355, %v9227
      %9357 = vst.msk [vmem:[%s279 + $0x4] sm:$0xf] %vm9355, %v9228
      %9358 = vst.msk [vmem:[%s279 + $0x8] sm:$0xf] %vm9355, %v9229
      %9359 = vst.msk [vmem:[%s279 + $0xc] sm:$0xf] %vm9355, %v9230
      %9360 = vst.msk [vmem:[%s279 + $0x10] sm:$0xf] %vm9355, %v9231
      %9361 = vst.msk [vmem:[%s279 + $0x14] sm:$0xf] %vm9355, %v9232
      %9362 = vst.msk [vmem:[%s279 + $0x18] sm:$0xf] %vm9355, %v9233
      %9363 = vst.msk [vmem:[%s279 + $0x1c] sm:$0xf] %vm9355, %v9234
      %9364 = vst.msk [vmem:[%s279 + $0x20] sm:$0xf] %vm9355, %v9235
      %9365 = vst.msk [vmem:[%s279 + $0x24] sm:$0xf] %vm9355, %v9236
      %9366 = vst.msk [vmem:[%s279 + $0x28] sm:$0xf] %vm9355, %v9237
      %9367 = vst.msk [vmem:[%s279 + $0x2c] sm:$0xf] %vm9355, %v9238
      %9368 = vst.msk [vmem:[%s279 + $0x30] sm:$0xf] %vm9355, %v9239
      %9369 = vst.msk [vmem:[%s279 + $0x34] sm:$0xf] %vm9355, %v9240
      %9370 = vst.msk [vmem:[%s279 + $0x38] sm:$0xf] %vm9355, %v9241
      %9371 = vst.msk [vmem:[%s279 + $0x3c] sm:$0xf] %vm9355, %v9242
      %9372 = vst.msk [vmem:[%s279 + $0x40] sm:$0xf] %vm9355, %v9243
      %9373 = vst.msk [vmem:[%s279 + $0x44] sm:$0xf] %vm9355, %v9244
      %9374 = vst.msk [vmem:[%s279 + $0x48] sm:$0xf] %vm9355, %v9245
      %9375 = vst.msk [vmem:[%s279 + $0x4c] sm:$0xf] %vm9355, %v9246
      %9376 = vst.msk [vmem:[%s279 + $0x50] sm:$0xf] %vm9355, %v9247
      %9377 = vst.msk [vmem:[%s279 + $0x54] sm:$0xf] %vm9355, %v9248
      %9378 = vst.msk [vmem:[%s279 + $0x58] sm:$0xf] %vm9355, %v9249
      %9379 = vst.msk [vmem:[%s279 + $0x5c] sm:$0xf] %vm9355, %v9250
      %9380 = vst.msk [vmem:[%s279 + $0x60] sm:$0xf] %vm9355, %v9251
      %9381 = vst.msk [vmem:[%s279 + $0x64] sm:$0xf] %vm9355, %v9252
      %9382 = vst.msk [vmem:[%s279 + $0x68] sm:$0xf] %vm9355, %v9253
      %9383 = vst.msk [vmem:[%s279 + $0x6c] sm:$0xf] %vm9355, %v9254
      %9384 = vst.msk [vmem:[%s279 + $0x70] sm:$0xf] %vm9355, %v9255
      %9385 = vst.msk [vmem:[%s279 + $0x74] sm:$0xf] %vm9355, %v9256
      %9386 = vst.msk [vmem:[%s279 + $0x78] sm:$0xf] %vm9355, %v9257
      %9387 = vst.msk [vmem:[%s279 + $0x7c] sm:$0xf] %vm9355, %v9258
      %9388 = vst.msk [vmem:[%s279 + $0x80] sm:$0xf] %vm9355, %v9259
      %9389 = vst.msk [vmem:[%s279 + $0x84] sm:$0xf] %vm9355, %v9260
      %9390 = vst.msk [vmem:[%s279 + $0x88] sm:$0xf] %vm9355, %v9261
      %9391 = vst.msk [vmem:[%s279 + $0x8c] sm:$0xf] %vm9355, %v9262
      %9392 = vst.msk [vmem:[%s279 + $0x90] sm:$0xf] %vm9355, %v9263
      %9393 = vst.msk [vmem:[%s279 + $0x94] sm:$0xf] %vm9355, %v9264
      %9394 = vst.msk [vmem:[%s279 + $0x98] sm:$0xf] %vm9355, %v9265
      %9395 = vst.msk [vmem:[%s279 + $0x9c] sm:$0xf] %vm9355, %v9266
      %9396 = vst.msk [vmem:[%s279 + $0xa0] sm:$0xf] %vm9355, %v9267
      %9397 = vst.msk [vmem:[%s279 + $0xa4] sm:$0xf] %vm9355, %v9268
      %9398 = vst.msk [vmem:[%s279 + $0xa8] sm:$0xf] %vm9355, %v9269
      %9399 = vst.msk [vmem:[%s279 + $0xac] sm:$0xf] %vm9355, %v9270
      %9400 = vst.msk [vmem:[%s279 + $0xb0] sm:$0xf] %vm9355, %v9271
      %9401 = vst.msk [vmem:[%s279 + $0xb4] sm:$0xf] %vm9355, %v9272
      %9402 = vst.msk [vmem:[%s279 + $0xb8] sm:$0xf] %vm9355, %v9273
      %9403 = vst.msk [vmem:[%s279 + $0xbc] sm:$0xf] %vm9355, %v9274
      %9404 = vst.msk [vmem:[%s279 + $0xc0] sm:$0xf] %vm9355, %v9275
      %9405 = vst.msk [vmem:[%s279 + $0xc4] sm:$0xf] %vm9355, %v9276
      %9406 = vst.msk [vmem:[%s279 + $0xc8] sm:$0xf] %vm9355, %v9277
      %9407 = vst.msk [vmem:[%s279 + $0xcc] sm:$0xf] %vm9355, %v9278
      %9408 = vst.msk [vmem:[%s279 + $0xd0] sm:$0xf] %vm9355, %v9279
      %9409 = vst.msk [vmem:[%s279 + $0xd4] sm:$0xf] %vm9355, %v9280
      %9410 = vst.msk [vmem:[%s279 + $0xd8] sm:$0xf] %vm9355, %v9281
      %9411 = vst.msk [vmem:[%s279 + $0xdc] sm:$0xf] %vm9355, %v9282
      %9412 = vst.msk [vmem:[%s279 + $0xe0] sm:$0xf] %vm9355, %v9283
      %9413 = vst.msk [vmem:[%s279 + $0xe4] sm:$0xf] %vm9355, %v9284
      %9414 = vst.msk [vmem:[%s279 + $0xe8] sm:$0xf] %vm9355, %v9285
      %9415 = vst.msk [vmem:[%s279 + $0xec] sm:$0xf] %vm9355, %v9286
      %9416 = vst.msk [vmem:[%s279 + $0xf0] sm:$0xf] %vm9355, %v9287
      %9417 = vst.msk [vmem:[%s279 + $0xf4] sm:$0xf] %vm9355, %v9288
      %9418 = vst.msk [vmem:[%s279 + $0xf8] sm:$0xf] %vm9355, %v9289
      %9419 = vst.msk [vmem:[%s279 + $0xfc] sm:$0xf] %vm9355, %v9290
      %s9420 = smul.u32 64, %s21
      %p9421 = scmp.lt.s32.totalorder %s20, 1
      %s9422 = scalar_select %p9421, %s20, 1
      %p9423 = scmp.lt.s32.totalorder %s9420, 63
      %s9424 = scalar_select %p9423, %s9420, 63
      %s9425 = smul.addr %s9422, 64
      %s9426 = sadd.s32 %s9424, %s9425
      %s9427 = smul.addr %s9426, 4
      %s9428 = scalar_lea.vmem %s5, %s9427
      // Predicated region
      $region41: #{tpu_custom_call.1} parent=39 // pred_check
        %p9429 = pneg %p165
      $region42: #{tpu_custom_call.1} parent=39 // pred_check_branch
        %9431 = sbr.rel (%p9429) target = $region44
      $region43: #{tpu_custom_call.1} parent=39 // pred_region
        %s9432 = smul.u32 64, %s21
      $region44: #{tpu_custom_call.1} parent=39 // pred_fallthru
        _
    $region40: #{tpu_custom_call.1} parent=5 // pred_fallthru
      _
    %p9433 = scmp.le.s32.totalorder 2, %s11
    // Predicated region
    $region45: #{tpu_custom_call.1} parent=5 // pred_check
      %p9434 = pneg %p9433
    $region46: #{tpu_custom_call.1} parent=5 // pred_check_branch
      %9436 = sbr.rel (%p9434) target = $region48
    $region47: #{tpu_custom_call.1} parent=5 // pred_region
      %s9437 = ssub.s32 %s11, 2
      // Predicated region
      $region49: #{tpu_custom_call.1} parent=47 // pred_check
        %p9438 = pneg %p171
      $region50: #{tpu_custom_call.1} parent=47 // pred_check_branch
        %9440 = sbr.rel (%p9438) target = $region52
      $region51: #{tpu_custom_call.1} parent=47 // pred_region
        %s9441 = smul.u32 64, %s23
        %p9442 = scmp.lt.s32.totalorder %s22, 1
        %s9443 = scalar_select %p9442, %s22, 1
        %p9444 = scmp.lt.s32.totalorder %s9441, 63
        %s9445 = scalar_select %p9444, %s9441, 63
        %s9446 = smul.addr %s9443, 64
        %s9447 = sadd.s32 %s9445, %s9446
        %s9448 = smul.addr %s9447, 4
        %s9449 = scalar_lea.vmem %s5, %s9448
      $region52: #{tpu_custom_call.1} parent=47 // pred_fallthru
        _
    $region48: #{tpu_custom_call.1} parent=5 // pred_fallthru
      _
  $region6: #{tpu_custom_call.1} parent=0 // loop_footer
    %s15 = sadd.s32 1, %s11
  $region7: #{tpu_custom_call.1} parent=0 // loop_footer_branch
    %10 = sbr.rel target = $region3
  $region8: #{tpu_custom_call.1} parent=0 // loop_exit
    _

</llo_original>
